<compile_context>
chip_gen: v5e
topology: v5e:2x2
jax: 0.10.0
libtpu: 0.0.40
codegen_flags: <defaults>
</compile_context>

<pallas_src>
import functools

import jax
import jax.numpy as jnp
from jax.experimental import pallas as pl
from jax.experimental.pallas import tpu as pltpu

INPUT_DIM = 256          # ImplicitField(input_dim=256)
HIDDEN = 256             # hidden_dim
NUM_ENC_FN = 6
POS_ENC_DIM = 3 * (1 + 2 * NUM_ENC_FN)   # 39
POS_ENC_PAD = 128        # lane-dense padded width of the encoded coordinates
OUT_PAD = 128            # lane-dense fused (density | albedo) output width
NUM_FUSION_HIDDEN = 4    # num_layers=6 -> 4 hidden Linear+ReLU blocks in fusion_net

# Stacked weight / bias layout for the point MLP (all H x H mats in one operand)
IW_C2, IW_F1, IW_F2, IW_U1A, IW_U1B, IW_CA, IW_CB, IW_UH0 = 0, 1, 2, 3, 4, 5, 6, 7
IB_C1, IB_C2, IB_F1, IB_F2, IB_U1, IB_CA, IB_UH0 = 0, 1, 2, 3, 4, 5, 6
N_WHH = IW_UH0 + NUM_FUSION_HIDDEN      # 11 matrices of [256, 256]
N_BH = IB_UH0 + NUM_FUSION_HIDDEN       # 10 biases of [1, 256]

# 32 MiB: raises v5e's 16 MiB scoped default, equals the v6e/v7x default, and
# leaves headroom on v7x's 64 MiB physical VMEM.  Actual demand at tile=1024 is
# ~13 MiB (streams ~2 MiB double-buffered + ~1.7 MiB weights x2 + f32 temps).
VMEM_LIMIT_BYTES = 32 * 1024 * 1024


def _round_up(x, m):
    return (x + m - 1) // m * m


def _choose_row_tile(m, max_tile=1024):
    """Row tile: as large as possible (<= max_tile), multiple of 8.  Only split
    in two (so dimension_semantics='parallel' can use both v7x TensorCores)
    when each half still fills a 256-row MXU pass; never split small problems
    (that halves MXU row fill and doubles grid overhead on v5e/v6e)."""
    m8 = _round_up(m, 8)
    if m8 <= max_tile:
        half = m8 // 2
        if half >= 256 and half % 8 == 0:
            return half          # grid length 2, each shard still MXU-dense
        return m8                # single exactly-sized tile, no padding
    return max_tile


# --------------------------------------------------------------------------
# Kernel 1: stacked FPN 1x1 conv (as matmul) + folded BatchNorm + ReLU
# One pallas_call covers all three pyramid scales via a leading grid axis.
# Output is written in bfloat16 (this kernel is HBM-bandwidth bound).
# --------------------------------------------------------------------------
def _fpn_transform_kernel(x_ref, w_ref, b_ref, o_ref):
    y = jnp.dot(x_ref[...], w_ref[...], preferred_element_type=jnp.float32)
    o_ref[...] = jnp.maximum(y + b_ref[...], 0.0).astype(o_ref.dtype)


def fpn_transform_stacked(x_stacked, w_stacked, b_stacked, *, max_tile=1024):
    """x_stacked: [S, R, Cin] (rows of small scales zero-padded),
    w_stacked: [S, Cin, Cout] bf16, b_stacked: [S, 1, Cout] f32 (BN folded).
    Returns relu(x @ w + b) per scale, bfloat16, shape [S, R, Cout]."""
    s, r, cin = x_stacked.shape
    cout = w_stacked.shape[-1]
    tile = _choose_row_tile(r, max_tile)
    r_pad = _round_up(r, tile)
    xb = x_stacked.astype(jnp.bfloat16)
    if r_pad != r:
        xb = jnp.pad(xb, ((0, 0), (0, r_pad - r), (0, 0)))

    out = pl.pallas_call(
        _fpn_transform_kernel,
        out_shape=jax.ShapeDtypeStruct((s, r_pad, cout), jnp.bfloat16),
        grid_spec=pltpu.PrefetchScalarGridSpec(
            num_scalar_prefetch=0,
            grid=(s, r_pad // tile),
            in_specs=[
                pl.BlockSpec((None, tile, cin), lambda sc, ri: (sc, ri, 0)),
                pl.BlockSpec((None, cin, cout), lambda sc, ri: (sc, 0, 0)),
                pl.BlockSpec((None, 1, cout), lambda sc, ri: (sc, 0, 0)),
            ],
            out_specs=pl.BlockSpec((None, tile, cout), lambda sc, ri: (sc, ri, 0)),
        ),
        compiler_params=pltpu.CompilerParams(
            dimension_semantics=("arbitrary", "parallel"),
            vmem_limit_bytes=VMEM_LIMIT_BYTES),
    )(xb, w_stacked, b_stacked)
    return out[:, :r]


# --------------------------------------------------------------------------
# Kernel 2: fused per-point MLP stack
#   bilinear sample (interp-matrix matmul) -> coordinate_net -> feature_net
#   -> fusion_net (density) -> color_net (albedo)
# concat([coord_feat, feat_feat]) is realized by splitting first-layer weights
# of fusion_net / color_net in two halves (no in-kernel concat). Density and
# albedo share one lane-dense 128-wide output block.
# --------------------------------------------------------------------------
def _point_mlp_kernel(enc_ref, a_ref, feat_ref, wc1_ref, w_hh, b_h, w_out, b_out,
                      out_ref):
    dot = functools.partial(jnp.dot, preferred_element_type=jnp.float32)
    relu_b = lambda y: jnp.maximum(y, 0.0).astype(jnp.bfloat16)   # bf16 for next matmul

    # sample_features: 4-tap bilinear gather expressed as A @ feature_slab
    samp = dot(a_ref[...], feat_ref[...]).astype(jnp.bfloat16)        # [tile, 256]

    # coordinate_net: Linear(39->H) ReLU Linear(H->H) ReLU (39 padded to 128 lanes)
    c = relu_b(dot(enc_ref[...], wc1_ref[...]) + b_h[IB_C1])
    c = relu_b(dot(c, w_hh[IW_C2]) + b_h[IB_C2])

    # feature_net: Linear(C->H) ReLU Linear(H->H) ReLU
    f = relu_b(dot(samp, w_hh[IW_F1]) + b_h[IB_F1])
    f = relu_b(dot(f, w_hh[IW_F2]) + b_h[IB_F2])

    # fusion_net first layer and color_net hidden layer together, so c and f
    # die before the unrolled hidden loop (shorter live ranges at large tiles).
    h = relu_b(dot(c, w_hh[IW_U1A]) + dot(f, w_hh[IW_U1B]) + b_h[IB_U1])
    ch = relu_b(dot(c, w_hh[IW_CA]) + dot(f, w_hh[IW_CB]) + b_h[IB_CA])

    for l in range(NUM_FUSION_HIDDEN):          # static unroll
        h = relu_b(dot(h, w_hh[IW_UH0 + l]) + b_h[IB_UH0 + l])

    # Lane-dense fused output: lane 0 = density, lanes 1:4 = albedo.
    y = dot(h, w_out[0]) + dot(ch, w_out[1]) + b_out[...]             # [tile, 128] f32
    lane = jax.lax.broadcasted_iota(jnp.int32, y.shape, 1)
    out_ref[...] = jnp.where(lane == 0,
                             jnp.clip(y, -10.0, 10.0),    # torch.clamp(min=-10, max=10)
                             jax.nn.sigmoid(y))           # color_net sigmoid


def point_mlp(enc_pad, interp, feat_slab, p, max_tile=1024):
    """enc_pad: [M, 128] positional encoding (padded), interp: [M, KPAD]
    bilinear interpolation matrix, feat_slab: [KPAD, 256] bf16 fused features.
    Returns (densities [M,1], albedo [M,3])."""
    m = enc_pad.shape[0]
    kpad = interp.shape[1]
    tile = _choose_row_tile(m, max_tile)
    m_pad = _round_up(m, tile)
    enc_b = enc_pad.astype(jnp.bfloat16)
    a_b = interp.astype(jnp.bfloat16)
    if m_pad != m:
        # TODO(synk): masked tail handling would avoid this pad copy for large B*N.
        enc_b = jnp.pad(enc_b, ((0, m_pad - m), (0, 0)))
        a_b = jnp.pad(a_b, ((0, m_pad - m), (0, 0)))

    consts = [feat_slab, p["wc1"], p["w_hh"], p["b_h"], p["w_out"], p["b_out"]]

    def const_spec(a):
        nd = a.ndim
        return pl.BlockSpec(a.shape, lambda i, _nd=nd: (0,) * _nd)

    in_specs = ([pl.BlockSpec((tile, POS_ENC_PAD), lambda i: (i, 0)),
                 pl.BlockSpec((tile, kpad), lambda i: (i, 0))]
                + [const_spec(a) for a in consts])

    out = pl.pallas_call(
        _point_mlp_kernel,
        out_shape=jax.ShapeDtypeStruct((m_pad, OUT_PAD), jnp.float32),
        grid_spec=pltpu.PrefetchScalarGridSpec(
            num_scalar_prefetch=0,
            grid=(m_pad // tile,),
            in_specs=in_specs,
            out_specs=pl.BlockSpec((tile, OUT_PAD), lambda i: (i, 0)),
        ),
        compiler_params=pltpu.CompilerParams(
            dimension_semantics=("parallel",),
            vmem_limit_bytes=VMEM_LIMIT_BYTES),
    )(enc_b, a_b, *consts)
    return out[:m, 0:1], out[:m, 1:4]


# --------------------------------------------------------------------------
# Plain-JAX glue (elementwise / tiny pooling heads / resize)
# --------------------------------------------------------------------------
def positional_encoding_padded(x):
    """x: [B,N,3] -> [B,N,128]; columns 0:39 = [x, sin(x),cos(x), sin(2x),cos(2x),...]
    (torch order), columns 39:128 zero (lane-dense MXU input)."""
    outs = [x]
    for i in range(NUM_ENC_FN):
        freq = 2.0 ** i
        outs.append(jnp.sin(freq * x))
        outs.append(jnp.cos(freq * x))
    enc = jnp.concatenate(outs, axis=-1)
    return jnp.pad(enc, ((0, 0), (0, 0), (0, POS_ENC_PAD - POS_ENC_DIM)))


def build_interp_matrix(points_xy, H, W, kpad):
    """Bilinear grid_sample (align_corners=True, padding_mode='zeros') as a
    sparse interpolation matrix A [B*N, kpad] with 4 nonzeros/row, block-
    diagonal over batches (column = batch*H*W + y*W + x)."""
    B, N, _ = points_xy.shape
    x = (points_xy[..., 0] + 1.0) * 0.5 * (W - 1)   # align_corners=True mapping
    y = (points_xy[..., 1] + 1.0) * 0.5 * (H - 1)
    x0f, y0f = jnp.floor(x), jnp.floor(y)
    wx1, wy1 = x - x0f, y - y0f
    wx0, wy0 = 1.0 - wx1, 1.0 - wy1
    x0, y0 = x0f.astype(jnp.int32), y0f.astype(jnp.int32)
    x1, y1 = x0 + 1, y0 + 1
    boff = (jnp.arange(B, dtype=jnp.int32) * (H * W))[:, None]     # [B,1]
    lane = jnp.arange(kpad, dtype=jnp.int32)

    def tap(ix, iy, w):
        valid = (ix >= 0) & (ix <= W - 1) & (iy >= 0) & (iy <= H - 1)
        idx = boff + jnp.clip(iy, 0, H - 1) * W + jnp.clip(ix, 0, W - 1)   # [B,N]
        w = jnp.where(valid, w, 0.0)
        return (lane[None, None, :] == idx[..., None]).astype(jnp.float32) * w[..., None]

    A = (tap(x0, y0, wx0 * wy0) + tap(x1, y0, wx1 * wy0)
         + tap(x0, y1, wx0 * wy1) + tap(x1, y1, wx1 * wy1))
    return A.reshape(B * N, kpad)


def fpn_forward(features_list, fp):
    """FeaturePyramidFusion.forward, channel-last end-to-end.  The 1x1 conv+BN+
    ReLU of all scales runs in one stacked Pallas call; resize / pooling heads /
    weighted fusion stay in plain JAX (tiny)."""
    feats_nhwc = [jnp.transpose(f, (0, 2, 3, 1)) for f in features_list]   # once
    B, H0, W0, _ = feats_nhwc[0].shape
    rows = [f.shape[0] * f.shape[1] * f.shape[2] for f in feats_nhwc]
    r_max = max(rows)

    xs = []
    for f, r in zip(feats_nhwc, rows):
        x2d = f.reshape(r, f.shape[-1]).astype(jnp.bfloat16)
        xs.append(jnp.pad(x2d, ((0, r_max - r), (0, 0))))
    x_stacked = jnp.stack(xs, axis=0)                                      # [3, Rmax, 256]

    y_stacked = fpn_transform_stacked(x_stacked, fp["transform_w"], fp["transform_b"])

    transformed = []
    for i, f in enumerate(feats_nhwc):
        Bc, H, W, _ = f.shape
        y = y_stacked[i, :rows[i]].astype(jnp.float32).reshape(Bc, H, W, INPUT_DIM)
        if i > 0:   # F.interpolate(..., mode='bilinear', align_corners=False)
            y = jax.image.resize(y, (Bc, H0, W0, INPUT_DIM), method="bilinear")
        transformed.append(y)                                              # NHWC f32

    # per-scale weight predictors: global avg pool + 1x1 conv + sigmoid (tiny)
    logits = []
    for i, t in enumerate(transformed):
        g = t.mean(axis=(1, 2))                                            # [B, 256]
        logits.append(jax.nn.sigmoid(g @ fp["pred_w"][i] + fp["pred_b"][i]))
    wts = jax.nn.softmax(jnp.concatenate(logits, axis=1), axis=1)          # [B, 3]

    fused = sum(t * wts[:, i][:, None, None, None] for i, t in enumerate(transformed))

    # lighting estimator: avg pool -> 256->128 ReLU -> 128->9 (tiny)
    g = fused.mean(axis=(1, 2))
    l = jnp.maximum(g @ fp["light_w1"] + fp["light_b1"], 0.0)
    lighting = l @ fp["light_w2"] + fp["light_b2"]                         # [B, 9]
    return fused, wts, lighting                                            # fused: NHWC


def implicit_field_forward(features_list, points, params):
    """ImplicitField.forward(features_list, points) -> (points, densities, colors)."""
    fused_nhwc, feature_weights, lighting_params = fpn_forward(features_list, params["fpn"])
    B, H0, W0, C = fused_nhwc.shape
    _, N, _ = points.shape
    kpad = _round_up(B * H0 * W0, 128)

    enc = positional_encoding_padded(points).reshape(B * N, POS_ENC_PAD)
    interp = build_interp_matrix(points[..., :2], H0, W0, kpad)            # [B*N, kpad]
    feat_slab = fused_nhwc.reshape(B * H0 * W0, C)
    feat_slab = jnp.pad(feat_slab, ((0, kpad - B * H0 * W0), (0, 0))).astype(jnp.bfloat16)

    dens2d, alb2d = point_mlp(enc, interp, feat_slab, params["mlp"])
    densities = dens2d.reshape(B, N, 1)
    albedo = alb2d.reshape(B, N, 3)

    # TODO(synk): LightingModel is not defined in the reference source and
    # compute_normals needs autograd of densities w.r.t. points (no AD rule for
    # this pallas_call) -> lighting is skipped and colors are returned as albedo.
    colors = albedo
    del feature_weights, lighting_params
    return points, densities, colors


# --------------------------------------------------------------------------
# Deterministic synthetic parameter init (shapes from __init__)
# Matmul weights are stored in bfloat16 (MXU), biases in float32 (epilogue).
# --------------------------------------------------------------------------
def init_params(key):
    keys = iter(jax.random.split(key, 64))

    def dense(shape, scale=0.05):
        return jax.random.normal(next(keys), shape, dtype=jnp.float32) * scale

    H = HIDDEN
    eps = 1e-5
    bn_scale = 1.0 / jnp.sqrt(jnp.float32(1.0 + eps))  # gamma=1, running_var=1 (eval BN fold)
    bf16 = jnp.bfloat16

    fpn = {
        "transform_w": (dense((3, 256, INPUT_DIM)) * bn_scale).astype(bf16),   # stacked
        "transform_b": dense((3, 1, INPUT_DIM), 0.01) * bn_scale,
        "pred_w": [dense((INPUT_DIM, 1)) for _ in range(3)],
        "pred_b": [dense((1,), 0.01) for _ in range(3)],
        "light_w1": dense((INPUT_DIM, 128)),
        "light_b1": dense((128,), 0.01),
        "light_w2": dense((128, 9)),
        "light_b2": dense((9,), 0.01),
    }

    # coordinate-net first layer: pad the 39 real input rows to 128 lane-dense rows.
    wc1 = jnp.zeros((POS_ENC_PAD, H), jnp.float32).at[:POS_ENC_DIM].set(
        dense((POS_ENC_DIM, H))).astype(bf16)

    # all H x H matrices in one stacked operand (fewer DMA descriptors / operands)
    w_hh = dense((N_WHH, H, H)).astype(bf16)          # wc2, wf1, wf2, wu1a, wu1b, wca, wcb, wuh[0..3]
    b_h = dense((N_BH, 1, H), 0.01)                   # bc1, bc2, bf1, bf2, bu1, bca, buh[0..3]

    # fused lane-dense output projection: [0] fusion_net final -> density (lane 0),
    # [1] color_net final -> albedo (lanes 1:4); remaining lanes zero, sliced away.
    w_out = jnp.zeros((2, H, OUT_PAD), jnp.float32)
    w_out = w_out.at[0, :, 0:1].set(dense((H, 1)))
    w_out = w_out.at[1, :, 1:4].set(dense((H, 3)))
    w_out = w_out.astype(bf16)
    b_out = (jnp.zeros((1, OUT_PAD), jnp.float32)
             .at[:, 0:1].set(dense((1, 1), 0.01))
             .at[:, 1:4].set(dense((1, 3), 0.01)))

    mlp = {"wc1": wc1, "w_hh": w_hh, "b_h": b_h, "w_out": w_out, "b_out": b_out}
    return {"fpn": fpn, "mlp": mlp}


if __name__ == "__main__":
    B, N = 2, 64
    key = jax.random.PRNGKey(0)
    k_feat = jax.random.split(key, 4)

    # feature pyramid [C3, C4, C5]: feature_dims=[256,256,256] (fixed by the module)
    features_list = [
        jax.random.normal(k_feat[0], (B, 256, 8, 8), dtype=jnp.float32) * 0.1,
        jax.random.normal(k_feat[1], (B, 256, 4, 4), dtype=jnp.float32) * 0.1,
        jax.random.normal(k_feat[2], (B, 256, 2, 2), dtype=jnp.float32) * 0.1,
    ]
    points = jax.random.uniform(k_feat[3], (B, N, 3), minval=-1.0, maxval=1.0,
                                dtype=jnp.float32)
    params = init_params(jax.random.PRNGKey(42))

    fwd = jax.jit(implicit_field_forward)
    pts, densities, colors = fwd(features_list, points, params)
    jax.block_until_ready((pts, densities, colors))

    assert pts.shape == (B, N, 3)
    assert densities.shape == (B, N, 1)
    assert colors.shape == (B, N, 3)
    assert bool(jnp.all(jnp.isfinite(densities))) and bool(jnp.all(jnp.isfinite(colors)))
    assert bool(jnp.all(densities >= -10.0)) and bool(jnp.all(densities <= 10.0))
    assert bool(jnp.all(colors >= 0.0)) and bool(jnp.all(colors <= 1.0))
    print("KERNEL_OK")
</pallas_src>

<mosaic_0001>
module attributes {stable_mosaic.version = 11 : i64} {
  func.func @_fpn_transform_kernel(%arg0: i32, %arg1: i32, %arg2: memref<1x128x256xbf16, #tpu.memory_space<vmem>>, %arg3: memref<1x256x256xbf16, #tpu.memory_space<vmem>>, %arg4: memref<1x1x256xf32, #tpu.memory_space<vmem>>, %arg5: memref<1x128x256xbf16, #tpu.memory_space<vmem>>) attributes {dimension_semantics = [#tpu.dimension_semantics<arbitrary>, #tpu.dimension_semantics<parallel>], iteration_bounds = array<i64: 3, 1>, scalar_prefetch = 0 : i64, scratch_operands = 0 : i64, tpu.core_type = #tpu.core_type<tc>, window_params = [{transform_indices = @transform_0, window_bounds = array<i64: 1, 128, 256>}, {transform_indices = @transform_1, window_bounds = array<i64: 1, 256, 256>}, {transform_indices = @transform_2, window_bounds = array<i64: 1, 1, 256>}, {transform_indices = @transform_3, window_bounds = array<i64: 1, 128, 256>}]} {
    %c0 = arith.constant 0 : index
    %c0_0 = arith.constant 0 : index
    %c0_1 = arith.constant 0 : index
    %0 = vector.load %arg2[%c0, %c0_0, %c0_1] : memref<1x128x256xbf16, #tpu.memory_space<vmem>>, vector<1x128x256xbf16>
    %1 = vector.shape_cast %0 : vector<1x128x256xbf16> to vector<128x256xbf16>
    %c0_2 = arith.constant 0 : index
    %c0_3 = arith.constant 0 : index
    %c0_4 = arith.constant 0 : index
    %2 = vector.load %arg3[%c0_2, %c0_3, %c0_4] : memref<1x256x256xbf16, #tpu.memory_space<vmem>>, vector<1x256x256xbf16>
    %3 = vector.shape_cast %2 : vector<1x256x256xbf16> to vector<256x256xbf16>
    %cst = arith.constant dense<0.000000e+00> : vector<128x256xf32>
    %4 = tpu.matmul %1, %3, %cst {dimension_numbers = #tpu.dot_dimension_numbers<[1], [0], [0], [1], [0, 0, 1, 1], [], []>} : vector<128x256xbf16>, vector<256x256xbf16>, vector<128x256xf32> -> vector<128x256xf32>
    %c0_5 = arith.constant 0 : index
    %c0_6 = arith.constant 0 : index
    %c0_7 = arith.constant 0 : index
    %5 = vector.load %arg4[%c0_5, %c0_6, %c0_7] : memref<1x1x256xf32, #tpu.memory_space<vmem>>, vector<1x1x256xf32>
    %6 = vector.shape_cast %5 : vector<1x1x256xf32> to vector<1x256xf32>
    %7 = vector.broadcast %6 : vector<1x256xf32> to vector<128x256xf32>
    %8 = arith.addf %4, %7 : vector<128x256xf32>
    %cst_8 = arith.constant 0.000000e+00 : f32
    %9 = vector.broadcast %cst_8 : f32 to vector<128x256xf32>
    %10 = arith.maximumf %8, %9 : vector<128x256xf32>
    %11 = arith.truncf %10 : vector<128x256xf32> to vector<128x256xbf16>
    %c0_9 = arith.constant 0 : index
    %c0_10 = arith.constant 0 : index
    %c0_11 = arith.constant 0 : index
    %12 = vector.load %arg5[%c0_9, %c0_10, %c0_11] : memref<1x128x256xbf16, #tpu.memory_space<vmem>>, vector<1x128x256xbf16>
    %13 = vector.shape_cast %12 : vector<1x128x256xbf16> to vector<128x256xbf16>
    %14 = vector.shape_cast %11 : vector<128x256xbf16> to vector<1x128x256xbf16>
    tpu.vector_store %arg5[%c0_9, %c0_10, %c0_11], %14 {strides = array<i32>} : memref<1x128x256xbf16, #tpu.memory_space<vmem>>, vector<1x128x256xbf16>,
    return
  }
  func.func @transform_0(%arg0: i32, %arg1: i32) -> (i32, i32, i32) {
    %c0_i32 = arith.constant 0 : i32
    %c0_i32_0 = arith.constant 0 : i32
    return %arg0, %arg1, %c0_i32 : i32, i32, i32
  }
  func.func @transform_1(%arg0: i32, %arg1: i32) -> (i32, i32, i32) {
    %c0_i32 = arith.constant 0 : i32
    %c0_i32_0 = arith.constant 0 : i32
    %c0_i32_1 = arith.constant 0 : i32
    return %arg0, %c0_i32, %c0_i32_0 : i32, i32, i32
  }
  func.func @transform_2(%arg0: i32, %arg1: i32) -> (i32, i32, i32) {
    %c0_i32 = arith.constant 0 : i32
    %c0_i32_0 = arith.constant 0 : i32
    %c0_i32_1 = arith.constant 0 : i32
    return %arg0, %c0_i32, %c0_i32_0 : i32, i32, i32
  }
  func.func @transform_3(%arg0: i32, %arg1: i32) -> (i32, i32, i32) {
    %c0_i32 = arith.constant 0 : i32
    %c0_i32_0 = arith.constant 0 : i32
    return %arg0, %arg1, %c0_i32 : i32, i32, i32
  }
}

module attributes {stable_mosaic.version = 11 : i64} {
  func.func @_point_mlp_kernel(%arg0: i32, %arg1: memref<128x128xbf16, #tpu.memory_space<vmem>>, %arg2: memref<128x128xbf16, #tpu.memory_space<vmem>>, %arg3: memref<128x256xbf16, #tpu.memory_space<vmem>>, %arg4: memref<128x256xbf16, #tpu.memory_space<vmem>>, %arg5: memref<11x256x256xbf16, #tpu.memory_space<vmem>>, %arg6: memref<10x1x256xf32, #tpu.memory_space<vmem>>, %arg7: memref<2x256x128xbf16, #tpu.memory_space<vmem>>, %arg8: memref<1x128xf32, #tpu.memory_space<vmem>>, %arg9: memref<128x128xf32, #tpu.memory_space<vmem>>) attributes {dimension_semantics = [#tpu.dimension_semantics<parallel>], iteration_bounds = array<i64: 1>, scalar_prefetch = 0 : i64, scratch_operands = 0 : i64, tpu.core_type = #tpu.core_type<tc>, window_params = [{transform_indices = @transform_0, window_bounds = array<i64: 128, 128>}, {transform_indices = @transform_1, window_bounds = array<i64: 128, 128>}, {pipeline_mode = #tpu.pipeline_mode<synchronous>, transform_indices = @transform_2, window_bounds = array<i64: 128, 256>}, {pipeline_mode = #tpu.pipeline_mode<synchronous>, transform_indices = @transform_3, window_bounds = array<i64: 128, 256>}, {pipeline_mode = #tpu.pipeline_mode<synchronous>, transform_indices = @transform_4, window_bounds = array<i64: 11, 256, 256>}, {pipeline_mode = #tpu.pipeline_mode<synchronous>, transform_indices = @transform_5, window_bounds = array<i64: 10, 1, 256>}, {pipeline_mode = #tpu.pipeline_mode<synchronous>, transform_indices = @transform_6, window_bounds = array<i64: 2, 256, 128>}, {pipeline_mode = #tpu.pipeline_mode<synchronous>, transform_indices = @transform_7, window_bounds = array<i64: 1, 128>}, {transform_indices = @transform_8, window_bounds = array<i64: 128, 128>}]} {
    %c0 = arith.constant 0 : index
    %c0_0 = arith.constant 0 : index
    %0 = vector.load %arg2[%c0, %c0_0] : memref<128x128xbf16, #tpu.memory_space<vmem>>, vector<128x128xbf16>
    %c0_1 = arith.constant 0 : index
    %c0_2 = arith.constant 0 : index
    %1 = vector.load %arg3[%c0_1, %c0_2] : memref<128x256xbf16, #tpu.memory_space<vmem>>, vector<128x256xbf16>
    %cst = arith.constant dense<0.000000e+00> : vector<128x256xf32>
    %2 = tpu.matmul %0, %1, %cst {dimension_numbers = #tpu.dot_dimension_numbers<[1], [0], [0], [1], [0, 0, 1, 1], [], []>} : vector<128x128xbf16>, vector<128x256xbf16>, vector<128x256xf32> -> vector<128x256xf32>
    %3 = arith.truncf %2 : vector<128x256xf32> to vector<128x256xbf16>
    %c0_3 = arith.constant 0 : index
    %c0_4 = arith.constant 0 : index
    %4 = vector.load %arg1[%c0_3, %c0_4] : memref<128x128xbf16, #tpu.memory_space<vmem>>, vector<128x128xbf16>
    %c0_5 = arith.constant 0 : index
    %c0_6 = arith.constant 0 : index
    %5 = vector.load %arg4[%c0_5, %c0_6] : memref<128x256xbf16, #tpu.memory_space<vmem>>, vector<128x256xbf16>
    %cst_7 = arith.constant dense<0.000000e+00> : vector<128x256xf32>
    %6 = tpu.matmul %4, %5, %cst_7 {dimension_numbers = #tpu.dot_dimension_numbers<[1], [0], [0], [1], [0, 0, 1, 1], [], []>} : vector<128x128xbf16>, vector<128x256xbf16>, vector<128x256xf32> -> vector<128x256xf32>
    %c0_8 = arith.constant 0 : index
    %c0_9 = arith.constant 0 : index
    %c0_10 = arith.constant 0 : index
    %7 = vector.load %arg6[%c0_8, %c0_9, %c0_10] : memref<10x1x256xf32, #tpu.memory_space<vmem>>, vector<1x1x256xf32>
    %8 = vector.shape_cast %7 : vector<1x1x256xf32> to vector<1x256xf32>
    %9 = vector.broadcast %8 : vector<1x256xf32> to vector<128x256xf32>
    %10 = arith.addf %6, %9 : vector<128x256xf32>
    %cst_11 = arith.constant 0.000000e+00 : f32
    %11 = vector.broadcast %cst_11 : f32 to vector<128x256xf32>
    %12 = arith.maximumf %10, %11 : vector<128x256xf32>
    %13 = arith.truncf %12 : vector<128x256xf32> to vector<128x256xbf16>
    %c0_12 = arith.constant 0 : index
    %c0_13 = arith.constant 0 : index
    %c0_14 = arith.constant 0 : index
    %14 = vector.load %arg5[%c0_12, %c0_13, %c0_14] : memref<11x256x256xbf16, #tpu.memory_space<vmem>>, vector<1x256x256xbf16>
    %15 = vector.shape_cast %14 : vector<1x256x256xbf16> to vector<256x256xbf16>
    %cst_15 = arith.constant dense<0.000000e+00> : vector<128x256xf32>
    %16 = tpu.matmul %13, %15, %cst_15 {dimension_numbers = #tpu.dot_dimension_numbers<[1], [0], [0], [1], [0, 0, 1, 1], [], []>} : vector<128x256xbf16>, vector<256x256xbf16>, vector<128x256xf32> -> vector<128x256xf32>
    %c1 = arith.constant 1 : index
    %c0_16 = arith.constant 0 : index
    %c0_17 = arith.constant 0 : index
    %17 = vector.load %arg6[%c1, %c0_16, %c0_17] : memref<10x1x256xf32, #tpu.memory_space<vmem>>, vector<1x1x256xf32>
    %18 = vector.shape_cast %17 : vector<1x1x256xf32> to vector<1x256xf32>
    %19 = vector.broadcast %18 : vector<1x256xf32> to vector<128x256xf32>
    %20 = arith.addf %16, %19 : vector<128x256xf32>
    %cst_18 = arith.constant 0.000000e+00 : f32
    %21 = vector.broadcast %cst_18 : f32 to vector<128x256xf32>
    %22 = arith.maximumf %20, %21 : vector<128x256xf32>
    %23 = arith.truncf %22 : vector<128x256xf32> to vector<128x256xbf16>
    %c1_19 = arith.constant 1 : index
    %c0_20 = arith.constant 0 : index
    %c0_21 = arith.constant 0 : index
    %24 = vector.load %arg5[%c1_19, %c0_20, %c0_21] : memref<11x256x256xbf16, #tpu.memory_space<vmem>>, vector<1x256x256xbf16>
    %25 = vector.shape_cast %24 : vector<1x256x256xbf16> to vector<256x256xbf16>
    %cst_22 = arith.constant dense<0.000000e+00> : vector<128x256xf32>
    %26 = tpu.matmul %3, %25, %cst_22 {dimension_numbers = #tpu.dot_dimension_numbers<[1], [0], [0], [1], [0, 0, 1, 1], [], []>} : vector<128x256xbf16>, vector<256x256xbf16>, vector<128x256xf32> -> vector<128x256xf32>
    %c2 = arith.constant 2 : index
    %c0_23 = arith.constant 0 : index
    %c0_24 = arith.constant 0 : index
    %27 = vector.load %arg6[%c2, %c0_23, %c0_24] : memref<10x1x256xf32, #tpu.memory_space<vmem>>, vector<1x1x256xf32>
    %28 = vector.shape_cast %27 : vector<1x1x256xf32> to vector<1x256xf32>
    %29 = vector.broadcast %28 : vector<1x256xf32> to vector<128x256xf32>
    %30 = arith.addf %26, %29 : vector<128x256xf32>
    %cst_25 = arith.constant 0.000000e+00 : f32
    %31 = vector.broadcast %cst_25 : f32 to vector<128x256xf32>
    %32 = arith.maximumf %30, %31 : vector<128x256xf32>
    %33 = arith.truncf %32 : vector<128x256xf32> to vector<128x256xbf16>
    %c2_26 = arith.constant 2 : index
    %c0_27 = arith.constant 0 : index
    %c0_28 = arith.constant 0 : index
    %34 = vector.load %arg5[%c2_26, %c0_27, %c0_28] : memref<11x256x256xbf16, #tpu.memory_space<vmem>>, vector<1x256x256xbf16>
    %35 = vector.shape_cast %34 : vector<1x256x256xbf16> to vector<256x256xbf16>
    %cst_29 = arith.constant dense<0.000000e+00> : vector<128x256xf32>
    %36 = tpu.matmul %33, %35, %cst_29 {dimension_numbers = #tpu.dot_dimension_numbers<[1], [0], [0], [1], [0, 0, 1, 1], [], []>} : vector<128x256xbf16>, vector<256x256xbf16>, vector<128x256xf32> -> vector<128x256xf32>
    %c3 = arith.constant 3 : index
    %c0_30 = arith.constant 0 : index
    %c0_31 = arith.constant 0 : index
    %37 = vector.load %arg6[%c3, %c0_30, %c0_31] : memref<10x1x256xf32, #tpu.memory_space<vmem>>, vector<1x1x256xf32>
    %38 = vector.shape_cast %37 : vector<1x1x256xf32> to vector<1x256xf32>
    %39 = vector.broadcast %38 : vector<1x256xf32> to vector<128x256xf32>
    %40 = arith.addf %36, %39 : vector<128x256xf32>
    %cst_32 = arith.constant 0.000000e+00 : f32
    %41 = vector.broadcast %cst_32 : f32 to vector<128x256xf32>
    %42 = arith.maximumf %40, %41 : vector<128x256xf32>
    %43 = arith.truncf %42 : vector<128x256xf32> to vector<128x256xbf16>
    %c3_33 = arith.constant 3 : index
    %c0_34 = arith.constant 0 : index
    %c0_35 = arith.constant 0 : index
    %44 = vector.load %arg5[%c3_33, %c0_34, %c0_35] : memref<11x256x256xbf16, #tpu.memory_space<vmem>>, vector<1x256x256xbf16>
    %45 = vector.shape_cast %44 : vector<1x256x256xbf16> to vector<256x256xbf16>
    %cst_36 = arith.constant dense<0.000000e+00> : vector<128x256xf32>
    %46 = tpu.matmul %23, %45, %cst_36 {dimension_numbers = #tpu.dot_dimension_numbers<[1], [0], [0], [1], [0, 0, 1, 1], [], []>} : vector<128x256xbf16>, vector<256x256xbf16>, vector<128x256xf32> -> vector<128x256xf32>
    %c4 = arith.constant 4 : index
    %c0_37 = arith.constant 0 : index
    %c0_38 = arith.constant 0 : index
    %47 = vector.load %arg5[%c4, %c0_37, %c0_38] : memref<11x256x256xbf16, #tpu.memory_space<vmem>>, vector<1x256x256xbf16>
    %48 = vector.shape_cast %47 : vector<1x256x256xbf16> to vector<256x256xbf16>
    %cst_39 = arith.constant dense<0.000000e+00> : vector<128x256xf32>
    %49 = tpu.matmul %43, %48, %cst_39 {dimension_numbers = #tpu.dot_dimension_numbers<[1], [0], [0], [1], [0, 0, 1, 1], [], []>} : vector<128x256xbf16>, vector<256x256xbf16>, vector<128x256xf32> -> vector<128x256xf32>
    %50 = arith.addf %46, %49 : vector<128x256xf32>
    %c4_40 = arith.constant 4 : index
    %c0_41 = arith.constant 0 : index
    %c0_42 = arith.constant 0 : index
    %51 = vector.load %arg6[%c4_40, %c0_41, %c0_42] : memref<10x1x256xf32, #tpu.memory_space<vmem>>, vector<1x1x256xf32>
    %52 = vector.shape_cast %51 : vector<1x1x256xf32> to vector<1x256xf32>
    %53 = vector.broadcast %52 : vector<1x256xf32> to vector<128x256xf32>
    %54 = arith.addf %50, %53 : vector<128x256xf32>
    %cst_43 = arith.constant 0.000000e+00 : f32
    %55 = vector.broadcast %cst_43 : f32 to vector<128x256xf32>
    %56 = arith.maximumf %54, %55 : vector<128x256xf32>
    %57 = arith.truncf %56 : vector<128x256xf32> to vector<128x256xbf16>
    %c5 = arith.constant 5 : index
    %c0_44 = arith.constant 0 : index
    %c0_45 = arith.constant 0 : index
    %58 = vector.load %arg5[%c5, %c0_44, %c0_45] : memref<11x256x256xbf16, #tpu.memory_space<vmem>>, vector<1x256x256xbf16>
    %59 = vector.shape_cast %58 : vector<1x256x256xbf16> to vector<256x256xbf16>
    %cst_46 = arith.constant dense<0.000000e+00> : vector<128x256xf32>
    %60 = tpu.matmul %23, %59, %cst_46 {dimension_numbers = #tpu.dot_dimension_numbers<[1], [0], [0], [1], [0, 0, 1, 1], [], []>} : vector<128x256xbf16>, vector<256x256xbf16>, vector<128x256xf32> -> vector<128x256xf32>
    %c6 = arith.constant 6 : index
    %c0_47 = arith.constant 0 : index
    %c0_48 = arith.constant 0 : index
    %61 = vector.load %arg5[%c6, %c0_47, %c0_48] : memref<11x256x256xbf16, #tpu.memory_space<vmem>>, vector<1x256x256xbf16>
    %62 = vector.shape_cast %61 : vector<1x256x256xbf16> to vector<256x256xbf16>
    %cst_49 = arith.constant dense<0.000000e+00> : vector<128x256xf32>
    %63 = tpu.matmul %43, %62, %cst_49 {dimension_numbers = #tpu.dot_dimension_numbers<[1], [0], [0], [1], [0, 0, 1, 1], [], []>} : vector<128x256xbf16>, vector<256x256xbf16>, vector<128x256xf32> -> vector<128x256xf32>
    %64 = arith.addf %60, %63 : vector<128x256xf32>
    %c5_50 = arith.constant 5 : index
    %c0_51 = arith.constant 0 : index
    %c0_52 = arith.constant 0 : index
    %65 = vector.load %arg6[%c5_50, %c0_51, %c0_52] : memref<10x1x256xf32, #tpu.memory_space<vmem>>, vector<1x1x256xf32>
    %66 = vector.shape_cast %65 : vector<1x1x256xf32> to vector<1x256xf32>
    %67 = vector.broadcast %66 : vector<1x256xf32> to vector<128x256xf32>
    %68 = arith.addf %64, %67 : vector<128x256xf32>
    %cst_53 = arith.constant 0.000000e+00 : f32
    %69 = vector.broadcast %cst_53 : f32 to vector<128x256xf32>
    %70 = arith.maximumf %68, %69 : vector<128x256xf32>
    %71 = arith.truncf %70 : vector<128x256xf32> to vector<128x256xbf16>
    %c7 = arith.constant 7 : index
    %c0_54 = arith.constant 0 : index
    %c0_55 = arith.constant 0 : index
    %72 = vector.load %arg5[%c7, %c0_54, %c0_55] : memref<11x256x256xbf16, #tpu.memory_space<vmem>>, vector<1x256x256xbf16>
    %73 = vector.shape_cast %72 : vector<1x256x256xbf16> to vector<256x256xbf16>
    %cst_56 = arith.constant dense<0.000000e+00> : vector<128x256xf32>
    %74 = tpu.matmul %57, %73, %cst_56 {dimension_numbers = #tpu.dot_dimension_numbers<[1], [0], [0], [1], [0, 0, 1, 1], [], []>} : vector<128x256xbf16>, vector<256x256xbf16>, vector<128x256xf32> -> vector<128x256xf32>
    %c6_57 = arith.constant 6 : index
    %c0_58 = arith.constant 0 : index
    %c0_59 = arith.constant 0 : index
    %75 = vector.load %arg6[%c6_57, %c0_58, %c0_59] : memref<10x1x256xf32, #tpu.memory_space<vmem>>, vector<1x1x256xf32>
    %76 = vector.shape_cast %75 : vector<1x1x256xf32> to vector<1x256xf32>
    %77 = vector.broadcast %76 : vector<1x256xf32> to vector<128x256xf32>
    %78 = arith.addf %74, %77 : vector<128x256xf32>
    %cst_60 = arith.constant 0.000000e+00 : f32
    %79 = vector.broadcast %cst_60 : f32 to vector<128x256xf32>
    %80 = arith.maximumf %78, %79 : vector<128x256xf32>
    %81 = arith.truncf %80 : vector<128x256xf32> to vector<128x256xbf16>
    %c8 = arith.constant 8 : index
    %c0_61 = arith.constant 0 : index
    %c0_62 = arith.constant 0 : index
    %82 = vector.load %arg5[%c8, %c0_61, %c0_62] : memref<11x256x256xbf16, #tpu.memory_space<vmem>>, vector<1x256x256xbf16>
    %83 = vector.shape_cast %82 : vector<1x256x256xbf16> to vector<256x256xbf16>
    %cst_63 = arith.constant dense<0.000000e+00> : vector<128x256xf32>
    %84 = tpu.matmul %81, %83, %cst_63 {dimension_numbers = #tpu.dot_dimension_numbers<[1], [0], [0], [1], [0, 0, 1, 1], [], []>} : vector<128x256xbf16>, vector<256x256xbf16>, vector<128x256xf32> -> vector<128x256xf32>
    %c7_64 = arith.constant 7 : index
    %c0_65 = arith.constant 0 : index
    %c0_66 = arith.constant 0 : index
    %85 = vector.load %arg6[%c7_64, %c0_65, %c0_66] : memref<10x1x256xf32, #tpu.memory_space<vmem>>, vector<1x1x256xf32>
    %86 = vector.shape_cast %85 : vector<1x1x256xf32> to vector<1x256xf32>
    %87 = vector.broadcast %86 : vector<1x256xf32> to vector<128x256xf32>
    %88 = arith.addf %84, %87 : vector<128x256xf32>
    %cst_67 = arith.constant 0.000000e+00 : f32
    %89 = vector.broadcast %cst_67 : f32 to vector<128x256xf32>
    %90 = arith.maximumf %88, %89 : vector<128x256xf32>
    %91 = arith.truncf %90 : vector<128x256xf32> to vector<128x256xbf16>
    %c9 = arith.constant 9 : index
    %c0_68 = arith.constant 0 : index
    %c0_69 = arith.constant 0 : index
    %92 = vector.load %arg5[%c9, %c0_68, %c0_69] : memref<11x256x256xbf16, #tpu.memory_space<vmem>>, vector<1x256x256xbf16>
    %93 = vector.shape_cast %92 : vector<1x256x256xbf16> to vector<256x256xbf16>
    %cst_70 = arith.constant dense<0.000000e+00> : vector<128x256xf32>
    %94 = tpu.matmul %91, %93, %cst_70 {dimension_numbers = #tpu.dot_dimension_numbers<[1], [0], [0], [1], [0, 0, 1, 1], [], []>} : vector<128x256xbf16>, vector<256x256xbf16>, vector<128x256xf32> -> vector<128x256xf32>
    %c8_71 = arith.constant 8 : index
    %c0_72 = arith.constant 0 : index
    %c0_73 = arith.constant 0 : index
    %95 = vector.load %arg6[%c8_71, %c0_72, %c0_73] : memref<10x1x256xf32, #tpu.memory_space<vmem>>, vector<1x1x256xf32>
    %96 = vector.shape_cast %95 : vector<1x1x256xf32> to vector<1x256xf32>
    %97 = vector.broadcast %96 : vector<1x256xf32> to vector<128x256xf32>
    %98 = arith.addf %94, %97 : vector<128x256xf32>
    %cst_74 = arith.constant 0.000000e+00 : f32
    %99 = vector.broadcast %cst_74 : f32 to vector<128x256xf32>
    %100 = arith.maximumf %98, %99 : vector<128x256xf32>
    %101 = arith.truncf %100 : vector<128x256xf32> to vector<128x256xbf16>
    %c10 = arith.constant 10 : index
    %c0_75 = arith.constant 0 : index
    %c0_76 = arith.constant 0 : index
    %102 = vector.load %arg5[%c10, %c0_75, %c0_76] : memref<11x256x256xbf16, #tpu.memory_space<vmem>>, vector<1x256x256xbf16>
    %103 = vector.shape_cast %102 : vector<1x256x256xbf16> to vector<256x256xbf16>
    %cst_77 = arith.constant dense<0.000000e+00> : vector<128x256xf32>
    %104 = tpu.matmul %101, %103, %cst_77 {dimension_numbers = #tpu.dot_dimension_numbers<[1], [0], [0], [1], [0, 0, 1, 1], [], []>} : vector<128x256xbf16>, vector<256x256xbf16>, vector<128x256xf32> -> vector<128x256xf32>
    %c9_78 = arith.constant 9 : index
    %c0_79 = arith.constant 0 : index
    %c0_80 = arith.constant 0 : index
    %105 = vector.load %arg6[%c9_78, %c0_79, %c0_80] : memref<10x1x256xf32, #tpu.memory_space<vmem>>, vector<1x1x256xf32>
    %106 = vector.shape_cast %105 : vector<1x1x256xf32> to vector<1x256xf32>
    %107 = vector.broadcast %106 : vector<1x256xf32> to vector<128x256xf32>
    %108 = arith.addf %104, %107 : vector<128x256xf32>
    %cst_81 = arith.constant 0.000000e+00 : f32
    %109 = vector.broadcast %cst_81 : f32 to vector<128x256xf32>
    %110 = arith.maximumf %108, %109 : vector<128x256xf32>
    %111 = arith.truncf %110 : vector<128x256xf32> to vector<128x256xbf16>
    %c0_82 = arith.constant 0 : index
    %c0_83 = arith.constant 0 : index
    %c0_84 = arith.constant 0 : index
    %112 = vector.load %arg7[%c0_82, %c0_83, %c0_84] : memref<2x256x128xbf16, #tpu.memory_space<vmem>>, vector<1x256x128xbf16>
    %113 = vector.shape_cast %112 : vector<1x256x128xbf16> to vector<256x128xbf16>
    %cst_85 = arith.constant dense<0.000000e+00> : vector<128x128xf32>
    %114 = tpu.matmul %111, %113, %cst_85 {dimension_numbers = #tpu.dot_dimension_numbers<[1], [0], [0], [1], [0, 0, 1, 1], [], []>} : vector<128x256xbf16>, vector<256x128xbf16>, vector<128x128xf32> -> vector<128x128xf32>
    %c1_86 = arith.constant 1 : index
    %c0_87 = arith.constant 0 : index
    %c0_88 = arith.constant 0 : index
    %115 = vector.load %arg7[%c1_86, %c0_87, %c0_88] : memref<2x256x128xbf16, #tpu.memory_space<vmem>>, vector<1x256x128xbf16>
    %116 = vector.shape_cast %115 : vector<1x256x128xbf16> to vector<256x128xbf16>
    %cst_89 = arith.constant dense<0.000000e+00> : vector<128x128xf32>
    %117 = tpu.matmul %71, %116, %cst_89 {dimension_numbers = #tpu.dot_dimension_numbers<[1], [0], [0], [1], [0, 0, 1, 1], [], []>} : vector<128x256xbf16>, vector<256x128xbf16>, vector<128x128xf32> -> vector<128x128xf32>
    %118 = arith.addf %114, %117 : vector<128x128xf32>
    %c0_90 = arith.constant 0 : index
    %c0_91 = arith.constant 0 : index
    %119 = vector.load %arg8[%c0_90, %c0_91] : memref<1x128xf32, #tpu.memory_space<vmem>>, vector<1x128xf32>
    %120 = vector.broadcast %119 : vector<1x128xf32> to vector<128x128xf32>
    %121 = arith.addf %118, %120 : vector<128x128xf32>
    %122 = tpu.iota {dimensions = array<i32: 1>} : vector<128x128xi32>
    %c0_i32 = arith.constant 0 : i32
    %123 = vector.broadcast %c0_i32 : i32 to vector<128x128xi32>
    %124 = arith.cmpi eq, %122, %123 : vector<128x128xi32>
    %cst_92 = arith.constant -1.000000e+01 : f32
    %cst_93 = arith.constant 1.000000e+01 : f32
    %125 = vector.broadcast %cst_92 : f32 to vector<128x128xf32>
    %126 = arith.maximumf %125, %121 : vector<128x128xf32>
    %127 = vector.broadcast %cst_93 : f32 to vector<128x128xf32>
    %128 = arith.minimumf %127, %126 : vector<128x128xf32>
    %129 = arith.negf %121 : vector<128x128xf32>
    %130 = math.exp %129 : vector<128x128xf32>
    %cst_94 = arith.constant 1.000000e+00 : f32
    %131 = vector.broadcast %cst_94 : f32 to vector<128x128xf32>
    %132 = arith.addf %131, %130 : vector<128x128xf32>
    %133 = arith.divf %131, %132 : vector<128x128xf32>
    %134 = arith.select %124, %128, %133 : vector<128x128xi1>, vector<128x128xf32>
    %c0_95 = arith.constant 0 : index
    %c0_96 = arith.constant 0 : index
    %135 = vector.load %arg9[%c0_95, %c0_96] : memref<128x128xf32, #tpu.memory_space<vmem>>, vector<128x128xf32>
    tpu.vector_store %arg9[%c0_95, %c0_96], %134 {strides = array<i32>} : memref<128x128xf32, #tpu.memory_space<vmem>>, vector<128x128xf32>,
    return
  }
  func.func @transform_0(%arg0: i32) -> (i32, i32) {
    %c0_i32 = arith.constant 0 : i32
    %c0_i32_0 = arith.constant 0 : i32
    return %arg0, %c0_i32 : i32, i32
  }
  func.func @transform_1(%arg0: i32) -> (i32, i32) {
    %c0_i32 = arith.constant 0 : i32
    %c0_i32_0 = arith.constant 0 : i32
    return %arg0, %c0_i32 : i32, i32
  }
  func.func @transform_2(%arg0: i32) -> (i32, i32) {
    %c0_i32 = arith.constant 0 : i32
    %c0_i32_0 = arith.constant 0 : i32
    %c0_i32_1 = arith.constant 0 : i32
    return %c0_i32, %c0_i32_0 : i32, i32
  }
  func.func @transform_3(%arg0: i32) -> (i32, i32) {
    %c0_i32 = arith.constant 0 : i32
    %c0_i32_0 = arith.constant 0 : i32
    %c0_i32_1 = arith.constant 0 : i32
    return %c0_i32, %c0_i32_0 : i32, i32
  }
  func.func @transform_4(%arg0: i32) -> (i32, i32, i32) {
    %c0_i32 = arith.constant 0 : i32
    %c0_i32_0 = arith.constant 0 : i32
    %c0_i32_1 = arith.constant 0 : i32
    %c0_i32_2 = arith.constant 0 : i32
    return %c0_i32, %c0_i32_0, %c0_i32_1 : i32, i32, i32
  }
  func.func @transform_5(%arg0: i32) -> (i32, i32, i32) {
    %c0_i32 = arith.constant 0 : i32
    %c0_i32_0 = arith.constant 0 : i32
    %c0_i32_1 = arith.constant 0 : i32
    %c0_i32_2 = arith.constant 0 : i32
    return %c0_i32, %c0_i32_0, %c0_i32_1 : i32, i32, i32
  }
  func.func @transform_6(%arg0: i32) -> (i32, i32, i32) {
    %c0_i32 = arith.constant 0 : i32
    %c0_i32_0 = arith.constant 0 : i32
    %c0_i32_1 = arith.constant 0 : i32
    %c0_i32_2 = arith.constant 0 : i32
    return %c0_i32, %c0_i32_0, %c0_i32_1 : i32, i32, i32
  }
  func.func @transform_7(%arg0: i32) -> (i32, i32) {
    %c0_i32 = arith.constant 0 : i32
    %c0_i32_0 = arith.constant 0 : i32
    %c0_i32_1 = arith.constant 0 : i32
    return %c0_i32, %c0_i32_0 : i32, i32
  }
  func.func @transform_8(%arg0: i32) -> (i32, i32) {
    %c0_i32 = arith.constant 0 : i32
    %c0_i32_0 = arith.constant 0 : i32
    return %arg0, %c0_i32 : i32, i32
  }
}

</mosaic_0001>

<llo_original>
// kernel: implicit_field_forward.2
$region0: #{implicit_field_forward.2}
  #allocation0 [shape = 'u32[]', space=smem, size = 0x4, offset = 0x4, fixed_abs, tag = 'smem constant byte address 0x4 - core index']
  #allocation1 [shape = 'u32[72,128]{1,0:T(1,128)}', space=vmem, size = 0x9000, scoped, tag = 'internal scratch']
  %s0 = inlined_call_operand.vmem [shape: bf16[3,128,256], index: 0, kind: input, shape index: {}]
  %s1 = inlined_call_operand.hbm [shape: bf16[3,256,256], index: 1, kind: input, shape index: {}]
  %s2 = inlined_call_operand.hbm [shape: f32[3,1,256], index: 2, kind: input, shape index: {}]
  %s3 = inlined_call_operand.vmem [shape: bf16[3,128,256], index: 3, kind: output, shape index: {}]
  %s4 = sld [smem:[#allocation0]]
  $region53: #{implicit_field_forward.2} parent=0
    _
  %s6 = ssub.s32 1, %s4
  %s7 = scalar_select 0, %s6, %s4
  $region1: #{implicit_field_forward.2} parent=0
    #allocation2 [shape = 'u8[262144]{0}', space=vmem, size = 0x40000, scoped, tag = 'input window, operand 1']
    #allocation3 [shape = 's32[2]{0}', space=sflag, size = 0x8, scoped, tag = 'scoped memory for implicit_field_forward.2']
    #allocation4 [shape = 'u8[2048]{0}', space=vmem, size = 0x800, scoped, tag = 'input window, operand 2']
    #allocation5 [shape = 's32[2]{0}', space=sflag, size = 0x8, scoped, tag = 'scoped memory for implicit_field_forward.2']
    %8 = vsyncpa [#allocation3], 0
    %s9 = scalar_lea.sflag [#allocation3], 1
    %10 = vsyncpa %s9, 0
    %11 = vsyncpa [#allocation5], 0
    %s12 = scalar_lea.sflag [#allocation5], 1
    %13 = vsyncpa %s12, 0
    loop: start=0, step=1, limit=5
    $region2: #{implicit_field_forward.2} parent=1 // loop_pre_header
      _
    $region3: #{implicit_field_forward.2} parent=1 // loop_header
      %s15 = sphi 0, %s19
      %p16 = scmp.ge.s32.totalorder %s15, 5
      %s22 = sphi 0, %s34
      %s23 = sphi 0, %s30
      %s24 = sphi 0, %s22
      %s25 = sphi 0, %s23
      %s26 = sphi 0, %s24
      %s27 = sphi 0, %s25
      %s39 = sphi 0, %s41
      %s42 = sphi 0, %s39
      %s43 = sphi 0, %s42
      %s59 = sphi 0, %s43
      %s65 = sphi 0, %s67
      %s68 = sphi 0, %s65
      %s69 = sphi 0, %s68
      %s85 = sphi 0, %s69
      %s91 = sphi 0, %s93
      %s94 = sphi 0, %s91
      %s95 = sphi 0, %s94
      %s111 = sphi 0, %s95
      %s119 = sphi 0, %s121
      %s122 = sphi 0, %s119
      %s123 = sphi 0, %s122
      %s139 = sphi 0, %s123
    $region4: #{implicit_field_forward.2} parent=1 // loop_header_branch
      %18 = sbr.rel (%p16) target = $region8
    $region5: #{implicit_field_forward.2} parent=1 // loop_body
      %s20 = ssub.s32 %s15, 1
      %s21 = ssub.s32 %s15, 2
      %s28 = sadd.s32 1, %s23
      %p29 = scmp.ge.s32.totalorder %s28, 1
      %s30 = scalar_select %p29, 0, %s28
      %s31 = sadd.s32 1, %s22
      %s32 = scalar_select %p29, %s31, %s22
      %p33 = scmp.ge.s32.totalorder %s32, 3
      %s34 = scalar_select %p33, 0, %s32
      %s35 = ssub.s32 %s22, %s34
      %s36 = ssub.s32 %s23, %s30
      %s37 = sor.u32 %s35, %s36
      %p38 = scmp.eq.s32.totalorder %s37, 0
      %s40 = sadd.s32 %s39, 1
      %s41 = scalar_select %p38, %s39, %s40
      %p44 = pneg %p38
      %p45 = scmp.eq.s32.totalorder %s15, 2
      %p46 = por %p44, %p45
      %p47 = scmp.ne.s32.totalorder %s39, %s42
      %p48 = scmp.eq.s32.totalorder %s15, 0
      %p49 = por %p47, %p48
      %p50 = scmp.ne.s32.totalorder %s39, %s42
      %p51 = scmp.eq.s32.totalorder %s20, 2
      %p52 = por %p50, %p51
      %p53 = scmp.ne.s32.totalorder %s42, %s43
      %p54 = scmp.eq.s32.totalorder %s20, 0
      %p55 = por %p53, %p54
      %p56 = scmp.ne.s32.totalorder %s42, %s43
      %p57 = scmp.eq.s32.totalorder %s21, 2
      %p58 = por %p56, %p57
      %p60 = scmp.ne.s32.totalorder %s43, %s59
      %p61 = scmp.eq.s32.totalorder %s21, 0
      %p62 = por %p60, %p61
      %s63 = ssub.s32 %s22, %s34
      %p64 = scmp.eq.s32.totalorder %s63, 0
      %s66 = sadd.s32 %s65, 1
      %s67 = scalar_select %p64, %s65, %s66
      %p70 = pneg %p64
      %p71 = scmp.eq.s32.totalorder %s15, 2
      %p72 = por %p70, %p71
      %p73 = scmp.ne.s32.totalorder %s65, %s68
      %p74 = scmp.eq.s32.totalorder %s15, 0
      %p75 = por %p73, %p74
      %p76 = scmp.ne.s32.totalorder %s65, %s68
      %p77 = scmp.eq.s32.totalorder %s20, 2
      %p78 = por %p76, %p77
      %p79 = scmp.ne.s32.totalorder %s68, %s69
      %p80 = scmp.eq.s32.totalorder %s20, 0
      %p81 = por %p79, %p80
      %p82 = scmp.ne.s32.totalorder %s68, %s69
      %p83 = scmp.eq.s32.totalorder %s21, 2
      %p84 = por %p82, %p83
      %p86 = scmp.ne.s32.totalorder %s69, %s85
      %p87 = scmp.eq.s32.totalorder %s21, 0
      %p88 = por %p86, %p87
      %s89 = ssub.s32 %s22, %s34
      %p90 = scmp.eq.s32.totalorder %s89, 0
      %s92 = sadd.s32 %s91, 1
      %s93 = scalar_select %p90, %s91, %s92
      %p96 = pneg %p90
      %p97 = scmp.eq.s32.totalorder %s15, 2
      %p98 = por %p96, %p97
      %p99 = scmp.ne.s32.totalorder %s91, %s94
      %p100 = scmp.eq.s32.totalorder %s15, 0
      %p101 = por %p99, %p100
      %p102 = scmp.ne.s32.totalorder %s91, %s94
      %p103 = scmp.eq.s32.totalorder %s20, 2
      %p104 = por %p102, %p103
      %p105 = scmp.ne.s32.totalorder %s94, %s95
      %p106 = scmp.eq.s32.totalorder %s20, 0
      %p107 = por %p105, %p106
      %p108 = scmp.ne.s32.totalorder %s94, %s95
      %p109 = scmp.eq.s32.totalorder %s21, 2
      %p110 = por %p108, %p109
      %p112 = scmp.ne.s32.totalorder %s95, %s111
      %p113 = scmp.eq.s32.totalorder %s21, 0
      %p114 = por %p112, %p113
      %s115 = ssub.s32 %s22, %s34
      %s116 = ssub.s32 %s23, %s30
      %s117 = sor.u32 %s115, %s116
      %p118 = scmp.eq.s32.totalorder %s117, 0
      %s120 = sadd.s32 %s119, 1
      %s121 = scalar_select %p118, %s119, %s120
      %p124 = pneg %p118
      %p125 = scmp.eq.s32.totalorder %s15, 2
      %p126 = por %p124, %p125
      %p127 = scmp.ne.s32.totalorder %s119, %s122
      %p128 = scmp.eq.s32.totalorder %s15, 0
      %p129 = por %p127, %p128
      %p130 = scmp.ne.s32.totalorder %s119, %s122
      %p131 = scmp.eq.s32.totalorder %s20, 2
      %p132 = por %p130, %p131
      %p133 = scmp.ne.s32.totalorder %s122, %s123
      %p134 = scmp.eq.s32.totalorder %s20, 0
      %p135 = por %p133, %p134
      %p136 = scmp.ne.s32.totalorder %s122, %s123
      %p137 = scmp.eq.s32.totalorder %s21, 2
      %p138 = por %p136, %p137
      %p140 = scmp.ne.s32.totalorder %s123, %s139
      %p141 = scmp.eq.s32.totalorder %s21, 0
      %p142 = por %p140, %p141
      %p143 = scmp.le.s32.totalorder 1, %s15
      %p144 = scmp.lt.s32.totalorder %s15, 4
      %p145 = pnand %p143, %p144
      %p146 = pneg %p145
      // Predicated region
      $region9: #{implicit_field_forward.2} parent=5 // pred_check
        _
      $region10: #{implicit_field_forward.2} parent=5 // pred_check_branch
        %148 = sbr.rel (%p145) target = $region12
      $region11: #{implicit_field_forward.2} parent=5 // pred_region
        %s149 = ssub.s32 %s15, 1
      $region12: #{implicit_field_forward.2} parent=5 // pred_fallthru
        _
      %p150 = scmp.lt.s32.totalorder %s15, 3
      // Predicated region
      $region13: #{implicit_field_forward.2} parent=5 // pred_check
        %p151 = pneg %p150
      $region14: #{implicit_field_forward.2} parent=5 // pred_check_branch
        %153 = sbr.rel (%p151) target = $region16
      $region15: #{implicit_field_forward.2} parent=5 // pred_region
        // Predicated region
        $region17: #{implicit_field_forward.2} parent=15 // pred_check
          %p154 = pneg %p49
        $region18: #{implicit_field_forward.2} parent=15 // pred_check_branch
          %156 = sbr.rel (%p154) target = $region20
        $region19: #{implicit_field_forward.2} parent=15 // pred_region
          %s157 = smul.u32 16, %s23
          %p158 = scmp.lt.s32.totalorder %s22, 2
          %s159 = scalar_select %p158, %s22, 2
          %p160 = scmp.lt.s32.totalorder %s157, 15
          %s161 = scalar_select %p160, %s157, 15
          %s162 = smul.addr %s161, 2
          %s163 = smul.addr %s159, 32
          %s164 = sadd.s32 %s162, %s163
          %s165 = smul.addr %s164, 4
          %s166 = scalar_lea.vmem %s0, %s165
          %s167 = smul.u32 16, %s23
        $region20: #{implicit_field_forward.2} parent=15 // pred_fallthru
          _
        // Predicated region
        $region21: #{implicit_field_forward.2} parent=15 // pred_check
          %p168 = pneg %p75
        $region22: #{implicit_field_forward.2} parent=15 // pred_check_branch
          %170 = sbr.rel (%p168) target = $region24
        $region23: #{implicit_field_forward.2} parent=15 // pred_region
          %s171 = sand.u32 %s65, 1
          %s172 = scalar_lea.sflag [#allocation3], %s171
          %s173 = sand.u32 %s65, 1
          %s174 = smul.addr %s173, 256
          %s175 = scalar_lea.vmem [#allocation2], %s174
          %177 = vsyncadd %s172, 0
          %s178 = smul.addr %s22, 64
          %s179 = smul.addr %s178, 4
          %s180 = scalar_lea.hbm %s1, %s179
          %s181 = sshll.u32 %s180, 4
          %s182 = int_to_ptr.hbm [resolvable:$true] %s181
          %s183 = sshll.u32 %s175, 4
          %s184 = int_to_ptr.vmem [resolvable:$true] %s183
          %189 = dma.hbm_to_vmem [thread:$0]  %s182, 4096, %s184, %s172, 128, 128, 8
        $region24: #{implicit_field_forward.2} parent=15 // pred_fallthru
          _
        // Predicated region
        $region25: #{implicit_field_forward.2} parent=15 // pred_check
          %p190 = pneg %p101
        $region26: #{implicit_field_forward.2} parent=15 // pred_check_branch
          %192 = sbr.rel (%p190) target = $region28
        $region27: #{implicit_field_forward.2} parent=15 // pred_region
          %s193 = sand.u32 %s91, 1
          %s194 = scalar_lea.sflag [#allocation5], %s193
          %s195 = sand.u32 %s91, 1
          %s196 = smul.addr %s195, 2
          %s197 = scalar_lea.vmem [#allocation4], %s196
          %199 = vsyncadd %s194, 0
          %s200 = smul.addr %s22, 2
          %s201 = scalar_lea.hbm %s2, %s200
          %s203 = sshll.u32 %s201, 4
          %s204 = int_to_ptr.hbm [resolvable:$true] %s203
          %s205 = sshll.u32 %s197, 4
          %s206 = int_to_ptr.vmem [resolvable:$true] %s205
          %208 = dma.hbm_to_vmem [thread:$0]  %s204, 32, %s206, %s194
        $region28: #{implicit_field_forward.2} parent=15 // pred_fallthru
          _
      $region16: #{implicit_field_forward.2} parent=5 // pred_fallthru
        _
      %p209 = scmp.le.s32.totalorder 1, %s15
      %p210 = scmp.lt.s32.totalorder %s15, 4
      %p211 = pnand %p209, %p210
      %p212 = pneg %p211
      // Predicated region
      $region29: #{implicit_field_forward.2} parent=5 // pred_check
        _
      $region30: #{implicit_field_forward.2} parent=5 // pred_check_branch
        %214 = sbr.rel (%p211) target = $region32
      $region31: #{implicit_field_forward.2} parent=5 // pred_region
        %s215 = ssub.s32 %s15, 1
        %s216 = sand.u32 %s68, 1
        %s217 = scalar_lea.sflag [#allocation3], %s216
        %s218 = sand.u32 %s68, 1
        %s219 = smul.addr %s218, 256
        %s220 = scalar_lea.vmem [#allocation2], %s219
        // Predicated region
        $region33: #{implicit_field_forward.2} parent=31 // pred_check
          %p221 = pneg %p81
        $region34: #{implicit_field_forward.2} parent=31 // pred_check_branch
          %223 = sbr.rel (%p221) target = $region36
        $region35: #{implicit_field_forward.2} parent=31 // pred_region
          %225 = dma.done %s217, 4096
        $region36: #{implicit_field_forward.2} parent=31 // pred_fallthru
          _
        %s226 = sand.u32 %s94, 1
        %s227 = scalar_lea.sflag [#allocation5], %s226
        %s228 = sand.u32 %s94, 1
        %s229 = smul.addr %s228, 2
        %s230 = scalar_lea.vmem [#allocation4], %s229
        // Predicated region
        $region37: #{implicit_field_forward.2} parent=31 // pred_check
          %p231 = pneg %p107
        $region38: #{implicit_field_forward.2} parent=31 // pred_check_branch
          %233 = sbr.rel (%p231) target = $region40
        $region39: #{implicit_field_forward.2} parent=31 // pred_region
          %235 = dma.done %s227, 32
        $region40: #{implicit_field_forward.2} parent=31 // pred_fallthru
          _
        %s236 = smul.u32 16, %s25
        %p237 = scmp.lt.s32.totalorder %s24, 2
        %s238 = scalar_select %p237, %s24, 2
        %p239 = scmp.lt.s32.totalorder %s236, 15
        %s240 = scalar_select %p239, %s236, 15
        %s241 = smul.addr %s240, 2
        %s242 = smul.addr %s238, 32
        %s243 = sadd.s32 %s241, %s242
        %s244 = smul.addr %s243, 4
        %s245 = scalar_lea.vmem %s0, %s244
        %p246 = pneg %p55
        %p247 = pneg %p52
        %s248 = sand.u32 %s68, 1
        %s249 = scalar_lea.sflag [#allocation3], %s248
        %s250 = sand.u32 %s68, 1
        %s251 = smul.addr %s250, 256
        %s252 = scalar_lea.vmem [#allocation2], %s251
        %p253 = pneg %p81
        %p254 = pneg %p78
        %s255 = sand.u32 %s94, 1
        %s256 = scalar_lea.sflag [#allocation5], %s255
        %s257 = sand.u32 %s94, 1
        %s258 = smul.addr %s257, 2
        %s259 = scalar_lea.vmem [#allocation4], %s258
        %p260 = pneg %p107
        %p261 = pneg %p104
        %p262 = pneg %p135
        %p263 = pneg %p132
        %s264 = smul.u32 16, %s25
        %p265 = scmp.lt.s32.totalorder %s24, 2
        %s266 = scalar_select %p265, %s24, 2
        %p267 = scmp.lt.s32.totalorder %s264, 15
        %s268 = scalar_select %p267, %s264, 15
        %s269 = smul.addr %s268, 2
        %s270 = smul.addr %s266, 32
        %s271 = sadd.s32 %s269, %s270
        %s272 = smul.addr %s271, 4
        %s273 = scalar_lea.vmem %s3, %s272
        %s274 = smul.u32 16, %s25
        %p275 = scmp.lt.s32.totalorder %s24, 2
        %s276 = scalar_select %p275, %s24, 2
        %p277 = scmp.lt.s32.totalorder %s274, 15
        %s278 = scalar_select %p277, %s274, 15
        %s279 = smul.addr %s278, 2
        %s280 = smul.addr %s276, 32
        %s281 = sadd.s32 %s279, %s280
        %s282 = smul.addr %s281, 4
        %s283 = scalar_lea.vmem %s0, %s282
        %s284 = smul.u32 16, %s25
        %s285 = smul.u32 16, %s25
        %p286 = scmp.lt.s32.totalorder %s24, 2
        %s287 = scalar_select %p286, %s24, 2
        %p288 = scmp.lt.s32.totalorder %s285, 15
        %s289 = scalar_select %p288, %s285, 15
        %s290 = smul.addr %s289, 2
        %s291 = smul.addr %s287, 32
        %s292 = sadd.s32 %s290, %s291
        %s293 = smul.addr %s292, 4
        %s294 = scalar_lea.vmem %s3, %s293
        %s295 = smul.u32 16, %s25
        %v296 = vld [vmem:[%s283] sm:$0xff]
        %v297 = vld [vmem:[%s283 + $0x8] sm:$0xff]
        %v298 = vld [vmem:[%s283 + $0x10] sm:$0xff]
        %v299 = vld [vmem:[%s283 + $0x18] sm:$0xff]
        %v300 = vld [vmem:[%s283 + $0x20] sm:$0xff]
        %v301 = vld [vmem:[%s283 + $0x28] sm:$0xff]
        %v302 = vld [vmem:[%s283 + $0x30] sm:$0xff]
        %v303 = vld [vmem:[%s283 + $0x38] sm:$0xff]
        %v304 = vld [vmem:[%s283 + $0x40] sm:$0xff]
        %v305 = vld [vmem:[%s283 + $0x48] sm:$0xff]
        %v306 = vld [vmem:[%s283 + $0x50] sm:$0xff]
        %v307 = vld [vmem:[%s283 + $0x58] sm:$0xff]
        %v308 = vld [vmem:[%s283 + $0x60] sm:$0xff]
        %v309 = vld [vmem:[%s283 + $0x68] sm:$0xff]
        %v310 = vld [vmem:[%s283 + $0x70] sm:$0xff]
        %v311 = vld [vmem:[%s283 + $0x78] sm:$0xff]
        %v312 = vld [vmem:[%s220] sm:$0xff]
        %v313 = vld [vmem:[%s220 + $0x8] sm:$0xff]
        %v314 = vld [vmem:[%s220 + $0x10] sm:$0xff]
        %v315 = vld [vmem:[%s220 + $0x18] sm:$0xff]
        %v316 = vld [vmem:[%s220 + $0x20] sm:$0xff]
        %v317 = vld [vmem:[%s220 + $0x28] sm:$0xff]
        %v318 = vld [vmem:[%s220 + $0x30] sm:$0xff]
        %v319 = vld [vmem:[%s220 + $0x38] sm:$0xff]
        %v320 = vld [vmem:[%s220 + $0x40] sm:$0xff]
        %v321 = vld [vmem:[%s220 + $0x48] sm:$0xff]
        %v322 = vld [vmem:[%s220 + $0x50] sm:$0xff]
        %v323 = vld [vmem:[%s220 + $0x58] sm:$0xff]
        %v324 = vld [vmem:[%s220 + $0x60] sm:$0xff]
        %v325 = vld [vmem:[%s220 + $0x68] sm:$0xff]
        %v326 = vld [vmem:[%s220 + $0x70] sm:$0xff]
        %v327 = vld [vmem:[%s220 + $0x78] sm:$0xff]
        %v328 = vld [vmem:[%s220 + $0x80] sm:$0xff]
        %v329 = vld [vmem:[%s220 + $0x88] sm:$0xff]
        %v330 = vld [vmem:[%s220 + $0x90] sm:$0xff]
        %v331 = vld [vmem:[%s220 + $0x98] sm:$0xff]
        %v332 = vld [vmem:[%s220 + $0xa0] sm:$0xff]
        %v333 = vld [vmem:[%s220 + $0xa8] sm:$0xff]
        %v334 = vld [vmem:[%s220 + $0xb0] sm:$0xff]
        %v335 = vld [vmem:[%s220 + $0xb8] sm:$0xff]
        %v336 = vld [vmem:[%s220 + $0xc0] sm:$0xff]
        %v337 = vld [vmem:[%s220 + $0xc8] sm:$0xff]
        %v338 = vld [vmem:[%s220 + $0xd0] sm:$0xff]
        %v339 = vld [vmem:[%s220 + $0xd8] sm:$0xff]
        %v340 = vld [vmem:[%s220 + $0xe0] sm:$0xff]
        %v341 = vld [vmem:[%s220 + $0xe8] sm:$0xff]
        %v342 = vld [vmem:[%s220 + $0xf0] sm:$0xff]
        %v343 = vld [vmem:[%s220 + $0xf8] sm:$0xff]
        %v344 = vld [vmem:[%s230] sm:$0x3]
        %v346 = vperm.slane %v344, 0
        %v347 = vperm.slane %v344, 1
        %v366 = vunpack.c.l.b16 %v296
        %v367 = vunpack.c.h.b16 %v296
        %v368 = vunpack.c.l.b16 %v297
        %v369 = vunpack.c.h.b16 %v297
        %v370 = vunpack.c.l.b16 %v298
        %v371 = vunpack.c.h.b16 %v298
        %v372 = vunpack.c.l.b16 %v299
        %v373 = vunpack.c.h.b16 %v299
        %v374 = vunpack.c.l.b16 %v300
        %v375 = vunpack.c.h.b16 %v300
        %v376 = vunpack.c.l.b16 %v301
        %v377 = vunpack.c.h.b16 %v301
        %v378 = vunpack.c.l.b16 %v302
        %v379 = vunpack.c.h.b16 %v302
        %v380 = vunpack.c.l.b16 %v303
        %v381 = vunpack.c.h.b16 %v303
        %v382 = vunpack.c.l.b16 %v304
        %v383 = vunpack.c.h.b16 %v304
        %v384 = vunpack.c.l.b16 %v305
        %v385 = vunpack.c.h.b16 %v305
        %v386 = vunpack.c.l.b16 %v306
        %v387 = vunpack.c.h.b16 %v306
        %v388 = vunpack.c.l.b16 %v307
        %v389 = vunpack.c.h.b16 %v307
        %v390 = vunpack.c.l.b16 %v308
        %v391 = vunpack.c.h.b16 %v308
        %v392 = vunpack.c.l.b16 %v309
        %v393 = vunpack.c.h.b16 %v309
        %v394 = vunpack.c.l.b16 %v310
        %v395 = vunpack.c.h.b16 %v310
        %v396 = vunpack.c.l.b16 %v311
        %v397 = vunpack.c.h.b16 %v311
        %v398 = vpack.c.b16 %v368, %v366
        %v399 = vpack.c.b16 %v369, %v367
        %v400 = vpack.c.b16 %v372, %v370
        %v401 = vpack.c.b16 %v373, %v371
        %v402 = vpack.c.b16 %v376, %v374
        %v403 = vpack.c.b16 %v377, %v375
        %v404 = vpack.c.b16 %v380, %v378
        %v405 = vpack.c.b16 %v381, %v379
        %v406 = vpack.c.b16 %v384, %v382
        %v407 = vpack.c.b16 %v385, %v383
        %v408 = vpack.c.b16 %v388, %v386
        %v409 = vpack.c.b16 %v389, %v387
        %v410 = vpack.c.b16 %v392, %v390
        %v411 = vpack.c.b16 %v393, %v391
        %v412 = vpack.c.b16 %v396, %v394
        %v413 = vpack.c.b16 %v397, %v395
        %v462 = vunpack.c.l.b16 %v312
        %v463 = vunpack.c.h.b16 %v312
        %v464 = vunpack.c.l.b16 %v313
        %v465 = vunpack.c.h.b16 %v313
        %v466 = vunpack.c.l.b16 %v314
        %v467 = vunpack.c.h.b16 %v314
        %v468 = vunpack.c.l.b16 %v315
        %v469 = vunpack.c.h.b16 %v315
        %v470 = vunpack.c.l.b16 %v316
        %v471 = vunpack.c.h.b16 %v316
        %v472 = vunpack.c.l.b16 %v317
        %v473 = vunpack.c.h.b16 %v317
        %v474 = vunpack.c.l.b16 %v318
        %v475 = vunpack.c.h.b16 %v318
        %v476 = vunpack.c.l.b16 %v319
        %v477 = vunpack.c.h.b16 %v319
        %v478 = vunpack.c.l.b16 %v320
        %v479 = vunpack.c.h.b16 %v320
        %v480 = vunpack.c.l.b16 %v321
        %v481 = vunpack.c.h.b16 %v321
        %v482 = vunpack.c.l.b16 %v322
        %v483 = vunpack.c.h.b16 %v322
        %v484 = vunpack.c.l.b16 %v323
        %v485 = vunpack.c.h.b16 %v323
        %v486 = vunpack.c.l.b16 %v324
        %v487 = vunpack.c.h.b16 %v324
        %v488 = vunpack.c.l.b16 %v325
        %v489 = vunpack.c.h.b16 %v325
        %v490 = vunpack.c.l.b16 %v326
        %v491 = vunpack.c.h.b16 %v326
        %v492 = vunpack.c.l.b16 %v327
        %v493 = vunpack.c.h.b16 %v327
        %v494 = vunpack.c.l.b16 %v328
        %v495 = vunpack.c.h.b16 %v328
        %v496 = vunpack.c.l.b16 %v329
        %v497 = vunpack.c.h.b16 %v329
        %v498 = vunpack.c.l.b16 %v330
        %v499 = vunpack.c.h.b16 %v330
        %v500 = vunpack.c.l.b16 %v331
        %v501 = vunpack.c.h.b16 %v331
        %v502 = vunpack.c.l.b16 %v332
        %v503 = vunpack.c.h.b16 %v332
        %v504 = vunpack.c.l.b16 %v333
        %v505 = vunpack.c.h.b16 %v333
        %v506 = vunpack.c.l.b16 %v334
        %v507 = vunpack.c.h.b16 %v334
        %v508 = vunpack.c.l.b16 %v335
        %v509 = vunpack.c.h.b16 %v335
        %v510 = vunpack.c.l.b16 %v336
        %v511 = vunpack.c.h.b16 %v336
        %v512 = vunpack.c.l.b16 %v337
        %v513 = vunpack.c.h.b16 %v337
        %v514 = vunpack.c.l.b16 %v338
        %v515 = vunpack.c.h.b16 %v338
        %v516 = vunpack.c.l.b16 %v339
        %v517 = vunpack.c.h.b16 %v339
        %v518 = vunpack.c.l.b16 %v340
        %v519 = vunpack.c.h.b16 %v340
        %v520 = vunpack.c.l.b16 %v341
        %v521 = vunpack.c.h.b16 %v341
        %v522 = vunpack.c.l.b16 %v342
        %v523 = vunpack.c.h.b16 %v342
        %v524 = vunpack.c.l.b16 %v343
        %v525 = vunpack.c.h.b16 %v343
        %v526 = vpack.c.b16 %v464, %v462
        %v527 = vpack.c.b16 %v465, %v463
        %v528 = vpack.c.b16 %v468, %v466
        %v529 = vpack.c.b16 %v469, %v467
        %v530 = vpack.c.b16 %v472, %v470
        %v531 = vpack.c.b16 %v473, %v471
        %v532 = vpack.c.b16 %v476, %v474
        %v533 = vpack.c.b16 %v477, %v475
        %v534 = vpack.c.b16 %v480, %v478
        %v535 = vpack.c.b16 %v481, %v479
        %v536 = vpack.c.b16 %v484, %v482
        %v537 = vpack.c.b16 %v485, %v483
        %v538 = vpack.c.b16 %v488, %v486
        %v539 = vpack.c.b16 %v489, %v487
        %v540 = vpack.c.b16 %v492, %v490
        %v541 = vpack.c.b16 %v493, %v491
        %v542 = vpack.c.b16 %v496, %v494
        %v543 = vpack.c.b16 %v497, %v495
        %v544 = vpack.c.b16 %v500, %v498
        %v545 = vpack.c.b16 %v501, %v499
        %v546 = vpack.c.b16 %v504, %v502
        %v547 = vpack.c.b16 %v505, %v503
        %v548 = vpack.c.b16 %v508, %v506
        %v549 = vpack.c.b16 %v509, %v507
        %v550 = vpack.c.b16 %v512, %v510
        %v551 = vpack.c.b16 %v513, %v511
        %v552 = vpack.c.b16 %v516, %v514
        %v553 = vpack.c.b16 %v517, %v515
        %v554 = vpack.c.b16 %v520, %v518
        %v555 = vpack.c.b16 %v521, %v519
        %v556 = vpack.c.b16 %v524, %v522
        %v557 = vpack.c.b16 %v525, %v523
        %590 = vmatpush.bf16.msra.mxu0 %v540
        %591 = vmatpush.bf16.msra.mxu0 %v538
        %592 = vmatpush.bf16.msra.mxu0 %v536
        %593 = vmatpush.bf16.msra.mxu0 %v534
        %594 = vmatpush.bf16.msra.mxu0 %v532
        %595 = vmatpush.bf16.msra.mxu0 %v530
        %596 = vmatpush.bf16.msra.mxu0 %v528
        %597 = vmatpush.bf16.msra.mxu0 %v526
        %598 = vmatmul.bf16.gmra.mxu0 %v398
        %v599 = vpop.f32.mrf.mxu0
        %v600 = vadd.f32 %v346, %v599
        %v601 = vpop.f32.mrf.mxu0
        %v602 = vadd.f32 %v346, %v601
        %603 = vmatmul.bf16.gmra.mxu0 %v400
        %v604 = vpop.f32.mrf.mxu0
        %v605 = vadd.f32 %v346, %v604
        %v606 = vpop.f32.mrf.mxu0
        %v607 = vadd.f32 %v346, %v606
        %608 = vmatmul.bf16.gmra.mxu0 %v402
        %v609 = vpop.f32.mrf.mxu0
        %v610 = vadd.f32 %v346, %v609
        %v611 = vpop.f32.mrf.mxu0
        %v612 = vadd.f32 %v346, %v611
        %613 = vmatmul.bf16.gmra.mxu0 %v404
        %v614 = vpop.f32.mrf.mxu0
        %v615 = vadd.f32 %v346, %v614
        %v616 = vpop.f32.mrf.mxu0
        %v617 = vadd.f32 %v346, %v616
        %618 = vmatmul.bf16.gmra.mxu0 %v406
        %v619 = vpop.f32.mrf.mxu0
        %v620 = vadd.f32 %v346, %v619
        %v621 = vpop.f32.mrf.mxu0
        %v622 = vadd.f32 %v346, %v621
        %623 = vmatmul.bf16.gmra.mxu0 %v408
        %v624 = vpop.f32.mrf.mxu0
        %v625 = vadd.f32 %v346, %v624
        %v626 = vpop.f32.mrf.mxu0
        %v627 = vadd.f32 %v346, %v626
        %628 = vmatmul.bf16.gmra.mxu0 %v410
        %v629 = vpop.f32.mrf.mxu0
        %v630 = vadd.f32 %v346, %v629
        %v631 = vpop.f32.mrf.mxu0
        %v632 = vadd.f32 %v346, %v631
        %633 = vmatmul.bf16.gmra.mxu0 %v412
        %v634 = vpop.f32.mrf.mxu0
        %v635 = vadd.f32 %v346, %v634
        %v636 = vpop.f32.mrf.mxu0
        %v637 = vadd.f32 %v346, %v636
        %638 = vdwg.mxu0
        %639 = vmatpush.bf16.msra.mxu0 %v556
        %640 = vmatpush.bf16.msra.mxu0 %v554
        %641 = vmatpush.bf16.msra.mxu0 %v552
        %642 = vmatpush.bf16.msra.mxu0 %v550
        %643 = vmatpush.bf16.msra.mxu0 %v548
        %644 = vmatpush.bf16.msra.mxu0 %v546
        %645 = vmatpush.bf16.msra.mxu0 %v544
        %646 = vmatpush.bf16.msra.mxu0 %v542
        %647 = vmatmul.bf16.gmra.mxu0 %v399
        %v648 = vpop.f32.mrf.mxu0
        %v649 = vadd.f32 %v600, %v648
        %v650 = vpop.f32.mrf.mxu0
        %v651 = vadd.f32 %v602, %v650
        %652 = vmatmul.bf16.gmra.mxu0 %v401
        %v653 = vpop.f32.mrf.mxu0
        %v654 = vadd.f32 %v605, %v653
        %v655 = vpop.f32.mrf.mxu0
        %v656 = vadd.f32 %v607, %v655
        %657 = vmatmul.bf16.gmra.mxu0 %v403
        %v658 = vpop.f32.mrf.mxu0
        %v659 = vadd.f32 %v610, %v658
        %v660 = vpop.f32.mrf.mxu0
        %v661 = vadd.f32 %v612, %v660
        %662 = vmatmul.bf16.gmra.mxu0 %v405
        %v663 = vpop.f32.mrf.mxu0
        %v664 = vadd.f32 %v615, %v663
        %v665 = vpop.f32.mrf.mxu0
        %v666 = vadd.f32 %v617, %v665
        %667 = vmatmul.bf16.gmra.mxu0 %v407
        %v668 = vpop.f32.mrf.mxu0
        %v669 = vadd.f32 %v620, %v668
        %v670 = vpop.f32.mrf.mxu0
        %v671 = vadd.f32 %v622, %v670
        %672 = vmatmul.bf16.gmra.mxu0 %v409
        %v673 = vpop.f32.mrf.mxu0
        %v674 = vadd.f32 %v625, %v673
        %v675 = vpop.f32.mrf.mxu0
        %v676 = vadd.f32 %v627, %v675
        %677 = vmatmul.bf16.gmra.mxu0 %v411
        %v678 = vpop.f32.mrf.mxu0
        %v679 = vadd.f32 %v630, %v678
        %v680 = vpop.f32.mrf.mxu0
        %v681 = vadd.f32 %v632, %v680
        %682 = vmatmul.bf16.gmra.mxu0 %v413
        %v683 = vpop.f32.mrf.mxu0
        %v684 = vadd.f32 %v635, %v683
        %v685 = vpop.f32.mrf.mxu0
        %v686 = vadd.f32 %v637, %v685
        %687 = vdwg.mxu0
        %688 = vmatpush.bf16.msra.mxu0 %v541
        %689 = vmatpush.bf16.msra.mxu0 %v539
        %690 = vmatpush.bf16.msra.mxu0 %v537
        %691 = vmatpush.bf16.msra.mxu0 %v535
        %692 = vmatpush.bf16.msra.mxu0 %v533
        %693 = vmatpush.bf16.msra.mxu0 %v531
        %694 = vmatpush.bf16.msra.mxu0 %v529
        %695 = vmatpush.bf16.msra.mxu0 %v527
        %696 = vmatmul.bf16.gmra.mxu0 %v398
        %v697 = vpop.f32.mrf.mxu0
        %v698 = vadd.f32 %v347, %v697
        %v699 = vpop.f32.mrf.mxu0
        %v700 = vadd.f32 %v347, %v699
        %701 = vmatmul.bf16.gmra.mxu0 %v400
        %v702 = vpop.f32.mrf.mxu0
        %v703 = vadd.f32 %v347, %v702
        %v704 = vpop.f32.mrf.mxu0
        %v705 = vadd.f32 %v347, %v704
        %706 = vmatmul.bf16.gmra.mxu0 %v402
        %v707 = vpop.f32.mrf.mxu0
        %v708 = vadd.f32 %v347, %v707
        %v709 = vpop.f32.mrf.mxu0
        %v710 = vadd.f32 %v347, %v709
        %711 = vmatmul.bf16.gmra.mxu0 %v404
        %v712 = vpop.f32.mrf.mxu0
        %v713 = vadd.f32 %v347, %v712
        %v714 = vpop.f32.mrf.mxu0
        %v715 = vadd.f32 %v347, %v714
        %716 = vmatmul.bf16.gmra.mxu0 %v406
        %v717 = vpop.f32.mrf.mxu0
        %v718 = vadd.f32 %v347, %v717
        %v719 = vpop.f32.mrf.mxu0
        %v720 = vadd.f32 %v347, %v719
        %721 = vmatmul.bf16.gmra.mxu0 %v408
        %v722 = vpop.f32.mrf.mxu0
        %v723 = vadd.f32 %v347, %v722
        %v724 = vpop.f32.mrf.mxu0
        %v725 = vadd.f32 %v347, %v724
        %726 = vmatmul.bf16.gmra.mxu0 %v410
        %v727 = vpop.f32.mrf.mxu0
        %v728 = vadd.f32 %v347, %v727
        %v729 = vpop.f32.mrf.mxu0
        %v730 = vadd.f32 %v347, %v729
        %731 = vmatmul.bf16.gmra.mxu0 %v412
        %v732 = vpop.f32.mrf.mxu0
        %v733 = vadd.f32 %v347, %v732
        %v734 = vpop.f32.mrf.mxu0
        %v735 = vadd.f32 %v347, %v734
        %736 = vdwg.mxu0
        %737 = vmatpush.bf16.msra.mxu0 %v557
        %738 = vmatpush.bf16.msra.mxu0 %v555
        %739 = vmatpush.bf16.msra.mxu0 %v553
        %740 = vmatpush.bf16.msra.mxu0 %v551
        %741 = vmatpush.bf16.msra.mxu0 %v549
        %742 = vmatpush.bf16.msra.mxu0 %v547
        %743 = vmatpush.bf16.msra.mxu0 %v545
        %744 = vmatpush.bf16.msra.mxu0 %v543
        %745 = vmatmul.bf16.gmra.mxu0 %v399
        %v746 = vpop.f32.mrf.mxu0
        %v747 = vadd.f32 %v698, %v746
        %v748 = vpop.f32.mrf.mxu0
        %v749 = vadd.f32 %v700, %v748
        %750 = vmatmul.bf16.gmra.mxu0 %v401
        %v751 = vpop.f32.mrf.mxu0
        %v752 = vadd.f32 %v703, %v751
        %v753 = vpop.f32.mrf.mxu0
        %v754 = vadd.f32 %v705, %v753
        %755 = vmatmul.bf16.gmra.mxu0 %v403
        %v756 = vpop.f32.mrf.mxu0
        %v757 = vadd.f32 %v708, %v756
        %v758 = vpop.f32.mrf.mxu0
        %v759 = vadd.f32 %v710, %v758
        %760 = vmatmul.bf16.gmra.mxu0 %v405
        %v761 = vpop.f32.mrf.mxu0
        %v762 = vadd.f32 %v713, %v761
        %v763 = vpop.f32.mrf.mxu0
        %v764 = vadd.f32 %v715, %v763
        %765 = vmatmul.bf16.gmra.mxu0 %v407
        %v766 = vpop.f32.mrf.mxu0
        %v767 = vadd.f32 %v718, %v766
        %v768 = vpop.f32.mrf.mxu0
        %v769 = vadd.f32 %v720, %v768
        %770 = vmatmul.bf16.gmra.mxu0 %v409
        %v771 = vpop.f32.mrf.mxu0
        %v772 = vadd.f32 %v723, %v771
        %v773 = vpop.f32.mrf.mxu0
        %v774 = vadd.f32 %v725, %v773
        %775 = vmatmul.bf16.gmra.mxu0 %v411
        %v776 = vpop.f32.mrf.mxu0
        %v777 = vadd.f32 %v728, %v776
        %v778 = vpop.f32.mrf.mxu0
        %v779 = vadd.f32 %v730, %v778
        %780 = vmatmul.bf16.gmra.mxu0 %v413
        %v781 = vpop.f32.mrf.mxu0
        %v782 = vadd.f32 %v733, %v781
        %v783 = vpop.f32.mrf.mxu0
        %v784 = vadd.f32 %v735, %v783
        %785 = vdwg.mxu0
        %v786 = vmax.f32 %v649, 0.0
        %v787 = vmax.f32 %v747, 0.0
        %v788 = vmax.f32 %v651, 0.0
        %v789 = vmax.f32 %v749, 0.0
        %v790 = vmax.f32 %v654, 0.0
        %v791 = vmax.f32 %v752, 0.0
        %v792 = vmax.f32 %v656, 0.0
        %v793 = vmax.f32 %v754, 0.0
        %v794 = vmax.f32 %v659, 0.0
        %v795 = vmax.f32 %v757, 0.0
        %v796 = vmax.f32 %v661, 0.0
        %v797 = vmax.f32 %v759, 0.0
        %v798 = vmax.f32 %v664, 0.0
        %v799 = vmax.f32 %v762, 0.0
        %v800 = vmax.f32 %v666, 0.0
        %v801 = vmax.f32 %v764, 0.0
        %v802 = vmax.f32 %v669, 0.0
        %v803 = vmax.f32 %v767, 0.0
        %v804 = vmax.f32 %v671, 0.0
        %v805 = vmax.f32 %v769, 0.0
        %v806 = vmax.f32 %v674, 0.0
        %v807 = vmax.f32 %v772, 0.0
        %v808 = vmax.f32 %v676, 0.0
        %v809 = vmax.f32 %v774, 0.0
        %v810 = vmax.f32 %v679, 0.0
        %v811 = vmax.f32 %v777, 0.0
        %v812 = vmax.f32 %v681, 0.0
        %v813 = vmax.f32 %v779, 0.0
        %v814 = vmax.f32 %v684, 0.0
        %v815 = vmax.f32 %v782, 0.0
        %v816 = vmax.f32 %v686, 0.0
        %v817 = vmax.f32 %v784, 0.0
        %v818 = vpack.c.bf16 %v787, %v786
        %v819 = vpack.c.bf16 %v789, %v788
        %v820 = vpack.c.bf16 %v791, %v790
        %v821 = vpack.c.bf16 %v793, %v792
        %v822 = vpack.c.bf16 %v795, %v794
        %v823 = vpack.c.bf16 %v797, %v796
        %v824 = vpack.c.bf16 %v799, %v798
        %v825 = vpack.c.bf16 %v801, %v800
        %v826 = vpack.c.bf16 %v803, %v802
        %v827 = vpack.c.bf16 %v805, %v804
        %v828 = vpack.c.bf16 %v807, %v806
        %v829 = vpack.c.bf16 %v809, %v808
        %v830 = vpack.c.bf16 %v811, %v810
        %v831 = vpack.c.bf16 %v813, %v812
        %v832 = vpack.c.bf16 %v815, %v814
        %v833 = vpack.c.bf16 %v817, %v816
        %834 = vst [vmem:[%s294] sm:$0xff] %v818
        %835 = vst [vmem:[%s294 + $0x8] sm:$0xff] %v819
        %836 = vst [vmem:[%s294 + $0x10] sm:$0xff] %v820
        %837 = vst [vmem:[%s294 + $0x18] sm:$0xff] %v821
        %838 = vst [vmem:[%s294 + $0x20] sm:$0xff] %v822
        %839 = vst [vmem:[%s294 + $0x28] sm:$0xff] %v823
        %840 = vst [vmem:[%s294 + $0x30] sm:$0xff] %v824
        %841 = vst [vmem:[%s294 + $0x38] sm:$0xff] %v825
        %842 = vst [vmem:[%s294 + $0x40] sm:$0xff] %v826
        %843 = vst [vmem:[%s294 + $0x48] sm:$0xff] %v827
        %844 = vst [vmem:[%s294 + $0x50] sm:$0xff] %v828
        %845 = vst [vmem:[%s294 + $0x58] sm:$0xff] %v829
        %846 = vst [vmem:[%s294 + $0x60] sm:$0xff] %v830
        %847 = vst [vmem:[%s294 + $0x68] sm:$0xff] %v831
        %848 = vst [vmem:[%s294 + $0x70] sm:$0xff] %v832
        %849 = vst [vmem:[%s294 + $0x78] sm:$0xff] %v833
        %s850 = smul.u32 16, %s25
        %p851 = scmp.lt.s32.totalorder %s24, 2
        %s852 = scalar_select %p851, %s24, 2
        %p853 = scmp.lt.s32.totalorder %s850, 15
        %s854 = scalar_select %p853, %s850, 15
        %s855 = smul.addr %s854, 2
        %s856 = smul.addr %s852, 32
        %s857 = sadd.s32 %s855, %s856
        %s858 = smul.addr %s857, 4
        %s859 = scalar_lea.vmem %s3, %s858
        // Predicated region
        $region41: #{implicit_field_forward.2} parent=31 // pred_check
          %p860 = pneg %p132
        $region42: #{implicit_field_forward.2} parent=31 // pred_check_branch
          %862 = sbr.rel (%p860) target = $region44
        $region43: #{implicit_field_forward.2} parent=31 // pred_region
          %s863 = smul.u32 16, %s25
        $region44: #{implicit_field_forward.2} parent=31 // pred_fallthru
          _
      $region32: #{implicit_field_forward.2} parent=5 // pred_fallthru
        _
      %p864 = scmp.le.s32.totalorder 2, %s15
      // Predicated region
      $region45: #{implicit_field_forward.2} parent=5 // pred_check
        %p865 = pneg %p864
      $region46: #{implicit_field_forward.2} parent=5 // pred_check_branch
        %867 = sbr.rel (%p865) target = $region48
      $region47: #{implicit_field_forward.2} parent=5 // pred_region
        %s868 = ssub.s32 %s15, 2
        // Predicated region
        $region49: #{implicit_field_forward.2} parent=47 // pred_check
          %p869 = pneg %p138
        $region50: #{implicit_field_forward.2} parent=47 // pred_check_branch
          %871 = sbr.rel (%p869) target = $region52
        $region51: #{implicit_field_forward.2} parent=47 // pred_region
          %s872 = smul.u32 16, %s27
          %p873 = scmp.lt.s32.totalorder %s26, 2
          %s874 = scalar_select %p873, %s26, 2
          %p875 = scmp.lt.s32.totalorder %s872, 15
          %s876 = scalar_select %p875, %s872, 15
          %s877 = smul.addr %s876, 2
          %s878 = smul.addr %s874, 32
          %s879 = sadd.s32 %s877, %s878
          %s880 = smul.addr %s879, 4
          %s881 = scalar_lea.vmem %s3, %s880
        $region52: #{implicit_field_forward.2} parent=47 // pred_fallthru
          _
      $region48: #{implicit_field_forward.2} parent=5 // pred_fallthru
        _
    $region6: #{implicit_field_forward.2} parent=1 // loop_footer
      %s19 = sadd.s32 1, %s15
    $region7: #{implicit_field_forward.2} parent=1 // loop_footer_branch
      %14 = sbr.rel target = $region3
    $region8: #{implicit_field_forward.2} parent=1 // loop_exit
      _
    %882 = vsyncpa [#allocation3], 1
    %s883 = scalar_lea.sflag [#allocation3], 1
    %884 = vsyncpa %s883, 1
    %885 = vsyncpa [#allocation5], 1
    %s886 = scalar_lea.sflag [#allocation5], 1
    %887 = vsyncpa %s886, 1

// kernel: implicit_field_forward.3
$region0: #{implicit_field_forward.3}
  #allocation0 [shape = 'u32[]', space=smem, size = 0x4, offset = 0x4, fixed_abs, tag = 'smem constant byte address 0x4 - core index']
  #allocation1 [shape = 'u32[72,128]{1,0:T(1,128)}', space=vmem, size = 0x9000, scoped, tag = 'internal scratch']
  %s0 = inlined_call_operand.vmem [shape: bf16[128,128], index: 0, kind: input, shape index: {}]
  %s1 = inlined_call_operand.vmem [shape: bf16[128,128], index: 1, kind: input, shape index: {}]
  %s2 = inlined_call_operand.vmem [shape: bf16[128,256], index: 2, kind: input, shape index: {}]
  %s3 = inlined_call_operand.vmem [shape: bf16[128,256], index: 3, kind: input, shape index: {}]
  %s4 = inlined_call_operand.vmem [shape: bf16[11,256,256], index: 4, kind: input, shape index: {}]
  %s5 = inlined_call_operand.vmem [shape: f32[10,1,256], index: 5, kind: input, shape index: {}]
  %s6 = inlined_call_operand.vmem [shape: bf16[2,256,128], index: 6, kind: input, shape index: {}]
  %s7 = inlined_call_operand.vmem [shape: f32[1,128], index: 7, kind: input, shape index: {}]
  %s8 = inlined_call_operand.vmem [shape: f32[128,128], index: 8, kind: output, shape index: {}]
  %s9 = sld [smem:[#allocation0]]
  $region42: #{implicit_field_forward.3} parent=0
    _
  %s11 = ssub.s32 1, %s9
  %s12 = scalar_select 0, %s11, %s9
  // Predicated region
  $region2: #{implicit_field_forward.3} parent=0 // pred_check
    _
  $region3: #{implicit_field_forward.3} parent=0 // pred_check_branch
    %14 = sbr.rel (0) target = $region5
  $region4: #{implicit_field_forward.3} parent=0 // pred_region
    _
  $region5: #{implicit_field_forward.3} parent=0 // pred_fallthru
    _
  // Predicated region
  $region6: #{implicit_field_forward.3} parent=0 // pred_check
    _
  $region7: #{implicit_field_forward.3} parent=0 // pred_check_branch
    %16 = sbr.rel (0) target = $region9
  $region8: #{implicit_field_forward.3} parent=0 // pred_region
    _
  $region9: #{implicit_field_forward.3} parent=0 // pred_fallthru
    _
  // Predicated region
  $region10: #{implicit_field_forward.3} parent=0 // pred_check
    _
  $region11: #{implicit_field_forward.3} parent=0 // pred_check_branch
    %18 = sbr.rel (0) target = $region13
  $region12: #{implicit_field_forward.3} parent=0 // pred_region
    _
  $region13: #{implicit_field_forward.3} parent=0 // pred_fallthru
    _
  // Predicated region
  $region14: #{implicit_field_forward.3} parent=0 // pred_check
    _
  $region15: #{implicit_field_forward.3} parent=0 // pred_check_branch
    %20 = sbr.rel (0) target = $region17
  $region16: #{implicit_field_forward.3} parent=0 // pred_region
    _
  $region17: #{implicit_field_forward.3} parent=0 // pred_fallthru
    _
  // Predicated region
  $region18: #{implicit_field_forward.3} parent=0 // pred_check
    _
  $region19: #{implicit_field_forward.3} parent=0 // pred_check_branch
    %22 = sbr.rel (0) target = $region21
  $region20: #{implicit_field_forward.3} parent=0 // pred_region
    _
  $region21: #{implicit_field_forward.3} parent=0 // pred_fallthru
    _
  // Predicated region
  $region22: #{implicit_field_forward.3} parent=0 // pred_check
    _
  $region23: #{implicit_field_forward.3} parent=0 // pred_check_branch
    %24 = sbr.rel (0) target = $region25
  $region24: #{implicit_field_forward.3} parent=0 // pred_region
    _
  $region25: #{implicit_field_forward.3} parent=0 // pred_fallthru
    _
  // Predicated region
  $region26: #{implicit_field_forward.3} parent=0 // pred_check
    _
  $region27: #{implicit_field_forward.3} parent=0 // pred_check_branch
    %26 = sbr.rel (0) target = $region29
  $region28: #{implicit_field_forward.3} parent=0 // pred_region
    _
  $region29: #{implicit_field_forward.3} parent=0 // pred_fallthru
    _
  // Predicated region
  $region30: #{implicit_field_forward.3} parent=0 // pred_check
    _
  $region31: #{implicit_field_forward.3} parent=0 // pred_check_branch
    %28 = sbr.rel (0) target = $region33
  $region32: #{implicit_field_forward.3} parent=0 // pred_region
    _
  $region33: #{implicit_field_forward.3} parent=0 // pred_fallthru
    _
  %v29 = vld [vmem:[%s1] sm:$0xf]
  %v30 = vld [vmem:[%s1 + $0x4] sm:$0xf]
  %v31 = vld [vmem:[%s1 + $0x8] sm:$0xf]
  %v32 = vld [vmem:[%s1 + $0xc] sm:$0xf]
  %v33 = vld [vmem:[%s1 + $0x10] sm:$0xf]
  %v34 = vld [vmem:[%s1 + $0x14] sm:$0xf]
  %v35 = vld [vmem:[%s1 + $0x18] sm:$0xf]
  %v36 = vld [vmem:[%s1 + $0x1c] sm:$0xf]
  %v37 = vld [vmem:[%s1 + $0x20] sm:$0xf]
  %v38 = vld [vmem:[%s1 + $0x24] sm:$0xf]
  %v39 = vld [vmem:[%s1 + $0x28] sm:$0xf]
  %v40 = vld [vmem:[%s1 + $0x2c] sm:$0xf]
  %v41 = vld [vmem:[%s1 + $0x30] sm:$0xf]
  %v42 = vld [vmem:[%s1 + $0x34] sm:$0xf]
  %v43 = vld [vmem:[%s1 + $0x38] sm:$0xf]
  %v44 = vld [vmem:[%s1 + $0x3c] sm:$0xf]
  %v45 = vld [vmem:[%s2] sm:$0xff]
  %v46 = vld [vmem:[%s2 + $0x8] sm:$0xff]
  %v47 = vld [vmem:[%s2 + $0x10] sm:$0xff]
  %v48 = vld [vmem:[%s2 + $0x18] sm:$0xff]
  %v49 = vld [vmem:[%s2 + $0x20] sm:$0xff]
  %v50 = vld [vmem:[%s2 + $0x28] sm:$0xff]
  %v51 = vld [vmem:[%s2 + $0x30] sm:$0xff]
  %v52 = vld [vmem:[%s2 + $0x38] sm:$0xff]
  %v53 = vld [vmem:[%s2 + $0x40] sm:$0xff]
  %v54 = vld [vmem:[%s2 + $0x48] sm:$0xff]
  %v55 = vld [vmem:[%s2 + $0x50] sm:$0xff]
  %v56 = vld [vmem:[%s2 + $0x58] sm:$0xff]
  %v57 = vld [vmem:[%s2 + $0x60] sm:$0xff]
  %v58 = vld [vmem:[%s2 + $0x68] sm:$0xff]
  %v59 = vld [vmem:[%s2 + $0x70] sm:$0xff]
  %v60 = vld [vmem:[%s2 + $0x78] sm:$0xff]
  %v77 = vunpack.c.l.b16 %v29
  %v78 = vunpack.c.l.b16 %v30
  %v79 = vunpack.c.l.b16 %v31
  %v80 = vunpack.c.l.b16 %v32
  %v81 = vunpack.c.l.b16 %v33
  %v82 = vunpack.c.l.b16 %v34
  %v83 = vunpack.c.l.b16 %v35
  %v84 = vunpack.c.l.b16 %v36
  %v85 = vunpack.c.l.b16 %v37
  %v86 = vunpack.c.l.b16 %v38
  %v87 = vunpack.c.l.b16 %v39
  %v88 = vunpack.c.l.b16 %v40
  %v89 = vunpack.c.l.b16 %v41
  %v90 = vunpack.c.l.b16 %v42
  %v91 = vunpack.c.l.b16 %v43
  %v92 = vunpack.c.l.b16 %v44
  %v93 = vpack.c.b16 %v78, %v77
  %v94 = vpack.c.b16 %v80, %v79
  %v95 = vpack.c.b16 %v82, %v81
  %v96 = vpack.c.b16 %v84, %v83
  %v97 = vpack.c.b16 %v86, %v85
  %v98 = vpack.c.b16 %v88, %v87
  %v99 = vpack.c.b16 %v90, %v89
  %v100 = vpack.c.b16 %v92, %v91
  %v125 = vunpack.c.l.b16 %v45
  %v126 = vunpack.c.h.b16 %v45
  %v127 = vunpack.c.l.b16 %v46
  %v128 = vunpack.c.h.b16 %v46
  %v129 = vunpack.c.l.b16 %v47
  %v130 = vunpack.c.h.b16 %v47
  %v131 = vunpack.c.l.b16 %v48
  %v132 = vunpack.c.h.b16 %v48
  %v133 = vunpack.c.l.b16 %v49
  %v134 = vunpack.c.h.b16 %v49
  %v135 = vunpack.c.l.b16 %v50
  %v136 = vunpack.c.h.b16 %v50
  %v137 = vunpack.c.l.b16 %v51
  %v138 = vunpack.c.h.b16 %v51
  %v139 = vunpack.c.l.b16 %v52
  %v140 = vunpack.c.h.b16 %v52
  %v141 = vunpack.c.l.b16 %v53
  %v142 = vunpack.c.h.b16 %v53
  %v143 = vunpack.c.l.b16 %v54
  %v144 = vunpack.c.h.b16 %v54
  %v145 = vunpack.c.l.b16 %v55
  %v146 = vunpack.c.h.b16 %v55
  %v147 = vunpack.c.l.b16 %v56
  %v148 = vunpack.c.h.b16 %v56
  %v149 = vunpack.c.l.b16 %v57
  %v150 = vunpack.c.h.b16 %v57
  %v151 = vunpack.c.l.b16 %v58
  %v152 = vunpack.c.h.b16 %v58
  %v153 = vunpack.c.l.b16 %v59
  %v154 = vunpack.c.h.b16 %v59
  %v155 = vunpack.c.l.b16 %v60
  %v156 = vunpack.c.h.b16 %v60
  %v157 = vpack.c.b16 %v127, %v125
  %v158 = vpack.c.b16 %v128, %v126
  %v159 = vpack.c.b16 %v131, %v129
  %v160 = vpack.c.b16 %v132, %v130
  %v161 = vpack.c.b16 %v135, %v133
  %v162 = vpack.c.b16 %v136, %v134
  %v163 = vpack.c.b16 %v139, %v137
  %v164 = vpack.c.b16 %v140, %v138
  %v165 = vpack.c.b16 %v143, %v141
  %v166 = vpack.c.b16 %v144, %v142
  %v167 = vpack.c.b16 %v147, %v145
  %v168 = vpack.c.b16 %v148, %v146
  %v169 = vpack.c.b16 %v151, %v149
  %v170 = vpack.c.b16 %v152, %v150
  %v171 = vpack.c.b16 %v155, %v153
  %v172 = vpack.c.b16 %v156, %v154
  %189 = vmatpush.bf16.msra.mxu0 %v171
  %190 = vmatpush.bf16.msra.mxu0 %v169
  %191 = vmatpush.bf16.msra.mxu0 %v167
  %192 = vmatpush.bf16.msra.mxu0 %v165
  %193 = vmatpush.bf16.msra.mxu0 %v163
  %194 = vmatpush.bf16.msra.mxu0 %v161
  %195 = vmatpush.bf16.msra.mxu0 %v159
  %196 = vmatpush.bf16.msra.mxu0 %v157
  %197 = vmatmul.bf16.gmra.mxu0 %v93
  %v198 = vpop.f32.mrf.mxu0
  %v199 = vadd.f32 0.0, %v198
  %v200 = vpop.f32.mrf.mxu0
  %v201 = vadd.f32 0.0, %v200
  %202 = vmatmul.bf16.gmra.mxu0 %v94
  %v203 = vpop.f32.mrf.mxu0
  %v204 = vadd.f32 0.0, %v203
  %v205 = vpop.f32.mrf.mxu0
  %v206 = vadd.f32 0.0, %v205
  %207 = vmatmul.bf16.gmra.mxu0 %v95
  %v208 = vpop.f32.mrf.mxu0
  %v209 = vadd.f32 0.0, %v208
  %v210 = vpop.f32.mrf.mxu0
  %v211 = vadd.f32 0.0, %v210
  %212 = vmatmul.bf16.gmra.mxu0 %v96
  %v213 = vpop.f32.mrf.mxu0
  %v214 = vadd.f32 0.0, %v213
  %v215 = vpop.f32.mrf.mxu0
  %v216 = vadd.f32 0.0, %v215
  %217 = vmatmul.bf16.gmra.mxu0 %v97
  %v218 = vpop.f32.mrf.mxu0
  %v219 = vadd.f32 0.0, %v218
  %v220 = vpop.f32.mrf.mxu0
  %v221 = vadd.f32 0.0, %v220
  %222 = vmatmul.bf16.gmra.mxu0 %v98
  %v223 = vpop.f32.mrf.mxu0
  %v224 = vadd.f32 0.0, %v223
  %v225 = vpop.f32.mrf.mxu0
  %v226 = vadd.f32 0.0, %v225
  %227 = vmatmul.bf16.gmra.mxu0 %v99
  %v228 = vpop.f32.mrf.mxu0
  %v229 = vadd.f32 0.0, %v228
  %v230 = vpop.f32.mrf.mxu0
  %v231 = vadd.f32 0.0, %v230
  %232 = vmatmul.bf16.gmra.mxu0 %v100
  %v233 = vpop.f32.mrf.mxu0
  %v234 = vadd.f32 0.0, %v233
  %v235 = vpop.f32.mrf.mxu0
  %v236 = vadd.f32 0.0, %v235
  %237 = vdwg.mxu0
  %238 = vmatpush.bf16.msra.mxu0 %v172
  %239 = vmatpush.bf16.msra.mxu0 %v170
  %240 = vmatpush.bf16.msra.mxu0 %v168
  %241 = vmatpush.bf16.msra.mxu0 %v166
  %242 = vmatpush.bf16.msra.mxu0 %v164
  %243 = vmatpush.bf16.msra.mxu0 %v162
  %244 = vmatpush.bf16.msra.mxu0 %v160
  %245 = vmatpush.bf16.msra.mxu0 %v158
  %246 = vmatmul.bf16.gmra.mxu0 %v93
  %v247 = vpop.f32.mrf.mxu0
  %v248 = vadd.f32 0.0, %v247
  %v249 = vpop.f32.mrf.mxu0
  %v250 = vadd.f32 0.0, %v249
  %251 = vmatmul.bf16.gmra.mxu0 %v94
  %v252 = vpop.f32.mrf.mxu0
  %v253 = vadd.f32 0.0, %v252
  %v254 = vpop.f32.mrf.mxu0
  %v255 = vadd.f32 0.0, %v254
  %256 = vmatmul.bf16.gmra.mxu0 %v95
  %v257 = vpop.f32.mrf.mxu0
  %v258 = vadd.f32 0.0, %v257
  %v259 = vpop.f32.mrf.mxu0
  %v260 = vadd.f32 0.0, %v259
  %261 = vmatmul.bf16.gmra.mxu0 %v96
  %v262 = vpop.f32.mrf.mxu0
  %v263 = vadd.f32 0.0, %v262
  %v264 = vpop.f32.mrf.mxu0
  %v265 = vadd.f32 0.0, %v264
  %266 = vmatmul.bf16.gmra.mxu0 %v97
  %v267 = vpop.f32.mrf.mxu0
  %v268 = vadd.f32 0.0, %v267
  %v269 = vpop.f32.mrf.mxu0
  %v270 = vadd.f32 0.0, %v269
  %271 = vmatmul.bf16.gmra.mxu0 %v98
  %v272 = vpop.f32.mrf.mxu0
  %v273 = vadd.f32 0.0, %v272
  %v274 = vpop.f32.mrf.mxu0
  %v275 = vadd.f32 0.0, %v274
  %276 = vmatmul.bf16.gmra.mxu0 %v99
  %v277 = vpop.f32.mrf.mxu0
  %v278 = vadd.f32 0.0, %v277
  %v279 = vpop.f32.mrf.mxu0
  %v280 = vadd.f32 0.0, %v279
  %281 = vmatmul.bf16.gmra.mxu0 %v100
  %v282 = vpop.f32.mrf.mxu0
  %v283 = vadd.f32 0.0, %v282
  %v284 = vpop.f32.mrf.mxu0
  %v285 = vadd.f32 0.0, %v284
  %286 = vdwg.mxu0
  %v287 = vpack.c.bf16 %v201, %v199
  %v288 = vpack.c.bf16 %v250, %v248
  %v289 = vpack.c.bf16 %v206, %v204
  %v290 = vpack.c.bf16 %v255, %v253
  %v291 = vpack.c.bf16 %v211, %v209
  %v292 = vpack.c.bf16 %v260, %v258
  %v293 = vpack.c.bf16 %v216, %v214
  %v294 = vpack.c.bf16 %v265, %v263
  %v295 = vpack.c.bf16 %v221, %v219
  %v296 = vpack.c.bf16 %v270, %v268
  %v297 = vpack.c.bf16 %v226, %v224
  %v298 = vpack.c.bf16 %v275, %v273
  %v299 = vpack.c.bf16 %v231, %v229
  %v300 = vpack.c.bf16 %v280, %v278
  %v301 = vpack.c.bf16 %v236, %v234
  %v302 = vpack.c.bf16 %v285, %v283
  %v303 = vld [vmem:[%s0] sm:$0xf]
  %v304 = vld [vmem:[%s0 + $0x4] sm:$0xf]
  %v305 = vld [vmem:[%s0 + $0x8] sm:$0xf]
  %v306 = vld [vmem:[%s0 + $0xc] sm:$0xf]
  %v307 = vld [vmem:[%s0 + $0x10] sm:$0xf]
  %v308 = vld [vmem:[%s0 + $0x14] sm:$0xf]
  %v309 = vld [vmem:[%s0 + $0x18] sm:$0xf]
  %v310 = vld [vmem:[%s0 + $0x1c] sm:$0xf]
  %v311 = vld [vmem:[%s0 + $0x20] sm:$0xf]
  %v312 = vld [vmem:[%s0 + $0x24] sm:$0xf]
  %v313 = vld [vmem:[%s0 + $0x28] sm:$0xf]
  %v314 = vld [vmem:[%s0 + $0x2c] sm:$0xf]
  %v315 = vld [vmem:[%s0 + $0x30] sm:$0xf]
  %v316 = vld [vmem:[%s0 + $0x34] sm:$0xf]
  %v317 = vld [vmem:[%s0 + $0x38] sm:$0xf]
  %v318 = vld [vmem:[%s0 + $0x3c] sm:$0xf]
  %v319 = vld [vmem:[%s3] sm:$0xff]
  %v320 = vld [vmem:[%s3 + $0x8] sm:$0xff]
  %v321 = vld [vmem:[%s3 + $0x10] sm:$0xff]
  %v322 = vld [vmem:[%s3 + $0x18] sm:$0xff]
  %v323 = vld [vmem:[%s3 + $0x20] sm:$0xff]
  %v324 = vld [vmem:[%s3 + $0x28] sm:$0xff]
  %v325 = vld [vmem:[%s3 + $0x30] sm:$0xff]
  %v326 = vld [vmem:[%s3 + $0x38] sm:$0xff]
  %v327 = vld [vmem:[%s3 + $0x40] sm:$0xff]
  %v328 = vld [vmem:[%s3 + $0x48] sm:$0xff]
  %v329 = vld [vmem:[%s3 + $0x50] sm:$0xff]
  %v330 = vld [vmem:[%s3 + $0x58] sm:$0xff]
  %v331 = vld [vmem:[%s3 + $0x60] sm:$0xff]
  %v332 = vld [vmem:[%s3 + $0x68] sm:$0xff]
  %v333 = vld [vmem:[%s3 + $0x70] sm:$0xff]
  %v334 = vld [vmem:[%s3 + $0x78] sm:$0xff]
  %v335 = vld [vmem:[%s5] sm:$0x3]
  %v337 = vperm.slane %v335, 0
  %v338 = vperm.slane %v335, 1
  %v357 = vunpack.c.l.b16 %v303
  %v358 = vunpack.c.l.b16 %v304
  %v359 = vunpack.c.l.b16 %v305
  %v360 = vunpack.c.l.b16 %v306
  %v361 = vunpack.c.l.b16 %v307
  %v362 = vunpack.c.l.b16 %v308
  %v363 = vunpack.c.l.b16 %v309
  %v364 = vunpack.c.l.b16 %v310
  %v365 = vunpack.c.l.b16 %v311
  %v366 = vunpack.c.l.b16 %v312
  %v367 = vunpack.c.l.b16 %v313
  %v368 = vunpack.c.l.b16 %v314
  %v369 = vunpack.c.l.b16 %v315
  %v370 = vunpack.c.l.b16 %v316
  %v371 = vunpack.c.l.b16 %v317
  %v372 = vunpack.c.l.b16 %v318
  %v373 = vpack.c.b16 %v358, %v357
  %v374 = vpack.c.b16 %v360, %v359
  %v375 = vpack.c.b16 %v362, %v361
  %v376 = vpack.c.b16 %v364, %v363
  %v377 = vpack.c.b16 %v366, %v365
  %v378 = vpack.c.b16 %v368, %v367
  %v379 = vpack.c.b16 %v370, %v369
  %v380 = vpack.c.b16 %v372, %v371
  %v405 = vunpack.c.l.b16 %v319
  %v406 = vunpack.c.h.b16 %v319
  %v407 = vunpack.c.l.b16 %v320
  %v408 = vunpack.c.h.b16 %v320
  %v409 = vunpack.c.l.b16 %v321
  %v410 = vunpack.c.h.b16 %v321
  %v411 = vunpack.c.l.b16 %v322
  %v412 = vunpack.c.h.b16 %v322
  %v413 = vunpack.c.l.b16 %v323
  %v414 = vunpack.c.h.b16 %v323
  %v415 = vunpack.c.l.b16 %v324
  %v416 = vunpack.c.h.b16 %v324
  %v417 = vunpack.c.l.b16 %v325
  %v418 = vunpack.c.h.b16 %v325
  %v419 = vunpack.c.l.b16 %v326
  %v420 = vunpack.c.h.b16 %v326
  %v421 = vunpack.c.l.b16 %v327
  %v422 = vunpack.c.h.b16 %v327
  %v423 = vunpack.c.l.b16 %v328
  %v424 = vunpack.c.h.b16 %v328
  %v425 = vunpack.c.l.b16 %v329
  %v426 = vunpack.c.h.b16 %v329
  %v427 = vunpack.c.l.b16 %v330
  %v428 = vunpack.c.h.b16 %v330
  %v429 = vunpack.c.l.b16 %v331
  %v430 = vunpack.c.h.b16 %v331
  %v431 = vunpack.c.l.b16 %v332
  %v432 = vunpack.c.h.b16 %v332
  %v433 = vunpack.c.l.b16 %v333
  %v434 = vunpack.c.h.b16 %v333
  %v435 = vunpack.c.l.b16 %v334
  %v436 = vunpack.c.h.b16 %v334
  %v437 = vpack.c.b16 %v407, %v405
  %v438 = vpack.c.b16 %v408, %v406
  %v439 = vpack.c.b16 %v411, %v409
  %v440 = vpack.c.b16 %v412, %v410
  %v441 = vpack.c.b16 %v415, %v413
  %v442 = vpack.c.b16 %v416, %v414
  %v443 = vpack.c.b16 %v419, %v417
  %v444 = vpack.c.b16 %v420, %v418
  %v445 = vpack.c.b16 %v423, %v421
  %v446 = vpack.c.b16 %v424, %v422
  %v447 = vpack.c.b16 %v427, %v425
  %v448 = vpack.c.b16 %v428, %v426
  %v449 = vpack.c.b16 %v431, %v429
  %v450 = vpack.c.b16 %v432, %v430
  %v451 = vpack.c.b16 %v435, %v433
  %v452 = vpack.c.b16 %v436, %v434
  %469 = vmatpush.bf16.msra.mxu0 %v451
  %470 = vmatpush.bf16.msra.mxu0 %v449
  %471 = vmatpush.bf16.msra.mxu0 %v447
  %472 = vmatpush.bf16.msra.mxu0 %v445
  %473 = vmatpush.bf16.msra.mxu0 %v443
  %474 = vmatpush.bf16.msra.mxu0 %v441
  %475 = vmatpush.bf16.msra.mxu0 %v439
  %476 = vmatpush.bf16.msra.mxu0 %v437
  %477 = vmatmul.bf16.gmra.mxu0 %v373
  %v478 = vpop.f32.mrf.mxu0
  %v479 = vadd.f32 %v337, %v478
  %v480 = vpop.f32.mrf.mxu0
  %v481 = vadd.f32 %v337, %v480
  %482 = vmatmul.bf16.gmra.mxu0 %v374
  %v483 = vpop.f32.mrf.mxu0
  %v484 = vadd.f32 %v337, %v483
  %v485 = vpop.f32.mrf.mxu0
  %v486 = vadd.f32 %v337, %v485
  %487 = vmatmul.bf16.gmra.mxu0 %v375
  %v488 = vpop.f32.mrf.mxu0
  %v489 = vadd.f32 %v337, %v488
  %v490 = vpop.f32.mrf.mxu0
  %v491 = vadd.f32 %v337, %v490
  %492 = vmatmul.bf16.gmra.mxu0 %v376
  %v493 = vpop.f32.mrf.mxu0
  %v494 = vadd.f32 %v337, %v493
  %v495 = vpop.f32.mrf.mxu0
  %v496 = vadd.f32 %v337, %v495
  %497 = vmatmul.bf16.gmra.mxu0 %v377
  %v498 = vpop.f32.mrf.mxu0
  %v499 = vadd.f32 %v337, %v498
  %v500 = vpop.f32.mrf.mxu0
  %v501 = vadd.f32 %v337, %v500
  %502 = vmatmul.bf16.gmra.mxu0 %v378
  %v503 = vpop.f32.mrf.mxu0
  %v504 = vadd.f32 %v337, %v503
  %v505 = vpop.f32.mrf.mxu0
  %v506 = vadd.f32 %v337, %v505
  %507 = vmatmul.bf16.gmra.mxu0 %v379
  %v508 = vpop.f32.mrf.mxu0
  %v509 = vadd.f32 %v337, %v508
  %v510 = vpop.f32.mrf.mxu0
  %v511 = vadd.f32 %v337, %v510
  %512 = vmatmul.bf16.gmra.mxu0 %v380
  %v513 = vpop.f32.mrf.mxu0
  %v514 = vadd.f32 %v337, %v513
  %v515 = vpop.f32.mrf.mxu0
  %v516 = vadd.f32 %v337, %v515
  %517 = vdwg.mxu0
  %518 = vmatpush.bf16.msra.mxu0 %v452
  %519 = vmatpush.bf16.msra.mxu0 %v450
  %520 = vmatpush.bf16.msra.mxu0 %v448
  %521 = vmatpush.bf16.msra.mxu0 %v446
  %522 = vmatpush.bf16.msra.mxu0 %v444
  %523 = vmatpush.bf16.msra.mxu0 %v442
  %524 = vmatpush.bf16.msra.mxu0 %v440
  %525 = vmatpush.bf16.msra.mxu0 %v438
  %526 = vmatmul.bf16.gmra.mxu0 %v373
  %v527 = vpop.f32.mrf.mxu0
  %v528 = vadd.f32 %v338, %v527
  %v529 = vpop.f32.mrf.mxu0
  %v530 = vadd.f32 %v338, %v529
  %531 = vmatmul.bf16.gmra.mxu0 %v374
  %v532 = vpop.f32.mrf.mxu0
  %v533 = vadd.f32 %v338, %v532
  %v534 = vpop.f32.mrf.mxu0
  %v535 = vadd.f32 %v338, %v534
  %536 = vmatmul.bf16.gmra.mxu0 %v375
  %v537 = vpop.f32.mrf.mxu0
  %v538 = vadd.f32 %v338, %v537
  %v539 = vpop.f32.mrf.mxu0
  %v540 = vadd.f32 %v338, %v539
  %541 = vmatmul.bf16.gmra.mxu0 %v376
  %v542 = vpop.f32.mrf.mxu0
  %v543 = vadd.f32 %v338, %v542
  %v544 = vpop.f32.mrf.mxu0
  %v545 = vadd.f32 %v338, %v544
  %546 = vmatmul.bf16.gmra.mxu0 %v377
  %v547 = vpop.f32.mrf.mxu0
  %v548 = vadd.f32 %v338, %v547
  %v549 = vpop.f32.mrf.mxu0
  %v550 = vadd.f32 %v338, %v549
  %551 = vmatmul.bf16.gmra.mxu0 %v378
  %v552 = vpop.f32.mrf.mxu0
  %v553 = vadd.f32 %v338, %v552
  %v554 = vpop.f32.mrf.mxu0
  %v555 = vadd.f32 %v338, %v554
  %556 = vmatmul.bf16.gmra.mxu0 %v379
  %v557 = vpop.f32.mrf.mxu0
  %v558 = vadd.f32 %v338, %v557
  %v559 = vpop.f32.mrf.mxu0
  %v560 = vadd.f32 %v338, %v559
  %561 = vmatmul.bf16.gmra.mxu0 %v380
  %v562 = vpop.f32.mrf.mxu0
  %v563 = vadd.f32 %v338, %v562
  %v564 = vpop.f32.mrf.mxu0
  %v565 = vadd.f32 %v338, %v564
  %566 = vdwg.mxu0
  %v567 = vmax.f32 %v479, 0.0
  %v568 = vmax.f32 %v528, 0.0
  %v569 = vmax.f32 %v481, 0.0
  %v570 = vmax.f32 %v530, 0.0
  %v571 = vmax.f32 %v484, 0.0
  %v572 = vmax.f32 %v533, 0.0
  %v573 = vmax.f32 %v486, 0.0
  %v574 = vmax.f32 %v535, 0.0
  %v575 = vmax.f32 %v489, 0.0
  %v576 = vmax.f32 %v538, 0.0
  %v577 = vmax.f32 %v491, 0.0
  %v578 = vmax.f32 %v540, 0.0
  %v579 = vmax.f32 %v494, 0.0
  %v580 = vmax.f32 %v543, 0.0
  %v581 = vmax.f32 %v496, 0.0
  %v582 = vmax.f32 %v545, 0.0
  %v583 = vmax.f32 %v499, 0.0
  %v584 = vmax.f32 %v548, 0.0
  %v585 = vmax.f32 %v501, 0.0
  %v586 = vmax.f32 %v550, 0.0
  %v587 = vmax.f32 %v504, 0.0
  %v588 = vmax.f32 %v553, 0.0
  %v589 = vmax.f32 %v506, 0.0
  %v590 = vmax.f32 %v555, 0.0
  %v591 = vmax.f32 %v509, 0.0
  %v592 = vmax.f32 %v558, 0.0
  %v593 = vmax.f32 %v511, 0.0
  %v594 = vmax.f32 %v560, 0.0
  %v595 = vmax.f32 %v514, 0.0
  %v596 = vmax.f32 %v563, 0.0
  %v597 = vmax.f32 %v516, 0.0
  %v598 = vmax.f32 %v565, 0.0
  %v599 = vpack.c.bf16 %v569, %v567
  %v600 = vpack.c.bf16 %v570, %v568
  %v601 = vpack.c.bf16 %v573, %v571
  %v602 = vpack.c.bf16 %v574, %v572
  %v603 = vpack.c.bf16 %v577, %v575
  %v604 = vpack.c.bf16 %v578, %v576
  %v605 = vpack.c.bf16 %v581, %v579
  %v606 = vpack.c.bf16 %v582, %v580
  %v607 = vpack.c.bf16 %v585, %v583
  %v608 = vpack.c.bf16 %v586, %v584
  %v609 = vpack.c.bf16 %v589, %v587
  %v610 = vpack.c.bf16 %v590, %v588
  %v611 = vpack.c.bf16 %v593, %v591
  %v612 = vpack.c.bf16 %v594, %v592
  %v613 = vpack.c.bf16 %v597, %v595
  %v614 = vpack.c.bf16 %v598, %v596
  %v615 = vld [vmem:[%s4] sm:$0xff]
  %v616 = vld [vmem:[%s4 + $0x8] sm:$0xff]
  %v617 = vld [vmem:[%s4 + $0x10] sm:$0xff]
  %v618 = vld [vmem:[%s4 + $0x18] sm:$0xff]
  %v619 = vld [vmem:[%s4 + $0x20] sm:$0xff]
  %v620 = vld [vmem:[%s4 + $0x28] sm:$0xff]
  %v621 = vld [vmem:[%s4 + $0x30] sm:$0xff]
  %v622 = vld [vmem:[%s4 + $0x38] sm:$0xff]
  %v623 = vld [vmem:[%s4 + $0x40] sm:$0xff]
  %v624 = vld [vmem:[%s4 + $0x48] sm:$0xff]
  %v625 = vld [vmem:[%s4 + $0x50] sm:$0xff]
  %v626 = vld [vmem:[%s4 + $0x58] sm:$0xff]
  %v627 = vld [vmem:[%s4 + $0x60] sm:$0xff]
  %v628 = vld [vmem:[%s4 + $0x68] sm:$0xff]
  %v629 = vld [vmem:[%s4 + $0x70] sm:$0xff]
  %v630 = vld [vmem:[%s4 + $0x78] sm:$0xff]
  %v631 = vld [vmem:[%s4 + $0x80] sm:$0xff]
  %v632 = vld [vmem:[%s4 + $0x88] sm:$0xff]
  %v633 = vld [vmem:[%s4 + $0x90] sm:$0xff]
  %v634 = vld [vmem:[%s4 + $0x98] sm:$0xff]
  %v635 = vld [vmem:[%s4 + $0xa0] sm:$0xff]
  %v636 = vld [vmem:[%s4 + $0xa8] sm:$0xff]
  %v637 = vld [vmem:[%s4 + $0xb0] sm:$0xff]
  %v638 = vld [vmem:[%s4 + $0xb8] sm:$0xff]
  %v639 = vld [vmem:[%s4 + $0xc0] sm:$0xff]
  %v640 = vld [vmem:[%s4 + $0xc8] sm:$0xff]
  %v641 = vld [vmem:[%s4 + $0xd0] sm:$0xff]
  %v642 = vld [vmem:[%s4 + $0xd8] sm:$0xff]
  %v643 = vld [vmem:[%s4 + $0xe0] sm:$0xff]
  %v644 = vld [vmem:[%s4 + $0xe8] sm:$0xff]
  %v645 = vld [vmem:[%s4 + $0xf0] sm:$0xff]
  %v646 = vld [vmem:[%s4 + $0xf8] sm:$0xff]
  %s647 = scalar_lea.vmem %s5, 2
  %v648 = vld [vmem:[%s647] sm:$0x3]
  %v650 = vperm.slane %v648, 0
  %v651 = vperm.slane %v648, 1
  %v686 = vunpack.c.l.b16 %v615
  %v687 = vunpack.c.h.b16 %v615
  %v688 = vunpack.c.l.b16 %v616
  %v689 = vunpack.c.h.b16 %v616
  %v690 = vunpack.c.l.b16 %v617
  %v691 = vunpack.c.h.b16 %v617
  %v692 = vunpack.c.l.b16 %v618
  %v693 = vunpack.c.h.b16 %v618
  %v694 = vunpack.c.l.b16 %v619
  %v695 = vunpack.c.h.b16 %v619
  %v696 = vunpack.c.l.b16 %v620
  %v697 = vunpack.c.h.b16 %v620
  %v698 = vunpack.c.l.b16 %v621
  %v699 = vunpack.c.h.b16 %v621
  %v700 = vunpack.c.l.b16 %v622
  %v701 = vunpack.c.h.b16 %v622
  %v702 = vunpack.c.l.b16 %v623
  %v703 = vunpack.c.h.b16 %v623
  %v704 = vunpack.c.l.b16 %v624
  %v705 = vunpack.c.h.b16 %v624
  %v706 = vunpack.c.l.b16 %v625
  %v707 = vunpack.c.h.b16 %v625
  %v708 = vunpack.c.l.b16 %v626
  %v709 = vunpack.c.h.b16 %v626
  %v710 = vunpack.c.l.b16 %v627
  %v711 = vunpack.c.h.b16 %v627
  %v712 = vunpack.c.l.b16 %v628
  %v713 = vunpack.c.h.b16 %v628
  %v714 = vunpack.c.l.b16 %v629
  %v715 = vunpack.c.h.b16 %v629
  %v716 = vunpack.c.l.b16 %v630
  %v717 = vunpack.c.h.b16 %v630
  %v718 = vunpack.c.l.b16 %v631
  %v719 = vunpack.c.h.b16 %v631
  %v720 = vunpack.c.l.b16 %v632
  %v721 = vunpack.c.h.b16 %v632
  %v722 = vunpack.c.l.b16 %v633
  %v723 = vunpack.c.h.b16 %v633
  %v724 = vunpack.c.l.b16 %v634
  %v725 = vunpack.c.h.b16 %v634
  %v726 = vunpack.c.l.b16 %v635
  %v727 = vunpack.c.h.b16 %v635
  %v728 = vunpack.c.l.b16 %v636
  %v729 = vunpack.c.h.b16 %v636
  %v730 = vunpack.c.l.b16 %v637
  %v731 = vunpack.c.h.b16 %v637
  %v732 = vunpack.c.l.b16 %v638
  %v733 = vunpack.c.h.b16 %v638
  %v734 = vunpack.c.l.b16 %v639
  %v735 = vunpack.c.h.b16 %v639
  %v736 = vunpack.c.l.b16 %v640
  %v737 = vunpack.c.h.b16 %v640
  %v738 = vunpack.c.l.b16 %v641
  %v739 = vunpack.c.h.b16 %v641
  %v740 = vunpack.c.l.b16 %v642
  %v741 = vunpack.c.h.b16 %v642
  %v742 = vunpack.c.l.b16 %v643
  %v743 = vunpack.c.h.b16 %v643
  %v744 = vunpack.c.l.b16 %v644
  %v745 = vunpack.c.h.b16 %v644
  %v746 = vunpack.c.l.b16 %v645
  %v747 = vunpack.c.h.b16 %v645
  %v748 = vunpack.c.l.b16 %v646
  %v749 = vunpack.c.h.b16 %v646
  %v750 = vpack.c.b16 %v688, %v686
  %v751 = vpack.c.b16 %v689, %v687
  %v752 = vpack.c.b16 %v692, %v690
  %v753 = vpack.c.b16 %v693, %v691
  %v754 = vpack.c.b16 %v696, %v694
  %v755 = vpack.c.b16 %v697, %v695
  %v756 = vpack.c.b16 %v700, %v698
  %v757 = vpack.c.b16 %v701, %v699
  %v758 = vpack.c.b16 %v704, %v702
  %v759 = vpack.c.b16 %v705, %v703
  %v760 = vpack.c.b16 %v708, %v706
  %v761 = vpack.c.b16 %v709, %v707
  %v762 = vpack.c.b16 %v712, %v710
  %v763 = vpack.c.b16 %v713, %v711
  %v764 = vpack.c.b16 %v716, %v714
  %v765 = vpack.c.b16 %v717, %v715
  %v766 = vpack.c.b16 %v720, %v718
  %v767 = vpack.c.b16 %v721, %v719
  %v768 = vpack.c.b16 %v724, %v722
  %v769 = vpack.c.b16 %v725, %v723
  %v770 = vpack.c.b16 %v728, %v726
  %v771 = vpack.c.b16 %v729, %v727
  %v772 = vpack.c.b16 %v732, %v730
  %v773 = vpack.c.b16 %v733, %v731
  %v774 = vpack.c.b16 %v736, %v734
  %v775 = vpack.c.b16 %v737, %v735
  %v776 = vpack.c.b16 %v740, %v738
  %v777 = vpack.c.b16 %v741, %v739
  %v778 = vpack.c.b16 %v744, %v742
  %v779 = vpack.c.b16 %v745, %v743
  %v780 = vpack.c.b16 %v748, %v746
  %v781 = vpack.c.b16 %v749, %v747
  %814 = vmatpush.bf16.msra.mxu0 %v764
  %815 = vmatpush.bf16.msra.mxu0 %v762
  %816 = vmatpush.bf16.msra.mxu0 %v760
  %817 = vmatpush.bf16.msra.mxu0 %v758
  %818 = vmatpush.bf16.msra.mxu0 %v756
  %819 = vmatpush.bf16.msra.mxu0 %v754
  %820 = vmatpush.bf16.msra.mxu0 %v752
  %821 = vmatpush.bf16.msra.mxu0 %v750
  %822 = vmatmul.bf16.gmra.mxu0 %v599
  %v823 = vpop.f32.mrf.mxu0
  %v824 = vadd.f32 %v650, %v823
  %v825 = vpop.f32.mrf.mxu0
  %v826 = vadd.f32 %v650, %v825
  %827 = vmatmul.bf16.gmra.mxu0 %v601
  %v828 = vpop.f32.mrf.mxu0
  %v829 = vadd.f32 %v650, %v828
  %v830 = vpop.f32.mrf.mxu0
  %v831 = vadd.f32 %v650, %v830
  %832 = vmatmul.bf16.gmra.mxu0 %v603
  %v833 = vpop.f32.mrf.mxu0
  %v834 = vadd.f32 %v650, %v833
  %v835 = vpop.f32.mrf.mxu0
  %v836 = vadd.f32 %v650, %v835
  %837 = vmatmul.bf16.gmra.mxu0 %v605
  %v838 = vpop.f32.mrf.mxu0
  %v839 = vadd.f32 %v650, %v838
  %v840 = vpop.f32.mrf.mxu0
  %v841 = vadd.f32 %v650, %v840
  %842 = vmatmul.bf16.gmra.mxu0 %v607
  %v843 = vpop.f32.mrf.mxu0
  %v844 = vadd.f32 %v650, %v843
  %v845 = vpop.f32.mrf.mxu0
  %v846 = vadd.f32 %v650, %v845
  %847 = vmatmul.bf16.gmra.mxu0 %v609
  %v848 = vpop.f32.mrf.mxu0
  %v849 = vadd.f32 %v650, %v848
  %v850 = vpop.f32.mrf.mxu0
  %v851 = vadd.f32 %v650, %v850
  %852 = vmatmul.bf16.gmra.mxu0 %v611
  %v853 = vpop.f32.mrf.mxu0
  %v854 = vadd.f32 %v650, %v853
  %v855 = vpop.f32.mrf.mxu0
  %v856 = vadd.f32 %v650, %v855
  %857 = vmatmul.bf16.gmra.mxu0 %v613
  %v858 = vpop.f32.mrf.mxu0
  %v859 = vadd.f32 %v650, %v858
  %v860 = vpop.f32.mrf.mxu0
  %v861 = vadd.f32 %v650, %v860
  %862 = vdwg.mxu0
  %863 = vmatpush.bf16.msra.mxu0 %v780
  %864 = vmatpush.bf16.msra.mxu0 %v778
  %865 = vmatpush.bf16.msra.mxu0 %v776
  %866 = vmatpush.bf16.msra.mxu0 %v774
  %867 = vmatpush.bf16.msra.mxu0 %v772
  %868 = vmatpush.bf16.msra.mxu0 %v770
  %869 = vmatpush.bf16.msra.mxu0 %v768
  %870 = vmatpush.bf16.msra.mxu0 %v766
  %871 = vmatmul.bf16.gmra.mxu0 %v600
  %v872 = vpop.f32.mrf.mxu0
  %v873 = vadd.f32 %v824, %v872
  %v874 = vpop.f32.mrf.mxu0
  %v875 = vadd.f32 %v826, %v874
  %876 = vmatmul.bf16.gmra.mxu0 %v602
  %v877 = vpop.f32.mrf.mxu0
  %v878 = vadd.f32 %v829, %v877
  %v879 = vpop.f32.mrf.mxu0
  %v880 = vadd.f32 %v831, %v879
  %881 = vmatmul.bf16.gmra.mxu0 %v604
  %v882 = vpop.f32.mrf.mxu0
  %v883 = vadd.f32 %v834, %v882
  %v884 = vpop.f32.mrf.mxu0
  %v885 = vadd.f32 %v836, %v884
  %886 = vmatmul.bf16.gmra.mxu0 %v606
  %v887 = vpop.f32.mrf.mxu0
  %v888 = vadd.f32 %v839, %v887
  %v889 = vpop.f32.mrf.mxu0
  %v890 = vadd.f32 %v841, %v889
  %891 = vmatmul.bf16.gmra.mxu0 %v608
  %v892 = vpop.f32.mrf.mxu0
  %v893 = vadd.f32 %v844, %v892
  %v894 = vpop.f32.mrf.mxu0
  %v895 = vadd.f32 %v846, %v894
  %896 = vmatmul.bf16.gmra.mxu0 %v610
  %v897 = vpop.f32.mrf.mxu0
  %v898 = vadd.f32 %v849, %v897
  %v899 = vpop.f32.mrf.mxu0
  %v900 = vadd.f32 %v851, %v899
  %901 = vmatmul.bf16.gmra.mxu0 %v612
  %v902 = vpop.f32.mrf.mxu0
  %v903 = vadd.f32 %v854, %v902
  %v904 = vpop.f32.mrf.mxu0
  %v905 = vadd.f32 %v856, %v904
  %906 = vmatmul.bf16.gmra.mxu0 %v614
  %v907 = vpop.f32.mrf.mxu0
  %v908 = vadd.f32 %v859, %v907
  %v909 = vpop.f32.mrf.mxu0
  %v910 = vadd.f32 %v861, %v909
  %911 = vdwg.mxu0
  %912 = vmatpush.bf16.msra.mxu0 %v765
  %913 = vmatpush.bf16.msra.mxu0 %v763
  %914 = vmatpush.bf16.msra.mxu0 %v761
  %915 = vmatpush.bf16.msra.mxu0 %v759
  %916 = vmatpush.bf16.msra.mxu0 %v757
  %917 = vmatpush.bf16.msra.mxu0 %v755
  %918 = vmatpush.bf16.msra.mxu0 %v753
  %919 = vmatpush.bf16.msra.mxu0 %v751
  %920 = vmatmul.bf16.gmra.mxu0 %v599
  %v921 = vpop.f32.mrf.mxu0
  %v922 = vadd.f32 %v651, %v921
  %v923 = vpop.f32.mrf.mxu0
  %v924 = vadd.f32 %v651, %v923
  %925 = vmatmul.bf16.gmra.mxu0 %v601
  %v926 = vpop.f32.mrf.mxu0
  %v927 = vadd.f32 %v651, %v926
  %v928 = vpop.f32.mrf.mxu0
  %v929 = vadd.f32 %v651, %v928
  %930 = vmatmul.bf16.gmra.mxu0 %v603
  %v931 = vpop.f32.mrf.mxu0
  %v932 = vadd.f32 %v651, %v931
  %v933 = vpop.f32.mrf.mxu0
  %v934 = vadd.f32 %v651, %v933
  %935 = vmatmul.bf16.gmra.mxu0 %v605
  %v936 = vpop.f32.mrf.mxu0
  %v937 = vadd.f32 %v651, %v936
  %v938 = vpop.f32.mrf.mxu0
  %v939 = vadd.f32 %v651, %v938
  %940 = vmatmul.bf16.gmra.mxu0 %v607
  %v941 = vpop.f32.mrf.mxu0
  %v942 = vadd.f32 %v651, %v941
  %v943 = vpop.f32.mrf.mxu0
  %v944 = vadd.f32 %v651, %v943
  %945 = vmatmul.bf16.gmra.mxu0 %v609
  %v946 = vpop.f32.mrf.mxu0
  %v947 = vadd.f32 %v651, %v946
  %v948 = vpop.f32.mrf.mxu0
  %v949 = vadd.f32 %v651, %v948
  %950 = vmatmul.bf16.gmra.mxu0 %v611
  %v951 = vpop.f32.mrf.mxu0
  %v952 = vadd.f32 %v651, %v951
  %v953 = vpop.f32.mrf.mxu0
  %v954 = vadd.f32 %v651, %v953
  %955 = vmatmul.bf16.gmra.mxu0 %v613
  %v956 = vpop.f32.mrf.mxu0
  %v957 = vadd.f32 %v651, %v956
  %v958 = vpop.f32.mrf.mxu0
  %v959 = vadd.f32 %v651, %v958
  %960 = vdwg.mxu0
  %961 = vmatpush.bf16.msra.mxu0 %v781
  %962 = vmatpush.bf16.msra.mxu0 %v779
  %963 = vmatpush.bf16.msra.mxu0 %v777
  %964 = vmatpush.bf16.msra.mxu0 %v775
  %965 = vmatpush.bf16.msra.mxu0 %v773
  %966 = vmatpush.bf16.msra.mxu0 %v771
  %967 = vmatpush.bf16.msra.mxu0 %v769
  %968 = vmatpush.bf16.msra.mxu0 %v767
  %969 = vmatmul.bf16.gmra.mxu0 %v600
  %v970 = vpop.f32.mrf.mxu0
  %v971 = vadd.f32 %v922, %v970
  %v972 = vpop.f32.mrf.mxu0
  %v973 = vadd.f32 %v924, %v972
  %974 = vmatmul.bf16.gmra.mxu0 %v602
  %v975 = vpop.f32.mrf.mxu0
  %v976 = vadd.f32 %v927, %v975
  %v977 = vpop.f32.mrf.mxu0
  %v978 = vadd.f32 %v929, %v977
  %979 = vmatmul.bf16.gmra.mxu0 %v604
  %v980 = vpop.f32.mrf.mxu0
  %v981 = vadd.f32 %v932, %v980
  %v982 = vpop.f32.mrf.mxu0
  %v983 = vadd.f32 %v934, %v982
  %984 = vmatmul.bf16.gmra.mxu0 %v606
  %v985 = vpop.f32.mrf.mxu0
  %v986 = vadd.f32 %v937, %v985
  %v987 = vpop.f32.mrf.mxu0
  %v988 = vadd.f32 %v939, %v987
  %989 = vmatmul.bf16.gmra.mxu0 %v608
  %v990 = vpop.f32.mrf.mxu0
  %v991 = vadd.f32 %v942, %v990
  %v992 = vpop.f32.mrf.mxu0
  %v993 = vadd.f32 %v944, %v992
  %994 = vmatmul.bf16.gmra.mxu0 %v610
  %v995 = vpop.f32.mrf.mxu0
  %v996 = vadd.f32 %v947, %v995
  %v997 = vpop.f32.mrf.mxu0
  %v998 = vadd.f32 %v949, %v997
  %999 = vmatmul.bf16.gmra.mxu0 %v612
  %v1000 = vpop.f32.mrf.mxu0
  %v1001 = vadd.f32 %v952, %v1000
  %v1002 = vpop.f32.mrf.mxu0
  %v1003 = vadd.f32 %v954, %v1002
  %1004 = vmatmul.bf16.gmra.mxu0 %v614
  %v1005 = vpop.f32.mrf.mxu0
  %v1006 = vadd.f32 %v957, %v1005
  %v1007 = vpop.f32.mrf.mxu0
  %v1008 = vadd.f32 %v959, %v1007
  %1009 = vdwg.mxu0
  %v1010 = vmax.f32 %v873, 0.0
  %v1011 = vmax.f32 %v971, 0.0
  %v1012 = vmax.f32 %v875, 0.0
  %v1013 = vmax.f32 %v973, 0.0
  %v1014 = vmax.f32 %v878, 0.0
  %v1015 = vmax.f32 %v976, 0.0
  %v1016 = vmax.f32 %v880, 0.0
  %v1017 = vmax.f32 %v978, 0.0
  %v1018 = vmax.f32 %v883, 0.0
  %v1019 = vmax.f32 %v981, 0.0
  %v1020 = vmax.f32 %v885, 0.0
  %v1021 = vmax.f32 %v983, 0.0
  %v1022 = vmax.f32 %v888, 0.0
  %v1023 = vmax.f32 %v986, 0.0
  %v1024 = vmax.f32 %v890, 0.0
  %v1025 = vmax.f32 %v988, 0.0
  %v1026 = vmax.f32 %v893, 0.0
  %v1027 = vmax.f32 %v991, 0.0
  %v1028 = vmax.f32 %v895, 0.0
  %v1029 = vmax.f32 %v993, 0.0
  %v1030 = vmax.f32 %v898, 0.0
  %v1031 = vmax.f32 %v996, 0.0
  %v1032 = vmax.f32 %v900, 0.0
  %v1033 = vmax.f32 %v998, 0.0
  %v1034 = vmax.f32 %v903, 0.0
  %v1035 = vmax.f32 %v1001, 0.0
  %v1036 = vmax.f32 %v905, 0.0
  %v1037 = vmax.f32 %v1003, 0.0
  %v1038 = vmax.f32 %v908, 0.0
  %v1039 = vmax.f32 %v1006, 0.0
  %v1040 = vmax.f32 %v910, 0.0
  %v1041 = vmax.f32 %v1008, 0.0
  %v1042 = vpack.c.bf16 %v1012, %v1010
  %v1043 = vpack.c.bf16 %v1013, %v1011
  %v1044 = vpack.c.bf16 %v1016, %v1014
  %v1045 = vpack.c.bf16 %v1017, %v1015
  %v1046 = vpack.c.bf16 %v1020, %v1018
  %v1047 = vpack.c.bf16 %v1021, %v1019
  %v1048 = vpack.c.bf16 %v1024, %v1022
  %v1049 = vpack.c.bf16 %v1025, %v1023
  %v1050 = vpack.c.bf16 %v1028, %v1026
  %v1051 = vpack.c.bf16 %v1029, %v1027
  %v1052 = vpack.c.bf16 %v1032, %v1030
  %v1053 = vpack.c.bf16 %v1033, %v1031
  %v1054 = vpack.c.bf16 %v1036, %v1034
  %v1055 = vpack.c.bf16 %v1037, %v1035
  %v1056 = vpack.c.bf16 %v1040, %v1038
  %v1057 = vpack.c.bf16 %v1041, %v1039
  %s1058 = scalar_lea.vmem %s4, 256
  %v1059 = vld [vmem:[%s1058] sm:$0xff]
  %v1060 = vld [vmem:[%s1058 + $0x8] sm:$0xff]
  %v1061 = vld [vmem:[%s1058 + $0x10] sm:$0xff]
  %v1062 = vld [vmem:[%s1058 + $0x18] sm:$0xff]
  %v1063 = vld [vmem:[%s1058 + $0x20] sm:$0xff]
  %v1064 = vld [vmem:[%s1058 + $0x28] sm:$0xff]
  %v1065 = vld [vmem:[%s1058 + $0x30] sm:$0xff]
  %v1066 = vld [vmem:[%s1058 + $0x38] sm:$0xff]
  %v1067 = vld [vmem:[%s1058 + $0x40] sm:$0xff]
  %v1068 = vld [vmem:[%s1058 + $0x48] sm:$0xff]
  %v1069 = vld [vmem:[%s1058 + $0x50] sm:$0xff]
  %v1070 = vld [vmem:[%s1058 + $0x58] sm:$0xff]
  %v1071 = vld [vmem:[%s1058 + $0x60] sm:$0xff]
  %v1072 = vld [vmem:[%s1058 + $0x68] sm:$0xff]
  %v1073 = vld [vmem:[%s1058 + $0x70] sm:$0xff]
  %v1074 = vld [vmem:[%s1058 + $0x78] sm:$0xff]
  %v1075 = vld [vmem:[%s1058 + $0x80] sm:$0xff]
  %v1076 = vld [vmem:[%s1058 + $0x88] sm:$0xff]
  %v1077 = vld [vmem:[%s1058 + $0x90] sm:$0xff]
  %v1078 = vld [vmem:[%s1058 + $0x98] sm:$0xff]
  %v1079 = vld [vmem:[%s1058 + $0xa0] sm:$0xff]
  %v1080 = vld [vmem:[%s1058 + $0xa8] sm:$0xff]
  %v1081 = vld [vmem:[%s1058 + $0xb0] sm:$0xff]
  %v1082 = vld [vmem:[%s1058 + $0xb8] sm:$0xff]
  %v1083 = vld [vmem:[%s1058 + $0xc0] sm:$0xff]
  %v1084 = vld [vmem:[%s1058 + $0xc8] sm:$0xff]
  %v1085 = vld [vmem:[%s1058 + $0xd0] sm:$0xff]
  %v1086 = vld [vmem:[%s1058 + $0xd8] sm:$0xff]
  %v1087 = vld [vmem:[%s1058 + $0xe0] sm:$0xff]
  %v1088 = vld [vmem:[%s1058 + $0xe8] sm:$0xff]
  %v1089 = vld [vmem:[%s1058 + $0xf0] sm:$0xff]
  %v1090 = vld [vmem:[%s1058 + $0xf8] sm:$0xff]
  %s1091 = scalar_lea.vmem %s5, 4
  %v1092 = vld [vmem:[%s1091] sm:$0x3]
  %v1094 = vperm.slane %v1092, 0
  %v1095 = vperm.slane %v1092, 1
  %v1130 = vunpack.c.l.b16 %v1059
  %v1131 = vunpack.c.h.b16 %v1059
  %v1132 = vunpack.c.l.b16 %v1060
  %v1133 = vunpack.c.h.b16 %v1060
  %v1134 = vunpack.c.l.b16 %v1061
  %v1135 = vunpack.c.h.b16 %v1061
  %v1136 = vunpack.c.l.b16 %v1062
  %v1137 = vunpack.c.h.b16 %v1062
  %v1138 = vunpack.c.l.b16 %v1063
  %v1139 = vunpack.c.h.b16 %v1063
  %v1140 = vunpack.c.l.b16 %v1064
  %v1141 = vunpack.c.h.b16 %v1064
  %v1142 = vunpack.c.l.b16 %v1065
  %v1143 = vunpack.c.h.b16 %v1065
  %v1144 = vunpack.c.l.b16 %v1066
  %v1145 = vunpack.c.h.b16 %v1066
  %v1146 = vunpack.c.l.b16 %v1067
  %v1147 = vunpack.c.h.b16 %v1067
  %v1148 = vunpack.c.l.b16 %v1068
  %v1149 = vunpack.c.h.b16 %v1068
  %v1150 = vunpack.c.l.b16 %v1069
  %v1151 = vunpack.c.h.b16 %v1069
  %v1152 = vunpack.c.l.b16 %v1070
  %v1153 = vunpack.c.h.b16 %v1070
  %v1154 = vunpack.c.l.b16 %v1071
  %v1155 = vunpack.c.h.b16 %v1071
  %v1156 = vunpack.c.l.b16 %v1072
  %v1157 = vunpack.c.h.b16 %v1072
  %v1158 = vunpack.c.l.b16 %v1073
  %v1159 = vunpack.c.h.b16 %v1073
  %v1160 = vunpack.c.l.b16 %v1074
  %v1161 = vunpack.c.h.b16 %v1074
  %v1162 = vunpack.c.l.b16 %v1075
  %v1163 = vunpack.c.h.b16 %v1075
  %v1164 = vunpack.c.l.b16 %v1076
  %v1165 = vunpack.c.h.b16 %v1076
  %v1166 = vunpack.c.l.b16 %v1077
  %v1167 = vunpack.c.h.b16 %v1077
  %v1168 = vunpack.c.l.b16 %v1078
  %v1169 = vunpack.c.h.b16 %v1078
  %v1170 = vunpack.c.l.b16 %v1079
  %v1171 = vunpack.c.h.b16 %v1079
  %v1172 = vunpack.c.l.b16 %v1080
  %v1173 = vunpack.c.h.b16 %v1080
  %v1174 = vunpack.c.l.b16 %v1081
  %v1175 = vunpack.c.h.b16 %v1081
  %v1176 = vunpack.c.l.b16 %v1082
  %v1177 = vunpack.c.h.b16 %v1082
  %v1178 = vunpack.c.l.b16 %v1083
  %v1179 = vunpack.c.h.b16 %v1083
  %v1180 = vunpack.c.l.b16 %v1084
  %v1181 = vunpack.c.h.b16 %v1084
  %v1182 = vunpack.c.l.b16 %v1085
  %v1183 = vunpack.c.h.b16 %v1085
  %v1184 = vunpack.c.l.b16 %v1086
  %v1185 = vunpack.c.h.b16 %v1086
  %v1186 = vunpack.c.l.b16 %v1087
  %v1187 = vunpack.c.h.b16 %v1087
  %v1188 = vunpack.c.l.b16 %v1088
  %v1189 = vunpack.c.h.b16 %v1088
  %v1190 = vunpack.c.l.b16 %v1089
  %v1191 = vunpack.c.h.b16 %v1089
  %v1192 = vunpack.c.l.b16 %v1090
  %v1193 = vunpack.c.h.b16 %v1090
  %v1194 = vpack.c.b16 %v1132, %v1130
  %v1195 = vpack.c.b16 %v1133, %v1131
  %v1196 = vpack.c.b16 %v1136, %v1134
  %v1197 = vpack.c.b16 %v1137, %v1135
  %v1198 = vpack.c.b16 %v1140, %v1138
  %v1199 = vpack.c.b16 %v1141, %v1139
  %v1200 = vpack.c.b16 %v1144, %v1142
  %v1201 = vpack.c.b16 %v1145, %v1143
  %v1202 = vpack.c.b16 %v1148, %v1146
  %v1203 = vpack.c.b16 %v1149, %v1147
  %v1204 = vpack.c.b16 %v1152, %v1150
  %v1205 = vpack.c.b16 %v1153, %v1151
  %v1206 = vpack.c.b16 %v1156, %v1154
  %v1207 = vpack.c.b16 %v1157, %v1155
  %v1208 = vpack.c.b16 %v1160, %v1158
  %v1209 = vpack.c.b16 %v1161, %v1159
  %v1210 = vpack.c.b16 %v1164, %v1162
  %v1211 = vpack.c.b16 %v1165, %v1163
  %v1212 = vpack.c.b16 %v1168, %v1166
  %v1213 = vpack.c.b16 %v1169, %v1167
  %v1214 = vpack.c.b16 %v1172, %v1170
  %v1215 = vpack.c.b16 %v1173, %v1171
  %v1216 = vpack.c.b16 %v1176, %v1174
  %v1217 = vpack.c.b16 %v1177, %v1175
  %v1218 = vpack.c.b16 %v1180, %v1178
  %v1219 = vpack.c.b16 %v1181, %v1179
  %v1220 = vpack.c.b16 %v1184, %v1182
  %v1221 = vpack.c.b16 %v1185, %v1183
  %v1222 = vpack.c.b16 %v1188, %v1186
  %v1223 = vpack.c.b16 %v1189, %v1187
  %v1224 = vpack.c.b16 %v1192, %v1190
  %v1225 = vpack.c.b16 %v1193, %v1191
  %1258 = vmatpush.bf16.msra.mxu0 %v1208
  %1259 = vmatpush.bf16.msra.mxu0 %v1206
  %1260 = vmatpush.bf16.msra.mxu0 %v1204
  %1261 = vmatpush.bf16.msra.mxu0 %v1202
  %1262 = vmatpush.bf16.msra.mxu0 %v1200
  %1263 = vmatpush.bf16.msra.mxu0 %v1198
  %1264 = vmatpush.bf16.msra.mxu0 %v1196
  %1265 = vmatpush.bf16.msra.mxu0 %v1194
  %1266 = vmatmul.bf16.gmra.mxu0 %v287
  %v1267 = vpop.f32.mrf.mxu0
  %v1268 = vadd.f32 %v1094, %v1267
  %v1269 = vpop.f32.mrf.mxu0
  %v1270 = vadd.f32 %v1094, %v1269
  %1271 = vmatmul.bf16.gmra.mxu0 %v289
  %v1272 = vpop.f32.mrf.mxu0
  %v1273 = vadd.f32 %v1094, %v1272
  %v1274 = vpop.f32.mrf.mxu0
  %v1275 = vadd.f32 %v1094, %v1274
  %1276 = vmatmul.bf16.gmra.mxu0 %v291
  %v1277 = vpop.f32.mrf.mxu0
  %v1278 = vadd.f32 %v1094, %v1277
  %v1279 = vpop.f32.mrf.mxu0
  %v1280 = vadd.f32 %v1094, %v1279
  %1281 = vmatmul.bf16.gmra.mxu0 %v293
  %v1282 = vpop.f32.mrf.mxu0
  %v1283 = vadd.f32 %v1094, %v1282
  %v1284 = vpop.f32.mrf.mxu0
  %v1285 = vadd.f32 %v1094, %v1284
  %1286 = vmatmul.bf16.gmra.mxu0 %v295
  %v1287 = vpop.f32.mrf.mxu0
  %v1288 = vadd.f32 %v1094, %v1287
  %v1289 = vpop.f32.mrf.mxu0
  %v1290 = vadd.f32 %v1094, %v1289
  %1291 = vmatmul.bf16.gmra.mxu0 %v297
  %v1292 = vpop.f32.mrf.mxu0
  %v1293 = vadd.f32 %v1094, %v1292
  %v1294 = vpop.f32.mrf.mxu0
  %v1295 = vadd.f32 %v1094, %v1294
  %1296 = vmatmul.bf16.gmra.mxu0 %v299
  %v1297 = vpop.f32.mrf.mxu0
  %v1298 = vadd.f32 %v1094, %v1297
  %v1299 = vpop.f32.mrf.mxu0
  %v1300 = vadd.f32 %v1094, %v1299
  %1301 = vmatmul.bf16.gmra.mxu0 %v301
  %v1302 = vpop.f32.mrf.mxu0
  %v1303 = vadd.f32 %v1094, %v1302
  %v1304 = vpop.f32.mrf.mxu0
  %v1305 = vadd.f32 %v1094, %v1304
  %1306 = vdwg.mxu0
  %1307 = vmatpush.bf16.msra.mxu0 %v1224
  %1308 = vmatpush.bf16.msra.mxu0 %v1222
  %1309 = vmatpush.bf16.msra.mxu0 %v1220
  %1310 = vmatpush.bf16.msra.mxu0 %v1218
  %1311 = vmatpush.bf16.msra.mxu0 %v1216
  %1312 = vmatpush.bf16.msra.mxu0 %v1214
  %1313 = vmatpush.bf16.msra.mxu0 %v1212
  %1314 = vmatpush.bf16.msra.mxu0 %v1210
  %1315 = vmatmul.bf16.gmra.mxu0 %v288
  %v1316 = vpop.f32.mrf.mxu0
  %v1317 = vadd.f32 %v1268, %v1316
  %v1318 = vpop.f32.mrf.mxu0
  %v1319 = vadd.f32 %v1270, %v1318
  %1320 = vmatmul.bf16.gmra.mxu0 %v290
  %v1321 = vpop.f32.mrf.mxu0
  %v1322 = vadd.f32 %v1273, %v1321
  %v1323 = vpop.f32.mrf.mxu0
  %v1324 = vadd.f32 %v1275, %v1323
  %1325 = vmatmul.bf16.gmra.mxu0 %v292
  %v1326 = vpop.f32.mrf.mxu0
  %v1327 = vadd.f32 %v1278, %v1326
  %v1328 = vpop.f32.mrf.mxu0
  %v1329 = vadd.f32 %v1280, %v1328
  %1330 = vmatmul.bf16.gmra.mxu0 %v294
  %v1331 = vpop.f32.mrf.mxu0
  %v1332 = vadd.f32 %v1283, %v1331
  %v1333 = vpop.f32.mrf.mxu0
  %v1334 = vadd.f32 %v1285, %v1333
  %1335 = vmatmul.bf16.gmra.mxu0 %v296
  %v1336 = vpop.f32.mrf.mxu0
  %v1337 = vadd.f32 %v1288, %v1336
  %v1338 = vpop.f32.mrf.mxu0
  %v1339 = vadd.f32 %v1290, %v1338
  %1340 = vmatmul.bf16.gmra.mxu0 %v298
  %v1341 = vpop.f32.mrf.mxu0
  %v1342 = vadd.f32 %v1293, %v1341
  %v1343 = vpop.f32.mrf.mxu0
  %v1344 = vadd.f32 %v1295, %v1343
  %1345 = vmatmul.bf16.gmra.mxu0 %v300
  %v1346 = vpop.f32.mrf.mxu0
  %v1347 = vadd.f32 %v1298, %v1346
  %v1348 = vpop.f32.mrf.mxu0
  %v1349 = vadd.f32 %v1300, %v1348
  %1350 = vmatmul.bf16.gmra.mxu0 %v302
  %v1351 = vpop.f32.mrf.mxu0
  %v1352 = vadd.f32 %v1303, %v1351
  %v1353 = vpop.f32.mrf.mxu0
  %v1354 = vadd.f32 %v1305, %v1353
  %1355 = vdwg.mxu0
  %1356 = vmatpush.bf16.msra.mxu0 %v1209
  %1357 = vmatpush.bf16.msra.mxu0 %v1207
  %1358 = vmatpush.bf16.msra.mxu0 %v1205
  %1359 = vmatpush.bf16.msra.mxu0 %v1203
  %1360 = vmatpush.bf16.msra.mxu0 %v1201
  %1361 = vmatpush.bf16.msra.mxu0 %v1199
  %1362 = vmatpush.bf16.msra.mxu0 %v1197
  %1363 = vmatpush.bf16.msra.mxu0 %v1195
  %1364 = vmatmul.bf16.gmra.mxu0 %v287
  %v1365 = vpop.f32.mrf.mxu0
  %v1366 = vadd.f32 %v1095, %v1365
  %v1367 = vpop.f32.mrf.mxu0
  %v1368 = vadd.f32 %v1095, %v1367
  %1369 = vmatmul.bf16.gmra.mxu0 %v289
  %v1370 = vpop.f32.mrf.mxu0
  %v1371 = vadd.f32 %v1095, %v1370
  %v1372 = vpop.f32.mrf.mxu0
  %v1373 = vadd.f32 %v1095, %v1372
  %1374 = vmatmul.bf16.gmra.mxu0 %v291
  %v1375 = vpop.f32.mrf.mxu0
  %v1376 = vadd.f32 %v1095, %v1375
  %v1377 = vpop.f32.mrf.mxu0
  %v1378 = vadd.f32 %v1095, %v1377
  %1379 = vmatmul.bf16.gmra.mxu0 %v293
  %v1380 = vpop.f32.mrf.mxu0
  %v1381 = vadd.f32 %v1095, %v1380
  %v1382 = vpop.f32.mrf.mxu0
  %v1383 = vadd.f32 %v1095, %v1382
  %1384 = vmatmul.bf16.gmra.mxu0 %v295
  %v1385 = vpop.f32.mrf.mxu0
  %v1386 = vadd.f32 %v1095, %v1385
  %v1387 = vpop.f32.mrf.mxu0
  %v1388 = vadd.f32 %v1095, %v1387
  %1389 = vmatmul.bf16.gmra.mxu0 %v297
  %v1390 = vpop.f32.mrf.mxu0
  %v1391 = vadd.f32 %v1095, %v1390
  %v1392 = vpop.f32.mrf.mxu0
  %v1393 = vadd.f32 %v1095, %v1392
  %1394 = vmatmul.bf16.gmra.mxu0 %v299
  %v1395 = vpop.f32.mrf.mxu0
  %v1396 = vadd.f32 %v1095, %v1395
  %v1397 = vpop.f32.mrf.mxu0
  %v1398 = vadd.f32 %v1095, %v1397
  %1399 = vmatmul.bf16.gmra.mxu0 %v301
  %v1400 = vpop.f32.mrf.mxu0
  %v1401 = vadd.f32 %v1095, %v1400
  %v1402 = vpop.f32.mrf.mxu0
  %v1403 = vadd.f32 %v1095, %v1402
  %1404 = vdwg.mxu0
  %1405 = vmatpush.bf16.msra.mxu0 %v1225
  %1406 = vmatpush.bf16.msra.mxu0 %v1223
  %1407 = vmatpush.bf16.msra.mxu0 %v1221
  %1408 = vmatpush.bf16.msra.mxu0 %v1219
  %1409 = vmatpush.bf16.msra.mxu0 %v1217
  %1410 = vmatpush.bf16.msra.mxu0 %v1215
  %1411 = vmatpush.bf16.msra.mxu0 %v1213
  %1412 = vmatpush.bf16.msra.mxu0 %v1211
  %1413 = vmatmul.bf16.gmra.mxu0 %v288
  %v1414 = vpop.f32.mrf.mxu0
  %v1415 = vadd.f32 %v1366, %v1414
  %v1416 = vpop.f32.mrf.mxu0
  %v1417 = vadd.f32 %v1368, %v1416
  %1418 = vmatmul.bf16.gmra.mxu0 %v290
  %v1419 = vpop.f32.mrf.mxu0
  %v1420 = vadd.f32 %v1371, %v1419
  %v1421 = vpop.f32.mrf.mxu0
  %v1422 = vadd.f32 %v1373, %v1421
  %1423 = vmatmul.bf16.gmra.mxu0 %v292
  %v1424 = vpop.f32.mrf.mxu0
  %v1425 = vadd.f32 %v1376, %v1424
  %v1426 = vpop.f32.mrf.mxu0
  %v1427 = vadd.f32 %v1378, %v1426
  %1428 = vmatmul.bf16.gmra.mxu0 %v294
  %v1429 = vpop.f32.mrf.mxu0
  %v1430 = vadd.f32 %v1381, %v1429
  %v1431 = vpop.f32.mrf.mxu0
  %v1432 = vadd.f32 %v1383, %v1431
  %1433 = vmatmul.bf16.gmra.mxu0 %v296
  %v1434 = vpop.f32.mrf.mxu0
  %v1435 = vadd.f32 %v1386, %v1434
  %v1436 = vpop.f32.mrf.mxu0
  %v1437 = vadd.f32 %v1388, %v1436
  %1438 = vmatmul.bf16.gmra.mxu0 %v298
  %v1439 = vpop.f32.mrf.mxu0
  %v1440 = vadd.f32 %v1391, %v1439
  %v1441 = vpop.f32.mrf.mxu0
  %v1442 = vadd.f32 %v1393, %v1441
  %1443 = vmatmul.bf16.gmra.mxu0 %v300
  %v1444 = vpop.f32.mrf.mxu0
  %v1445 = vadd.f32 %v1396, %v1444
  %v1446 = vpop.f32.mrf.mxu0
  %v1447 = vadd.f32 %v1398, %v1446
  %1448 = vmatmul.bf16.gmra.mxu0 %v302
  %v1449 = vpop.f32.mrf.mxu0
  %v1450 = vadd.f32 %v1401, %v1449
  %v1451 = vpop.f32.mrf.mxu0
  %v1452 = vadd.f32 %v1403, %v1451
  %1453 = vdwg.mxu0
  %v1454 = vmax.f32 %v1317, 0.0
  %v1455 = vmax.f32 %v1415, 0.0
  %v1456 = vmax.f32 %v1319, 0.0
  %v1457 = vmax.f32 %v1417, 0.0
  %v1458 = vmax.f32 %v1322, 0.0
  %v1459 = vmax.f32 %v1420, 0.0
  %v1460 = vmax.f32 %v1324, 0.0
  %v1461 = vmax.f32 %v1422, 0.0
  %v1462 = vmax.f32 %v1327, 0.0
  %v1463 = vmax.f32 %v1425, 0.0
  %v1464 = vmax.f32 %v1329, 0.0
  %v1465 = vmax.f32 %v1427, 0.0
  %v1466 = vmax.f32 %v1332, 0.0
  %v1467 = vmax.f32 %v1430, 0.0
  %v1468 = vmax.f32 %v1334, 0.0
  %v1469 = vmax.f32 %v1432, 0.0
  %v1470 = vmax.f32 %v1337, 0.0
  %v1471 = vmax.f32 %v1435, 0.0
  %v1472 = vmax.f32 %v1339, 0.0
  %v1473 = vmax.f32 %v1437, 0.0
  %v1474 = vmax.f32 %v1342, 0.0
  %v1475 = vmax.f32 %v1440, 0.0
  %v1476 = vmax.f32 %v1344, 0.0
  %v1477 = vmax.f32 %v1442, 0.0
  %v1478 = vmax.f32 %v1347, 0.0
  %v1479 = vmax.f32 %v1445, 0.0
  %v1480 = vmax.f32 %v1349, 0.0
  %v1481 = vmax.f32 %v1447, 0.0
  %v1482 = vmax.f32 %v1352, 0.0
  %v1483 = vmax.f32 %v1450, 0.0
  %v1484 = vmax.f32 %v1354, 0.0
  %v1485 = vmax.f32 %v1452, 0.0
  %v1486 = vpack.c.bf16 %v1456, %v1454
  %v1487 = vpack.c.bf16 %v1457, %v1455
  %v1488 = vpack.c.bf16 %v1460, %v1458
  %v1489 = vpack.c.bf16 %v1461, %v1459
  %v1490 = vpack.c.bf16 %v1464, %v1462
  %v1491 = vpack.c.bf16 %v1465, %v1463
  %v1492 = vpack.c.bf16 %v1468, %v1466
  %v1493 = vpack.c.bf16 %v1469, %v1467
  %v1494 = vpack.c.bf16 %v1472, %v1470
  %v1495 = vpack.c.bf16 %v1473, %v1471
  %v1496 = vpack.c.bf16 %v1476, %v1474
  %v1497 = vpack.c.bf16 %v1477, %v1475
  %v1498 = vpack.c.bf16 %v1480, %v1478
  %v1499 = vpack.c.bf16 %v1481, %v1479
  %v1500 = vpack.c.bf16 %v1484, %v1482
  %v1501 = vpack.c.bf16 %v1485, %v1483
  %s1502 = scalar_lea.vmem %s4, 512
  %v1503 = vld [vmem:[%s1502] sm:$0xff]
  %v1504 = vld [vmem:[%s1502 + $0x8] sm:$0xff]
  %v1505 = vld [vmem:[%s1502 + $0x10] sm:$0xff]
  %v1506 = vld [vmem:[%s1502 + $0x18] sm:$0xff]
  %v1507 = vld [vmem:[%s1502 + $0x20] sm:$0xff]
  %v1508 = vld [vmem:[%s1502 + $0x28] sm:$0xff]
  %v1509 = vld [vmem:[%s1502 + $0x30] sm:$0xff]
  %v1510 = vld [vmem:[%s1502 + $0x38] sm:$0xff]
  %v1511 = vld [vmem:[%s1502 + $0x40] sm:$0xff]
  %v1512 = vld [vmem:[%s1502 + $0x48] sm:$0xff]
  %v1513 = vld [vmem:[%s1502 + $0x50] sm:$0xff]
  %v1514 = vld [vmem:[%s1502 + $0x58] sm:$0xff]
  %v1515 = vld [vmem:[%s1502 + $0x60] sm:$0xff]
  %v1516 = vld [vmem:[%s1502 + $0x68] sm:$0xff]
  %v1517 = vld [vmem:[%s1502 + $0x70] sm:$0xff]
  %v1518 = vld [vmem:[%s1502 + $0x78] sm:$0xff]
  %v1519 = vld [vmem:[%s1502 + $0x80] sm:$0xff]
  %v1520 = vld [vmem:[%s1502 + $0x88] sm:$0xff]
  %v1521 = vld [vmem:[%s1502 + $0x90] sm:$0xff]
  %v1522 = vld [vmem:[%s1502 + $0x98] sm:$0xff]
  %v1523 = vld [vmem:[%s1502 + $0xa0] sm:$0xff]
  %v1524 = vld [vmem:[%s1502 + $0xa8] sm:$0xff]
  %v1525 = vld [vmem:[%s1502 + $0xb0] sm:$0xff]
  %v1526 = vld [vmem:[%s1502 + $0xb8] sm:$0xff]
  %v1527 = vld [vmem:[%s1502 + $0xc0] sm:$0xff]
  %v1528 = vld [vmem:[%s1502 + $0xc8] sm:$0xff]
  %v1529 = vld [vmem:[%s1502 + $0xd0] sm:$0xff]
  %v1530 = vld [vmem:[%s1502 + $0xd8] sm:$0xff]
  %v1531 = vld [vmem:[%s1502 + $0xe0] sm:$0xff]
  %v1532 = vld [vmem:[%s1502 + $0xe8] sm:$0xff]
  %v1533 = vld [vmem:[%s1502 + $0xf0] sm:$0xff]
  %v1534 = vld [vmem:[%s1502 + $0xf8] sm:$0xff]
  %s1535 = scalar_lea.vmem %s5, 6
  %v1536 = vld [vmem:[%s1535] sm:$0x3]
  %v1538 = vperm.slane %v1536, 0
  %v1539 = vperm.slane %v1536, 1
  %v1574 = vunpack.c.l.b16 %v1503
  %v1575 = vunpack.c.h.b16 %v1503
  %v1576 = vunpack.c.l.b16 %v1504
  %v1577 = vunpack.c.h.b16 %v1504
  %v1578 = vunpack.c.l.b16 %v1505
  %v1579 = vunpack.c.h.b16 %v1505
  %v1580 = vunpack.c.l.b16 %v1506
  %v1581 = vunpack.c.h.b16 %v1506
  %v1582 = vunpack.c.l.b16 %v1507
  %v1583 = vunpack.c.h.b16 %v1507
  %v1584 = vunpack.c.l.b16 %v1508
  %v1585 = vunpack.c.h.b16 %v1508
  %v1586 = vunpack.c.l.b16 %v1509
  %v1587 = vunpack.c.h.b16 %v1509
  %v1588 = vunpack.c.l.b16 %v1510
  %v1589 = vunpack.c.h.b16 %v1510
  %v1590 = vunpack.c.l.b16 %v1511
  %v1591 = vunpack.c.h.b16 %v1511
  %v1592 = vunpack.c.l.b16 %v1512
  %v1593 = vunpack.c.h.b16 %v1512
  %v1594 = vunpack.c.l.b16 %v1513
  %v1595 = vunpack.c.h.b16 %v1513
  %v1596 = vunpack.c.l.b16 %v1514
  %v1597 = vunpack.c.h.b16 %v1514
  %v1598 = vunpack.c.l.b16 %v1515
  %v1599 = vunpack.c.h.b16 %v1515
  %v1600 = vunpack.c.l.b16 %v1516
  %v1601 = vunpack.c.h.b16 %v1516
  %v1602 = vunpack.c.l.b16 %v1517
  %v1603 = vunpack.c.h.b16 %v1517
  %v1604 = vunpack.c.l.b16 %v1518
  %v1605 = vunpack.c.h.b16 %v1518
  %v1606 = vunpack.c.l.b16 %v1519
  %v1607 = vunpack.c.h.b16 %v1519
  %v1608 = vunpack.c.l.b16 %v1520
  %v1609 = vunpack.c.h.b16 %v1520
  %v1610 = vunpack.c.l.b16 %v1521
  %v1611 = vunpack.c.h.b16 %v1521
  %v1612 = vunpack.c.l.b16 %v1522
  %v1613 = vunpack.c.h.b16 %v1522
  %v1614 = vunpack.c.l.b16 %v1523
  %v1615 = vunpack.c.h.b16 %v1523
  %v1616 = vunpack.c.l.b16 %v1524
  %v1617 = vunpack.c.h.b16 %v1524
  %v1618 = vunpack.c.l.b16 %v1525
  %v1619 = vunpack.c.h.b16 %v1525
  %v1620 = vunpack.c.l.b16 %v1526
  %v1621 = vunpack.c.h.b16 %v1526
  %v1622 = vunpack.c.l.b16 %v1527
  %v1623 = vunpack.c.h.b16 %v1527
  %v1624 = vunpack.c.l.b16 %v1528
  %v1625 = vunpack.c.h.b16 %v1528
  %v1626 = vunpack.c.l.b16 %v1529
  %v1627 = vunpack.c.h.b16 %v1529
  %v1628 = vunpack.c.l.b16 %v1530
  %v1629 = vunpack.c.h.b16 %v1530
  %v1630 = vunpack.c.l.b16 %v1531
  %v1631 = vunpack.c.h.b16 %v1531
  %v1632 = vunpack.c.l.b16 %v1532
  %v1633 = vunpack.c.h.b16 %v1532
  %v1634 = vunpack.c.l.b16 %v1533
  %v1635 = vunpack.c.h.b16 %v1533
  %v1636 = vunpack.c.l.b16 %v1534
  %v1637 = vunpack.c.h.b16 %v1534
  %v1638 = vpack.c.b16 %v1576, %v1574
  %v1639 = vpack.c.b16 %v1577, %v1575
  %v1640 = vpack.c.b16 %v1580, %v1578
  %v1641 = vpack.c.b16 %v1581, %v1579
  %v1642 = vpack.c.b16 %v1584, %v1582
  %v1643 = vpack.c.b16 %v1585, %v1583
  %v1644 = vpack.c.b16 %v1588, %v1586
  %v1645 = vpack.c.b16 %v1589, %v1587
  %v1646 = vpack.c.b16 %v1592, %v1590
  %v1647 = vpack.c.b16 %v1593, %v1591
  %v1648 = vpack.c.b16 %v1596, %v1594
  %v1649 = vpack.c.b16 %v1597, %v1595
  %v1650 = vpack.c.b16 %v1600, %v1598
  %v1651 = vpack.c.b16 %v1601, %v1599
  %v1652 = vpack.c.b16 %v1604, %v1602
  %v1653 = vpack.c.b16 %v1605, %v1603
  %v1654 = vpack.c.b16 %v1608, %v1606
  %v1655 = vpack.c.b16 %v1609, %v1607
  %v1656 = vpack.c.b16 %v1612, %v1610
  %v1657 = vpack.c.b16 %v1613, %v1611
  %v1658 = vpack.c.b16 %v1616, %v1614
  %v1659 = vpack.c.b16 %v1617, %v1615
  %v1660 = vpack.c.b16 %v1620, %v1618
  %v1661 = vpack.c.b16 %v1621, %v1619
  %v1662 = vpack.c.b16 %v1624, %v1622
  %v1663 = vpack.c.b16 %v1625, %v1623
  %v1664 = vpack.c.b16 %v1628, %v1626
  %v1665 = vpack.c.b16 %v1629, %v1627
  %v1666 = vpack.c.b16 %v1632, %v1630
  %v1667 = vpack.c.b16 %v1633, %v1631
  %v1668 = vpack.c.b16 %v1636, %v1634
  %v1669 = vpack.c.b16 %v1637, %v1635
  %1702 = vmatpush.bf16.msra.mxu0 %v1652
  %1703 = vmatpush.bf16.msra.mxu0 %v1650
  %1704 = vmatpush.bf16.msra.mxu0 %v1648
  %1705 = vmatpush.bf16.msra.mxu0 %v1646
  %1706 = vmatpush.bf16.msra.mxu0 %v1644
  %1707 = vmatpush.bf16.msra.mxu0 %v1642
  %1708 = vmatpush.bf16.msra.mxu0 %v1640
  %1709 = vmatpush.bf16.msra.mxu0 %v1638
  %1710 = vmatmul.bf16.gmra.mxu0 %v1486
  %v1711 = vpop.f32.mrf.mxu0
  %v1712 = vadd.f32 %v1538, %v1711
  %v1713 = vpop.f32.mrf.mxu0
  %v1714 = vadd.f32 %v1538, %v1713
  %1715 = vmatmul.bf16.gmra.mxu0 %v1488
  %v1716 = vpop.f32.mrf.mxu0
  %v1717 = vadd.f32 %v1538, %v1716
  %v1718 = vpop.f32.mrf.mxu0
  %v1719 = vadd.f32 %v1538, %v1718
  %1720 = vmatmul.bf16.gmra.mxu0 %v1490
  %v1721 = vpop.f32.mrf.mxu0
  %v1722 = vadd.f32 %v1538, %v1721
  %v1723 = vpop.f32.mrf.mxu0
  %v1724 = vadd.f32 %v1538, %v1723
  %1725 = vmatmul.bf16.gmra.mxu0 %v1492
  %v1726 = vpop.f32.mrf.mxu0
  %v1727 = vadd.f32 %v1538, %v1726
  %v1728 = vpop.f32.mrf.mxu0
  %v1729 = vadd.f32 %v1538, %v1728
  %1730 = vmatmul.bf16.gmra.mxu0 %v1494
  %v1731 = vpop.f32.mrf.mxu0
  %v1732 = vadd.f32 %v1538, %v1731
  %v1733 = vpop.f32.mrf.mxu0
  %v1734 = vadd.f32 %v1538, %v1733
  %1735 = vmatmul.bf16.gmra.mxu0 %v1496
  %v1736 = vpop.f32.mrf.mxu0
  %v1737 = vadd.f32 %v1538, %v1736
  %v1738 = vpop.f32.mrf.mxu0
  %v1739 = vadd.f32 %v1538, %v1738
  %1740 = vmatmul.bf16.gmra.mxu0 %v1498
  %v1741 = vpop.f32.mrf.mxu0
  %v1742 = vadd.f32 %v1538, %v1741
  %v1743 = vpop.f32.mrf.mxu0
  %v1744 = vadd.f32 %v1538, %v1743
  %1745 = vmatmul.bf16.gmra.mxu0 %v1500
  %v1746 = vpop.f32.mrf.mxu0
  %v1747 = vadd.f32 %v1538, %v1746
  %v1748 = vpop.f32.mrf.mxu0
  %v1749 = vadd.f32 %v1538, %v1748
  %1750 = vdwg.mxu0
  %1751 = vmatpush.bf16.msra.mxu0 %v1668
  %1752 = vmatpush.bf16.msra.mxu0 %v1666
  %1753 = vmatpush.bf16.msra.mxu0 %v1664
  %1754 = vmatpush.bf16.msra.mxu0 %v1662
  %1755 = vmatpush.bf16.msra.mxu0 %v1660
  %1756 = vmatpush.bf16.msra.mxu0 %v1658
  %1757 = vmatpush.bf16.msra.mxu0 %v1656
  %1758 = vmatpush.bf16.msra.mxu0 %v1654
  %1759 = vmatmul.bf16.gmra.mxu0 %v1487
  %v1760 = vpop.f32.mrf.mxu0
  %v1761 = vadd.f32 %v1712, %v1760
  %v1762 = vpop.f32.mrf.mxu0
  %v1763 = vadd.f32 %v1714, %v1762
  %1764 = vmatmul.bf16.gmra.mxu0 %v1489
  %v1765 = vpop.f32.mrf.mxu0
  %v1766 = vadd.f32 %v1717, %v1765
  %v1767 = vpop.f32.mrf.mxu0
  %v1768 = vadd.f32 %v1719, %v1767
  %1769 = vmatmul.bf16.gmra.mxu0 %v1491
  %v1770 = vpop.f32.mrf.mxu0
  %v1771 = vadd.f32 %v1722, %v1770
  %v1772 = vpop.f32.mrf.mxu0
  %v1773 = vadd.f32 %v1724, %v1772
  %1774 = vmatmul.bf16.gmra.mxu0 %v1493
  %v1775 = vpop.f32.mrf.mxu0
  %v1776 = vadd.f32 %v1727, %v1775
  %v1777 = vpop.f32.mrf.mxu0
  %v1778 = vadd.f32 %v1729, %v1777
  %1779 = vmatmul.bf16.gmra.mxu0 %v1495
  %v1780 = vpop.f32.mrf.mxu0
  %v1781 = vadd.f32 %v1732, %v1780
  %v1782 = vpop.f32.mrf.mxu0
  %v1783 = vadd.f32 %v1734, %v1782
  %1784 = vmatmul.bf16.gmra.mxu0 %v1497
  %v1785 = vpop.f32.mrf.mxu0
  %v1786 = vadd.f32 %v1737, %v1785
  %v1787 = vpop.f32.mrf.mxu0
  %v1788 = vadd.f32 %v1739, %v1787
  %1789 = vmatmul.bf16.gmra.mxu0 %v1499
  %v1790 = vpop.f32.mrf.mxu0
  %v1791 = vadd.f32 %v1742, %v1790
  %v1792 = vpop.f32.mrf.mxu0
  %v1793 = vadd.f32 %v1744, %v1792
  %1794 = vmatmul.bf16.gmra.mxu0 %v1501
  %v1795 = vpop.f32.mrf.mxu0
  %v1796 = vadd.f32 %v1747, %v1795
  %v1797 = vpop.f32.mrf.mxu0
  %v1798 = vadd.f32 %v1749, %v1797
  %1799 = vdwg.mxu0
  %1800 = vmatpush.bf16.msra.mxu0 %v1653
  %1801 = vmatpush.bf16.msra.mxu0 %v1651
  %1802 = vmatpush.bf16.msra.mxu0 %v1649
  %1803 = vmatpush.bf16.msra.mxu0 %v1647
  %1804 = vmatpush.bf16.msra.mxu0 %v1645
  %1805 = vmatpush.bf16.msra.mxu0 %v1643
  %1806 = vmatpush.bf16.msra.mxu0 %v1641
  %1807 = vmatpush.bf16.msra.mxu0 %v1639
  %1808 = vmatmul.bf16.gmra.mxu0 %v1486
  %v1809 = vpop.f32.mrf.mxu0
  %v1810 = vadd.f32 %v1539, %v1809
  %v1811 = vpop.f32.mrf.mxu0
  %v1812 = vadd.f32 %v1539, %v1811
  %1813 = vmatmul.bf16.gmra.mxu0 %v1488
  %v1814 = vpop.f32.mrf.mxu0
  %v1815 = vadd.f32 %v1539, %v1814
  %v1816 = vpop.f32.mrf.mxu0
  %v1817 = vadd.f32 %v1539, %v1816
  %1818 = vmatmul.bf16.gmra.mxu0 %v1490
  %v1819 = vpop.f32.mrf.mxu0
  %v1820 = vadd.f32 %v1539, %v1819
  %v1821 = vpop.f32.mrf.mxu0
  %v1822 = vadd.f32 %v1539, %v1821
  %1823 = vmatmul.bf16.gmra.mxu0 %v1492
  %v1824 = vpop.f32.mrf.mxu0
  %v1825 = vadd.f32 %v1539, %v1824
  %v1826 = vpop.f32.mrf.mxu0
  %v1827 = vadd.f32 %v1539, %v1826
  %1828 = vmatmul.bf16.gmra.mxu0 %v1494
  %v1829 = vpop.f32.mrf.mxu0
  %v1830 = vadd.f32 %v1539, %v1829
  %v1831 = vpop.f32.mrf.mxu0
  %v1832 = vadd.f32 %v1539, %v1831
  %1833 = vmatmul.bf16.gmra.mxu0 %v1496
  %v1834 = vpop.f32.mrf.mxu0
  %v1835 = vadd.f32 %v1539, %v1834
  %v1836 = vpop.f32.mrf.mxu0
  %v1837 = vadd.f32 %v1539, %v1836
  %1838 = vmatmul.bf16.gmra.mxu0 %v1498
  %v1839 = vpop.f32.mrf.mxu0
  %v1840 = vadd.f32 %v1539, %v1839
  %v1841 = vpop.f32.mrf.mxu0
  %v1842 = vadd.f32 %v1539, %v1841
  %1843 = vmatmul.bf16.gmra.mxu0 %v1500
  %v1844 = vpop.f32.mrf.mxu0
  %v1845 = vadd.f32 %v1539, %v1844
  %v1846 = vpop.f32.mrf.mxu0
  %v1847 = vadd.f32 %v1539, %v1846
  %1848 = vdwg.mxu0
  %1849 = vmatpush.bf16.msra.mxu0 %v1669
  %1850 = vmatpush.bf16.msra.mxu0 %v1667
  %1851 = vmatpush.bf16.msra.mxu0 %v1665
  %1852 = vmatpush.bf16.msra.mxu0 %v1663
  %1853 = vmatpush.bf16.msra.mxu0 %v1661
  %1854 = vmatpush.bf16.msra.mxu0 %v1659
  %1855 = vmatpush.bf16.msra.mxu0 %v1657
  %1856 = vmatpush.bf16.msra.mxu0 %v1655
  %1857 = vmatmul.bf16.gmra.mxu0 %v1487
  %v1858 = vpop.f32.mrf.mxu0
  %v1859 = vadd.f32 %v1810, %v1858
  %v1860 = vpop.f32.mrf.mxu0
  %v1861 = vadd.f32 %v1812, %v1860
  %1862 = vmatmul.bf16.gmra.mxu0 %v1489
  %v1863 = vpop.f32.mrf.mxu0
  %v1864 = vadd.f32 %v1815, %v1863
  %v1865 = vpop.f32.mrf.mxu0
  %v1866 = vadd.f32 %v1817, %v1865
  %1867 = vmatmul.bf16.gmra.mxu0 %v1491
  %v1868 = vpop.f32.mrf.mxu0
  %v1869 = vadd.f32 %v1820, %v1868
  %v1870 = vpop.f32.mrf.mxu0
  %v1871 = vadd.f32 %v1822, %v1870
  %1872 = vmatmul.bf16.gmra.mxu0 %v1493
  %v1873 = vpop.f32.mrf.mxu0
  %v1874 = vadd.f32 %v1825, %v1873
  %v1875 = vpop.f32.mrf.mxu0
  %v1876 = vadd.f32 %v1827, %v1875
  %1877 = vmatmul.bf16.gmra.mxu0 %v1495
  %v1878 = vpop.f32.mrf.mxu0
  %v1879 = vadd.f32 %v1830, %v1878
  %v1880 = vpop.f32.mrf.mxu0
  %v1881 = vadd.f32 %v1832, %v1880
  %1882 = vmatmul.bf16.gmra.mxu0 %v1497
  %v1883 = vpop.f32.mrf.mxu0
  %v1884 = vadd.f32 %v1835, %v1883
  %v1885 = vpop.f32.mrf.mxu0
  %v1886 = vadd.f32 %v1837, %v1885
  %1887 = vmatmul.bf16.gmra.mxu0 %v1499
  %v1888 = vpop.f32.mrf.mxu0
  %v1889 = vadd.f32 %v1840, %v1888
  %v1890 = vpop.f32.mrf.mxu0
  %v1891 = vadd.f32 %v1842, %v1890
  %1892 = vmatmul.bf16.gmra.mxu0 %v1501
  %v1893 = vpop.f32.mrf.mxu0
  %v1894 = vadd.f32 %v1845, %v1893
  %v1895 = vpop.f32.mrf.mxu0
  %v1896 = vadd.f32 %v1847, %v1895
  %1897 = vdwg.mxu0
  %v1898 = vmax.f32 %v1761, 0.0
  %v1899 = vmax.f32 %v1859, 0.0
  %v1900 = vmax.f32 %v1763, 0.0
  %v1901 = vmax.f32 %v1861, 0.0
  %v1902 = vmax.f32 %v1766, 0.0
  %v1903 = vmax.f32 %v1864, 0.0
  %v1904 = vmax.f32 %v1768, 0.0
  %v1905 = vmax.f32 %v1866, 0.0
  %v1906 = vmax.f32 %v1771, 0.0
  %v1907 = vmax.f32 %v1869, 0.0
  %v1908 = vmax.f32 %v1773, 0.0
  %v1909 = vmax.f32 %v1871, 0.0
  %v1910 = vmax.f32 %v1776, 0.0
  %v1911 = vmax.f32 %v1874, 0.0
  %v1912 = vmax.f32 %v1778, 0.0
  %v1913 = vmax.f32 %v1876, 0.0
  %v1914 = vmax.f32 %v1781, 0.0
  %v1915 = vmax.f32 %v1879, 0.0
  %v1916 = vmax.f32 %v1783, 0.0
  %v1917 = vmax.f32 %v1881, 0.0
  %v1918 = vmax.f32 %v1786, 0.0
  %v1919 = vmax.f32 %v1884, 0.0
  %v1920 = vmax.f32 %v1788, 0.0
  %v1921 = vmax.f32 %v1886, 0.0
  %v1922 = vmax.f32 %v1791, 0.0
  %v1923 = vmax.f32 %v1889, 0.0
  %v1924 = vmax.f32 %v1793, 0.0
  %v1925 = vmax.f32 %v1891, 0.0
  %v1926 = vmax.f32 %v1796, 0.0
  %v1927 = vmax.f32 %v1894, 0.0
  %v1928 = vmax.f32 %v1798, 0.0
  %v1929 = vmax.f32 %v1896, 0.0
  %v1930 = vpack.c.bf16 %v1900, %v1898
  %v1931 = vpack.c.bf16 %v1901, %v1899
  %v1932 = vpack.c.bf16 %v1904, %v1902
  %v1933 = vpack.c.bf16 %v1905, %v1903
  %v1934 = vpack.c.bf16 %v1908, %v1906
  %v1935 = vpack.c.bf16 %v1909, %v1907
  %v1936 = vpack.c.bf16 %v1912, %v1910
  %v1937 = vpack.c.bf16 %v1913, %v1911
  %v1938 = vpack.c.bf16 %v1916, %v1914
  %v1939 = vpack.c.bf16 %v1917, %v1915
  %v1940 = vpack.c.bf16 %v1920, %v1918
  %v1941 = vpack.c.bf16 %v1921, %v1919
  %v1942 = vpack.c.bf16 %v1924, %v1922
  %v1943 = vpack.c.bf16 %v1925, %v1923
  %v1944 = vpack.c.bf16 %v1928, %v1926
  %v1945 = vpack.c.bf16 %v1929, %v1927
  %s1946 = scalar_lea.vmem %s4, 768
  %v1947 = vld [vmem:[%s1946] sm:$0xff]
  %v1948 = vld [vmem:[%s1946 + $0x8] sm:$0xff]
  %v1949 = vld [vmem:[%s1946 + $0x10] sm:$0xff]
  %v1950 = vld [vmem:[%s1946 + $0x18] sm:$0xff]
  %v1951 = vld [vmem:[%s1946 + $0x20] sm:$0xff]
  %v1952 = vld [vmem:[%s1946 + $0x28] sm:$0xff]
  %v1953 = vld [vmem:[%s1946 + $0x30] sm:$0xff]
  %v1954 = vld [vmem:[%s1946 + $0x38] sm:$0xff]
  %v1955 = vld [vmem:[%s1946 + $0x40] sm:$0xff]
  %v1956 = vld [vmem:[%s1946 + $0x48] sm:$0xff]
  %v1957 = vld [vmem:[%s1946 + $0x50] sm:$0xff]
  %v1958 = vld [vmem:[%s1946 + $0x58] sm:$0xff]
  %v1959 = vld [vmem:[%s1946 + $0x60] sm:$0xff]
  %v1960 = vld [vmem:[%s1946 + $0x68] sm:$0xff]
  %v1961 = vld [vmem:[%s1946 + $0x70] sm:$0xff]
  %v1962 = vld [vmem:[%s1946 + $0x78] sm:$0xff]
  %v1963 = vld [vmem:[%s1946 + $0x80] sm:$0xff]
  %v1964 = vld [vmem:[%s1946 + $0x88] sm:$0xff]
  %v1965 = vld [vmem:[%s1946 + $0x90] sm:$0xff]
  %v1966 = vld [vmem:[%s1946 + $0x98] sm:$0xff]
  %v1967 = vld [vmem:[%s1946 + $0xa0] sm:$0xff]
  %v1968 = vld [vmem:[%s1946 + $0xa8] sm:$0xff]
  %v1969 = vld [vmem:[%s1946 + $0xb0] sm:$0xff]
  %v1970 = vld [vmem:[%s1946 + $0xb8] sm:$0xff]
  %v1971 = vld [vmem:[%s1946 + $0xc0] sm:$0xff]
  %v1972 = vld [vmem:[%s1946 + $0xc8] sm:$0xff]
  %v1973 = vld [vmem:[%s1946 + $0xd0] sm:$0xff]
  %v1974 = vld [vmem:[%s1946 + $0xd8] sm:$0xff]
  %v1975 = vld [vmem:[%s1946 + $0xe0] sm:$0xff]
  %v1976 = vld [vmem:[%s1946 + $0xe8] sm:$0xff]
  %v1977 = vld [vmem:[%s1946 + $0xf0] sm:$0xff]
  %v1978 = vld [vmem:[%s1946 + $0xf8] sm:$0xff]
  %s1979 = scalar_lea.vmem %s4, 1024
  %v1980 = vld [vmem:[%s1979] sm:$0xff]
  %v1981 = vld [vmem:[%s1979 + $0x8] sm:$0xff]
  %v1982 = vld [vmem:[%s1979 + $0x10] sm:$0xff]
  %v1983 = vld [vmem:[%s1979 + $0x18] sm:$0xff]
  %v1984 = vld [vmem:[%s1979 + $0x20] sm:$0xff]
  %v1985 = vld [vmem:[%s1979 + $0x28] sm:$0xff]
  %v1986 = vld [vmem:[%s1979 + $0x30] sm:$0xff]
  %v1987 = vld [vmem:[%s1979 + $0x38] sm:$0xff]
  %v1988 = vld [vmem:[%s1979 + $0x40] sm:$0xff]
  %v1989 = vld [vmem:[%s1979 + $0x48] sm:$0xff]
  %v1990 = vld [vmem:[%s1979 + $0x50] sm:$0xff]
  %v1991 = vld [vmem:[%s1979 + $0x58] sm:$0xff]
  %v1992 = vld [vmem:[%s1979 + $0x60] sm:$0xff]
  %v1993 = vld [vmem:[%s1979 + $0x68] sm:$0xff]
  %v1994 = vld [vmem:[%s1979 + $0x70] sm:$0xff]
  %v1995 = vld [vmem:[%s1979 + $0x78] sm:$0xff]
  %v1996 = vld [vmem:[%s1979 + $0x80] sm:$0xff]
  %v1997 = vld [vmem:[%s1979 + $0x88] sm:$0xff]
  %v1998 = vld [vmem:[%s1979 + $0x90] sm:$0xff]
  %v1999 = vld [vmem:[%s1979 + $0x98] sm:$0xff]
  %v2000 = vld [vmem:[%s1979 + $0xa0] sm:$0xff]
  %v2001 = vld [vmem:[%s1979 + $0xa8] sm:$0xff]
  %v2002 = vld [vmem:[%s1979 + $0xb0] sm:$0xff]
  %v2003 = vld [vmem:[%s1979 + $0xb8] sm:$0xff]
  %v2004 = vld [vmem:[%s1979 + $0xc0] sm:$0xff]
  %v2005 = vld [vmem:[%s1979 + $0xc8] sm:$0xff]
  %v2006 = vld [vmem:[%s1979 + $0xd0] sm:$0xff]
  %v2007 = vld [vmem:[%s1979 + $0xd8] sm:$0xff]
  %v2008 = vld [vmem:[%s1979 + $0xe0] sm:$0xff]
  %v2009 = vld [vmem:[%s1979 + $0xe8] sm:$0xff]
  %v2010 = vld [vmem:[%s1979 + $0xf0] sm:$0xff]
  %v2011 = vld [vmem:[%s1979 + $0xf8] sm:$0xff]
  %v2044 = vunpack.c.l.b16 %v1980
  %v2045 = vunpack.c.h.b16 %v1980
  %v2046 = vunpack.c.l.b16 %v1981
  %v2047 = vunpack.c.h.b16 %v1981
  %v2048 = vunpack.c.l.b16 %v1982
  %v2049 = vunpack.c.h.b16 %v1982
  %v2050 = vunpack.c.l.b16 %v1983
  %v2051 = vunpack.c.h.b16 %v1983
  %v2052 = vunpack.c.l.b16 %v1984
  %v2053 = vunpack.c.h.b16 %v1984
  %v2054 = vunpack.c.l.b16 %v1985
  %v2055 = vunpack.c.h.b16 %v1985
  %v2056 = vunpack.c.l.b16 %v1986
  %v2057 = vunpack.c.h.b16 %v1986
  %v2058 = vunpack.c.l.b16 %v1987
  %v2059 = vunpack.c.h.b16 %v1987
  %v2060 = vunpack.c.l.b16 %v1988
  %v2061 = vunpack.c.h.b16 %v1988
  %v2062 = vunpack.c.l.b16 %v1989
  %v2063 = vunpack.c.h.b16 %v1989
  %v2064 = vunpack.c.l.b16 %v1990
  %v2065 = vunpack.c.h.b16 %v1990
  %v2066 = vunpack.c.l.b16 %v1991
  %v2067 = vunpack.c.h.b16 %v1991
  %v2068 = vunpack.c.l.b16 %v1992
  %v2069 = vunpack.c.h.b16 %v1992
  %v2070 = vunpack.c.l.b16 %v1993
  %v2071 = vunpack.c.h.b16 %v1993
  %v2072 = vunpack.c.l.b16 %v1994
  %v2073 = vunpack.c.h.b16 %v1994
  %v2074 = vunpack.c.l.b16 %v1995
  %v2075 = vunpack.c.h.b16 %v1995
  %v2076 = vunpack.c.l.b16 %v1996
  %v2077 = vunpack.c.h.b16 %v1996
  %v2078 = vunpack.c.l.b16 %v1997
  %v2079 = vunpack.c.h.b16 %v1997
  %v2080 = vunpack.c.l.b16 %v1998
  %v2081 = vunpack.c.h.b16 %v1998
  %v2082 = vunpack.c.l.b16 %v1999
  %v2083 = vunpack.c.h.b16 %v1999
  %v2084 = vunpack.c.l.b16 %v2000
  %v2085 = vunpack.c.h.b16 %v2000
  %v2086 = vunpack.c.l.b16 %v2001
  %v2087 = vunpack.c.h.b16 %v2001
  %v2088 = vunpack.c.l.b16 %v2002
  %v2089 = vunpack.c.h.b16 %v2002
  %v2090 = vunpack.c.l.b16 %v2003
  %v2091 = vunpack.c.h.b16 %v2003
  %v2092 = vunpack.c.l.b16 %v2004
  %v2093 = vunpack.c.h.b16 %v2004
  %v2094 = vunpack.c.l.b16 %v2005
  %v2095 = vunpack.c.h.b16 %v2005
  %v2096 = vunpack.c.l.b16 %v2006
  %v2097 = vunpack.c.h.b16 %v2006
  %v2098 = vunpack.c.l.b16 %v2007
  %v2099 = vunpack.c.h.b16 %v2007
  %v2100 = vunpack.c.l.b16 %v2008
  %v2101 = vunpack.c.h.b16 %v2008
  %v2102 = vunpack.c.l.b16 %v2009
  %v2103 = vunpack.c.h.b16 %v2009
  %v2104 = vunpack.c.l.b16 %v2010
  %v2105 = vunpack.c.h.b16 %v2010
  %v2106 = vunpack.c.l.b16 %v2011
  %v2107 = vunpack.c.h.b16 %v2011
  %v2108 = vpack.c.b16 %v2046, %v2044
  %v2109 = vpack.c.b16 %v2047, %v2045
  %v2110 = vpack.c.b16 %v2050, %v2048
  %v2111 = vpack.c.b16 %v2051, %v2049
  %v2112 = vpack.c.b16 %v2054, %v2052
  %v2113 = vpack.c.b16 %v2055, %v2053
  %v2114 = vpack.c.b16 %v2058, %v2056
  %v2115 = vpack.c.b16 %v2059, %v2057
  %v2116 = vpack.c.b16 %v2062, %v2060
  %v2117 = vpack.c.b16 %v2063, %v2061
  %v2118 = vpack.c.b16 %v2066, %v2064
  %v2119 = vpack.c.b16 %v2067, %v2065
  %v2120 = vpack.c.b16 %v2070, %v2068
  %v2121 = vpack.c.b16 %v2071, %v2069
  %v2122 = vpack.c.b16 %v2074, %v2072
  %v2123 = vpack.c.b16 %v2075, %v2073
  %v2124 = vpack.c.b16 %v2078, %v2076
  %v2125 = vpack.c.b16 %v2079, %v2077
  %v2126 = vpack.c.b16 %v2082, %v2080
  %v2127 = vpack.c.b16 %v2083, %v2081
  %v2128 = vpack.c.b16 %v2086, %v2084
  %v2129 = vpack.c.b16 %v2087, %v2085
  %v2130 = vpack.c.b16 %v2090, %v2088
  %v2131 = vpack.c.b16 %v2091, %v2089
  %v2132 = vpack.c.b16 %v2094, %v2092
  %v2133 = vpack.c.b16 %v2095, %v2093
  %v2134 = vpack.c.b16 %v2098, %v2096
  %v2135 = vpack.c.b16 %v2099, %v2097
  %v2136 = vpack.c.b16 %v2102, %v2100
  %v2137 = vpack.c.b16 %v2103, %v2101
  %v2138 = vpack.c.b16 %v2106, %v2104
  %v2139 = vpack.c.b16 %v2107, %v2105
  %2172 = vmatpush.bf16.msra.mxu0 %v2122
  %2173 = vmatpush.bf16.msra.mxu0 %v2120
  %2174 = vmatpush.bf16.msra.mxu0 %v2118
  %2175 = vmatpush.bf16.msra.mxu0 %v2116
  %2176 = vmatpush.bf16.msra.mxu0 %v2114
  %2177 = vmatpush.bf16.msra.mxu0 %v2112
  %2178 = vmatpush.bf16.msra.mxu0 %v2110
  %2179 = vmatpush.bf16.msra.mxu0 %v2108
  %2180 = vmatmul.bf16.gmra.mxu0 %v1930
  %v2181 = vpop.f32.mrf.mxu0
  %v2182 = vadd.f32 0.0, %v2181
  %v2183 = vpop.f32.mrf.mxu0
  %v2184 = vadd.f32 0.0, %v2183
  %2185 = vmatmul.bf16.gmra.mxu0 %v1932
  %v2186 = vpop.f32.mrf.mxu0
  %v2187 = vadd.f32 0.0, %v2186
  %v2188 = vpop.f32.mrf.mxu0
  %v2189 = vadd.f32 0.0, %v2188
  %2190 = vmatmul.bf16.gmra.mxu0 %v1934
  %v2191 = vpop.f32.mrf.mxu0
  %v2192 = vadd.f32 0.0, %v2191
  %v2193 = vpop.f32.mrf.mxu0
  %v2194 = vadd.f32 0.0, %v2193
  %2195 = vmatmul.bf16.gmra.mxu0 %v1936
  %v2196 = vpop.f32.mrf.mxu0
  %v2197 = vadd.f32 0.0, %v2196
  %v2198 = vpop.f32.mrf.mxu0
  %v2199 = vadd.f32 0.0, %v2198
  %2200 = vmatmul.bf16.gmra.mxu0 %v1938
  %v2201 = vpop.f32.mrf.mxu0
  %v2202 = vadd.f32 0.0, %v2201
  %v2203 = vpop.f32.mrf.mxu0
  %v2204 = vadd.f32 0.0, %v2203
  %2205 = vmatmul.bf16.gmra.mxu0 %v1940
  %v2206 = vpop.f32.mrf.mxu0
  %v2207 = vadd.f32 0.0, %v2206
  %v2208 = vpop.f32.mrf.mxu0
  %v2209 = vadd.f32 0.0, %v2208
  %2210 = vmatmul.bf16.gmra.mxu0 %v1942
  %v2211 = vpop.f32.mrf.mxu0
  %v2212 = vadd.f32 0.0, %v2211
  %v2213 = vpop.f32.mrf.mxu0
  %v2214 = vadd.f32 0.0, %v2213
  %2215 = vmatmul.bf16.gmra.mxu0 %v1944
  %v2216 = vpop.f32.mrf.mxu0
  %v2217 = vadd.f32 0.0, %v2216
  %v2218 = vpop.f32.mrf.mxu0
  %v2219 = vadd.f32 0.0, %v2218
  %2220 = vdwg.mxu0
  %2221 = vmatpush.bf16.msra.mxu0 %v2138
  %2222 = vmatpush.bf16.msra.mxu0 %v2136
  %2223 = vmatpush.bf16.msra.mxu0 %v2134
  %2224 = vmatpush.bf16.msra.mxu0 %v2132
  %2225 = vmatpush.bf16.msra.mxu0 %v2130
  %2226 = vmatpush.bf16.msra.mxu0 %v2128
  %2227 = vmatpush.bf16.msra.mxu0 %v2126
  %2228 = vmatpush.bf16.msra.mxu0 %v2124
  %2229 = vmatmul.bf16.gmra.mxu0 %v1931
  %v2230 = vpop.f32.mrf.mxu0
  %v2231 = vadd.f32 %v2182, %v2230
  %v2232 = vpop.f32.mrf.mxu0
  %v2233 = vadd.f32 %v2184, %v2232
  %2234 = vmatmul.bf16.gmra.mxu0 %v1933
  %v2235 = vpop.f32.mrf.mxu0
  %v2236 = vadd.f32 %v2187, %v2235
  %v2237 = vpop.f32.mrf.mxu0
  %v2238 = vadd.f32 %v2189, %v2237
  %2239 = vmatmul.bf16.gmra.mxu0 %v1935
  %v2240 = vpop.f32.mrf.mxu0
  %v2241 = vadd.f32 %v2192, %v2240
  %v2242 = vpop.f32.mrf.mxu0
  %v2243 = vadd.f32 %v2194, %v2242
  %2244 = vmatmul.bf16.gmra.mxu0 %v1937
  %v2245 = vpop.f32.mrf.mxu0
  %v2246 = vadd.f32 %v2197, %v2245
  %v2247 = vpop.f32.mrf.mxu0
  %v2248 = vadd.f32 %v2199, %v2247
  %2249 = vmatmul.bf16.gmra.mxu0 %v1939
  %v2250 = vpop.f32.mrf.mxu0
  %v2251 = vadd.f32 %v2202, %v2250
  %v2252 = vpop.f32.mrf.mxu0
  %v2253 = vadd.f32 %v2204, %v2252
  %2254 = vmatmul.bf16.gmra.mxu0 %v1941
  %v2255 = vpop.f32.mrf.mxu0
  %v2256 = vadd.f32 %v2207, %v2255
  %v2257 = vpop.f32.mrf.mxu0
  %v2258 = vadd.f32 %v2209, %v2257
  %2259 = vmatmul.bf16.gmra.mxu0 %v1943
  %v2260 = vpop.f32.mrf.mxu0
  %v2261 = vadd.f32 %v2212, %v2260
  %v2262 = vpop.f32.mrf.mxu0
  %v2263 = vadd.f32 %v2214, %v2262
  %2264 = vmatmul.bf16.gmra.mxu0 %v1945
  %v2265 = vpop.f32.mrf.mxu0
  %v2266 = vadd.f32 %v2217, %v2265
  %v2267 = vpop.f32.mrf.mxu0
  %v2268 = vadd.f32 %v2219, %v2267
  %2269 = vdwg.mxu0
  %2270 = vmatpush.bf16.msra.mxu0 %v2123
  %2271 = vmatpush.bf16.msra.mxu0 %v2121
  %2272 = vmatpush.bf16.msra.mxu0 %v2119
  %2273 = vmatpush.bf16.msra.mxu0 %v2117
  %2274 = vmatpush.bf16.msra.mxu0 %v2115
  %2275 = vmatpush.bf16.msra.mxu0 %v2113
  %2276 = vmatpush.bf16.msra.mxu0 %v2111
  %2277 = vmatpush.bf16.msra.mxu0 %v2109
  %2278 = vmatmul.bf16.gmra.mxu0 %v1930
  %v2279 = vpop.f32.mrf.mxu0
  %v2280 = vadd.f32 0.0, %v2279
  %v2281 = vpop.f32.mrf.mxu0
  %v2282 = vadd.f32 0.0, %v2281
  %2283 = vmatmul.bf16.gmra.mxu0 %v1932
  %v2284 = vpop.f32.mrf.mxu0
  %v2285 = vadd.f32 0.0, %v2284
  %v2286 = vpop.f32.mrf.mxu0
  %v2287 = vadd.f32 0.0, %v2286
  %2288 = vmatmul.bf16.gmra.mxu0 %v1934
  %v2289 = vpop.f32.mrf.mxu0
  %v2290 = vadd.f32 0.0, %v2289
  %v2291 = vpop.f32.mrf.mxu0
  %v2292 = vadd.f32 0.0, %v2291
  %2293 = vmatmul.bf16.gmra.mxu0 %v1936
  %v2294 = vpop.f32.mrf.mxu0
  %v2295 = vadd.f32 0.0, %v2294
  %v2296 = vpop.f32.mrf.mxu0
  %v2297 = vadd.f32 0.0, %v2296
  %2298 = vmatmul.bf16.gmra.mxu0 %v1938
  %v2299 = vpop.f32.mrf.mxu0
  %v2300 = vadd.f32 0.0, %v2299
  %v2301 = vpop.f32.mrf.mxu0
  %v2302 = vadd.f32 0.0, %v2301
  %2303 = vmatmul.bf16.gmra.mxu0 %v1940
  %v2304 = vpop.f32.mrf.mxu0
  %v2305 = vadd.f32 0.0, %v2304
  %v2306 = vpop.f32.mrf.mxu0
  %v2307 = vadd.f32 0.0, %v2306
  %2308 = vmatmul.bf16.gmra.mxu0 %v1942
  %v2309 = vpop.f32.mrf.mxu0
  %v2310 = vadd.f32 0.0, %v2309
  %v2311 = vpop.f32.mrf.mxu0
  %v2312 = vadd.f32 0.0, %v2311
  %2313 = vmatmul.bf16.gmra.mxu0 %v1944
  %v2314 = vpop.f32.mrf.mxu0
  %v2315 = vadd.f32 0.0, %v2314
  %v2316 = vpop.f32.mrf.mxu0
  %v2317 = vadd.f32 0.0, %v2316
  %2318 = vdwg.mxu0
  %2319 = vmatpush.bf16.msra.mxu0 %v2139
  %2320 = vmatpush.bf16.msra.mxu0 %v2137
  %2321 = vmatpush.bf16.msra.mxu0 %v2135
  %2322 = vmatpush.bf16.msra.mxu0 %v2133
  %2323 = vmatpush.bf16.msra.mxu0 %v2131
  %2324 = vmatpush.bf16.msra.mxu0 %v2129
  %2325 = vmatpush.bf16.msra.mxu0 %v2127
  %2326 = vmatpush.bf16.msra.mxu0 %v2125
  %2327 = vmatmul.bf16.gmra.mxu0 %v1931
  %v2328 = vpop.f32.mrf.mxu0
  %v2329 = vadd.f32 %v2280, %v2328
  %v2330 = vpop.f32.mrf.mxu0
  %v2331 = vadd.f32 %v2282, %v2330
  %2332 = vmatmul.bf16.gmra.mxu0 %v1933
  %v2333 = vpop.f32.mrf.mxu0
  %v2334 = vadd.f32 %v2285, %v2333
  %v2335 = vpop.f32.mrf.mxu0
  %v2336 = vadd.f32 %v2287, %v2335
  %2337 = vmatmul.bf16.gmra.mxu0 %v1935
  %v2338 = vpop.f32.mrf.mxu0
  %v2339 = vadd.f32 %v2290, %v2338
  %v2340 = vpop.f32.mrf.mxu0
  %v2341 = vadd.f32 %v2292, %v2340
  %2342 = vmatmul.bf16.gmra.mxu0 %v1937
  %v2343 = vpop.f32.mrf.mxu0
  %v2344 = vadd.f32 %v2295, %v2343
  %v2345 = vpop.f32.mrf.mxu0
  %v2346 = vadd.f32 %v2297, %v2345
  %2347 = vmatmul.bf16.gmra.mxu0 %v1939
  %v2348 = vpop.f32.mrf.mxu0
  %v2349 = vadd.f32 %v2300, %v2348
  %v2350 = vpop.f32.mrf.mxu0
  %v2351 = vadd.f32 %v2302, %v2350
  %2352 = vmatmul.bf16.gmra.mxu0 %v1941
  %v2353 = vpop.f32.mrf.mxu0
  %v2354 = vadd.f32 %v2305, %v2353
  %v2355 = vpop.f32.mrf.mxu0
  %v2356 = vadd.f32 %v2307, %v2355
  %2357 = vmatmul.bf16.gmra.mxu0 %v1943
  %v2358 = vpop.f32.mrf.mxu0
  %v2359 = vadd.f32 %v2310, %v2358
  %v2360 = vpop.f32.mrf.mxu0
  %v2361 = vadd.f32 %v2312, %v2360
  %2362 = vmatmul.bf16.gmra.mxu0 %v1945
  %v2363 = vpop.f32.mrf.mxu0
  %v2364 = vadd.f32 %v2315, %v2363
  %v2365 = vpop.f32.mrf.mxu0
  %v2366 = vadd.f32 %v2317, %v2365
  %2367 = vdwg.mxu0
  %v2400 = vunpack.c.l.b16 %v1947
  %v2401 = vunpack.c.h.b16 %v1947
  %v2402 = vunpack.c.l.b16 %v1948
  %v2403 = vunpack.c.h.b16 %v1948
  %v2404 = vunpack.c.l.b16 %v1949
  %v2405 = vunpack.c.h.b16 %v1949
  %v2406 = vunpack.c.l.b16 %v1950
  %v2407 = vunpack.c.h.b16 %v1950
  %v2408 = vunpack.c.l.b16 %v1951
  %v2409 = vunpack.c.h.b16 %v1951
  %v2410 = vunpack.c.l.b16 %v1952
  %v2411 = vunpack.c.h.b16 %v1952
  %v2412 = vunpack.c.l.b16 %v1953
  %v2413 = vunpack.c.h.b16 %v1953
  %v2414 = vunpack.c.l.b16 %v1954
  %v2415 = vunpack.c.h.b16 %v1954
  %v2416 = vunpack.c.l.b16 %v1955
  %v2417 = vunpack.c.h.b16 %v1955
  %v2418 = vunpack.c.l.b16 %v1956
  %v2419 = vunpack.c.h.b16 %v1956
  %v2420 = vunpack.c.l.b16 %v1957
  %v2421 = vunpack.c.h.b16 %v1957
  %v2422 = vunpack.c.l.b16 %v1958
  %v2423 = vunpack.c.h.b16 %v1958
  %v2424 = vunpack.c.l.b16 %v1959
  %v2425 = vunpack.c.h.b16 %v1959
  %v2426 = vunpack.c.l.b16 %v1960
  %v2427 = vunpack.c.h.b16 %v1960
  %v2428 = vunpack.c.l.b16 %v1961
  %v2429 = vunpack.c.h.b16 %v1961
  %v2430 = vunpack.c.l.b16 %v1962
  %v2431 = vunpack.c.h.b16 %v1962
  %v2432 = vunpack.c.l.b16 %v1963
  %v2433 = vunpack.c.h.b16 %v1963
  %v2434 = vunpack.c.l.b16 %v1964
  %v2435 = vunpack.c.h.b16 %v1964
  %v2436 = vunpack.c.l.b16 %v1965
  %v2437 = vunpack.c.h.b16 %v1965
  %v2438 = vunpack.c.l.b16 %v1966
  %v2439 = vunpack.c.h.b16 %v1966
  %v2440 = vunpack.c.l.b16 %v1967
  %v2441 = vunpack.c.h.b16 %v1967
  %v2442 = vunpack.c.l.b16 %v1968
  %v2443 = vunpack.c.h.b16 %v1968
  %v2444 = vunpack.c.l.b16 %v1969
  %v2445 = vunpack.c.h.b16 %v1969
  %v2446 = vunpack.c.l.b16 %v1970
  %v2447 = vunpack.c.h.b16 %v1970
  %v2448 = vunpack.c.l.b16 %v1971
  %v2449 = vunpack.c.h.b16 %v1971
  %v2450 = vunpack.c.l.b16 %v1972
  %v2451 = vunpack.c.h.b16 %v1972
  %v2452 = vunpack.c.l.b16 %v1973
  %v2453 = vunpack.c.h.b16 %v1973
  %v2454 = vunpack.c.l.b16 %v1974
  %v2455 = vunpack.c.h.b16 %v1974
  %v2456 = vunpack.c.l.b16 %v1975
  %v2457 = vunpack.c.h.b16 %v1975
  %v2458 = vunpack.c.l.b16 %v1976
  %v2459 = vunpack.c.h.b16 %v1976
  %v2460 = vunpack.c.l.b16 %v1977
  %v2461 = vunpack.c.h.b16 %v1977
  %v2462 = vunpack.c.l.b16 %v1978
  %v2463 = vunpack.c.h.b16 %v1978
  %v2464 = vpack.c.b16 %v2402, %v2400
  %v2465 = vpack.c.b16 %v2403, %v2401
  %v2466 = vpack.c.b16 %v2406, %v2404
  %v2467 = vpack.c.b16 %v2407, %v2405
  %v2468 = vpack.c.b16 %v2410, %v2408
  %v2469 = vpack.c.b16 %v2411, %v2409
  %v2470 = vpack.c.b16 %v2414, %v2412
  %v2471 = vpack.c.b16 %v2415, %v2413
  %v2472 = vpack.c.b16 %v2418, %v2416
  %v2473 = vpack.c.b16 %v2419, %v2417
  %v2474 = vpack.c.b16 %v2422, %v2420
  %v2475 = vpack.c.b16 %v2423, %v2421
  %v2476 = vpack.c.b16 %v2426, %v2424
  %v2477 = vpack.c.b16 %v2427, %v2425
  %v2478 = vpack.c.b16 %v2430, %v2428
  %v2479 = vpack.c.b16 %v2431, %v2429
  %v2480 = vpack.c.b16 %v2434, %v2432
  %v2481 = vpack.c.b16 %v2435, %v2433
  %v2482 = vpack.c.b16 %v2438, %v2436
  %v2483 = vpack.c.b16 %v2439, %v2437
  %v2484 = vpack.c.b16 %v2442, %v2440
  %v2485 = vpack.c.b16 %v2443, %v2441
  %v2486 = vpack.c.b16 %v2446, %v2444
  %v2487 = vpack.c.b16 %v2447, %v2445
  %v2488 = vpack.c.b16 %v2450, %v2448
  %v2489 = vpack.c.b16 %v2451, %v2449
  %v2490 = vpack.c.b16 %v2454, %v2452
  %v2491 = vpack.c.b16 %v2455, %v2453
  %v2492 = vpack.c.b16 %v2458, %v2456
  %v2493 = vpack.c.b16 %v2459, %v2457
  %v2494 = vpack.c.b16 %v2462, %v2460
  %v2495 = vpack.c.b16 %v2463, %v2461
  %2528 = vmatpush.bf16.msra.mxu0 %v2478
  %2529 = vmatpush.bf16.msra.mxu0 %v2476
  %2530 = vmatpush.bf16.msra.mxu0 %v2474
  %2531 = vmatpush.bf16.msra.mxu0 %v2472
  %2532 = vmatpush.bf16.msra.mxu0 %v2470
  %2533 = vmatpush.bf16.msra.mxu0 %v2468
  %2534 = vmatpush.bf16.msra.mxu0 %v2466
  %2535 = vmatpush.bf16.msra.mxu0 %v2464
  %2536 = vmatmul.bf16.gmra.mxu0 %v1042
  %v2537 = vpop.f32.mrf.mxu0
  %v2538 = vadd.f32 %v2231, %v2537
  %v2539 = vpop.f32.mrf.mxu0
  %v2540 = vadd.f32 %v2233, %v2539
  %2541 = vmatmul.bf16.gmra.mxu0 %v1044
  %v2542 = vpop.f32.mrf.mxu0
  %v2543 = vadd.f32 %v2236, %v2542
  %v2544 = vpop.f32.mrf.mxu0
  %v2545 = vadd.f32 %v2238, %v2544
  %2546 = vmatmul.bf16.gmra.mxu0 %v1046
  %v2547 = vpop.f32.mrf.mxu0
  %v2548 = vadd.f32 %v2241, %v2547
  %v2549 = vpop.f32.mrf.mxu0
  %v2550 = vadd.f32 %v2243, %v2549
  %2551 = vmatmul.bf16.gmra.mxu0 %v1048
  %v2552 = vpop.f32.mrf.mxu0
  %v2553 = vadd.f32 %v2246, %v2552
  %v2554 = vpop.f32.mrf.mxu0
  %v2555 = vadd.f32 %v2248, %v2554
  %2556 = vmatmul.bf16.gmra.mxu0 %v1050
  %v2557 = vpop.f32.mrf.mxu0
  %v2558 = vadd.f32 %v2251, %v2557
  %v2559 = vpop.f32.mrf.mxu0
  %v2560 = vadd.f32 %v2253, %v2559
  %2561 = vmatmul.bf16.gmra.mxu0 %v1052
  %v2562 = vpop.f32.mrf.mxu0
  %v2563 = vadd.f32 %v2256, %v2562
  %v2564 = vpop.f32.mrf.mxu0
  %v2565 = vadd.f32 %v2258, %v2564
  %2566 = vmatmul.bf16.gmra.mxu0 %v1054
  %v2567 = vpop.f32.mrf.mxu0
  %v2568 = vadd.f32 %v2261, %v2567
  %v2569 = vpop.f32.mrf.mxu0
  %v2570 = vadd.f32 %v2263, %v2569
  %2571 = vmatmul.bf16.gmra.mxu0 %v1056
  %v2572 = vpop.f32.mrf.mxu0
  %v2573 = vadd.f32 %v2266, %v2572
  %v2574 = vpop.f32.mrf.mxu0
  %v2575 = vadd.f32 %v2268, %v2574
  %2576 = vdwg.mxu0
  %2577 = vmatpush.bf16.msra.mxu0 %v2494
  %2578 = vmatpush.bf16.msra.mxu0 %v2492
  %2579 = vmatpush.bf16.msra.mxu0 %v2490
  %2580 = vmatpush.bf16.msra.mxu0 %v2488
  %2581 = vmatpush.bf16.msra.mxu0 %v2486
  %2582 = vmatpush.bf16.msra.mxu0 %v2484
  %2583 = vmatpush.bf16.msra.mxu0 %v2482
  %2584 = vmatpush.bf16.msra.mxu0 %v2480
  %2585 = vmatmul.bf16.gmra.mxu0 %v1043
  %v2586 = vpop.f32.mrf.mxu0
  %v2587 = vadd.f32 %v2538, %v2586
  %v2588 = vpop.f32.mrf.mxu0
  %v2589 = vadd.f32 %v2540, %v2588
  %2590 = vmatmul.bf16.gmra.mxu0 %v1045
  %v2591 = vpop.f32.mrf.mxu0
  %v2592 = vadd.f32 %v2543, %v2591
  %v2593 = vpop.f32.mrf.mxu0
  %v2594 = vadd.f32 %v2545, %v2593
  %2595 = vmatmul.bf16.gmra.mxu0 %v1047
  %v2596 = vpop.f32.mrf.mxu0
  %v2597 = vadd.f32 %v2548, %v2596
  %v2598 = vpop.f32.mrf.mxu0
  %v2599 = vadd.f32 %v2550, %v2598
  %2600 = vmatmul.bf16.gmra.mxu0 %v1049
  %v2601 = vpop.f32.mrf.mxu0
  %v2602 = vadd.f32 %v2553, %v2601
  %v2603 = vpop.f32.mrf.mxu0
  %v2604 = vadd.f32 %v2555, %v2603
  %2605 = vmatmul.bf16.gmra.mxu0 %v1051
  %v2606 = vpop.f32.mrf.mxu0
  %v2607 = vadd.f32 %v2558, %v2606
  %v2608 = vpop.f32.mrf.mxu0
  %v2609 = vadd.f32 %v2560, %v2608
  %2610 = vmatmul.bf16.gmra.mxu0 %v1053
  %v2611 = vpop.f32.mrf.mxu0
  %v2612 = vadd.f32 %v2563, %v2611
  %v2613 = vpop.f32.mrf.mxu0
  %v2614 = vadd.f32 %v2565, %v2613
  %2615 = vmatmul.bf16.gmra.mxu0 %v1055
  %v2616 = vpop.f32.mrf.mxu0
  %v2617 = vadd.f32 %v2568, %v2616
  %v2618 = vpop.f32.mrf.mxu0
  %v2619 = vadd.f32 %v2570, %v2618
  %2620 = vmatmul.bf16.gmra.mxu0 %v1057
  %v2621 = vpop.f32.mrf.mxu0
  %v2622 = vadd.f32 %v2573, %v2621
  %v2623 = vpop.f32.mrf.mxu0
  %v2624 = vadd.f32 %v2575, %v2623
  %2625 = vdwg.mxu0
  %2626 = vmatpush.bf16.msra.mxu0 %v2479
  %2627 = vmatpush.bf16.msra.mxu0 %v2477
  %2628 = vmatpush.bf16.msra.mxu0 %v2475
  %2629 = vmatpush.bf16.msra.mxu0 %v2473
  %2630 = vmatpush.bf16.msra.mxu0 %v2471
  %2631 = vmatpush.bf16.msra.mxu0 %v2469
  %2632 = vmatpush.bf16.msra.mxu0 %v2467
  %2633 = vmatpush.bf16.msra.mxu0 %v2465
  %2634 = vmatmul.bf16.gmra.mxu0 %v1042
  %v2635 = vpop.f32.mrf.mxu0
  %v2636 = vadd.f32 %v2329, %v2635
  %v2637 = vpop.f32.mrf.mxu0
  %v2638 = vadd.f32 %v2331, %v2637
  %2639 = vmatmul.bf16.gmra.mxu0 %v1044
  %v2640 = vpop.f32.mrf.mxu0
  %v2641 = vadd.f32 %v2334, %v2640
  %v2642 = vpop.f32.mrf.mxu0
  %v2643 = vadd.f32 %v2336, %v2642
  %2644 = vmatmul.bf16.gmra.mxu0 %v1046
  %v2645 = vpop.f32.mrf.mxu0
  %v2646 = vadd.f32 %v2339, %v2645
  %v2647 = vpop.f32.mrf.mxu0
  %v2648 = vadd.f32 %v2341, %v2647
  %2649 = vmatmul.bf16.gmra.mxu0 %v1048
  %v2650 = vpop.f32.mrf.mxu0
  %v2651 = vadd.f32 %v2344, %v2650
  %v2652 = vpop.f32.mrf.mxu0
  %v2653 = vadd.f32 %v2346, %v2652
  %2654 = vmatmul.bf16.gmra.mxu0 %v1050
  %v2655 = vpop.f32.mrf.mxu0
  %v2656 = vadd.f32 %v2349, %v2655
  %v2657 = vpop.f32.mrf.mxu0
  %v2658 = vadd.f32 %v2351, %v2657
  %2659 = vmatmul.bf16.gmra.mxu0 %v1052
  %v2660 = vpop.f32.mrf.mxu0
  %v2661 = vadd.f32 %v2354, %v2660
  %v2662 = vpop.f32.mrf.mxu0
  %v2663 = vadd.f32 %v2356, %v2662
  %2664 = vmatmul.bf16.gmra.mxu0 %v1054
  %v2665 = vpop.f32.mrf.mxu0
  %v2666 = vadd.f32 %v2359, %v2665
  %v2667 = vpop.f32.mrf.mxu0
  %v2668 = vadd.f32 %v2361, %v2667
  %2669 = vmatmul.bf16.gmra.mxu0 %v1056
  %v2670 = vpop.f32.mrf.mxu0
  %v2671 = vadd.f32 %v2364, %v2670
  %v2672 = vpop.f32.mrf.mxu0
  %v2673 = vadd.f32 %v2366, %v2672
  %2674 = vdwg.mxu0
  %2675 = vmatpush.bf16.msra.mxu0 %v2495
  %2676 = vmatpush.bf16.msra.mxu0 %v2493
  %2677 = vmatpush.bf16.msra.mxu0 %v2491
  %2678 = vmatpush.bf16.msra.mxu0 %v2489
  %2679 = vmatpush.bf16.msra.mxu0 %v2487
  %2680 = vmatpush.bf16.msra.mxu0 %v2485
  %2681 = vmatpush.bf16.msra.mxu0 %v2483
  %2682 = vmatpush.bf16.msra.mxu0 %v2481
  %2683 = vmatmul.bf16.gmra.mxu0 %v1043
  %v2684 = vpop.f32.mrf.mxu0
  %v2685 = vadd.f32 %v2636, %v2684
  %v2686 = vpop.f32.mrf.mxu0
  %v2687 = vadd.f32 %v2638, %v2686
  %2688 = vmatmul.bf16.gmra.mxu0 %v1045
  %v2689 = vpop.f32.mrf.mxu0
  %v2690 = vadd.f32 %v2641, %v2689
  %v2691 = vpop.f32.mrf.mxu0
  %v2692 = vadd.f32 %v2643, %v2691
  %2693 = vmatmul.bf16.gmra.mxu0 %v1047
  %v2694 = vpop.f32.mrf.mxu0
  %v2695 = vadd.f32 %v2646, %v2694
  %v2696 = vpop.f32.mrf.mxu0
  %v2697 = vadd.f32 %v2648, %v2696
  %2698 = vmatmul.bf16.gmra.mxu0 %v1049
  %v2699 = vpop.f32.mrf.mxu0
  %v2700 = vadd.f32 %v2651, %v2699
  %v2701 = vpop.f32.mrf.mxu0
  %v2702 = vadd.f32 %v2653, %v2701
  %2703 = vmatmul.bf16.gmra.mxu0 %v1051
  %v2704 = vpop.f32.mrf.mxu0
  %v2705 = vadd.f32 %v2656, %v2704
  %v2706 = vpop.f32.mrf.mxu0
  %v2707 = vadd.f32 %v2658, %v2706
  %2708 = vmatmul.bf16.gmra.mxu0 %v1053
  %v2709 = vpop.f32.mrf.mxu0
  %v2710 = vadd.f32 %v2661, %v2709
  %v2711 = vpop.f32.mrf.mxu0
  %v2712 = vadd.f32 %v2663, %v2711
  %2713 = vmatmul.bf16.gmra.mxu0 %v1055
  %v2714 = vpop.f32.mrf.mxu0
  %v2715 = vadd.f32 %v2666, %v2714
  %v2716 = vpop.f32.mrf.mxu0
  %v2717 = vadd.f32 %v2668, %v2716
  %2718 = vmatmul.bf16.gmra.mxu0 %v1057
  %v2719 = vpop.f32.mrf.mxu0
  %v2720 = vadd.f32 %v2671, %v2719
  %v2721 = vpop.f32.mrf.mxu0
  %v2722 = vadd.f32 %v2673, %v2721
  %2723 = vdwg.mxu0
  %s2724 = scalar_lea.vmem %s5, 8
  %v2725 = vld [vmem:[%s2724] sm:$0x3]
  %v2727 = vperm.slane %v2725, 0
  %v2728 = vperm.slane %v2725, 1
  %v2731 = vadd.f32 %v2587, %v2727
  %v2732 = vadd.f32 %v2685, %v2728
  %v2733 = vadd.f32 %v2589, %v2727
  %v2734 = vadd.f32 %v2687, %v2728
  %v2735 = vadd.f32 %v2592, %v2727
  %v2736 = vadd.f32 %v2690, %v2728
  %v2737 = vadd.f32 %v2594, %v2727
  %v2738 = vadd.f32 %v2692, %v2728
  %v2739 = vadd.f32 %v2597, %v2727
  %v2740 = vadd.f32 %v2695, %v2728
  %v2741 = vadd.f32 %v2599, %v2727
  %v2742 = vadd.f32 %v2697, %v2728
  %v2743 = vadd.f32 %v2602, %v2727
  %v2744 = vadd.f32 %v2700, %v2728
  %v2745 = vadd.f32 %v2604, %v2727
  %v2746 = vadd.f32 %v2702, %v2728
  %v2747 = vadd.f32 %v2607, %v2727
  %v2748 = vadd.f32 %v2705, %v2728
  %v2749 = vadd.f32 %v2609, %v2727
  %v2750 = vadd.f32 %v2707, %v2728
  %v2751 = vadd.f32 %v2612, %v2727
  %v2752 = vadd.f32 %v2710, %v2728
  %v2753 = vadd.f32 %v2614, %v2727
  %v2754 = vadd.f32 %v2712, %v2728
  %v2755 = vadd.f32 %v2617, %v2727
  %v2756 = vadd.f32 %v2715, %v2728
  %v2757 = vadd.f32 %v2619, %v2727
  %v2758 = vadd.f32 %v2717, %v2728
  %v2759 = vadd.f32 %v2622, %v2727
  %v2760 = vadd.f32 %v2720, %v2728
  %v2761 = vadd.f32 %v2624, %v2727
  %v2762 = vadd.f32 %v2722, %v2728
  %v2763 = vmax.f32 %v2731, 0.0
  %v2764 = vmax.f32 %v2732, 0.0
  %v2765 = vmax.f32 %v2733, 0.0
  %v2766 = vmax.f32 %v2734, 0.0
  %v2767 = vmax.f32 %v2735, 0.0
  %v2768 = vmax.f32 %v2736, 0.0
  %v2769 = vmax.f32 %v2737, 0.0
  %v2770 = vmax.f32 %v2738, 0.0
  %v2771 = vmax.f32 %v2739, 0.0
  %v2772 = vmax.f32 %v2740, 0.0
  %v2773 = vmax.f32 %v2741, 0.0
  %v2774 = vmax.f32 %v2742, 0.0
  %v2775 = vmax.f32 %v2743, 0.0
  %v2776 = vmax.f32 %v2744, 0.0
  %v2777 = vmax.f32 %v2745, 0.0
  %v2778 = vmax.f32 %v2746, 0.0
  %v2779 = vmax.f32 %v2747, 0.0
  %v2780 = vmax.f32 %v2748, 0.0
  %v2781 = vmax.f32 %v2749, 0.0
  %v2782 = vmax.f32 %v2750, 0.0
  %v2783 = vmax.f32 %v2751, 0.0
  %v2784 = vmax.f32 %v2752, 0.0
  %v2785 = vmax.f32 %v2753, 0.0
  %v2786 = vmax.f32 %v2754, 0.0
  %v2787 = vmax.f32 %v2755, 0.0
  %v2788 = vmax.f32 %v2756, 0.0
  %v2789 = vmax.f32 %v2757, 0.0
  %v2790 = vmax.f32 %v2758, 0.0
  %v2791 = vmax.f32 %v2759, 0.0
  %v2792 = vmax.f32 %v2760, 0.0
  %v2793 = vmax.f32 %v2761, 0.0
  %v2794 = vmax.f32 %v2762, 0.0
  %v2795 = vpack.c.bf16 %v2765, %v2763
  %v2796 = vpack.c.bf16 %v2766, %v2764
  %v2797 = vpack.c.bf16 %v2769, %v2767
  %v2798 = vpack.c.bf16 %v2770, %v2768
  %v2799 = vpack.c.bf16 %v2773, %v2771
  %v2800 = vpack.c.bf16 %v2774, %v2772
  %v2801 = vpack.c.bf16 %v2777, %v2775
  %v2802 = vpack.c.bf16 %v2778, %v2776
  %v2803 = vpack.c.bf16 %v2781, %v2779
  %v2804 = vpack.c.bf16 %v2782, %v2780
  %v2805 = vpack.c.bf16 %v2785, %v2783
  %v2806 = vpack.c.bf16 %v2786, %v2784
  %v2807 = vpack.c.bf16 %v2789, %v2787
  %v2808 = vpack.c.bf16 %v2790, %v2788
  %v2809 = vpack.c.bf16 %v2793, %v2791
  %v2810 = vpack.c.bf16 %v2794, %v2792
  %s2811 = scalar_lea.vmem %s4, 1280
  %v2812 = vld [vmem:[%s2811] sm:$0xff]
  %v2813 = vld [vmem:[%s2811 + $0x8] sm:$0xff]
  %v2814 = vld [vmem:[%s2811 + $0x10] sm:$0xff]
  %v2815 = vld [vmem:[%s2811 + $0x18] sm:$0xff]
  %v2816 = vld [vmem:[%s2811 + $0x20] sm:$0xff]
  %v2817 = vld [vmem:[%s2811 + $0x28] sm:$0xff]
  %v2818 = vld [vmem:[%s2811 + $0x30] sm:$0xff]
  %v2819 = vld [vmem:[%s2811 + $0x38] sm:$0xff]
  %v2820 = vld [vmem:[%s2811 + $0x40] sm:$0xff]
  %v2821 = vld [vmem:[%s2811 + $0x48] sm:$0xff]
  %v2822 = vld [vmem:[%s2811 + $0x50] sm:$0xff]
  %v2823 = vld [vmem:[%s2811 + $0x58] sm:$0xff]
  %v2824 = vld [vmem:[%s2811 + $0x60] sm:$0xff]
  %v2825 = vld [vmem:[%s2811 + $0x68] sm:$0xff]
  %v2826 = vld [vmem:[%s2811 + $0x70] sm:$0xff]
  %v2827 = vld [vmem:[%s2811 + $0x78] sm:$0xff]
  %v2828 = vld [vmem:[%s2811 + $0x80] sm:$0xff]
  %v2829 = vld [vmem:[%s2811 + $0x88] sm:$0xff]
  %v2830 = vld [vmem:[%s2811 + $0x90] sm:$0xff]
  %v2831 = vld [vmem:[%s2811 + $0x98] sm:$0xff]
  %v2832 = vld [vmem:[%s2811 + $0xa0] sm:$0xff]
  %v2833 = vld [vmem:[%s2811 + $0xa8] sm:$0xff]
  %v2834 = vld [vmem:[%s2811 + $0xb0] sm:$0xff]
  %v2835 = vld [vmem:[%s2811 + $0xb8] sm:$0xff]
  %v2836 = vld [vmem:[%s2811 + $0xc0] sm:$0xff]
  %v2837 = vld [vmem:[%s2811 + $0xc8] sm:$0xff]
  %v2838 = vld [vmem:[%s2811 + $0xd0] sm:$0xff]
  %v2839 = vld [vmem:[%s2811 + $0xd8] sm:$0xff]
  %v2840 = vld [vmem:[%s2811 + $0xe0] sm:$0xff]
  %v2841 = vld [vmem:[%s2811 + $0xe8] sm:$0xff]
  %v2842 = vld [vmem:[%s2811 + $0xf0] sm:$0xff]
  %v2843 = vld [vmem:[%s2811 + $0xf8] sm:$0xff]
  %s2844 = scalar_lea.vmem %s4, 1536
  %v2845 = vld [vmem:[%s2844] sm:$0xff]
  %v2846 = vld [vmem:[%s2844 + $0x8] sm:$0xff]
  %v2847 = vld [vmem:[%s2844 + $0x10] sm:$0xff]
  %v2848 = vld [vmem:[%s2844 + $0x18] sm:$0xff]
  %v2849 = vld [vmem:[%s2844 + $0x20] sm:$0xff]
  %v2850 = vld [vmem:[%s2844 + $0x28] sm:$0xff]
  %v2851 = vld [vmem:[%s2844 + $0x30] sm:$0xff]
  %v2852 = vld [vmem:[%s2844 + $0x38] sm:$0xff]
  %v2853 = vld [vmem:[%s2844 + $0x40] sm:$0xff]
  %v2854 = vld [vmem:[%s2844 + $0x48] sm:$0xff]
  %v2855 = vld [vmem:[%s2844 + $0x50] sm:$0xff]
  %v2856 = vld [vmem:[%s2844 + $0x58] sm:$0xff]
  %v2857 = vld [vmem:[%s2844 + $0x60] sm:$0xff]
  %v2858 = vld [vmem:[%s2844 + $0x68] sm:$0xff]
  %v2859 = vld [vmem:[%s2844 + $0x70] sm:$0xff]
  %v2860 = vld [vmem:[%s2844 + $0x78] sm:$0xff]
  %v2861 = vld [vmem:[%s2844 + $0x80] sm:$0xff]
  %v2862 = vld [vmem:[%s2844 + $0x88] sm:$0xff]
  %v2863 = vld [vmem:[%s2844 + $0x90] sm:$0xff]
  %v2864 = vld [vmem:[%s2844 + $0x98] sm:$0xff]
  %v2865 = vld [vmem:[%s2844 + $0xa0] sm:$0xff]
  %v2866 = vld [vmem:[%s2844 + $0xa8] sm:$0xff]
  %v2867 = vld [vmem:[%s2844 + $0xb0] sm:$0xff]
  %v2868 = vld [vmem:[%s2844 + $0xb8] sm:$0xff]
  %v2869 = vld [vmem:[%s2844 + $0xc0] sm:$0xff]
  %v2870 = vld [vmem:[%s2844 + $0xc8] sm:$0xff]
  %v2871 = vld [vmem:[%s2844 + $0xd0] sm:$0xff]
  %v2872 = vld [vmem:[%s2844 + $0xd8] sm:$0xff]
  %v2873 = vld [vmem:[%s2844 + $0xe0] sm:$0xff]
  %v2874 = vld [vmem:[%s2844 + $0xe8] sm:$0xff]
  %v2875 = vld [vmem:[%s2844 + $0xf0] sm:$0xff]
  %v2876 = vld [vmem:[%s2844 + $0xf8] sm:$0xff]
  %v2909 = vunpack.c.l.b16 %v2845
  %v2910 = vunpack.c.h.b16 %v2845
  %v2911 = vunpack.c.l.b16 %v2846
  %v2912 = vunpack.c.h.b16 %v2846
  %v2913 = vunpack.c.l.b16 %v2847
  %v2914 = vunpack.c.h.b16 %v2847
  %v2915 = vunpack.c.l.b16 %v2848
  %v2916 = vunpack.c.h.b16 %v2848
  %v2917 = vunpack.c.l.b16 %v2849
  %v2918 = vunpack.c.h.b16 %v2849
  %v2919 = vunpack.c.l.b16 %v2850
  %v2920 = vunpack.c.h.b16 %v2850
  %v2921 = vunpack.c.l.b16 %v2851
  %v2922 = vunpack.c.h.b16 %v2851
  %v2923 = vunpack.c.l.b16 %v2852
  %v2924 = vunpack.c.h.b16 %v2852
  %v2925 = vunpack.c.l.b16 %v2853
  %v2926 = vunpack.c.h.b16 %v2853
  %v2927 = vunpack.c.l.b16 %v2854
  %v2928 = vunpack.c.h.b16 %v2854
  %v2929 = vunpack.c.l.b16 %v2855
  %v2930 = vunpack.c.h.b16 %v2855
  %v2931 = vunpack.c.l.b16 %v2856
  %v2932 = vunpack.c.h.b16 %v2856
  %v2933 = vunpack.c.l.b16 %v2857
  %v2934 = vunpack.c.h.b16 %v2857
  %v2935 = vunpack.c.l.b16 %v2858
  %v2936 = vunpack.c.h.b16 %v2858
  %v2937 = vunpack.c.l.b16 %v2859
  %v2938 = vunpack.c.h.b16 %v2859
  %v2939 = vunpack.c.l.b16 %v2860
  %v2940 = vunpack.c.h.b16 %v2860
  %v2941 = vunpack.c.l.b16 %v2861
  %v2942 = vunpack.c.h.b16 %v2861
  %v2943 = vunpack.c.l.b16 %v2862
  %v2944 = vunpack.c.h.b16 %v2862
  %v2945 = vunpack.c.l.b16 %v2863
  %v2946 = vunpack.c.h.b16 %v2863
  %v2947 = vunpack.c.l.b16 %v2864
  %v2948 = vunpack.c.h.b16 %v2864
  %v2949 = vunpack.c.l.b16 %v2865
  %v2950 = vunpack.c.h.b16 %v2865
  %v2951 = vunpack.c.l.b16 %v2866
  %v2952 = vunpack.c.h.b16 %v2866
  %v2953 = vunpack.c.l.b16 %v2867
  %v2954 = vunpack.c.h.b16 %v2867
  %v2955 = vunpack.c.l.b16 %v2868
  %v2956 = vunpack.c.h.b16 %v2868
  %v2957 = vunpack.c.l.b16 %v2869
  %v2958 = vunpack.c.h.b16 %v2869
  %v2959 = vunpack.c.l.b16 %v2870
  %v2960 = vunpack.c.h.b16 %v2870
  %v2961 = vunpack.c.l.b16 %v2871
  %v2962 = vunpack.c.h.b16 %v2871
  %v2963 = vunpack.c.l.b16 %v2872
  %v2964 = vunpack.c.h.b16 %v2872
  %v2965 = vunpack.c.l.b16 %v2873
  %v2966 = vunpack.c.h.b16 %v2873
  %v2967 = vunpack.c.l.b16 %v2874
  %v2968 = vunpack.c.h.b16 %v2874
  %v2969 = vunpack.c.l.b16 %v2875
  %v2970 = vunpack.c.h.b16 %v2875
  %v2971 = vunpack.c.l.b16 %v2876
  %v2972 = vunpack.c.h.b16 %v2876
  %v2973 = vpack.c.b16 %v2911, %v2909
  %v2974 = vpack.c.b16 %v2912, %v2910
  %v2975 = vpack.c.b16 %v2915, %v2913
  %v2976 = vpack.c.b16 %v2916, %v2914
  %v2977 = vpack.c.b16 %v2919, %v2917
  %v2978 = vpack.c.b16 %v2920, %v2918
  %v2979 = vpack.c.b16 %v2923, %v2921
  %v2980 = vpack.c.b16 %v2924, %v2922
  %v2981 = vpack.c.b16 %v2927, %v2925
  %v2982 = vpack.c.b16 %v2928, %v2926
  %v2983 = vpack.c.b16 %v2931, %v2929
  %v2984 = vpack.c.b16 %v2932, %v2930
  %v2985 = vpack.c.b16 %v2935, %v2933
  %v2986 = vpack.c.b16 %v2936, %v2934
  %v2987 = vpack.c.b16 %v2939, %v2937
  %v2988 = vpack.c.b16 %v2940, %v2938
  %v2989 = vpack.c.b16 %v2943, %v2941
  %v2990 = vpack.c.b16 %v2944, %v2942
  %v2991 = vpack.c.b16 %v2947, %v2945
  %v2992 = vpack.c.b16 %v2948, %v2946
  %v2993 = vpack.c.b16 %v2951, %v2949
  %v2994 = vpack.c.b16 %v2952, %v2950
  %v2995 = vpack.c.b16 %v2955, %v2953
  %v2996 = vpack.c.b16 %v2956, %v2954
  %v2997 = vpack.c.b16 %v2959, %v2957
  %v2998 = vpack.c.b16 %v2960, %v2958
  %v2999 = vpack.c.b16 %v2963, %v2961
  %v3000 = vpack.c.b16 %v2964, %v2962
  %v3001 = vpack.c.b16 %v2967, %v2965
  %v3002 = vpack.c.b16 %v2968, %v2966
  %v3003 = vpack.c.b16 %v2971, %v2969
  %v3004 = vpack.c.b16 %v2972, %v2970
  %3037 = vmatpush.bf16.msra.mxu0 %v2987
  %3038 = vmatpush.bf16.msra.mxu0 %v2985
  %3039 = vmatpush.bf16.msra.mxu0 %v2983
  %3040 = vmatpush.bf16.msra.mxu0 %v2981
  %3041 = vmatpush.bf16.msra.mxu0 %v2979
  %3042 = vmatpush.bf16.msra.mxu0 %v2977
  %3043 = vmatpush.bf16.msra.mxu0 %v2975
  %3044 = vmatpush.bf16.msra.mxu0 %v2973
  %3045 = vmatmul.bf16.gmra.mxu0 %v1930
  %v3046 = vpop.f32.mrf.mxu0
  %v3047 = vadd.f32 0.0, %v3046
  %v3048 = vpop.f32.mrf.mxu0
  %v3049 = vadd.f32 0.0, %v3048
  %3050 = vmatmul.bf16.gmra.mxu0 %v1932
  %v3051 = vpop.f32.mrf.mxu0
  %v3052 = vadd.f32 0.0, %v3051
  %v3053 = vpop.f32.mrf.mxu0
  %v3054 = vadd.f32 0.0, %v3053
  %3055 = vmatmul.bf16.gmra.mxu0 %v1934
  %v3056 = vpop.f32.mrf.mxu0
  %v3057 = vadd.f32 0.0, %v3056
  %v3058 = vpop.f32.mrf.mxu0
  %v3059 = vadd.f32 0.0, %v3058
  %3060 = vmatmul.bf16.gmra.mxu0 %v1936
  %v3061 = vpop.f32.mrf.mxu0
  %v3062 = vadd.f32 0.0, %v3061
  %v3063 = vpop.f32.mrf.mxu0
  %v3064 = vadd.f32 0.0, %v3063
  %3065 = vmatmul.bf16.gmra.mxu0 %v1938
  %v3066 = vpop.f32.mrf.mxu0
  %v3067 = vadd.f32 0.0, %v3066
  %v3068 = vpop.f32.mrf.mxu0
  %v3069 = vadd.f32 0.0, %v3068
  %3070 = vmatmul.bf16.gmra.mxu0 %v1940
  %v3071 = vpop.f32.mrf.mxu0
  %v3072 = vadd.f32 0.0, %v3071
  %v3073 = vpop.f32.mrf.mxu0
  %v3074 = vadd.f32 0.0, %v3073
  %3075 = vmatmul.bf16.gmra.mxu0 %v1942
  %v3076 = vpop.f32.mrf.mxu0
  %v3077 = vadd.f32 0.0, %v3076
  %v3078 = vpop.f32.mrf.mxu0
  %v3079 = vadd.f32 0.0, %v3078
  %3080 = vmatmul.bf16.gmra.mxu0 %v1944
  %v3081 = vpop.f32.mrf.mxu0
  %v3082 = vadd.f32 0.0, %v3081
  %v3083 = vpop.f32.mrf.mxu0
  %v3084 = vadd.f32 0.0, %v3083
  %3085 = vdwg.mxu0
  %3086 = vmatpush.bf16.msra.mxu0 %v3003
  %3087 = vmatpush.bf16.msra.mxu0 %v3001
  %3088 = vmatpush.bf16.msra.mxu0 %v2999
  %3089 = vmatpush.bf16.msra.mxu0 %v2997
  %3090 = vmatpush.bf16.msra.mxu0 %v2995
  %3091 = vmatpush.bf16.msra.mxu0 %v2993
  %3092 = vmatpush.bf16.msra.mxu0 %v2991
  %3093 = vmatpush.bf16.msra.mxu0 %v2989
  %3094 = vmatmul.bf16.gmra.mxu0 %v1931
  %v3095 = vpop.f32.mrf.mxu0
  %v3096 = vadd.f32 %v3047, %v3095
  %v3097 = vpop.f32.mrf.mxu0
  %v3098 = vadd.f32 %v3049, %v3097
  %3099 = vmatmul.bf16.gmra.mxu0 %v1933
  %v3100 = vpop.f32.mrf.mxu0
  %v3101 = vadd.f32 %v3052, %v3100
  %v3102 = vpop.f32.mrf.mxu0
  %v3103 = vadd.f32 %v3054, %v3102
  %3104 = vmatmul.bf16.gmra.mxu0 %v1935
  %v3105 = vpop.f32.mrf.mxu0
  %v3106 = vadd.f32 %v3057, %v3105
  %v3107 = vpop.f32.mrf.mxu0
  %v3108 = vadd.f32 %v3059, %v3107
  %3109 = vmatmul.bf16.gmra.mxu0 %v1937
  %v3110 = vpop.f32.mrf.mxu0
  %v3111 = vadd.f32 %v3062, %v3110
  %v3112 = vpop.f32.mrf.mxu0
  %v3113 = vadd.f32 %v3064, %v3112
  %3114 = vmatmul.bf16.gmra.mxu0 %v1939
  %v3115 = vpop.f32.mrf.mxu0
  %v3116 = vadd.f32 %v3067, %v3115
  %v3117 = vpop.f32.mrf.mxu0
  %v3118 = vadd.f32 %v3069, %v3117
  %3119 = vmatmul.bf16.gmra.mxu0 %v1941
  %v3120 = vpop.f32.mrf.mxu0
  %v3121 = vadd.f32 %v3072, %v3120
  %v3122 = vpop.f32.mrf.mxu0
  %v3123 = vadd.f32 %v3074, %v3122
  %3124 = vmatmul.bf16.gmra.mxu0 %v1943
  %v3125 = vpop.f32.mrf.mxu0
  %v3126 = vadd.f32 %v3077, %v3125
  %v3127 = vpop.f32.mrf.mxu0
  %v3128 = vadd.f32 %v3079, %v3127
  %3129 = vmatmul.bf16.gmra.mxu0 %v1945
  %v3130 = vpop.f32.mrf.mxu0
  %v3131 = vadd.f32 %v3082, %v3130
  %v3132 = vpop.f32.mrf.mxu0
  %v3133 = vadd.f32 %v3084, %v3132
  %3134 = vdwg.mxu0
  %3135 = vmatpush.bf16.msra.mxu0 %v2988
  %3136 = vmatpush.bf16.msra.mxu0 %v2986
  %3137 = vmatpush.bf16.msra.mxu0 %v2984
  %3138 = vmatpush.bf16.msra.mxu0 %v2982
  %3139 = vmatpush.bf16.msra.mxu0 %v2980
  %3140 = vmatpush.bf16.msra.mxu0 %v2978
  %3141 = vmatpush.bf16.msra.mxu0 %v2976
  %3142 = vmatpush.bf16.msra.mxu0 %v2974
  %3143 = vmatmul.bf16.gmra.mxu0 %v1930
  %v3144 = vpop.f32.mrf.mxu0
  %v3145 = vadd.f32 0.0, %v3144
  %v3146 = vpop.f32.mrf.mxu0
  %v3147 = vadd.f32 0.0, %v3146
  %3148 = vmatmul.bf16.gmra.mxu0 %v1932
  %v3149 = vpop.f32.mrf.mxu0
  %v3150 = vadd.f32 0.0, %v3149
  %v3151 = vpop.f32.mrf.mxu0
  %v3152 = vadd.f32 0.0, %v3151
  %3153 = vmatmul.bf16.gmra.mxu0 %v1934
  %v3154 = vpop.f32.mrf.mxu0
  %v3155 = vadd.f32 0.0, %v3154
  %v3156 = vpop.f32.mrf.mxu0
  %v3157 = vadd.f32 0.0, %v3156
  %3158 = vmatmul.bf16.gmra.mxu0 %v1936
  %v3159 = vpop.f32.mrf.mxu0
  %v3160 = vadd.f32 0.0, %v3159
  %v3161 = vpop.f32.mrf.mxu0
  %v3162 = vadd.f32 0.0, %v3161
  %3163 = vmatmul.bf16.gmra.mxu0 %v1938
  %v3164 = vpop.f32.mrf.mxu0
  %v3165 = vadd.f32 0.0, %v3164
  %v3166 = vpop.f32.mrf.mxu0
  %v3167 = vadd.f32 0.0, %v3166
  %3168 = vmatmul.bf16.gmra.mxu0 %v1940
  %v3169 = vpop.f32.mrf.mxu0
  %v3170 = vadd.f32 0.0, %v3169
  %v3171 = vpop.f32.mrf.mxu0
  %v3172 = vadd.f32 0.0, %v3171
  %3173 = vmatmul.bf16.gmra.mxu0 %v1942
  %v3174 = vpop.f32.mrf.mxu0
  %v3175 = vadd.f32 0.0, %v3174
  %v3176 = vpop.f32.mrf.mxu0
  %v3177 = vadd.f32 0.0, %v3176
  %3178 = vmatmul.bf16.gmra.mxu0 %v1944
  %v3179 = vpop.f32.mrf.mxu0
  %v3180 = vadd.f32 0.0, %v3179
  %v3181 = vpop.f32.mrf.mxu0
  %v3182 = vadd.f32 0.0, %v3181
  %3183 = vdwg.mxu0
  %3184 = vmatpush.bf16.msra.mxu0 %v3004
  %3185 = vmatpush.bf16.msra.mxu0 %v3002
  %3186 = vmatpush.bf16.msra.mxu0 %v3000
  %3187 = vmatpush.bf16.msra.mxu0 %v2998
  %3188 = vmatpush.bf16.msra.mxu0 %v2996
  %3189 = vmatpush.bf16.msra.mxu0 %v2994
  %3190 = vmatpush.bf16.msra.mxu0 %v2992
  %3191 = vmatpush.bf16.msra.mxu0 %v2990
  %3192 = vmatmul.bf16.gmra.mxu0 %v1931
  %v3193 = vpop.f32.mrf.mxu0
  %v3194 = vadd.f32 %v3145, %v3193
  %v3195 = vpop.f32.mrf.mxu0
  %v3196 = vadd.f32 %v3147, %v3195
  %3197 = vmatmul.bf16.gmra.mxu0 %v1933
  %v3198 = vpop.f32.mrf.mxu0
  %v3199 = vadd.f32 %v3150, %v3198
  %v3200 = vpop.f32.mrf.mxu0
  %v3201 = vadd.f32 %v3152, %v3200
  %3202 = vmatmul.bf16.gmra.mxu0 %v1935
  %v3203 = vpop.f32.mrf.mxu0
  %v3204 = vadd.f32 %v3155, %v3203
  %v3205 = vpop.f32.mrf.mxu0
  %v3206 = vadd.f32 %v3157, %v3205
  %3207 = vmatmul.bf16.gmra.mxu0 %v1937
  %v3208 = vpop.f32.mrf.mxu0
  %v3209 = vadd.f32 %v3160, %v3208
  %v3210 = vpop.f32.mrf.mxu0
  %v3211 = vadd.f32 %v3162, %v3210
  %3212 = vmatmul.bf16.gmra.mxu0 %v1939
  %v3213 = vpop.f32.mrf.mxu0
  %v3214 = vadd.f32 %v3165, %v3213
  %v3215 = vpop.f32.mrf.mxu0
  %v3216 = vadd.f32 %v3167, %v3215
  %3217 = vmatmul.bf16.gmra.mxu0 %v1941
  %v3218 = vpop.f32.mrf.mxu0
  %v3219 = vadd.f32 %v3170, %v3218
  %v3220 = vpop.f32.mrf.mxu0
  %v3221 = vadd.f32 %v3172, %v3220
  %3222 = vmatmul.bf16.gmra.mxu0 %v1943
  %v3223 = vpop.f32.mrf.mxu0
  %v3224 = vadd.f32 %v3175, %v3223
  %v3225 = vpop.f32.mrf.mxu0
  %v3226 = vadd.f32 %v3177, %v3225
  %3227 = vmatmul.bf16.gmra.mxu0 %v1945
  %v3228 = vpop.f32.mrf.mxu0
  %v3229 = vadd.f32 %v3180, %v3228
  %v3230 = vpop.f32.mrf.mxu0
  %v3231 = vadd.f32 %v3182, %v3230
  %3232 = vdwg.mxu0
  %v3265 = vunpack.c.l.b16 %v2812
  %v3266 = vunpack.c.h.b16 %v2812
  %v3267 = vunpack.c.l.b16 %v2813
  %v3268 = vunpack.c.h.b16 %v2813
  %v3269 = vunpack.c.l.b16 %v2814
  %v3270 = vunpack.c.h.b16 %v2814
  %v3271 = vunpack.c.l.b16 %v2815
  %v3272 = vunpack.c.h.b16 %v2815
  %v3273 = vunpack.c.l.b16 %v2816
  %v3274 = vunpack.c.h.b16 %v2816
  %v3275 = vunpack.c.l.b16 %v2817
  %v3276 = vunpack.c.h.b16 %v2817
  %v3277 = vunpack.c.l.b16 %v2818
  %v3278 = vunpack.c.h.b16 %v2818
  %v3279 = vunpack.c.l.b16 %v2819
  %v3280 = vunpack.c.h.b16 %v2819
  %v3281 = vunpack.c.l.b16 %v2820
  %v3282 = vunpack.c.h.b16 %v2820
  %v3283 = vunpack.c.l.b16 %v2821
  %v3284 = vunpack.c.h.b16 %v2821
  %v3285 = vunpack.c.l.b16 %v2822
  %v3286 = vunpack.c.h.b16 %v2822
  %v3287 = vunpack.c.l.b16 %v2823
  %v3288 = vunpack.c.h.b16 %v2823
  %v3289 = vunpack.c.l.b16 %v2824
  %v3290 = vunpack.c.h.b16 %v2824
  %v3291 = vunpack.c.l.b16 %v2825
  %v3292 = vunpack.c.h.b16 %v2825
  %v3293 = vunpack.c.l.b16 %v2826
  %v3294 = vunpack.c.h.b16 %v2826
  %v3295 = vunpack.c.l.b16 %v2827
  %v3296 = vunpack.c.h.b16 %v2827
  %v3297 = vunpack.c.l.b16 %v2828
  %v3298 = vunpack.c.h.b16 %v2828
  %v3299 = vunpack.c.l.b16 %v2829
  %v3300 = vunpack.c.h.b16 %v2829
  %v3301 = vunpack.c.l.b16 %v2830
  %v3302 = vunpack.c.h.b16 %v2830
  %v3303 = vunpack.c.l.b16 %v2831
  %v3304 = vunpack.c.h.b16 %v2831
  %v3305 = vunpack.c.l.b16 %v2832
  %v3306 = vunpack.c.h.b16 %v2832
  %v3307 = vunpack.c.l.b16 %v2833
  %v3308 = vunpack.c.h.b16 %v2833
  %v3309 = vunpack.c.l.b16 %v2834
  %v3310 = vunpack.c.h.b16 %v2834
  %v3311 = vunpack.c.l.b16 %v2835
  %v3312 = vunpack.c.h.b16 %v2835
  %v3313 = vunpack.c.l.b16 %v2836
  %v3314 = vunpack.c.h.b16 %v2836
  %v3315 = vunpack.c.l.b16 %v2837
  %v3316 = vunpack.c.h.b16 %v2837
  %v3317 = vunpack.c.l.b16 %v2838
  %v3318 = vunpack.c.h.b16 %v2838
  %v3319 = vunpack.c.l.b16 %v2839
  %v3320 = vunpack.c.h.b16 %v2839
  %v3321 = vunpack.c.l.b16 %v2840
  %v3322 = vunpack.c.h.b16 %v2840
  %v3323 = vunpack.c.l.b16 %v2841
  %v3324 = vunpack.c.h.b16 %v2841
  %v3325 = vunpack.c.l.b16 %v2842
  %v3326 = vunpack.c.h.b16 %v2842
  %v3327 = vunpack.c.l.b16 %v2843
  %v3328 = vunpack.c.h.b16 %v2843
  %v3329 = vpack.c.b16 %v3267, %v3265
  %v3330 = vpack.c.b16 %v3268, %v3266
  %v3331 = vpack.c.b16 %v3271, %v3269
  %v3332 = vpack.c.b16 %v3272, %v3270
  %v3333 = vpack.c.b16 %v3275, %v3273
  %v3334 = vpack.c.b16 %v3276, %v3274
  %v3335 = vpack.c.b16 %v3279, %v3277
  %v3336 = vpack.c.b16 %v3280, %v3278
  %v3337 = vpack.c.b16 %v3283, %v3281
  %v3338 = vpack.c.b16 %v3284, %v3282
  %v3339 = vpack.c.b16 %v3287, %v3285
  %v3340 = vpack.c.b16 %v3288, %v3286
  %v3341 = vpack.c.b16 %v3291, %v3289
  %v3342 = vpack.c.b16 %v3292, %v3290
  %v3343 = vpack.c.b16 %v3295, %v3293
  %v3344 = vpack.c.b16 %v3296, %v3294
  %v3345 = vpack.c.b16 %v3299, %v3297
  %v3346 = vpack.c.b16 %v3300, %v3298
  %v3347 = vpack.c.b16 %v3303, %v3301
  %v3348 = vpack.c.b16 %v3304, %v3302
  %v3349 = vpack.c.b16 %v3307, %v3305
  %v3350 = vpack.c.b16 %v3308, %v3306
  %v3351 = vpack.c.b16 %v3311, %v3309
  %v3352 = vpack.c.b16 %v3312, %v3310
  %v3353 = vpack.c.b16 %v3315, %v3313
  %v3354 = vpack.c.b16 %v3316, %v3314
  %v3355 = vpack.c.b16 %v3319, %v3317
  %v3356 = vpack.c.b16 %v3320, %v3318
  %v3357 = vpack.c.b16 %v3323, %v3321
  %v3358 = vpack.c.b16 %v3324, %v3322
  %v3359 = vpack.c.b16 %v3327, %v3325
  %v3360 = vpack.c.b16 %v3328, %v3326
  %3393 = vmatpush.bf16.msra.mxu0 %v3343
  %3394 = vmatpush.bf16.msra.mxu0 %v3341
  %3395 = vmatpush.bf16.msra.mxu0 %v3339
  %3396 = vmatpush.bf16.msra.mxu0 %v3337
  %3397 = vmatpush.bf16.msra.mxu0 %v3335
  %3398 = vmatpush.bf16.msra.mxu0 %v3333
  %3399 = vmatpush.bf16.msra.mxu0 %v3331
  %3400 = vmatpush.bf16.msra.mxu0 %v3329
  %3401 = vmatmul.bf16.gmra.mxu0 %v1042
  %v3402 = vpop.f32.mrf.mxu0
  %v3403 = vadd.f32 %v3096, %v3402
  %v3404 = vpop.f32.mrf.mxu0
  %v3405 = vadd.f32 %v3098, %v3404
  %3406 = vmatmul.bf16.gmra.mxu0 %v1044
  %v3407 = vpop.f32.mrf.mxu0
  %v3408 = vadd.f32 %v3101, %v3407
  %v3409 = vpop.f32.mrf.mxu0
  %v3410 = vadd.f32 %v3103, %v3409
  %3411 = vmatmul.bf16.gmra.mxu0 %v1046
  %v3412 = vpop.f32.mrf.mxu0
  %v3413 = vadd.f32 %v3106, %v3412
  %v3414 = vpop.f32.mrf.mxu0
  %v3415 = vadd.f32 %v3108, %v3414
  %3416 = vmatmul.bf16.gmra.mxu0 %v1048
  %v3417 = vpop.f32.mrf.mxu0
  %v3418 = vadd.f32 %v3111, %v3417
  %v3419 = vpop.f32.mrf.mxu0
  %v3420 = vadd.f32 %v3113, %v3419
  %3421 = vmatmul.bf16.gmra.mxu0 %v1050
  %v3422 = vpop.f32.mrf.mxu0
  %v3423 = vadd.f32 %v3116, %v3422
  %v3424 = vpop.f32.mrf.mxu0
  %v3425 = vadd.f32 %v3118, %v3424
  %3426 = vmatmul.bf16.gmra.mxu0 %v1052
  %v3427 = vpop.f32.mrf.mxu0
  %v3428 = vadd.f32 %v3121, %v3427
  %v3429 = vpop.f32.mrf.mxu0
  %v3430 = vadd.f32 %v3123, %v3429
  %3431 = vmatmul.bf16.gmra.mxu0 %v1054
  %v3432 = vpop.f32.mrf.mxu0
  %v3433 = vadd.f32 %v3126, %v3432
  %v3434 = vpop.f32.mrf.mxu0
  %v3435 = vadd.f32 %v3128, %v3434
  %3436 = vmatmul.bf16.gmra.mxu0 %v1056
  %v3437 = vpop.f32.mrf.mxu0
  %v3438 = vadd.f32 %v3131, %v3437
  %v3439 = vpop.f32.mrf.mxu0
  %v3440 = vadd.f32 %v3133, %v3439
  %3441 = vdwg.mxu0
  %3442 = vmatpush.bf16.msra.mxu0 %v3359
  %3443 = vmatpush.bf16.msra.mxu0 %v3357
  %3444 = vmatpush.bf16.msra.mxu0 %v3355
  %3445 = vmatpush.bf16.msra.mxu0 %v3353
  %3446 = vmatpush.bf16.msra.mxu0 %v3351
  %3447 = vmatpush.bf16.msra.mxu0 %v3349
  %3448 = vmatpush.bf16.msra.mxu0 %v3347
  %3449 = vmatpush.bf16.msra.mxu0 %v3345
  %3450 = vmatmul.bf16.gmra.mxu0 %v1043
  %v3451 = vpop.f32.mrf.mxu0
  %v3452 = vadd.f32 %v3403, %v3451
  %v3453 = vpop.f32.mrf.mxu0
  %v3454 = vadd.f32 %v3405, %v3453
  %3455 = vmatmul.bf16.gmra.mxu0 %v1045
  %v3456 = vpop.f32.mrf.mxu0
  %v3457 = vadd.f32 %v3408, %v3456
  %v3458 = vpop.f32.mrf.mxu0
  %v3459 = vadd.f32 %v3410, %v3458
  %3460 = vmatmul.bf16.gmra.mxu0 %v1047
  %v3461 = vpop.f32.mrf.mxu0
  %v3462 = vadd.f32 %v3413, %v3461
  %v3463 = vpop.f32.mrf.mxu0
  %v3464 = vadd.f32 %v3415, %v3463
  %3465 = vmatmul.bf16.gmra.mxu0 %v1049
  %v3466 = vpop.f32.mrf.mxu0
  %v3467 = vadd.f32 %v3418, %v3466
  %v3468 = vpop.f32.mrf.mxu0
  %v3469 = vadd.f32 %v3420, %v3468
  %3470 = vmatmul.bf16.gmra.mxu0 %v1051
  %v3471 = vpop.f32.mrf.mxu0
  %v3472 = vadd.f32 %v3423, %v3471
  %v3473 = vpop.f32.mrf.mxu0
  %v3474 = vadd.f32 %v3425, %v3473
  %3475 = vmatmul.bf16.gmra.mxu0 %v1053
  %v3476 = vpop.f32.mrf.mxu0
  %v3477 = vadd.f32 %v3428, %v3476
  %v3478 = vpop.f32.mrf.mxu0
  %v3479 = vadd.f32 %v3430, %v3478
  %3480 = vmatmul.bf16.gmra.mxu0 %v1055
  %v3481 = vpop.f32.mrf.mxu0
  %v3482 = vadd.f32 %v3433, %v3481
  %v3483 = vpop.f32.mrf.mxu0
  %v3484 = vadd.f32 %v3435, %v3483
  %3485 = vmatmul.bf16.gmra.mxu0 %v1057
  %v3486 = vpop.f32.mrf.mxu0
  %v3487 = vadd.f32 %v3438, %v3486
  %v3488 = vpop.f32.mrf.mxu0
  %v3489 = vadd.f32 %v3440, %v3488
  %3490 = vdwg.mxu0
  %3491 = vmatpush.bf16.msra.mxu0 %v3344
  %3492 = vmatpush.bf16.msra.mxu0 %v3342
  %3493 = vmatpush.bf16.msra.mxu0 %v3340
  %3494 = vmatpush.bf16.msra.mxu0 %v3338
  %3495 = vmatpush.bf16.msra.mxu0 %v3336
  %3496 = vmatpush.bf16.msra.mxu0 %v3334
  %3497 = vmatpush.bf16.msra.mxu0 %v3332
  %3498 = vmatpush.bf16.msra.mxu0 %v3330
  %3499 = vmatmul.bf16.gmra.mxu0 %v1042
  %v3500 = vpop.f32.mrf.mxu0
  %v3501 = vadd.f32 %v3194, %v3500
  %v3502 = vpop.f32.mrf.mxu0
  %v3503 = vadd.f32 %v3196, %v3502
  %3504 = vmatmul.bf16.gmra.mxu0 %v1044
  %v3505 = vpop.f32.mrf.mxu0
  %v3506 = vadd.f32 %v3199, %v3505
  %v3507 = vpop.f32.mrf.mxu0
  %v3508 = vadd.f32 %v3201, %v3507
  %3509 = vmatmul.bf16.gmra.mxu0 %v1046
  %v3510 = vpop.f32.mrf.mxu0
  %v3511 = vadd.f32 %v3204, %v3510
  %v3512 = vpop.f32.mrf.mxu0
  %v3513 = vadd.f32 %v3206, %v3512
  %3514 = vmatmul.bf16.gmra.mxu0 %v1048
  %v3515 = vpop.f32.mrf.mxu0
  %v3516 = vadd.f32 %v3209, %v3515
  %v3517 = vpop.f32.mrf.mxu0
  %v3518 = vadd.f32 %v3211, %v3517
  %3519 = vmatmul.bf16.gmra.mxu0 %v1050
  %v3520 = vpop.f32.mrf.mxu0
  %v3521 = vadd.f32 %v3214, %v3520
  %v3522 = vpop.f32.mrf.mxu0
  %v3523 = vadd.f32 %v3216, %v3522
  %3524 = vmatmul.bf16.gmra.mxu0 %v1052
  %v3525 = vpop.f32.mrf.mxu0
  %v3526 = vadd.f32 %v3219, %v3525
  %v3527 = vpop.f32.mrf.mxu0
  %v3528 = vadd.f32 %v3221, %v3527
  %3529 = vmatmul.bf16.gmra.mxu0 %v1054
  %v3530 = vpop.f32.mrf.mxu0
  %v3531 = vadd.f32 %v3224, %v3530
  %v3532 = vpop.f32.mrf.mxu0
  %v3533 = vadd.f32 %v3226, %v3532
  %3534 = vmatmul.bf16.gmra.mxu0 %v1056
  %v3535 = vpop.f32.mrf.mxu0
  %v3536 = vadd.f32 %v3229, %v3535
  %v3537 = vpop.f32.mrf.mxu0
  %v3538 = vadd.f32 %v3231, %v3537
  %3539 = vdwg.mxu0
  %3540 = vmatpush.bf16.msra.mxu0 %v3360
  %3541 = vmatpush.bf16.msra.mxu0 %v3358
  %3542 = vmatpush.bf16.msra.mxu0 %v3356
  %3543 = vmatpush.bf16.msra.mxu0 %v3354
  %3544 = vmatpush.bf16.msra.mxu0 %v3352
  %3545 = vmatpush.bf16.msra.mxu0 %v3350
  %3546 = vmatpush.bf16.msra.mxu0 %v3348
  %3547 = vmatpush.bf16.msra.mxu0 %v3346
  %3548 = vmatmul.bf16.gmra.mxu0 %v1043
  %v3549 = vpop.f32.mrf.mxu0
  %v3550 = vadd.f32 %v3501, %v3549
  %v3551 = vpop.f32.mrf.mxu0
  %v3552 = vadd.f32 %v3503, %v3551
  %3553 = vmatmul.bf16.gmra.mxu0 %v1045
  %v3554 = vpop.f32.mrf.mxu0
  %v3555 = vadd.f32 %v3506, %v3554
  %v3556 = vpop.f32.mrf.mxu0
  %v3557 = vadd.f32 %v3508, %v3556
  %3558 = vmatmul.bf16.gmra.mxu0 %v1047
  %v3559 = vpop.f32.mrf.mxu0
  %v3560 = vadd.f32 %v3511, %v3559
  %v3561 = vpop.f32.mrf.mxu0
  %v3562 = vadd.f32 %v3513, %v3561
  %3563 = vmatmul.bf16.gmra.mxu0 %v1049
  %v3564 = vpop.f32.mrf.mxu0
  %v3565 = vadd.f32 %v3516, %v3564
  %v3566 = vpop.f32.mrf.mxu0
  %v3567 = vadd.f32 %v3518, %v3566
  %3568 = vmatmul.bf16.gmra.mxu0 %v1051
  %v3569 = vpop.f32.mrf.mxu0
  %v3570 = vadd.f32 %v3521, %v3569
  %v3571 = vpop.f32.mrf.mxu0
  %v3572 = vadd.f32 %v3523, %v3571
  %3573 = vmatmul.bf16.gmra.mxu0 %v1053
  %v3574 = vpop.f32.mrf.mxu0
  %v3575 = vadd.f32 %v3526, %v3574
  %v3576 = vpop.f32.mrf.mxu0
  %v3577 = vadd.f32 %v3528, %v3576
  %3578 = vmatmul.bf16.gmra.mxu0 %v1055
  %v3579 = vpop.f32.mrf.mxu0
  %v3580 = vadd.f32 %v3531, %v3579
  %v3581 = vpop.f32.mrf.mxu0
  %v3582 = vadd.f32 %v3533, %v3581
  %3583 = vmatmul.bf16.gmra.mxu0 %v1057
  %v3584 = vpop.f32.mrf.mxu0
  %v3585 = vadd.f32 %v3536, %v3584
  %v3586 = vpop.f32.mrf.mxu0
  %v3587 = vadd.f32 %v3538, %v3586
  %3588 = vdwg.mxu0
  %s3589 = scalar_lea.vmem %s5, 10
  %v3590 = vld [vmem:[%s3589] sm:$0x3]
  %v3592 = vperm.slane %v3590, 0
  %v3593 = vperm.slane %v3590, 1
  %v3596 = vadd.f32 %v3452, %v3592
  %v3597 = vadd.f32 %v3550, %v3593
  %v3598 = vadd.f32 %v3454, %v3592
  %v3599 = vadd.f32 %v3552, %v3593
  %v3600 = vadd.f32 %v3457, %v3592
  %v3601 = vadd.f32 %v3555, %v3593
  %v3602 = vadd.f32 %v3459, %v3592
  %v3603 = vadd.f32 %v3557, %v3593
  %v3604 = vadd.f32 %v3462, %v3592
  %v3605 = vadd.f32 %v3560, %v3593
  %v3606 = vadd.f32 %v3464, %v3592
  %v3607 = vadd.f32 %v3562, %v3593
  %v3608 = vadd.f32 %v3467, %v3592
  %v3609 = vadd.f32 %v3565, %v3593
  %v3610 = vadd.f32 %v3469, %v3592
  %v3611 = vadd.f32 %v3567, %v3593
  %v3612 = vadd.f32 %v3472, %v3592
  %v3613 = vadd.f32 %v3570, %v3593
  %v3614 = vadd.f32 %v3474, %v3592
  %v3615 = vadd.f32 %v3572, %v3593
  %v3616 = vadd.f32 %v3477, %v3592
  %v3617 = vadd.f32 %v3575, %v3593
  %v3618 = vadd.f32 %v3479, %v3592
  %v3619 = vadd.f32 %v3577, %v3593
  %v3620 = vadd.f32 %v3482, %v3592
  %v3621 = vadd.f32 %v3580, %v3593
  %v3622 = vadd.f32 %v3484, %v3592
  %v3623 = vadd.f32 %v3582, %v3593
  %v3624 = vadd.f32 %v3487, %v3592
  %v3625 = vadd.f32 %v3585, %v3593
  %v3626 = vadd.f32 %v3489, %v3592
  %v3627 = vadd.f32 %v3587, %v3593
  %v3628 = vmax.f32 %v3596, 0.0
  %v3629 = vmax.f32 %v3597, 0.0
  %v3630 = vmax.f32 %v3598, 0.0
  %v3631 = vmax.f32 %v3599, 0.0
  %v3632 = vmax.f32 %v3600, 0.0
  %v3633 = vmax.f32 %v3601, 0.0
  %v3634 = vmax.f32 %v3602, 0.0
  %v3635 = vmax.f32 %v3603, 0.0
  %v3636 = vmax.f32 %v3604, 0.0
  %v3637 = vmax.f32 %v3605, 0.0
  %v3638 = vmax.f32 %v3606, 0.0
  %v3639 = vmax.f32 %v3607, 0.0
  %v3640 = vmax.f32 %v3608, 0.0
  %v3641 = vmax.f32 %v3609, 0.0
  %v3642 = vmax.f32 %v3610, 0.0
  %v3643 = vmax.f32 %v3611, 0.0
  %v3644 = vmax.f32 %v3612, 0.0
  %v3645 = vmax.f32 %v3613, 0.0
  %v3646 = vmax.f32 %v3614, 0.0
  %v3647 = vmax.f32 %v3615, 0.0
  %v3648 = vmax.f32 %v3616, 0.0
  %v3649 = vmax.f32 %v3617, 0.0
  %v3650 = vmax.f32 %v3618, 0.0
  %v3651 = vmax.f32 %v3619, 0.0
  %v3652 = vmax.f32 %v3620, 0.0
  %v3653 = vmax.f32 %v3621, 0.0
  %v3654 = vmax.f32 %v3622, 0.0
  %v3655 = vmax.f32 %v3623, 0.0
  %v3656 = vmax.f32 %v3624, 0.0
  %v3657 = vmax.f32 %v3625, 0.0
  %v3658 = vmax.f32 %v3626, 0.0
  %v3659 = vmax.f32 %v3627, 0.0
  %v3660 = vpack.c.bf16 %v3630, %v3628
  %v3661 = vpack.c.bf16 %v3631, %v3629
  %v3662 = vpack.c.bf16 %v3634, %v3632
  %v3663 = vpack.c.bf16 %v3635, %v3633
  %v3664 = vpack.c.bf16 %v3638, %v3636
  %v3665 = vpack.c.bf16 %v3639, %v3637
  %v3666 = vpack.c.bf16 %v3642, %v3640
  %v3667 = vpack.c.bf16 %v3643, %v3641
  %v3668 = vpack.c.bf16 %v3646, %v3644
  %v3669 = vpack.c.bf16 %v3647, %v3645
  %v3670 = vpack.c.bf16 %v3650, %v3648
  %v3671 = vpack.c.bf16 %v3651, %v3649
  %v3672 = vpack.c.bf16 %v3654, %v3652
  %v3673 = vpack.c.bf16 %v3655, %v3653
  %v3674 = vpack.c.bf16 %v3658, %v3656
  %v3675 = vpack.c.bf16 %v3659, %v3657
  %s3676 = scalar_lea.vmem %s4, 1792
  %v3677 = vld [vmem:[%s3676] sm:$0xff]
  %v3678 = vld [vmem:[%s3676 + $0x8] sm:$0xff]
  %v3679 = vld [vmem:[%s3676 + $0x10] sm:$0xff]
  %v3680 = vld [vmem:[%s3676 + $0x18] sm:$0xff]
  %v3681 = vld [vmem:[%s3676 + $0x20] sm:$0xff]
  %v3682 = vld [vmem:[%s3676 + $0x28] sm:$0xff]
  %v3683 = vld [vmem:[%s3676 + $0x30] sm:$0xff]
  %v3684 = vld [vmem:[%s3676 + $0x38] sm:$0xff]
  %v3685 = vld [vmem:[%s3676 + $0x40] sm:$0xff]
  %v3686 = vld [vmem:[%s3676 + $0x48] sm:$0xff]
  %v3687 = vld [vmem:[%s3676 + $0x50] sm:$0xff]
  %v3688 = vld [vmem:[%s3676 + $0x58] sm:$0xff]
  %v3689 = vld [vmem:[%s3676 + $0x60] sm:$0xff]
  %v3690 = vld [vmem:[%s3676 + $0x68] sm:$0xff]
  %v3691 = vld [vmem:[%s3676 + $0x70] sm:$0xff]
  %v3692 = vld [vmem:[%s3676 + $0x78] sm:$0xff]
  %v3693 = vld [vmem:[%s3676 + $0x80] sm:$0xff]
  %v3694 = vld [vmem:[%s3676 + $0x88] sm:$0xff]
  %v3695 = vld [vmem:[%s3676 + $0x90] sm:$0xff]
  %v3696 = vld [vmem:[%s3676 + $0x98] sm:$0xff]
  %v3697 = vld [vmem:[%s3676 + $0xa0] sm:$0xff]
  %v3698 = vld [vmem:[%s3676 + $0xa8] sm:$0xff]
  %v3699 = vld [vmem:[%s3676 + $0xb0] sm:$0xff]
  %v3700 = vld [vmem:[%s3676 + $0xb8] sm:$0xff]
  %v3701 = vld [vmem:[%s3676 + $0xc0] sm:$0xff]
  %v3702 = vld [vmem:[%s3676 + $0xc8] sm:$0xff]
  %v3703 = vld [vmem:[%s3676 + $0xd0] sm:$0xff]
  %v3704 = vld [vmem:[%s3676 + $0xd8] sm:$0xff]
  %v3705 = vld [vmem:[%s3676 + $0xe0] sm:$0xff]
  %v3706 = vld [vmem:[%s3676 + $0xe8] sm:$0xff]
  %v3707 = vld [vmem:[%s3676 + $0xf0] sm:$0xff]
  %v3708 = vld [vmem:[%s3676 + $0xf8] sm:$0xff]
  %s3709 = scalar_lea.vmem %s5, 12
  %v3710 = vld [vmem:[%s3709] sm:$0x3]
  %v3712 = vperm.slane %v3710, 0
  %v3713 = vperm.slane %v3710, 1
  %v3748 = vunpack.c.l.b16 %v3677
  %v3749 = vunpack.c.h.b16 %v3677
  %v3750 = vunpack.c.l.b16 %v3678
  %v3751 = vunpack.c.h.b16 %v3678
  %v3752 = vunpack.c.l.b16 %v3679
  %v3753 = vunpack.c.h.b16 %v3679
  %v3754 = vunpack.c.l.b16 %v3680
  %v3755 = vunpack.c.h.b16 %v3680
  %v3756 = vunpack.c.l.b16 %v3681
  %v3757 = vunpack.c.h.b16 %v3681
  %v3758 = vunpack.c.l.b16 %v3682
  %v3759 = vunpack.c.h.b16 %v3682
  %v3760 = vunpack.c.l.b16 %v3683
  %v3761 = vunpack.c.h.b16 %v3683
  %v3762 = vunpack.c.l.b16 %v3684
  %v3763 = vunpack.c.h.b16 %v3684
  %v3764 = vunpack.c.l.b16 %v3685
  %v3765 = vunpack.c.h.b16 %v3685
  %v3766 = vunpack.c.l.b16 %v3686
  %v3767 = vunpack.c.h.b16 %v3686
  %v3768 = vunpack.c.l.b16 %v3687
  %v3769 = vunpack.c.h.b16 %v3687
  %v3770 = vunpack.c.l.b16 %v3688
  %v3771 = vunpack.c.h.b16 %v3688
  %v3772 = vunpack.c.l.b16 %v3689
  %v3773 = vunpack.c.h.b16 %v3689
  %v3774 = vunpack.c.l.b16 %v3690
  %v3775 = vunpack.c.h.b16 %v3690
  %v3776 = vunpack.c.l.b16 %v3691
  %v3777 = vunpack.c.h.b16 %v3691
  %v3778 = vunpack.c.l.b16 %v3692
  %v3779 = vunpack.c.h.b16 %v3692
  %v3780 = vunpack.c.l.b16 %v3693
  %v3781 = vunpack.c.h.b16 %v3693
  %v3782 = vunpack.c.l.b16 %v3694
  %v3783 = vunpack.c.h.b16 %v3694
  %v3784 = vunpack.c.l.b16 %v3695
  %v3785 = vunpack.c.h.b16 %v3695
  %v3786 = vunpack.c.l.b16 %v3696
  %v3787 = vunpack.c.h.b16 %v3696
  %v3788 = vunpack.c.l.b16 %v3697
  %v3789 = vunpack.c.h.b16 %v3697
  %v3790 = vunpack.c.l.b16 %v3698
  %v3791 = vunpack.c.h.b16 %v3698
  %v3792 = vunpack.c.l.b16 %v3699
  %v3793 = vunpack.c.h.b16 %v3699
  %v3794 = vunpack.c.l.b16 %v3700
  %v3795 = vunpack.c.h.b16 %v3700
  %v3796 = vunpack.c.l.b16 %v3701
  %v3797 = vunpack.c.h.b16 %v3701
  %v3798 = vunpack.c.l.b16 %v3702
  %v3799 = vunpack.c.h.b16 %v3702
  %v3800 = vunpack.c.l.b16 %v3703
  %v3801 = vunpack.c.h.b16 %v3703
  %v3802 = vunpack.c.l.b16 %v3704
  %v3803 = vunpack.c.h.b16 %v3704
  %v3804 = vunpack.c.l.b16 %v3705
  %v3805 = vunpack.c.h.b16 %v3705
  %v3806 = vunpack.c.l.b16 %v3706
  %v3807 = vunpack.c.h.b16 %v3706
  %v3808 = vunpack.c.l.b16 %v3707
  %v3809 = vunpack.c.h.b16 %v3707
  %v3810 = vunpack.c.l.b16 %v3708
  %v3811 = vunpack.c.h.b16 %v3708
  %v3812 = vpack.c.b16 %v3750, %v3748
  %v3813 = vpack.c.b16 %v3751, %v3749
  %v3814 = vpack.c.b16 %v3754, %v3752
  %v3815 = vpack.c.b16 %v3755, %v3753
  %v3816 = vpack.c.b16 %v3758, %v3756
  %v3817 = vpack.c.b16 %v3759, %v3757
  %v3818 = vpack.c.b16 %v3762, %v3760
  %v3819 = vpack.c.b16 %v3763, %v3761
  %v3820 = vpack.c.b16 %v3766, %v3764
  %v3821 = vpack.c.b16 %v3767, %v3765
  %v3822 = vpack.c.b16 %v3770, %v3768
  %v3823 = vpack.c.b16 %v3771, %v3769
  %v3824 = vpack.c.b16 %v3774, %v3772
  %v3825 = vpack.c.b16 %v3775, %v3773
  %v3826 = vpack.c.b16 %v3778, %v3776
  %v3827 = vpack.c.b16 %v3779, %v3777
  %v3828 = vpack.c.b16 %v3782, %v3780
  %v3829 = vpack.c.b16 %v3783, %v3781
  %v3830 = vpack.c.b16 %v3786, %v3784
  %v3831 = vpack.c.b16 %v3787, %v3785
  %v3832 = vpack.c.b16 %v3790, %v3788
  %v3833 = vpack.c.b16 %v3791, %v3789
  %v3834 = vpack.c.b16 %v3794, %v3792
  %v3835 = vpack.c.b16 %v3795, %v3793
  %v3836 = vpack.c.b16 %v3798, %v3796
  %v3837 = vpack.c.b16 %v3799, %v3797
  %v3838 = vpack.c.b16 %v3802, %v3800
  %v3839 = vpack.c.b16 %v3803, %v3801
  %v3840 = vpack.c.b16 %v3806, %v3804
  %v3841 = vpack.c.b16 %v3807, %v3805
  %v3842 = vpack.c.b16 %v3810, %v3808
  %v3843 = vpack.c.b16 %v3811, %v3809
  %3876 = vmatpush.bf16.msra.mxu0 %v3826
  %3877 = vmatpush.bf16.msra.mxu0 %v3824
  %3878 = vmatpush.bf16.msra.mxu0 %v3822
  %3879 = vmatpush.bf16.msra.mxu0 %v3820
  %3880 = vmatpush.bf16.msra.mxu0 %v3818
  %3881 = vmatpush.bf16.msra.mxu0 %v3816
  %3882 = vmatpush.bf16.msra.mxu0 %v3814
  %3883 = vmatpush.bf16.msra.mxu0 %v3812
  %3884 = vmatmul.bf16.gmra.mxu0 %v2795
  %v3885 = vpop.f32.mrf.mxu0
  %v3886 = vadd.f32 %v3712, %v3885
  %v3887 = vpop.f32.mrf.mxu0
  %v3888 = vadd.f32 %v3712, %v3887
  %3889 = vmatmul.bf16.gmra.mxu0 %v2797
  %v3890 = vpop.f32.mrf.mxu0
  %v3891 = vadd.f32 %v3712, %v3890
  %v3892 = vpop.f32.mrf.mxu0
  %v3893 = vadd.f32 %v3712, %v3892
  %3894 = vmatmul.bf16.gmra.mxu0 %v2799
  %v3895 = vpop.f32.mrf.mxu0
  %v3896 = vadd.f32 %v3712, %v3895
  %v3897 = vpop.f32.mrf.mxu0
  %v3898 = vadd.f32 %v3712, %v3897
  %3899 = vmatmul.bf16.gmra.mxu0 %v2801
  %v3900 = vpop.f32.mrf.mxu0
  %v3901 = vadd.f32 %v3712, %v3900
  %v3902 = vpop.f32.mrf.mxu0
  %v3903 = vadd.f32 %v3712, %v3902
  %3904 = vmatmul.bf16.gmra.mxu0 %v2803
  %v3905 = vpop.f32.mrf.mxu0
  %v3906 = vadd.f32 %v3712, %v3905
  %v3907 = vpop.f32.mrf.mxu0
  %v3908 = vadd.f32 %v3712, %v3907
  %3909 = vmatmul.bf16.gmra.mxu0 %v2805
  %v3910 = vpop.f32.mrf.mxu0
  %v3911 = vadd.f32 %v3712, %v3910
  %v3912 = vpop.f32.mrf.mxu0
  %v3913 = vadd.f32 %v3712, %v3912
  %3914 = vmatmul.bf16.gmra.mxu0 %v2807
  %v3915 = vpop.f32.mrf.mxu0
  %v3916 = vadd.f32 %v3712, %v3915
  %v3917 = vpop.f32.mrf.mxu0
  %v3918 = vadd.f32 %v3712, %v3917
  %3919 = vmatmul.bf16.gmra.mxu0 %v2809
  %v3920 = vpop.f32.mrf.mxu0
  %v3921 = vadd.f32 %v3712, %v3920
  %v3922 = vpop.f32.mrf.mxu0
  %v3923 = vadd.f32 %v3712, %v3922
  %3924 = vdwg.mxu0
  %3925 = vmatpush.bf16.msra.mxu0 %v3842
  %3926 = vmatpush.bf16.msra.mxu0 %v3840
  %3927 = vmatpush.bf16.msra.mxu0 %v3838
  %3928 = vmatpush.bf16.msra.mxu0 %v3836
  %3929 = vmatpush.bf16.msra.mxu0 %v3834
  %3930 = vmatpush.bf16.msra.mxu0 %v3832
  %3931 = vmatpush.bf16.msra.mxu0 %v3830
  %3932 = vmatpush.bf16.msra.mxu0 %v3828
  %3933 = vmatmul.bf16.gmra.mxu0 %v2796
  %v3934 = vpop.f32.mrf.mxu0
  %v3935 = vadd.f32 %v3886, %v3934
  %v3936 = vpop.f32.mrf.mxu0
  %v3937 = vadd.f32 %v3888, %v3936
  %3938 = vmatmul.bf16.gmra.mxu0 %v2798
  %v3939 = vpop.f32.mrf.mxu0
  %v3940 = vadd.f32 %v3891, %v3939
  %v3941 = vpop.f32.mrf.mxu0
  %v3942 = vadd.f32 %v3893, %v3941
  %3943 = vmatmul.bf16.gmra.mxu0 %v2800
  %v3944 = vpop.f32.mrf.mxu0
  %v3945 = vadd.f32 %v3896, %v3944
  %v3946 = vpop.f32.mrf.mxu0
  %v3947 = vadd.f32 %v3898, %v3946
  %3948 = vmatmul.bf16.gmra.mxu0 %v2802
  %v3949 = vpop.f32.mrf.mxu0
  %v3950 = vadd.f32 %v3901, %v3949
  %v3951 = vpop.f32.mrf.mxu0
  %v3952 = vadd.f32 %v3903, %v3951
  %3953 = vmatmul.bf16.gmra.mxu0 %v2804
  %v3954 = vpop.f32.mrf.mxu0
  %v3955 = vadd.f32 %v3906, %v3954
  %v3956 = vpop.f32.mrf.mxu0
  %v3957 = vadd.f32 %v3908, %v3956
  %3958 = vmatmul.bf16.gmra.mxu0 %v2806
  %v3959 = vpop.f32.mrf.mxu0
  %v3960 = vadd.f32 %v3911, %v3959
  %v3961 = vpop.f32.mrf.mxu0
  %v3962 = vadd.f32 %v3913, %v3961
  %3963 = vmatmul.bf16.gmra.mxu0 %v2808
  %v3964 = vpop.f32.mrf.mxu0
  %v3965 = vadd.f32 %v3916, %v3964
  %v3966 = vpop.f32.mrf.mxu0
  %v3967 = vadd.f32 %v3918, %v3966
  %3968 = vmatmul.bf16.gmra.mxu0 %v2810
  %v3969 = vpop.f32.mrf.mxu0
  %v3970 = vadd.f32 %v3921, %v3969
  %v3971 = vpop.f32.mrf.mxu0
  %v3972 = vadd.f32 %v3923, %v3971
  %3973 = vdwg.mxu0
  %3974 = vmatpush.bf16.msra.mxu0 %v3827
  %3975 = vmatpush.bf16.msra.mxu0 %v3825
  %3976 = vmatpush.bf16.msra.mxu0 %v3823
  %3977 = vmatpush.bf16.msra.mxu0 %v3821
  %3978 = vmatpush.bf16.msra.mxu0 %v3819
  %3979 = vmatpush.bf16.msra.mxu0 %v3817
  %3980 = vmatpush.bf16.msra.mxu0 %v3815
  %3981 = vmatpush.bf16.msra.mxu0 %v3813
  %3982 = vmatmul.bf16.gmra.mxu0 %v2795
  %v3983 = vpop.f32.mrf.mxu0
  %v3984 = vadd.f32 %v3713, %v3983
  %v3985 = vpop.f32.mrf.mxu0
  %v3986 = vadd.f32 %v3713, %v3985
  %3987 = vmatmul.bf16.gmra.mxu0 %v2797
  %v3988 = vpop.f32.mrf.mxu0
  %v3989 = vadd.f32 %v3713, %v3988
  %v3990 = vpop.f32.mrf.mxu0
  %v3991 = vadd.f32 %v3713, %v3990
  %3992 = vmatmul.bf16.gmra.mxu0 %v2799
  %v3993 = vpop.f32.mrf.mxu0
  %v3994 = vadd.f32 %v3713, %v3993
  %v3995 = vpop.f32.mrf.mxu0
  %v3996 = vadd.f32 %v3713, %v3995
  %3997 = vmatmul.bf16.gmra.mxu0 %v2801
  %v3998 = vpop.f32.mrf.mxu0
  %v3999 = vadd.f32 %v3713, %v3998
  %v4000 = vpop.f32.mrf.mxu0
  %v4001 = vadd.f32 %v3713, %v4000
  %4002 = vmatmul.bf16.gmra.mxu0 %v2803
  %v4003 = vpop.f32.mrf.mxu0
  %v4004 = vadd.f32 %v3713, %v4003
  %v4005 = vpop.f32.mrf.mxu0
  %v4006 = vadd.f32 %v3713, %v4005
  %4007 = vmatmul.bf16.gmra.mxu0 %v2805
  %v4008 = vpop.f32.mrf.mxu0
  %v4009 = vadd.f32 %v3713, %v4008
  %v4010 = vpop.f32.mrf.mxu0
  %v4011 = vadd.f32 %v3713, %v4010
  %4012 = vmatmul.bf16.gmra.mxu0 %v2807
  %v4013 = vpop.f32.mrf.mxu0
  %v4014 = vadd.f32 %v3713, %v4013
  %v4015 = vpop.f32.mrf.mxu0
  %v4016 = vadd.f32 %v3713, %v4015
  %4017 = vmatmul.bf16.gmra.mxu0 %v2809
  %v4018 = vpop.f32.mrf.mxu0
  %v4019 = vadd.f32 %v3713, %v4018
  %v4020 = vpop.f32.mrf.mxu0
  %v4021 = vadd.f32 %v3713, %v4020
  %4022 = vdwg.mxu0
  %4023 = vmatpush.bf16.msra.mxu0 %v3843
  %4024 = vmatpush.bf16.msra.mxu0 %v3841
  %4025 = vmatpush.bf16.msra.mxu0 %v3839
  %4026 = vmatpush.bf16.msra.mxu0 %v3837
  %4027 = vmatpush.bf16.msra.mxu0 %v3835
  %4028 = vmatpush.bf16.msra.mxu0 %v3833
  %4029 = vmatpush.bf16.msra.mxu0 %v3831
  %4030 = vmatpush.bf16.msra.mxu0 %v3829
  %4031 = vmatmul.bf16.gmra.mxu0 %v2796
  %v4032 = vpop.f32.mrf.mxu0
  %v4033 = vadd.f32 %v3984, %v4032
  %v4034 = vpop.f32.mrf.mxu0
  %v4035 = vadd.f32 %v3986, %v4034
  %4036 = vmatmul.bf16.gmra.mxu0 %v2798
  %v4037 = vpop.f32.mrf.mxu0
  %v4038 = vadd.f32 %v3989, %v4037
  %v4039 = vpop.f32.mrf.mxu0
  %v4040 = vadd.f32 %v3991, %v4039
  %4041 = vmatmul.bf16.gmra.mxu0 %v2800
  %v4042 = vpop.f32.mrf.mxu0
  %v4043 = vadd.f32 %v3994, %v4042
  %v4044 = vpop.f32.mrf.mxu0
  %v4045 = vadd.f32 %v3996, %v4044
  %4046 = vmatmul.bf16.gmra.mxu0 %v2802
  %v4047 = vpop.f32.mrf.mxu0
  %v4048 = vadd.f32 %v3999, %v4047
  %v4049 = vpop.f32.mrf.mxu0
  %v4050 = vadd.f32 %v4001, %v4049
  %4051 = vmatmul.bf16.gmra.mxu0 %v2804
  %v4052 = vpop.f32.mrf.mxu0
  %v4053 = vadd.f32 %v4004, %v4052
  %v4054 = vpop.f32.mrf.mxu0
  %v4055 = vadd.f32 %v4006, %v4054
  %4056 = vmatmul.bf16.gmra.mxu0 %v2806
  %v4057 = vpop.f32.mrf.mxu0
  %v4058 = vadd.f32 %v4009, %v4057
  %v4059 = vpop.f32.mrf.mxu0
  %v4060 = vadd.f32 %v4011, %v4059
  %4061 = vmatmul.bf16.gmra.mxu0 %v2808
  %v4062 = vpop.f32.mrf.mxu0
  %v4063 = vadd.f32 %v4014, %v4062
  %v4064 = vpop.f32.mrf.mxu0
  %v4065 = vadd.f32 %v4016, %v4064
  %4066 = vmatmul.bf16.gmra.mxu0 %v2810
  %v4067 = vpop.f32.mrf.mxu0
  %v4068 = vadd.f32 %v4019, %v4067
  %v4069 = vpop.f32.mrf.mxu0
  %v4070 = vadd.f32 %v4021, %v4069
  %4071 = vdwg.mxu0
  %v4072 = vmax.f32 %v3935, 0.0
  %v4073 = vmax.f32 %v4033, 0.0
  %v4074 = vmax.f32 %v3937, 0.0
  %v4075 = vmax.f32 %v4035, 0.0
  %v4076 = vmax.f32 %v3940, 0.0
  %v4077 = vmax.f32 %v4038, 0.0
  %v4078 = vmax.f32 %v3942, 0.0
  %v4079 = vmax.f32 %v4040, 0.0
  %v4080 = vmax.f32 %v3945, 0.0
  %v4081 = vmax.f32 %v4043, 0.0
  %v4082 = vmax.f32 %v3947, 0.0
  %v4083 = vmax.f32 %v4045, 0.0
  %v4084 = vmax.f32 %v3950, 0.0
  %v4085 = vmax.f32 %v4048, 0.0
  %v4086 = vmax.f32 %v3952, 0.0
  %v4087 = vmax.f32 %v4050, 0.0
  %v4088 = vmax.f32 %v3955, 0.0
  %v4089 = vmax.f32 %v4053, 0.0
  %v4090 = vmax.f32 %v3957, 0.0
  %v4091 = vmax.f32 %v4055, 0.0
  %v4092 = vmax.f32 %v3960, 0.0
  %v4093 = vmax.f32 %v4058, 0.0
  %v4094 = vmax.f32 %v3962, 0.0
  %v4095 = vmax.f32 %v4060, 0.0
  %v4096 = vmax.f32 %v3965, 0.0
  %v4097 = vmax.f32 %v4063, 0.0
  %v4098 = vmax.f32 %v3967, 0.0
  %v4099 = vmax.f32 %v4065, 0.0
  %v4100 = vmax.f32 %v3970, 0.0
  %v4101 = vmax.f32 %v4068, 0.0
  %v4102 = vmax.f32 %v3972, 0.0
  %v4103 = vmax.f32 %v4070, 0.0
  %v4104 = vpack.c.bf16 %v4074, %v4072
  %v4105 = vpack.c.bf16 %v4075, %v4073
  %v4106 = vpack.c.bf16 %v4078, %v4076
  %v4107 = vpack.c.bf16 %v4079, %v4077
  %v4108 = vpack.c.bf16 %v4082, %v4080
  %v4109 = vpack.c.bf16 %v4083, %v4081
  %v4110 = vpack.c.bf16 %v4086, %v4084
  %v4111 = vpack.c.bf16 %v4087, %v4085
  %v4112 = vpack.c.bf16 %v4090, %v4088
  %v4113 = vpack.c.bf16 %v4091, %v4089
  %v4114 = vpack.c.bf16 %v4094, %v4092
  %v4115 = vpack.c.bf16 %v4095, %v4093
  %v4116 = vpack.c.bf16 %v4098, %v4096
  %v4117 = vpack.c.bf16 %v4099, %v4097
  %v4118 = vpack.c.bf16 %v4102, %v4100
  %v4119 = vpack.c.bf16 %v4103, %v4101
  %s4120 = scalar_lea.vmem %s4, 2048
  %v4121 = vld [vmem:[%s4120] sm:$0xff]
  %v4122 = vld [vmem:[%s4120 + $0x8] sm:$0xff]
  %v4123 = vld [vmem:[%s4120 + $0x10] sm:$0xff]
  %v4124 = vld [vmem:[%s4120 + $0x18] sm:$0xff]
  %v4125 = vld [vmem:[%s4120 + $0x20] sm:$0xff]
  %v4126 = vld [vmem:[%s4120 + $0x28] sm:$0xff]
  %v4127 = vld [vmem:[%s4120 + $0x30] sm:$0xff]
  %v4128 = vld [vmem:[%s4120 + $0x38] sm:$0xff]
  %v4129 = vld [vmem:[%s4120 + $0x40] sm:$0xff]
  %v4130 = vld [vmem:[%s4120 + $0x48] sm:$0xff]
  %v4131 = vld [vmem:[%s4120 + $0x50] sm:$0xff]
  %v4132 = vld [vmem:[%s4120 + $0x58] sm:$0xff]
  %v4133 = vld [vmem:[%s4120 + $0x60] sm:$0xff]
  %v4134 = vld [vmem:[%s4120 + $0x68] sm:$0xff]
  %v4135 = vld [vmem:[%s4120 + $0x70] sm:$0xff]
  %v4136 = vld [vmem:[%s4120 + $0x78] sm:$0xff]
  %v4137 = vld [vmem:[%s4120 + $0x80] sm:$0xff]
  %v4138 = vld [vmem:[%s4120 + $0x88] sm:$0xff]
  %v4139 = vld [vmem:[%s4120 + $0x90] sm:$0xff]
  %v4140 = vld [vmem:[%s4120 + $0x98] sm:$0xff]
  %v4141 = vld [vmem:[%s4120 + $0xa0] sm:$0xff]
  %v4142 = vld [vmem:[%s4120 + $0xa8] sm:$0xff]
  %v4143 = vld [vmem:[%s4120 + $0xb0] sm:$0xff]
  %v4144 = vld [vmem:[%s4120 + $0xb8] sm:$0xff]
  %v4145 = vld [vmem:[%s4120 + $0xc0] sm:$0xff]
  %v4146 = vld [vmem:[%s4120 + $0xc8] sm:$0xff]
  %v4147 = vld [vmem:[%s4120 + $0xd0] sm:$0xff]
  %v4148 = vld [vmem:[%s4120 + $0xd8] sm:$0xff]
  %v4149 = vld [vmem:[%s4120 + $0xe0] sm:$0xff]
  %v4150 = vld [vmem:[%s4120 + $0xe8] sm:$0xff]
  %v4151 = vld [vmem:[%s4120 + $0xf0] sm:$0xff]
  %v4152 = vld [vmem:[%s4120 + $0xf8] sm:$0xff]
  %s4153 = scalar_lea.vmem %s5, 14
  %v4154 = vld [vmem:[%s4153] sm:$0x3]
  %v4156 = vperm.slane %v4154, 0
  %v4157 = vperm.slane %v4154, 1
  %v4192 = vunpack.c.l.b16 %v4121
  %v4193 = vunpack.c.h.b16 %v4121
  %v4194 = vunpack.c.l.b16 %v4122
  %v4195 = vunpack.c.h.b16 %v4122
  %v4196 = vunpack.c.l.b16 %v4123
  %v4197 = vunpack.c.h.b16 %v4123
  %v4198 = vunpack.c.l.b16 %v4124
  %v4199 = vunpack.c.h.b16 %v4124
  %v4200 = vunpack.c.l.b16 %v4125
  %v4201 = vunpack.c.h.b16 %v4125
  %v4202 = vunpack.c.l.b16 %v4126
  %v4203 = vunpack.c.h.b16 %v4126
  %v4204 = vunpack.c.l.b16 %v4127
  %v4205 = vunpack.c.h.b16 %v4127
  %v4206 = vunpack.c.l.b16 %v4128
  %v4207 = vunpack.c.h.b16 %v4128
  %v4208 = vunpack.c.l.b16 %v4129
  %v4209 = vunpack.c.h.b16 %v4129
  %v4210 = vunpack.c.l.b16 %v4130
  %v4211 = vunpack.c.h.b16 %v4130
  %v4212 = vunpack.c.l.b16 %v4131
  %v4213 = vunpack.c.h.b16 %v4131
  %v4214 = vunpack.c.l.b16 %v4132
  %v4215 = vunpack.c.h.b16 %v4132
  %v4216 = vunpack.c.l.b16 %v4133
  %v4217 = vunpack.c.h.b16 %v4133
  %v4218 = vunpack.c.l.b16 %v4134
  %v4219 = vunpack.c.h.b16 %v4134
  %v4220 = vunpack.c.l.b16 %v4135
  %v4221 = vunpack.c.h.b16 %v4135
  %v4222 = vunpack.c.l.b16 %v4136
  %v4223 = vunpack.c.h.b16 %v4136
  %v4224 = vunpack.c.l.b16 %v4137
  %v4225 = vunpack.c.h.b16 %v4137
  %v4226 = vunpack.c.l.b16 %v4138
  %v4227 = vunpack.c.h.b16 %v4138
  %v4228 = vunpack.c.l.b16 %v4139
  %v4229 = vunpack.c.h.b16 %v4139
  %v4230 = vunpack.c.l.b16 %v4140
  %v4231 = vunpack.c.h.b16 %v4140
  %v4232 = vunpack.c.l.b16 %v4141
  %v4233 = vunpack.c.h.b16 %v4141
  %v4234 = vunpack.c.l.b16 %v4142
  %v4235 = vunpack.c.h.b16 %v4142
  %v4236 = vunpack.c.l.b16 %v4143
  %v4237 = vunpack.c.h.b16 %v4143
  %v4238 = vunpack.c.l.b16 %v4144
  %v4239 = vunpack.c.h.b16 %v4144
  %v4240 = vunpack.c.l.b16 %v4145
  %v4241 = vunpack.c.h.b16 %v4145
  %v4242 = vunpack.c.l.b16 %v4146
  %v4243 = vunpack.c.h.b16 %v4146
  %v4244 = vunpack.c.l.b16 %v4147
  %v4245 = vunpack.c.h.b16 %v4147
  %v4246 = vunpack.c.l.b16 %v4148
  %v4247 = vunpack.c.h.b16 %v4148
  %v4248 = vunpack.c.l.b16 %v4149
  %v4249 = vunpack.c.h.b16 %v4149
  %v4250 = vunpack.c.l.b16 %v4150
  %v4251 = vunpack.c.h.b16 %v4150
  %v4252 = vunpack.c.l.b16 %v4151
  %v4253 = vunpack.c.h.b16 %v4151
  %v4254 = vunpack.c.l.b16 %v4152
  %v4255 = vunpack.c.h.b16 %v4152
  %v4256 = vpack.c.b16 %v4194, %v4192
  %v4257 = vpack.c.b16 %v4195, %v4193
  %v4258 = vpack.c.b16 %v4198, %v4196
  %v4259 = vpack.c.b16 %v4199, %v4197
  %v4260 = vpack.c.b16 %v4202, %v4200
  %v4261 = vpack.c.b16 %v4203, %v4201
  %v4262 = vpack.c.b16 %v4206, %v4204
  %v4263 = vpack.c.b16 %v4207, %v4205
  %v4264 = vpack.c.b16 %v4210, %v4208
  %v4265 = vpack.c.b16 %v4211, %v4209
  %v4266 = vpack.c.b16 %v4214, %v4212
  %v4267 = vpack.c.b16 %v4215, %v4213
  %v4268 = vpack.c.b16 %v4218, %v4216
  %v4269 = vpack.c.b16 %v4219, %v4217
  %v4270 = vpack.c.b16 %v4222, %v4220
  %v4271 = vpack.c.b16 %v4223, %v4221
  %v4272 = vpack.c.b16 %v4226, %v4224
  %v4273 = vpack.c.b16 %v4227, %v4225
  %v4274 = vpack.c.b16 %v4230, %v4228
  %v4275 = vpack.c.b16 %v4231, %v4229
  %v4276 = vpack.c.b16 %v4234, %v4232
  %v4277 = vpack.c.b16 %v4235, %v4233
  %v4278 = vpack.c.b16 %v4238, %v4236
  %v4279 = vpack.c.b16 %v4239, %v4237
  %v4280 = vpack.c.b16 %v4242, %v4240
  %v4281 = vpack.c.b16 %v4243, %v4241
  %v4282 = vpack.c.b16 %v4246, %v4244
  %v4283 = vpack.c.b16 %v4247, %v4245
  %v4284 = vpack.c.b16 %v4250, %v4248
  %v4285 = vpack.c.b16 %v4251, %v4249
  %v4286 = vpack.c.b16 %v4254, %v4252
  %v4287 = vpack.c.b16 %v4255, %v4253
  %4320 = vmatpush.bf16.msra.mxu0 %v4270
  %4321 = vmatpush.bf16.msra.mxu0 %v4268
  %4322 = vmatpush.bf16.msra.mxu0 %v4266
  %4323 = vmatpush.bf16.msra.mxu0 %v4264
  %4324 = vmatpush.bf16.msra.mxu0 %v4262
  %4325 = vmatpush.bf16.msra.mxu0 %v4260
  %4326 = vmatpush.bf16.msra.mxu0 %v4258
  %4327 = vmatpush.bf16.msra.mxu0 %v4256
  %4328 = vmatmul.bf16.gmra.mxu0 %v4104
  %v4329 = vpop.f32.mrf.mxu0
  %v4330 = vadd.f32 %v4156, %v4329
  %v4331 = vpop.f32.mrf.mxu0
  %v4332 = vadd.f32 %v4156, %v4331
  %4333 = vmatmul.bf16.gmra.mxu0 %v4106
  %v4334 = vpop.f32.mrf.mxu0
  %v4335 = vadd.f32 %v4156, %v4334
  %v4336 = vpop.f32.mrf.mxu0
  %v4337 = vadd.f32 %v4156, %v4336
  %4338 = vmatmul.bf16.gmra.mxu0 %v4108
  %v4339 = vpop.f32.mrf.mxu0
  %v4340 = vadd.f32 %v4156, %v4339
  %v4341 = vpop.f32.mrf.mxu0
  %v4342 = vadd.f32 %v4156, %v4341
  %4343 = vmatmul.bf16.gmra.mxu0 %v4110
  %v4344 = vpop.f32.mrf.mxu0
  %v4345 = vadd.f32 %v4156, %v4344
  %v4346 = vpop.f32.mrf.mxu0
  %v4347 = vadd.f32 %v4156, %v4346
  %4348 = vmatmul.bf16.gmra.mxu0 %v4112
  %v4349 = vpop.f32.mrf.mxu0
  %v4350 = vadd.f32 %v4156, %v4349
  %v4351 = vpop.f32.mrf.mxu0
  %v4352 = vadd.f32 %v4156, %v4351
  %4353 = vmatmul.bf16.gmra.mxu0 %v4114
  %v4354 = vpop.f32.mrf.mxu0
  %v4355 = vadd.f32 %v4156, %v4354
  %v4356 = vpop.f32.mrf.mxu0
  %v4357 = vadd.f32 %v4156, %v4356
  %4358 = vmatmul.bf16.gmra.mxu0 %v4116
  %v4359 = vpop.f32.mrf.mxu0
  %v4360 = vadd.f32 %v4156, %v4359
  %v4361 = vpop.f32.mrf.mxu0
  %v4362 = vadd.f32 %v4156, %v4361
  %4363 = vmatmul.bf16.gmra.mxu0 %v4118
  %v4364 = vpop.f32.mrf.mxu0
  %v4365 = vadd.f32 %v4156, %v4364
  %v4366 = vpop.f32.mrf.mxu0
  %v4367 = vadd.f32 %v4156, %v4366
  %4368 = vdwg.mxu0
  %4369 = vmatpush.bf16.msra.mxu0 %v4286
  %4370 = vmatpush.bf16.msra.mxu0 %v4284
  %4371 = vmatpush.bf16.msra.mxu0 %v4282
  %4372 = vmatpush.bf16.msra.mxu0 %v4280
  %4373 = vmatpush.bf16.msra.mxu0 %v4278
  %4374 = vmatpush.bf16.msra.mxu0 %v4276
  %4375 = vmatpush.bf16.msra.mxu0 %v4274
  %4376 = vmatpush.bf16.msra.mxu0 %v4272
  %4377 = vmatmul.bf16.gmra.mxu0 %v4105
  %v4378 = vpop.f32.mrf.mxu0
  %v4379 = vadd.f32 %v4330, %v4378
  %v4380 = vpop.f32.mrf.mxu0
  %v4381 = vadd.f32 %v4332, %v4380
  %4382 = vmatmul.bf16.gmra.mxu0 %v4107
  %v4383 = vpop.f32.mrf.mxu0
  %v4384 = vadd.f32 %v4335, %v4383
  %v4385 = vpop.f32.mrf.mxu0
  %v4386 = vadd.f32 %v4337, %v4385
  %4387 = vmatmul.bf16.gmra.mxu0 %v4109
  %v4388 = vpop.f32.mrf.mxu0
  %v4389 = vadd.f32 %v4340, %v4388
  %v4390 = vpop.f32.mrf.mxu0
  %v4391 = vadd.f32 %v4342, %v4390
  %4392 = vmatmul.bf16.gmra.mxu0 %v4111
  %v4393 = vpop.f32.mrf.mxu0
  %v4394 = vadd.f32 %v4345, %v4393
  %v4395 = vpop.f32.mrf.mxu0
  %v4396 = vadd.f32 %v4347, %v4395
  %4397 = vmatmul.bf16.gmra.mxu0 %v4113
  %v4398 = vpop.f32.mrf.mxu0
  %v4399 = vadd.f32 %v4350, %v4398
  %v4400 = vpop.f32.mrf.mxu0
  %v4401 = vadd.f32 %v4352, %v4400
  %4402 = vmatmul.bf16.gmra.mxu0 %v4115
  %v4403 = vpop.f32.mrf.mxu0
  %v4404 = vadd.f32 %v4355, %v4403
  %v4405 = vpop.f32.mrf.mxu0
  %v4406 = vadd.f32 %v4357, %v4405
  %4407 = vmatmul.bf16.gmra.mxu0 %v4117
  %v4408 = vpop.f32.mrf.mxu0
  %v4409 = vadd.f32 %v4360, %v4408
  %v4410 = vpop.f32.mrf.mxu0
  %v4411 = vadd.f32 %v4362, %v4410
  %4412 = vmatmul.bf16.gmra.mxu0 %v4119
  %v4413 = vpop.f32.mrf.mxu0
  %v4414 = vadd.f32 %v4365, %v4413
  %v4415 = vpop.f32.mrf.mxu0
  %v4416 = vadd.f32 %v4367, %v4415
  %4417 = vdwg.mxu0
  %4418 = vmatpush.bf16.msra.mxu0 %v4271
  %4419 = vmatpush.bf16.msra.mxu0 %v4269
  %4420 = vmatpush.bf16.msra.mxu0 %v4267
  %4421 = vmatpush.bf16.msra.mxu0 %v4265
  %4422 = vmatpush.bf16.msra.mxu0 %v4263
  %4423 = vmatpush.bf16.msra.mxu0 %v4261
  %4424 = vmatpush.bf16.msra.mxu0 %v4259
  %4425 = vmatpush.bf16.msra.mxu0 %v4257
  %4426 = vmatmul.bf16.gmra.mxu0 %v4104
  %v4427 = vpop.f32.mrf.mxu0
  %v4428 = vadd.f32 %v4157, %v4427
  %v4429 = vpop.f32.mrf.mxu0
  %v4430 = vadd.f32 %v4157, %v4429
  %4431 = vmatmul.bf16.gmra.mxu0 %v4106
  %v4432 = vpop.f32.mrf.mxu0
  %v4433 = vadd.f32 %v4157, %v4432
  %v4434 = vpop.f32.mrf.mxu0
  %v4435 = vadd.f32 %v4157, %v4434
  %4436 = vmatmul.bf16.gmra.mxu0 %v4108
  %v4437 = vpop.f32.mrf.mxu0
  %v4438 = vadd.f32 %v4157, %v4437
  %v4439 = vpop.f32.mrf.mxu0
  %v4440 = vadd.f32 %v4157, %v4439
  %4441 = vmatmul.bf16.gmra.mxu0 %v4110
  %v4442 = vpop.f32.mrf.mxu0
  %v4443 = vadd.f32 %v4157, %v4442
  %v4444 = vpop.f32.mrf.mxu0
  %v4445 = vadd.f32 %v4157, %v4444
  %4446 = vmatmul.bf16.gmra.mxu0 %v4112
  %v4447 = vpop.f32.mrf.mxu0
  %v4448 = vadd.f32 %v4157, %v4447
  %v4449 = vpop.f32.mrf.mxu0
  %v4450 = vadd.f32 %v4157, %v4449
  %4451 = vmatmul.bf16.gmra.mxu0 %v4114
  %v4452 = vpop.f32.mrf.mxu0
  %v4453 = vadd.f32 %v4157, %v4452
  %v4454 = vpop.f32.mrf.mxu0
  %v4455 = vadd.f32 %v4157, %v4454
  %4456 = vmatmul.bf16.gmra.mxu0 %v4116
  %v4457 = vpop.f32.mrf.mxu0
  %v4458 = vadd.f32 %v4157, %v4457
  %v4459 = vpop.f32.mrf.mxu0
  %v4460 = vadd.f32 %v4157, %v4459
  %4461 = vmatmul.bf16.gmra.mxu0 %v4118
  %v4462 = vpop.f32.mrf.mxu0
  %v4463 = vadd.f32 %v4157, %v4462
  %v4464 = vpop.f32.mrf.mxu0
  %v4465 = vadd.f32 %v4157, %v4464
  %4466 = vdwg.mxu0
  %4467 = vmatpush.bf16.msra.mxu0 %v4287
  %4468 = vmatpush.bf16.msra.mxu0 %v4285
  %4469 = vmatpush.bf16.msra.mxu0 %v4283
  %4470 = vmatpush.bf16.msra.mxu0 %v4281
  %4471 = vmatpush.bf16.msra.mxu0 %v4279
  %4472 = vmatpush.bf16.msra.mxu0 %v4277
  %4473 = vmatpush.bf16.msra.mxu0 %v4275
  %4474 = vmatpush.bf16.msra.mxu0 %v4273
  %4475 = vmatmul.bf16.gmra.mxu0 %v4105
  %v4476 = vpop.f32.mrf.mxu0
  %v4477 = vadd.f32 %v4428, %v4476
  %v4478 = vpop.f32.mrf.mxu0
  %v4479 = vadd.f32 %v4430, %v4478
  %4480 = vmatmul.bf16.gmra.mxu0 %v4107
  %v4481 = vpop.f32.mrf.mxu0
  %v4482 = vadd.f32 %v4433, %v4481
  %v4483 = vpop.f32.mrf.mxu0
  %v4484 = vadd.f32 %v4435, %v4483
  %4485 = vmatmul.bf16.gmra.mxu0 %v4109
  %v4486 = vpop.f32.mrf.mxu0
  %v4487 = vadd.f32 %v4438, %v4486
  %v4488 = vpop.f32.mrf.mxu0
  %v4489 = vadd.f32 %v4440, %v4488
  %4490 = vmatmul.bf16.gmra.mxu0 %v4111
  %v4491 = vpop.f32.mrf.mxu0
  %v4492 = vadd.f32 %v4443, %v4491
  %v4493 = vpop.f32.mrf.mxu0
  %v4494 = vadd.f32 %v4445, %v4493
  %4495 = vmatmul.bf16.gmra.mxu0 %v4113
  %v4496 = vpop.f32.mrf.mxu0
  %v4497 = vadd.f32 %v4448, %v4496
  %v4498 = vpop.f32.mrf.mxu0
  %v4499 = vadd.f32 %v4450, %v4498
  %4500 = vmatmul.bf16.gmra.mxu0 %v4115
  %v4501 = vpop.f32.mrf.mxu0
  %v4502 = vadd.f32 %v4453, %v4501
  %v4503 = vpop.f32.mrf.mxu0
  %v4504 = vadd.f32 %v4455, %v4503
  %4505 = vmatmul.bf16.gmra.mxu0 %v4117
  %v4506 = vpop.f32.mrf.mxu0
  %v4507 = vadd.f32 %v4458, %v4506
  %v4508 = vpop.f32.mrf.mxu0
  %v4509 = vadd.f32 %v4460, %v4508
  %4510 = vmatmul.bf16.gmra.mxu0 %v4119
  %v4511 = vpop.f32.mrf.mxu0
  %v4512 = vadd.f32 %v4463, %v4511
  %v4513 = vpop.f32.mrf.mxu0
  %v4514 = vadd.f32 %v4465, %v4513
  %4515 = vdwg.mxu0
  %v4516 = vmax.f32 %v4379, 0.0
  %v4517 = vmax.f32 %v4477, 0.0
  %v4518 = vmax.f32 %v4381, 0.0
  %v4519 = vmax.f32 %v4479, 0.0
  %v4520 = vmax.f32 %v4384, 0.0
  %v4521 = vmax.f32 %v4482, 0.0
  %v4522 = vmax.f32 %v4386, 0.0
  %v4523 = vmax.f32 %v4484, 0.0
  %v4524 = vmax.f32 %v4389, 0.0
  %v4525 = vmax.f32 %v4487, 0.0
  %v4526 = vmax.f32 %v4391, 0.0
  %v4527 = vmax.f32 %v4489, 0.0
  %v4528 = vmax.f32 %v4394, 0.0
  %v4529 = vmax.f32 %v4492, 0.0
  %v4530 = vmax.f32 %v4396, 0.0
  %v4531 = vmax.f32 %v4494, 0.0
  %v4532 = vmax.f32 %v4399, 0.0
  %v4533 = vmax.f32 %v4497, 0.0
  %v4534 = vmax.f32 %v4401, 0.0
  %v4535 = vmax.f32 %v4499, 0.0
  %v4536 = vmax.f32 %v4404, 0.0
  %v4537 = vmax.f32 %v4502, 0.0
  %v4538 = vmax.f32 %v4406, 0.0
  %v4539 = vmax.f32 %v4504, 0.0
  %v4540 = vmax.f32 %v4409, 0.0
  %v4541 = vmax.f32 %v4507, 0.0
  %v4542 = vmax.f32 %v4411, 0.0
  %v4543 = vmax.f32 %v4509, 0.0
  %v4544 = vmax.f32 %v4414, 0.0
  %v4545 = vmax.f32 %v4512, 0.0
  %v4546 = vmax.f32 %v4416, 0.0
  %v4547 = vmax.f32 %v4514, 0.0
  %v4548 = vpack.c.bf16 %v4518, %v4516
  %v4549 = vpack.c.bf16 %v4519, %v4517
  %v4550 = vpack.c.bf16 %v4522, %v4520
  %v4551 = vpack.c.bf16 %v4523, %v4521
  %v4552 = vpack.c.bf16 %v4526, %v4524
  %v4553 = vpack.c.bf16 %v4527, %v4525
  %v4554 = vpack.c.bf16 %v4530, %v4528
  %v4555 = vpack.c.bf16 %v4531, %v4529
  %v4556 = vpack.c.bf16 %v4534, %v4532
  %v4557 = vpack.c.bf16 %v4535, %v4533
  %v4558 = vpack.c.bf16 %v4538, %v4536
  %v4559 = vpack.c.bf16 %v4539, %v4537
  %v4560 = vpack.c.bf16 %v4542, %v4540
  %v4561 = vpack.c.bf16 %v4543, %v4541
  %v4562 = vpack.c.bf16 %v4546, %v4544
  %v4563 = vpack.c.bf16 %v4547, %v4545
  %s4564 = scalar_lea.vmem %s4, 2304
  %v4565 = vld [vmem:[%s4564] sm:$0xff]
  %v4566 = vld [vmem:[%s4564 + $0x8] sm:$0xff]
  %v4567 = vld [vmem:[%s4564 + $0x10] sm:$0xff]
  %v4568 = vld [vmem:[%s4564 + $0x18] sm:$0xff]
  %v4569 = vld [vmem:[%s4564 + $0x20] sm:$0xff]
  %v4570 = vld [vmem:[%s4564 + $0x28] sm:$0xff]
  %v4571 = vld [vmem:[%s4564 + $0x30] sm:$0xff]
  %v4572 = vld [vmem:[%s4564 + $0x38] sm:$0xff]
  %v4573 = vld [vmem:[%s4564 + $0x40] sm:$0xff]
  %v4574 = vld [vmem:[%s4564 + $0x48] sm:$0xff]
  %v4575 = vld [vmem:[%s4564 + $0x50] sm:$0xff]
  %v4576 = vld [vmem:[%s4564 + $0x58] sm:$0xff]
  %v4577 = vld [vmem:[%s4564 + $0x60] sm:$0xff]
  %v4578 = vld [vmem:[%s4564 + $0x68] sm:$0xff]
  %v4579 = vld [vmem:[%s4564 + $0x70] sm:$0xff]
  %v4580 = vld [vmem:[%s4564 + $0x78] sm:$0xff]
  %v4581 = vld [vmem:[%s4564 + $0x80] sm:$0xff]
  %v4582 = vld [vmem:[%s4564 + $0x88] sm:$0xff]
  %v4583 = vld [vmem:[%s4564 + $0x90] sm:$0xff]
  %v4584 = vld [vmem:[%s4564 + $0x98] sm:$0xff]
  %v4585 = vld [vmem:[%s4564 + $0xa0] sm:$0xff]
  %v4586 = vld [vmem:[%s4564 + $0xa8] sm:$0xff]
  %v4587 = vld [vmem:[%s4564 + $0xb0] sm:$0xff]
  %v4588 = vld [vmem:[%s4564 + $0xb8] sm:$0xff]
  %v4589 = vld [vmem:[%s4564 + $0xc0] sm:$0xff]
  %v4590 = vld [vmem:[%s4564 + $0xc8] sm:$0xff]
  %v4591 = vld [vmem:[%s4564 + $0xd0] sm:$0xff]
  %v4592 = vld [vmem:[%s4564 + $0xd8] sm:$0xff]
  %v4593 = vld [vmem:[%s4564 + $0xe0] sm:$0xff]
  %v4594 = vld [vmem:[%s4564 + $0xe8] sm:$0xff]
  %v4595 = vld [vmem:[%s4564 + $0xf0] sm:$0xff]
  %v4596 = vld [vmem:[%s4564 + $0xf8] sm:$0xff]
  %s4597 = scalar_lea.vmem %s5, 16
  %v4598 = vld [vmem:[%s4597] sm:$0x3]
  %v4600 = vperm.slane %v4598, 0
  %v4601 = vperm.slane %v4598, 1
  %v4636 = vunpack.c.l.b16 %v4565
  %v4637 = vunpack.c.h.b16 %v4565
  %v4638 = vunpack.c.l.b16 %v4566
  %v4639 = vunpack.c.h.b16 %v4566
  %v4640 = vunpack.c.l.b16 %v4567
  %v4641 = vunpack.c.h.b16 %v4567
  %v4642 = vunpack.c.l.b16 %v4568
  %v4643 = vunpack.c.h.b16 %v4568
  %v4644 = vunpack.c.l.b16 %v4569
  %v4645 = vunpack.c.h.b16 %v4569
  %v4646 = vunpack.c.l.b16 %v4570
  %v4647 = vunpack.c.h.b16 %v4570
  %v4648 = vunpack.c.l.b16 %v4571
  %v4649 = vunpack.c.h.b16 %v4571
  %v4650 = vunpack.c.l.b16 %v4572
  %v4651 = vunpack.c.h.b16 %v4572
  %v4652 = vunpack.c.l.b16 %v4573
  %v4653 = vunpack.c.h.b16 %v4573
  %v4654 = vunpack.c.l.b16 %v4574
  %v4655 = vunpack.c.h.b16 %v4574
  %v4656 = vunpack.c.l.b16 %v4575
  %v4657 = vunpack.c.h.b16 %v4575
  %v4658 = vunpack.c.l.b16 %v4576
  %v4659 = vunpack.c.h.b16 %v4576
  %v4660 = vunpack.c.l.b16 %v4577
  %v4661 = vunpack.c.h.b16 %v4577
  %v4662 = vunpack.c.l.b16 %v4578
  %v4663 = vunpack.c.h.b16 %v4578
  %v4664 = vunpack.c.l.b16 %v4579
  %v4665 = vunpack.c.h.b16 %v4579
  %v4666 = vunpack.c.l.b16 %v4580
  %v4667 = vunpack.c.h.b16 %v4580
  %v4668 = vunpack.c.l.b16 %v4581
  %v4669 = vunpack.c.h.b16 %v4581
  %v4670 = vunpack.c.l.b16 %v4582
  %v4671 = vunpack.c.h.b16 %v4582
  %v4672 = vunpack.c.l.b16 %v4583
  %v4673 = vunpack.c.h.b16 %v4583
  %v4674 = vunpack.c.l.b16 %v4584
  %v4675 = vunpack.c.h.b16 %v4584
  %v4676 = vunpack.c.l.b16 %v4585
  %v4677 = vunpack.c.h.b16 %v4585
  %v4678 = vunpack.c.l.b16 %v4586
  %v4679 = vunpack.c.h.b16 %v4586
  %v4680 = vunpack.c.l.b16 %v4587
  %v4681 = vunpack.c.h.b16 %v4587
  %v4682 = vunpack.c.l.b16 %v4588
  %v4683 = vunpack.c.h.b16 %v4588
  %v4684 = vunpack.c.l.b16 %v4589
  %v4685 = vunpack.c.h.b16 %v4589
  %v4686 = vunpack.c.l.b16 %v4590
  %v4687 = vunpack.c.h.b16 %v4590
  %v4688 = vunpack.c.l.b16 %v4591
  %v4689 = vunpack.c.h.b16 %v4591
  %v4690 = vunpack.c.l.b16 %v4592
  %v4691 = vunpack.c.h.b16 %v4592
  %v4692 = vunpack.c.l.b16 %v4593
  %v4693 = vunpack.c.h.b16 %v4593
  %v4694 = vunpack.c.l.b16 %v4594
  %v4695 = vunpack.c.h.b16 %v4594
  %v4696 = vunpack.c.l.b16 %v4595
  %v4697 = vunpack.c.h.b16 %v4595
  %v4698 = vunpack.c.l.b16 %v4596
  %v4699 = vunpack.c.h.b16 %v4596
  %v4700 = vpack.c.b16 %v4638, %v4636
  %v4701 = vpack.c.b16 %v4639, %v4637
  %v4702 = vpack.c.b16 %v4642, %v4640
  %v4703 = vpack.c.b16 %v4643, %v4641
  %v4704 = vpack.c.b16 %v4646, %v4644
  %v4705 = vpack.c.b16 %v4647, %v4645
  %v4706 = vpack.c.b16 %v4650, %v4648
  %v4707 = vpack.c.b16 %v4651, %v4649
  %v4708 = vpack.c.b16 %v4654, %v4652
  %v4709 = vpack.c.b16 %v4655, %v4653
  %v4710 = vpack.c.b16 %v4658, %v4656
  %v4711 = vpack.c.b16 %v4659, %v4657
  %v4712 = vpack.c.b16 %v4662, %v4660
  %v4713 = vpack.c.b16 %v4663, %v4661
  %v4714 = vpack.c.b16 %v4666, %v4664
  %v4715 = vpack.c.b16 %v4667, %v4665
  %v4716 = vpack.c.b16 %v4670, %v4668
  %v4717 = vpack.c.b16 %v4671, %v4669
  %v4718 = vpack.c.b16 %v4674, %v4672
  %v4719 = vpack.c.b16 %v4675, %v4673
  %v4720 = vpack.c.b16 %v4678, %v4676
  %v4721 = vpack.c.b16 %v4679, %v4677
  %v4722 = vpack.c.b16 %v4682, %v4680
  %v4723 = vpack.c.b16 %v4683, %v4681
  %v4724 = vpack.c.b16 %v4686, %v4684
  %v4725 = vpack.c.b16 %v4687, %v4685
  %v4726 = vpack.c.b16 %v4690, %v4688
  %v4727 = vpack.c.b16 %v4691, %v4689
  %v4728 = vpack.c.b16 %v4694, %v4692
  %v4729 = vpack.c.b16 %v4695, %v4693
  %v4730 = vpack.c.b16 %v4698, %v4696
  %v4731 = vpack.c.b16 %v4699, %v4697
  %4764 = vmatpush.bf16.msra.mxu0 %v4714
  %4765 = vmatpush.bf16.msra.mxu0 %v4712
  %4766 = vmatpush.bf16.msra.mxu0 %v4710
  %4767 = vmatpush.bf16.msra.mxu0 %v4708
  %4768 = vmatpush.bf16.msra.mxu0 %v4706
  %4769 = vmatpush.bf16.msra.mxu0 %v4704
  %4770 = vmatpush.bf16.msra.mxu0 %v4702
  %4771 = vmatpush.bf16.msra.mxu0 %v4700
  %4772 = vmatmul.bf16.gmra.mxu0 %v4548
  %v4773 = vpop.f32.mrf.mxu0
  %v4774 = vadd.f32 %v4600, %v4773
  %v4775 = vpop.f32.mrf.mxu0
  %v4776 = vadd.f32 %v4600, %v4775
  %4777 = vmatmul.bf16.gmra.mxu0 %v4550
  %v4778 = vpop.f32.mrf.mxu0
  %v4779 = vadd.f32 %v4600, %v4778
  %v4780 = vpop.f32.mrf.mxu0
  %v4781 = vadd.f32 %v4600, %v4780
  %4782 = vmatmul.bf16.gmra.mxu0 %v4552
  %v4783 = vpop.f32.mrf.mxu0
  %v4784 = vadd.f32 %v4600, %v4783
  %v4785 = vpop.f32.mrf.mxu0
  %v4786 = vadd.f32 %v4600, %v4785
  %4787 = vmatmul.bf16.gmra.mxu0 %v4554
  %v4788 = vpop.f32.mrf.mxu0
  %v4789 = vadd.f32 %v4600, %v4788
  %v4790 = vpop.f32.mrf.mxu0
  %v4791 = vadd.f32 %v4600, %v4790
  %4792 = vmatmul.bf16.gmra.mxu0 %v4556
  %v4793 = vpop.f32.mrf.mxu0
  %v4794 = vadd.f32 %v4600, %v4793
  %v4795 = vpop.f32.mrf.mxu0
  %v4796 = vadd.f32 %v4600, %v4795
  %4797 = vmatmul.bf16.gmra.mxu0 %v4558
  %v4798 = vpop.f32.mrf.mxu0
  %v4799 = vadd.f32 %v4600, %v4798
  %v4800 = vpop.f32.mrf.mxu0
  %v4801 = vadd.f32 %v4600, %v4800
  %4802 = vmatmul.bf16.gmra.mxu0 %v4560
  %v4803 = vpop.f32.mrf.mxu0
  %v4804 = vadd.f32 %v4600, %v4803
  %v4805 = vpop.f32.mrf.mxu0
  %v4806 = vadd.f32 %v4600, %v4805
  %4807 = vmatmul.bf16.gmra.mxu0 %v4562
  %v4808 = vpop.f32.mrf.mxu0
  %v4809 = vadd.f32 %v4600, %v4808
  %v4810 = vpop.f32.mrf.mxu0
  %v4811 = vadd.f32 %v4600, %v4810
  %4812 = vdwg.mxu0
  %4813 = vmatpush.bf16.msra.mxu0 %v4730
  %4814 = vmatpush.bf16.msra.mxu0 %v4728
  %4815 = vmatpush.bf16.msra.mxu0 %v4726
  %4816 = vmatpush.bf16.msra.mxu0 %v4724
  %4817 = vmatpush.bf16.msra.mxu0 %v4722
  %4818 = vmatpush.bf16.msra.mxu0 %v4720
  %4819 = vmatpush.bf16.msra.mxu0 %v4718
  %4820 = vmatpush.bf16.msra.mxu0 %v4716
  %4821 = vmatmul.bf16.gmra.mxu0 %v4549
  %v4822 = vpop.f32.mrf.mxu0
  %v4823 = vadd.f32 %v4774, %v4822
  %v4824 = vpop.f32.mrf.mxu0
  %v4825 = vadd.f32 %v4776, %v4824
  %4826 = vmatmul.bf16.gmra.mxu0 %v4551
  %v4827 = vpop.f32.mrf.mxu0
  %v4828 = vadd.f32 %v4779, %v4827
  %v4829 = vpop.f32.mrf.mxu0
  %v4830 = vadd.f32 %v4781, %v4829
  %4831 = vmatmul.bf16.gmra.mxu0 %v4553
  %v4832 = vpop.f32.mrf.mxu0
  %v4833 = vadd.f32 %v4784, %v4832
  %v4834 = vpop.f32.mrf.mxu0
  %v4835 = vadd.f32 %v4786, %v4834
  %4836 = vmatmul.bf16.gmra.mxu0 %v4555
  %v4837 = vpop.f32.mrf.mxu0
  %v4838 = vadd.f32 %v4789, %v4837
  %v4839 = vpop.f32.mrf.mxu0
  %v4840 = vadd.f32 %v4791, %v4839
  %4841 = vmatmul.bf16.gmra.mxu0 %v4557
  %v4842 = vpop.f32.mrf.mxu0
  %v4843 = vadd.f32 %v4794, %v4842
  %v4844 = vpop.f32.mrf.mxu0
  %v4845 = vadd.f32 %v4796, %v4844
  %4846 = vmatmul.bf16.gmra.mxu0 %v4559
  %v4847 = vpop.f32.mrf.mxu0
  %v4848 = vadd.f32 %v4799, %v4847
  %v4849 = vpop.f32.mrf.mxu0
  %v4850 = vadd.f32 %v4801, %v4849
  %4851 = vmatmul.bf16.gmra.mxu0 %v4561
  %v4852 = vpop.f32.mrf.mxu0
  %v4853 = vadd.f32 %v4804, %v4852
  %v4854 = vpop.f32.mrf.mxu0
  %v4855 = vadd.f32 %v4806, %v4854
  %4856 = vmatmul.bf16.gmra.mxu0 %v4563
  %v4857 = vpop.f32.mrf.mxu0
  %v4858 = vadd.f32 %v4809, %v4857
  %v4859 = vpop.f32.mrf.mxu0
  %v4860 = vadd.f32 %v4811, %v4859
  %4861 = vdwg.mxu0
  %4862 = vmatpush.bf16.msra.mxu0 %v4715
  %4863 = vmatpush.bf16.msra.mxu0 %v4713
  %4864 = vmatpush.bf16.msra.mxu0 %v4711
  %4865 = vmatpush.bf16.msra.mxu0 %v4709
  %4866 = vmatpush.bf16.msra.mxu0 %v4707
  %4867 = vmatpush.bf16.msra.mxu0 %v4705
  %4868 = vmatpush.bf16.msra.mxu0 %v4703
  %4869 = vmatpush.bf16.msra.mxu0 %v4701
  %4870 = vmatmul.bf16.gmra.mxu0 %v4548
  %v4871 = vpop.f32.mrf.mxu0
  %v4872 = vadd.f32 %v4601, %v4871
  %v4873 = vpop.f32.mrf.mxu0
  %v4874 = vadd.f32 %v4601, %v4873
  %4875 = vmatmul.bf16.gmra.mxu0 %v4550
  %v4876 = vpop.f32.mrf.mxu0
  %v4877 = vadd.f32 %v4601, %v4876
  %v4878 = vpop.f32.mrf.mxu0
  %v4879 = vadd.f32 %v4601, %v4878
  %4880 = vmatmul.bf16.gmra.mxu0 %v4552
  %v4881 = vpop.f32.mrf.mxu0
  %v4882 = vadd.f32 %v4601, %v4881
  %v4883 = vpop.f32.mrf.mxu0
  %v4884 = vadd.f32 %v4601, %v4883
  %4885 = vmatmul.bf16.gmra.mxu0 %v4554
  %v4886 = vpop.f32.mrf.mxu0
  %v4887 = vadd.f32 %v4601, %v4886
  %v4888 = vpop.f32.mrf.mxu0
  %v4889 = vadd.f32 %v4601, %v4888
  %4890 = vmatmul.bf16.gmra.mxu0 %v4556
  %v4891 = vpop.f32.mrf.mxu0
  %v4892 = vadd.f32 %v4601, %v4891
  %v4893 = vpop.f32.mrf.mxu0
  %v4894 = vadd.f32 %v4601, %v4893
  %4895 = vmatmul.bf16.gmra.mxu0 %v4558
  %v4896 = vpop.f32.mrf.mxu0
  %v4897 = vadd.f32 %v4601, %v4896
  %v4898 = vpop.f32.mrf.mxu0
  %v4899 = vadd.f32 %v4601, %v4898
  %4900 = vmatmul.bf16.gmra.mxu0 %v4560
  %v4901 = vpop.f32.mrf.mxu0
  %v4902 = vadd.f32 %v4601, %v4901
  %v4903 = vpop.f32.mrf.mxu0
  %v4904 = vadd.f32 %v4601, %v4903
  %4905 = vmatmul.bf16.gmra.mxu0 %v4562
  %v4906 = vpop.f32.mrf.mxu0
  %v4907 = vadd.f32 %v4601, %v4906
  %v4908 = vpop.f32.mrf.mxu0
  %v4909 = vadd.f32 %v4601, %v4908
  %4910 = vdwg.mxu0
  %4911 = vmatpush.bf16.msra.mxu0 %v4731
  %4912 = vmatpush.bf16.msra.mxu0 %v4729
  %4913 = vmatpush.bf16.msra.mxu0 %v4727
  %4914 = vmatpush.bf16.msra.mxu0 %v4725
  %4915 = vmatpush.bf16.msra.mxu0 %v4723
  %4916 = vmatpush.bf16.msra.mxu0 %v4721
  %4917 = vmatpush.bf16.msra.mxu0 %v4719
  %4918 = vmatpush.bf16.msra.mxu0 %v4717
  %4919 = vmatmul.bf16.gmra.mxu0 %v4549
  %v4920 = vpop.f32.mrf.mxu0
  %v4921 = vadd.f32 %v4872, %v4920
  %v4922 = vpop.f32.mrf.mxu0
  %v4923 = vadd.f32 %v4874, %v4922
  %4924 = vmatmul.bf16.gmra.mxu0 %v4551
  %v4925 = vpop.f32.mrf.mxu0
  %v4926 = vadd.f32 %v4877, %v4925
  %v4927 = vpop.f32.mrf.mxu0
  %v4928 = vadd.f32 %v4879, %v4927
  %4929 = vmatmul.bf16.gmra.mxu0 %v4553
  %v4930 = vpop.f32.mrf.mxu0
  %v4931 = vadd.f32 %v4882, %v4930
  %v4932 = vpop.f32.mrf.mxu0
  %v4933 = vadd.f32 %v4884, %v4932
  %4934 = vmatmul.bf16.gmra.mxu0 %v4555
  %v4935 = vpop.f32.mrf.mxu0
  %v4936 = vadd.f32 %v4887, %v4935
  %v4937 = vpop.f32.mrf.mxu0
  %v4938 = vadd.f32 %v4889, %v4937
  %4939 = vmatmul.bf16.gmra.mxu0 %v4557
  %v4940 = vpop.f32.mrf.mxu0
  %v4941 = vadd.f32 %v4892, %v4940
  %v4942 = vpop.f32.mrf.mxu0
  %v4943 = vadd.f32 %v4894, %v4942
  %4944 = vmatmul.bf16.gmra.mxu0 %v4559
  %v4945 = vpop.f32.mrf.mxu0
  %v4946 = vadd.f32 %v4897, %v4945
  %v4947 = vpop.f32.mrf.mxu0
  %v4948 = vadd.f32 %v4899, %v4947
  %4949 = vmatmul.bf16.gmra.mxu0 %v4561
  %v4950 = vpop.f32.mrf.mxu0
  %v4951 = vadd.f32 %v4902, %v4950
  %v4952 = vpop.f32.mrf.mxu0
  %v4953 = vadd.f32 %v4904, %v4952
  %4954 = vmatmul.bf16.gmra.mxu0 %v4563
  %v4955 = vpop.f32.mrf.mxu0
  %v4956 = vadd.f32 %v4907, %v4955
  %v4957 = vpop.f32.mrf.mxu0
  %v4958 = vadd.f32 %v4909, %v4957
  %4959 = vdwg.mxu0
  %v4960 = vmax.f32 %v4823, 0.0
  %v4961 = vmax.f32 %v4921, 0.0
  %v4962 = vmax.f32 %v4825, 0.0
  %v4963 = vmax.f32 %v4923, 0.0
  %v4964 = vmax.f32 %v4828, 0.0
  %v4965 = vmax.f32 %v4926, 0.0
  %v4966 = vmax.f32 %v4830, 0.0
  %v4967 = vmax.f32 %v4928, 0.0
  %v4968 = vmax.f32 %v4833, 0.0
  %v4969 = vmax.f32 %v4931, 0.0
  %v4970 = vmax.f32 %v4835, 0.0
  %v4971 = vmax.f32 %v4933, 0.0
  %v4972 = vmax.f32 %v4838, 0.0
  %v4973 = vmax.f32 %v4936, 0.0
  %v4974 = vmax.f32 %v4840, 0.0
  %v4975 = vmax.f32 %v4938, 0.0
  %v4976 = vmax.f32 %v4843, 0.0
  %v4977 = vmax.f32 %v4941, 0.0
  %v4978 = vmax.f32 %v4845, 0.0
  %v4979 = vmax.f32 %v4943, 0.0
  %v4980 = vmax.f32 %v4848, 0.0
  %v4981 = vmax.f32 %v4946, 0.0
  %v4982 = vmax.f32 %v4850, 0.0
  %v4983 = vmax.f32 %v4948, 0.0
  %v4984 = vmax.f32 %v4853, 0.0
  %v4985 = vmax.f32 %v4951, 0.0
  %v4986 = vmax.f32 %v4855, 0.0
  %v4987 = vmax.f32 %v4953, 0.0
  %v4988 = vmax.f32 %v4858, 0.0
  %v4989 = vmax.f32 %v4956, 0.0
  %v4990 = vmax.f32 %v4860, 0.0
  %v4991 = vmax.f32 %v4958, 0.0
  %v4992 = vpack.c.bf16 %v4962, %v4960
  %v4993 = vpack.c.bf16 %v4963, %v4961
  %v4994 = vpack.c.bf16 %v4966, %v4964
  %v4995 = vpack.c.bf16 %v4967, %v4965
  %v4996 = vpack.c.bf16 %v4970, %v4968
  %v4997 = vpack.c.bf16 %v4971, %v4969
  %v4998 = vpack.c.bf16 %v4974, %v4972
  %v4999 = vpack.c.bf16 %v4975, %v4973
  %v5000 = vpack.c.bf16 %v4978, %v4976
  %v5001 = vpack.c.bf16 %v4979, %v4977
  %v5002 = vpack.c.bf16 %v4982, %v4980
  %v5003 = vpack.c.bf16 %v4983, %v4981
  %v5004 = vpack.c.bf16 %v4986, %v4984
  %v5005 = vpack.c.bf16 %v4987, %v4985
  %v5006 = vpack.c.bf16 %v4990, %v4988
  %v5007 = vpack.c.bf16 %v4991, %v4989
  %s5008 = scalar_lea.vmem %s4, 2560
  %v5009 = vld [vmem:[%s5008] sm:$0xff]
  %v5010 = vld [vmem:[%s5008 + $0x8] sm:$0xff]
  %v5011 = vld [vmem:[%s5008 + $0x10] sm:$0xff]
  %v5012 = vld [vmem:[%s5008 + $0x18] sm:$0xff]
  %v5013 = vld [vmem:[%s5008 + $0x20] sm:$0xff]
  %v5014 = vld [vmem:[%s5008 + $0x28] sm:$0xff]
  %v5015 = vld [vmem:[%s5008 + $0x30] sm:$0xff]
  %v5016 = vld [vmem:[%s5008 + $0x38] sm:$0xff]
  %v5017 = vld [vmem:[%s5008 + $0x40] sm:$0xff]
  %v5018 = vld [vmem:[%s5008 + $0x48] sm:$0xff]
  %v5019 = vld [vmem:[%s5008 + $0x50] sm:$0xff]
  %v5020 = vld [vmem:[%s5008 + $0x58] sm:$0xff]
  %v5021 = vld [vmem:[%s5008 + $0x60] sm:$0xff]
  %v5022 = vld [vmem:[%s5008 + $0x68] sm:$0xff]
  %v5023 = vld [vmem:[%s5008 + $0x70] sm:$0xff]
  %v5024 = vld [vmem:[%s5008 + $0x78] sm:$0xff]
  %v5025 = vld [vmem:[%s5008 + $0x80] sm:$0xff]
  %v5026 = vld [vmem:[%s5008 + $0x88] sm:$0xff]
  %v5027 = vld [vmem:[%s5008 + $0x90] sm:$0xff]
  %v5028 = vld [vmem:[%s5008 + $0x98] sm:$0xff]
  %v5029 = vld [vmem:[%s5008 + $0xa0] sm:$0xff]
  %v5030 = vld [vmem:[%s5008 + $0xa8] sm:$0xff]
  %v5031 = vld [vmem:[%s5008 + $0xb0] sm:$0xff]
  %v5032 = vld [vmem:[%s5008 + $0xb8] sm:$0xff]
  %v5033 = vld [vmem:[%s5008 + $0xc0] sm:$0xff]
  %v5034 = vld [vmem:[%s5008 + $0xc8] sm:$0xff]
  %v5035 = vld [vmem:[%s5008 + $0xd0] sm:$0xff]
  %v5036 = vld [vmem:[%s5008 + $0xd8] sm:$0xff]
  %v5037 = vld [vmem:[%s5008 + $0xe0] sm:$0xff]
  %v5038 = vld [vmem:[%s5008 + $0xe8] sm:$0xff]
  %v5039 = vld [vmem:[%s5008 + $0xf0] sm:$0xff]
  %v5040 = vld [vmem:[%s5008 + $0xf8] sm:$0xff]
  %s5041 = scalar_lea.vmem %s5, 18
  %v5042 = vld [vmem:[%s5041] sm:$0x3]
  %v5044 = vperm.slane %v5042, 0
  %v5045 = vperm.slane %v5042, 1
  %v5080 = vunpack.c.l.b16 %v5009
  %v5081 = vunpack.c.h.b16 %v5009
  %v5082 = vunpack.c.l.b16 %v5010
  %v5083 = vunpack.c.h.b16 %v5010
  %v5084 = vunpack.c.l.b16 %v5011
  %v5085 = vunpack.c.h.b16 %v5011
  %v5086 = vunpack.c.l.b16 %v5012
  %v5087 = vunpack.c.h.b16 %v5012
  %v5088 = vunpack.c.l.b16 %v5013
  %v5089 = vunpack.c.h.b16 %v5013
  %v5090 = vunpack.c.l.b16 %v5014
  %v5091 = vunpack.c.h.b16 %v5014
  %v5092 = vunpack.c.l.b16 %v5015
  %v5093 = vunpack.c.h.b16 %v5015
  %v5094 = vunpack.c.l.b16 %v5016
  %v5095 = vunpack.c.h.b16 %v5016
  %v5096 = vunpack.c.l.b16 %v5017
  %v5097 = vunpack.c.h.b16 %v5017
  %v5098 = vunpack.c.l.b16 %v5018
  %v5099 = vunpack.c.h.b16 %v5018
  %v5100 = vunpack.c.l.b16 %v5019
  %v5101 = vunpack.c.h.b16 %v5019
  %v5102 = vunpack.c.l.b16 %v5020
  %v5103 = vunpack.c.h.b16 %v5020
  %v5104 = vunpack.c.l.b16 %v5021
  %v5105 = vunpack.c.h.b16 %v5021
  %v5106 = vunpack.c.l.b16 %v5022
  %v5107 = vunpack.c.h.b16 %v5022
  %v5108 = vunpack.c.l.b16 %v5023
  %v5109 = vunpack.c.h.b16 %v5023
  %v5110 = vunpack.c.l.b16 %v5024
  %v5111 = vunpack.c.h.b16 %v5024
  %v5112 = vunpack.c.l.b16 %v5025
  %v5113 = vunpack.c.h.b16 %v5025
  %v5114 = vunpack.c.l.b16 %v5026
  %v5115 = vunpack.c.h.b16 %v5026
  %v5116 = vunpack.c.l.b16 %v5027
  %v5117 = vunpack.c.h.b16 %v5027
  %v5118 = vunpack.c.l.b16 %v5028
  %v5119 = vunpack.c.h.b16 %v5028
  %v5120 = vunpack.c.l.b16 %v5029
  %v5121 = vunpack.c.h.b16 %v5029
  %v5122 = vunpack.c.l.b16 %v5030
  %v5123 = vunpack.c.h.b16 %v5030
  %v5124 = vunpack.c.l.b16 %v5031
  %v5125 = vunpack.c.h.b16 %v5031
  %v5126 = vunpack.c.l.b16 %v5032
  %v5127 = vunpack.c.h.b16 %v5032
  %v5128 = vunpack.c.l.b16 %v5033
  %v5129 = vunpack.c.h.b16 %v5033
  %v5130 = vunpack.c.l.b16 %v5034
  %v5131 = vunpack.c.h.b16 %v5034
  %v5132 = vunpack.c.l.b16 %v5035
  %v5133 = vunpack.c.h.b16 %v5035
  %v5134 = vunpack.c.l.b16 %v5036
  %v5135 = vunpack.c.h.b16 %v5036
  %v5136 = vunpack.c.l.b16 %v5037
  %v5137 = vunpack.c.h.b16 %v5037
  %v5138 = vunpack.c.l.b16 %v5038
  %v5139 = vunpack.c.h.b16 %v5038
  %v5140 = vunpack.c.l.b16 %v5039
  %v5141 = vunpack.c.h.b16 %v5039
  %v5142 = vunpack.c.l.b16 %v5040
  %v5143 = vunpack.c.h.b16 %v5040
  %v5144 = vpack.c.b16 %v5082, %v5080
  %v5145 = vpack.c.b16 %v5083, %v5081
  %v5146 = vpack.c.b16 %v5086, %v5084
  %v5147 = vpack.c.b16 %v5087, %v5085
  %v5148 = vpack.c.b16 %v5090, %v5088
  %v5149 = vpack.c.b16 %v5091, %v5089
  %v5150 = vpack.c.b16 %v5094, %v5092
  %v5151 = vpack.c.b16 %v5095, %v5093
  %v5152 = vpack.c.b16 %v5098, %v5096
  %v5153 = vpack.c.b16 %v5099, %v5097
  %v5154 = vpack.c.b16 %v5102, %v5100
  %v5155 = vpack.c.b16 %v5103, %v5101
  %v5156 = vpack.c.b16 %v5106, %v5104
  %v5157 = vpack.c.b16 %v5107, %v5105
  %v5158 = vpack.c.b16 %v5110, %v5108
  %v5159 = vpack.c.b16 %v5111, %v5109
  %v5160 = vpack.c.b16 %v5114, %v5112
  %v5161 = vpack.c.b16 %v5115, %v5113
  %v5162 = vpack.c.b16 %v5118, %v5116
  %v5163 = vpack.c.b16 %v5119, %v5117
  %v5164 = vpack.c.b16 %v5122, %v5120
  %v5165 = vpack.c.b16 %v5123, %v5121
  %v5166 = vpack.c.b16 %v5126, %v5124
  %v5167 = vpack.c.b16 %v5127, %v5125
  %v5168 = vpack.c.b16 %v5130, %v5128
  %v5169 = vpack.c.b16 %v5131, %v5129
  %v5170 = vpack.c.b16 %v5134, %v5132
  %v5171 = vpack.c.b16 %v5135, %v5133
  %v5172 = vpack.c.b16 %v5138, %v5136
  %v5173 = vpack.c.b16 %v5139, %v5137
  %v5174 = vpack.c.b16 %v5142, %v5140
  %v5175 = vpack.c.b16 %v5143, %v5141
  %5208 = vmatpush.bf16.msra.mxu0 %v5158
  %5209 = vmatpush.bf16.msra.mxu0 %v5156
  %5210 = vmatpush.bf16.msra.mxu0 %v5154
  %5211 = vmatpush.bf16.msra.mxu0 %v5152
  %5212 = vmatpush.bf16.msra.mxu0 %v5150
  %5213 = vmatpush.bf16.msra.mxu0 %v5148
  %5214 = vmatpush.bf16.msra.mxu0 %v5146
  %5215 = vmatpush.bf16.msra.mxu0 %v5144
  %5216 = vmatmul.bf16.gmra.mxu0 %v4992
  %v5217 = vpop.f32.mrf.mxu0
  %v5218 = vadd.f32 %v5044, %v5217
  %v5219 = vpop.f32.mrf.mxu0
  %v5220 = vadd.f32 %v5044, %v5219
  %5221 = vmatmul.bf16.gmra.mxu0 %v4994
  %v5222 = vpop.f32.mrf.mxu0
  %v5223 = vadd.f32 %v5044, %v5222
  %v5224 = vpop.f32.mrf.mxu0
  %v5225 = vadd.f32 %v5044, %v5224
  %5226 = vmatmul.bf16.gmra.mxu0 %v4996
  %v5227 = vpop.f32.mrf.mxu0
  %v5228 = vadd.f32 %v5044, %v5227
  %v5229 = vpop.f32.mrf.mxu0
  %v5230 = vadd.f32 %v5044, %v5229
  %5231 = vmatmul.bf16.gmra.mxu0 %v4998
  %v5232 = vpop.f32.mrf.mxu0
  %v5233 = vadd.f32 %v5044, %v5232
  %v5234 = vpop.f32.mrf.mxu0
  %v5235 = vadd.f32 %v5044, %v5234
  %5236 = vmatmul.bf16.gmra.mxu0 %v5000
  %v5237 = vpop.f32.mrf.mxu0
  %v5238 = vadd.f32 %v5044, %v5237
  %v5239 = vpop.f32.mrf.mxu0
  %v5240 = vadd.f32 %v5044, %v5239
  %5241 = vmatmul.bf16.gmra.mxu0 %v5002
  %v5242 = vpop.f32.mrf.mxu0
  %v5243 = vadd.f32 %v5044, %v5242
  %v5244 = vpop.f32.mrf.mxu0
  %v5245 = vadd.f32 %v5044, %v5244
  %5246 = vmatmul.bf16.gmra.mxu0 %v5004
  %v5247 = vpop.f32.mrf.mxu0
  %v5248 = vadd.f32 %v5044, %v5247
  %v5249 = vpop.f32.mrf.mxu0
  %v5250 = vadd.f32 %v5044, %v5249
  %5251 = vmatmul.bf16.gmra.mxu0 %v5006
  %v5252 = vpop.f32.mrf.mxu0
  %v5253 = vadd.f32 %v5044, %v5252
  %v5254 = vpop.f32.mrf.mxu0
  %v5255 = vadd.f32 %v5044, %v5254
  %5256 = vdwg.mxu0
  %5257 = vmatpush.bf16.msra.mxu0 %v5174
  %5258 = vmatpush.bf16.msra.mxu0 %v5172
  %5259 = vmatpush.bf16.msra.mxu0 %v5170
  %5260 = vmatpush.bf16.msra.mxu0 %v5168
  %5261 = vmatpush.bf16.msra.mxu0 %v5166
  %5262 = vmatpush.bf16.msra.mxu0 %v5164
  %5263 = vmatpush.bf16.msra.mxu0 %v5162
  %5264 = vmatpush.bf16.msra.mxu0 %v5160
  %5265 = vmatmul.bf16.gmra.mxu0 %v4993
  %v5266 = vpop.f32.mrf.mxu0
  %v5267 = vadd.f32 %v5218, %v5266
  %v5268 = vpop.f32.mrf.mxu0
  %v5269 = vadd.f32 %v5220, %v5268
  %5270 = vmatmul.bf16.gmra.mxu0 %v4995
  %v5271 = vpop.f32.mrf.mxu0
  %v5272 = vadd.f32 %v5223, %v5271
  %v5273 = vpop.f32.mrf.mxu0
  %v5274 = vadd.f32 %v5225, %v5273
  %5275 = vmatmul.bf16.gmra.mxu0 %v4997
  %v5276 = vpop.f32.mrf.mxu0
  %v5277 = vadd.f32 %v5228, %v5276
  %v5278 = vpop.f32.mrf.mxu0
  %v5279 = vadd.f32 %v5230, %v5278
  %5280 = vmatmul.bf16.gmra.mxu0 %v4999
  %v5281 = vpop.f32.mrf.mxu0
  %v5282 = vadd.f32 %v5233, %v5281
  %v5283 = vpop.f32.mrf.mxu0
  %v5284 = vadd.f32 %v5235, %v5283
  %5285 = vmatmul.bf16.gmra.mxu0 %v5001
  %v5286 = vpop.f32.mrf.mxu0
  %v5287 = vadd.f32 %v5238, %v5286
  %v5288 = vpop.f32.mrf.mxu0
  %v5289 = vadd.f32 %v5240, %v5288
  %5290 = vmatmul.bf16.gmra.mxu0 %v5003
  %v5291 = vpop.f32.mrf.mxu0
  %v5292 = vadd.f32 %v5243, %v5291
  %v5293 = vpop.f32.mrf.mxu0
  %v5294 = vadd.f32 %v5245, %v5293
  %5295 = vmatmul.bf16.gmra.mxu0 %v5005
  %v5296 = vpop.f32.mrf.mxu0
  %v5297 = vadd.f32 %v5248, %v5296
  %v5298 = vpop.f32.mrf.mxu0
  %v5299 = vadd.f32 %v5250, %v5298
  %5300 = vmatmul.bf16.gmra.mxu0 %v5007
  %v5301 = vpop.f32.mrf.mxu0
  %v5302 = vadd.f32 %v5253, %v5301
  %v5303 = vpop.f32.mrf.mxu0
  %v5304 = vadd.f32 %v5255, %v5303
  %5305 = vdwg.mxu0
  %5306 = vmatpush.bf16.msra.mxu0 %v5159
  %5307 = vmatpush.bf16.msra.mxu0 %v5157
  %5308 = vmatpush.bf16.msra.mxu0 %v5155
  %5309 = vmatpush.bf16.msra.mxu0 %v5153
  %5310 = vmatpush.bf16.msra.mxu0 %v5151
  %5311 = vmatpush.bf16.msra.mxu0 %v5149
  %5312 = vmatpush.bf16.msra.mxu0 %v5147
  %5313 = vmatpush.bf16.msra.mxu0 %v5145
  %5314 = vmatmul.bf16.gmra.mxu0 %v4992
  %v5315 = vpop.f32.mrf.mxu0
  %v5316 = vadd.f32 %v5045, %v5315
  %v5317 = vpop.f32.mrf.mxu0
  %v5318 = vadd.f32 %v5045, %v5317
  %5319 = vmatmul.bf16.gmra.mxu0 %v4994
  %v5320 = vpop.f32.mrf.mxu0
  %v5321 = vadd.f32 %v5045, %v5320
  %v5322 = vpop.f32.mrf.mxu0
  %v5323 = vadd.f32 %v5045, %v5322
  %5324 = vmatmul.bf16.gmra.mxu0 %v4996
  %v5325 = vpop.f32.mrf.mxu0
  %v5326 = vadd.f32 %v5045, %v5325
  %v5327 = vpop.f32.mrf.mxu0
  %v5328 = vadd.f32 %v5045, %v5327
  %5329 = vmatmul.bf16.gmra.mxu0 %v4998
  %v5330 = vpop.f32.mrf.mxu0
  %v5331 = vadd.f32 %v5045, %v5330
  %v5332 = vpop.f32.mrf.mxu0
  %v5333 = vadd.f32 %v5045, %v5332
  %5334 = vmatmul.bf16.gmra.mxu0 %v5000
  %v5335 = vpop.f32.mrf.mxu0
  %v5336 = vadd.f32 %v5045, %v5335
  %v5337 = vpop.f32.mrf.mxu0
  %v5338 = vadd.f32 %v5045, %v5337
  %5339 = vmatmul.bf16.gmra.mxu0 %v5002
  %v5340 = vpop.f32.mrf.mxu0
  %v5341 = vadd.f32 %v5045, %v5340
  %v5342 = vpop.f32.mrf.mxu0
  %v5343 = vadd.f32 %v5045, %v5342
  %5344 = vmatmul.bf16.gmra.mxu0 %v5004
  %v5345 = vpop.f32.mrf.mxu0
  %v5346 = vadd.f32 %v5045, %v5345
  %v5347 = vpop.f32.mrf.mxu0
  %v5348 = vadd.f32 %v5045, %v5347
  %5349 = vmatmul.bf16.gmra.mxu0 %v5006
  %v5350 = vpop.f32.mrf.mxu0
  %v5351 = vadd.f32 %v5045, %v5350
  %v5352 = vpop.f32.mrf.mxu0
  %v5353 = vadd.f32 %v5045, %v5352
  %5354 = vdwg.mxu0
  %5355 = vmatpush.bf16.msra.mxu0 %v5175
  %5356 = vmatpush.bf16.msra.mxu0 %v5173
  %5357 = vmatpush.bf16.msra.mxu0 %v5171
  %5358 = vmatpush.bf16.msra.mxu0 %v5169
  %5359 = vmatpush.bf16.msra.mxu0 %v5167
  %5360 = vmatpush.bf16.msra.mxu0 %v5165
  %5361 = vmatpush.bf16.msra.mxu0 %v5163
  %5362 = vmatpush.bf16.msra.mxu0 %v5161
  %5363 = vmatmul.bf16.gmra.mxu0 %v4993
  %v5364 = vpop.f32.mrf.mxu0
  %v5365 = vadd.f32 %v5316, %v5364
  %v5366 = vpop.f32.mrf.mxu0
  %v5367 = vadd.f32 %v5318, %v5366
  %5368 = vmatmul.bf16.gmra.mxu0 %v4995
  %v5369 = vpop.f32.mrf.mxu0
  %v5370 = vadd.f32 %v5321, %v5369
  %v5371 = vpop.f32.mrf.mxu0
  %v5372 = vadd.f32 %v5323, %v5371
  %5373 = vmatmul.bf16.gmra.mxu0 %v4997
  %v5374 = vpop.f32.mrf.mxu0
  %v5375 = vadd.f32 %v5326, %v5374
  %v5376 = vpop.f32.mrf.mxu0
  %v5377 = vadd.f32 %v5328, %v5376
  %5378 = vmatmul.bf16.gmra.mxu0 %v4999
  %v5379 = vpop.f32.mrf.mxu0
  %v5380 = vadd.f32 %v5331, %v5379
  %v5381 = vpop.f32.mrf.mxu0
  %v5382 = vadd.f32 %v5333, %v5381
  %5383 = vmatmul.bf16.gmra.mxu0 %v5001
  %v5384 = vpop.f32.mrf.mxu0
  %v5385 = vadd.f32 %v5336, %v5384
  %v5386 = vpop.f32.mrf.mxu0
  %v5387 = vadd.f32 %v5338, %v5386
  %5388 = vmatmul.bf16.gmra.mxu0 %v5003
  %v5389 = vpop.f32.mrf.mxu0
  %v5390 = vadd.f32 %v5341, %v5389
  %v5391 = vpop.f32.mrf.mxu0
  %v5392 = vadd.f32 %v5343, %v5391
  %5393 = vmatmul.bf16.gmra.mxu0 %v5005
  %v5394 = vpop.f32.mrf.mxu0
  %v5395 = vadd.f32 %v5346, %v5394
  %v5396 = vpop.f32.mrf.mxu0
  %v5397 = vadd.f32 %v5348, %v5396
  %5398 = vmatmul.bf16.gmra.mxu0 %v5007
  %v5399 = vpop.f32.mrf.mxu0
  %v5400 = vadd.f32 %v5351, %v5399
  %v5401 = vpop.f32.mrf.mxu0
  %v5402 = vadd.f32 %v5353, %v5401
  %5403 = vdwg.mxu0
  %v5404 = vmax.f32 %v5267, 0.0
  %v5405 = vmax.f32 %v5365, 0.0
  %v5406 = vmax.f32 %v5269, 0.0
  %v5407 = vmax.f32 %v5367, 0.0
  %v5408 = vmax.f32 %v5272, 0.0
  %v5409 = vmax.f32 %v5370, 0.0
  %v5410 = vmax.f32 %v5274, 0.0
  %v5411 = vmax.f32 %v5372, 0.0
  %v5412 = vmax.f32 %v5277, 0.0
  %v5413 = vmax.f32 %v5375, 0.0
  %v5414 = vmax.f32 %v5279, 0.0
  %v5415 = vmax.f32 %v5377, 0.0
  %v5416 = vmax.f32 %v5282, 0.0
  %v5417 = vmax.f32 %v5380, 0.0
  %v5418 = vmax.f32 %v5284, 0.0
  %v5419 = vmax.f32 %v5382, 0.0
  %v5420 = vmax.f32 %v5287, 0.0
  %v5421 = vmax.f32 %v5385, 0.0
  %v5422 = vmax.f32 %v5289, 0.0
  %v5423 = vmax.f32 %v5387, 0.0
  %v5424 = vmax.f32 %v5292, 0.0
  %v5425 = vmax.f32 %v5390, 0.0
  %v5426 = vmax.f32 %v5294, 0.0
  %v5427 = vmax.f32 %v5392, 0.0
  %v5428 = vmax.f32 %v5297, 0.0
  %v5429 = vmax.f32 %v5395, 0.0
  %v5430 = vmax.f32 %v5299, 0.0
  %v5431 = vmax.f32 %v5397, 0.0
  %v5432 = vmax.f32 %v5302, 0.0
  %v5433 = vmax.f32 %v5400, 0.0
  %v5434 = vmax.f32 %v5304, 0.0
  %v5435 = vmax.f32 %v5402, 0.0
  %v5436 = vpack.c.bf16 %v5406, %v5404
  %v5437 = vpack.c.bf16 %v5407, %v5405
  %v5438 = vpack.c.bf16 %v5410, %v5408
  %v5439 = vpack.c.bf16 %v5411, %v5409
  %v5440 = vpack.c.bf16 %v5414, %v5412
  %v5441 = vpack.c.bf16 %v5415, %v5413
  %v5442 = vpack.c.bf16 %v5418, %v5416
  %v5443 = vpack.c.bf16 %v5419, %v5417
  %v5444 = vpack.c.bf16 %v5422, %v5420
  %v5445 = vpack.c.bf16 %v5423, %v5421
  %v5446 = vpack.c.bf16 %v5426, %v5424
  %v5447 = vpack.c.bf16 %v5427, %v5425
  %v5448 = vpack.c.bf16 %v5430, %v5428
  %v5449 = vpack.c.bf16 %v5431, %v5429
  %v5450 = vpack.c.bf16 %v5434, %v5432
  %v5451 = vpack.c.bf16 %v5435, %v5433
  %v5452 = vld [vmem:[%s6] sm:$0xf]
  %v5453 = vld [vmem:[%s6 + $0x4] sm:$0xf]
  %v5454 = vld [vmem:[%s6 + $0x8] sm:$0xf]
  %v5455 = vld [vmem:[%s6 + $0xc] sm:$0xf]
  %v5456 = vld [vmem:[%s6 + $0x10] sm:$0xf]
  %v5457 = vld [vmem:[%s6 + $0x14] sm:$0xf]
  %v5458 = vld [vmem:[%s6 + $0x18] sm:$0xf]
  %v5459 = vld [vmem:[%s6 + $0x1c] sm:$0xf]
  %v5460 = vld [vmem:[%s6 + $0x20] sm:$0xf]
  %v5461 = vld [vmem:[%s6 + $0x24] sm:$0xf]
  %v5462 = vld [vmem:[%s6 + $0x28] sm:$0xf]
  %v5463 = vld [vmem:[%s6 + $0x2c] sm:$0xf]
  %v5464 = vld [vmem:[%s6 + $0x30] sm:$0xf]
  %v5465 = vld [vmem:[%s6 + $0x34] sm:$0xf]
  %v5466 = vld [vmem:[%s6 + $0x38] sm:$0xf]
  %v5467 = vld [vmem:[%s6 + $0x3c] sm:$0xf]
  %v5468 = vld [vmem:[%s6 + $0x40] sm:$0xf]
  %v5469 = vld [vmem:[%s6 + $0x44] sm:$0xf]
  %v5470 = vld [vmem:[%s6 + $0x48] sm:$0xf]
  %v5471 = vld [vmem:[%s6 + $0x4c] sm:$0xf]
  %v5472 = vld [vmem:[%s6 + $0x50] sm:$0xf]
  %v5473 = vld [vmem:[%s6 + $0x54] sm:$0xf]
  %v5474 = vld [vmem:[%s6 + $0x58] sm:$0xf]
  %v5475 = vld [vmem:[%s6 + $0x5c] sm:$0xf]
  %v5476 = vld [vmem:[%s6 + $0x60] sm:$0xf]
  %v5477 = vld [vmem:[%s6 + $0x64] sm:$0xf]
  %v5478 = vld [vmem:[%s6 + $0x68] sm:$0xf]
  %v5479 = vld [vmem:[%s6 + $0x6c] sm:$0xf]
  %v5480 = vld [vmem:[%s6 + $0x70] sm:$0xf]
  %v5481 = vld [vmem:[%s6 + $0x74] sm:$0xf]
  %v5482 = vld [vmem:[%s6 + $0x78] sm:$0xf]
  %v5483 = vld [vmem:[%s6 + $0x7c] sm:$0xf]
  %s5484 = scalar_lea.vmem %s6, 128
  %v5485 = vld [vmem:[%s5484] sm:$0xf]
  %v5486 = vld [vmem:[%s5484 + $0x4] sm:$0xf]
  %v5487 = vld [vmem:[%s5484 + $0x8] sm:$0xf]
  %v5488 = vld [vmem:[%s5484 + $0xc] sm:$0xf]
  %v5489 = vld [vmem:[%s5484 + $0x10] sm:$0xf]
  %v5490 = vld [vmem:[%s5484 + $0x14] sm:$0xf]
  %v5491 = vld [vmem:[%s5484 + $0x18] sm:$0xf]
  %v5492 = vld [vmem:[%s5484 + $0x1c] sm:$0xf]
  %v5493 = vld [vmem:[%s5484 + $0x20] sm:$0xf]
  %v5494 = vld [vmem:[%s5484 + $0x24] sm:$0xf]
  %v5495 = vld [vmem:[%s5484 + $0x28] sm:$0xf]
  %v5496 = vld [vmem:[%s5484 + $0x2c] sm:$0xf]
  %v5497 = vld [vmem:[%s5484 + $0x30] sm:$0xf]
  %v5498 = vld [vmem:[%s5484 + $0x34] sm:$0xf]
  %v5499 = vld [vmem:[%s5484 + $0x38] sm:$0xf]
  %v5500 = vld [vmem:[%s5484 + $0x3c] sm:$0xf]
  %v5501 = vld [vmem:[%s5484 + $0x40] sm:$0xf]
  %v5502 = vld [vmem:[%s5484 + $0x44] sm:$0xf]
  %v5503 = vld [vmem:[%s5484 + $0x48] sm:$0xf]
  %v5504 = vld [vmem:[%s5484 + $0x4c] sm:$0xf]
  %v5505 = vld [vmem:[%s5484 + $0x50] sm:$0xf]
  %v5506 = vld [vmem:[%s5484 + $0x54] sm:$0xf]
  %v5507 = vld [vmem:[%s5484 + $0x58] sm:$0xf]
  %v5508 = vld [vmem:[%s5484 + $0x5c] sm:$0xf]
  %v5509 = vld [vmem:[%s5484 + $0x60] sm:$0xf]
  %v5510 = vld [vmem:[%s5484 + $0x64] sm:$0xf]
  %v5511 = vld [vmem:[%s5484 + $0x68] sm:$0xf]
  %v5512 = vld [vmem:[%s5484 + $0x6c] sm:$0xf]
  %v5513 = vld [vmem:[%s5484 + $0x70] sm:$0xf]
  %v5514 = vld [vmem:[%s5484 + $0x74] sm:$0xf]
  %v5515 = vld [vmem:[%s5484 + $0x78] sm:$0xf]
  %v5516 = vld [vmem:[%s5484 + $0x7c] sm:$0xf]
  %v5549 = vunpack.c.l.b16 %v5485
  %v5550 = vunpack.c.l.b16 %v5486
  %v5551 = vunpack.c.l.b16 %v5487
  %v5552 = vunpack.c.l.b16 %v5488
  %v5553 = vunpack.c.l.b16 %v5489
  %v5554 = vunpack.c.l.b16 %v5490
  %v5555 = vunpack.c.l.b16 %v5491
  %v5556 = vunpack.c.l.b16 %v5492
  %v5557 = vunpack.c.l.b16 %v5493
  %v5558 = vunpack.c.l.b16 %v5494
  %v5559 = vunpack.c.l.b16 %v5495
  %v5560 = vunpack.c.l.b16 %v5496
  %v5561 = vunpack.c.l.b16 %v5497
  %v5562 = vunpack.c.l.b16 %v5498
  %v5563 = vunpack.c.l.b16 %v5499
  %v5564 = vunpack.c.l.b16 %v5500
  %v5565 = vunpack.c.l.b16 %v5501
  %v5566 = vunpack.c.l.b16 %v5502
  %v5567 = vunpack.c.l.b16 %v5503
  %v5568 = vunpack.c.l.b16 %v5504
  %v5569 = vunpack.c.l.b16 %v5505
  %v5570 = vunpack.c.l.b16 %v5506
  %v5571 = vunpack.c.l.b16 %v5507
  %v5572 = vunpack.c.l.b16 %v5508
  %v5573 = vunpack.c.l.b16 %v5509
  %v5574 = vunpack.c.l.b16 %v5510
  %v5575 = vunpack.c.l.b16 %v5511
  %v5576 = vunpack.c.l.b16 %v5512
  %v5577 = vunpack.c.l.b16 %v5513
  %v5578 = vunpack.c.l.b16 %v5514
  %v5579 = vunpack.c.l.b16 %v5515
  %v5580 = vunpack.c.l.b16 %v5516
  %v5581 = vpack.c.b16 %v5550, %v5549
  %v5582 = vpack.c.b16 %v5552, %v5551
  %v5583 = vpack.c.b16 %v5554, %v5553
  %v5584 = vpack.c.b16 %v5556, %v5555
  %v5585 = vpack.c.b16 %v5558, %v5557
  %v5586 = vpack.c.b16 %v5560, %v5559
  %v5587 = vpack.c.b16 %v5562, %v5561
  %v5588 = vpack.c.b16 %v5564, %v5563
  %v5589 = vpack.c.b16 %v5566, %v5565
  %v5590 = vpack.c.b16 %v5568, %v5567
  %v5591 = vpack.c.b16 %v5570, %v5569
  %v5592 = vpack.c.b16 %v5572, %v5571
  %v5593 = vpack.c.b16 %v5574, %v5573
  %v5594 = vpack.c.b16 %v5576, %v5575
  %v5595 = vpack.c.b16 %v5578, %v5577
  %v5596 = vpack.c.b16 %v5580, %v5579
  %5613 = vmatpush.bf16.msra.mxu0 %v5588
  %5614 = vmatpush.bf16.msra.mxu0 %v5587
  %5615 = vmatpush.bf16.msra.mxu0 %v5586
  %5616 = vmatpush.bf16.msra.mxu0 %v5585
  %5617 = vmatpush.bf16.msra.mxu0 %v5584
  %5618 = vmatpush.bf16.msra.mxu0 %v5583
  %5619 = vmatpush.bf16.msra.mxu0 %v5582
  %5620 = vmatpush.bf16.msra.mxu0 %v5581
  %5621 = vmatmul.bf16.gmra.mxu0 %v3660
  %v5622 = vpop.f32.mrf.mxu0
  %v5623 = vadd.f32 0.0, %v5622
  %v5624 = vpop.f32.mrf.mxu0
  %v5625 = vadd.f32 0.0, %v5624
  %5626 = vmatmul.bf16.gmra.mxu0 %v3662
  %v5627 = vpop.f32.mrf.mxu0
  %v5628 = vadd.f32 0.0, %v5627
  %v5629 = vpop.f32.mrf.mxu0
  %v5630 = vadd.f32 0.0, %v5629
  %5631 = vmatmul.bf16.gmra.mxu0 %v3664
  %v5632 = vpop.f32.mrf.mxu0
  %v5633 = vadd.f32 0.0, %v5632
  %v5634 = vpop.f32.mrf.mxu0
  %v5635 = vadd.f32 0.0, %v5634
  %5636 = vmatmul.bf16.gmra.mxu0 %v3666
  %v5637 = vpop.f32.mrf.mxu0
  %v5638 = vadd.f32 0.0, %v5637
  %v5639 = vpop.f32.mrf.mxu0
  %v5640 = vadd.f32 0.0, %v5639
  %5641 = vmatmul.bf16.gmra.mxu0 %v3668
  %v5642 = vpop.f32.mrf.mxu0
  %v5643 = vadd.f32 0.0, %v5642
  %v5644 = vpop.f32.mrf.mxu0
  %v5645 = vadd.f32 0.0, %v5644
  %5646 = vmatmul.bf16.gmra.mxu0 %v3670
  %v5647 = vpop.f32.mrf.mxu0
  %v5648 = vadd.f32 0.0, %v5647
  %v5649 = vpop.f32.mrf.mxu0
  %v5650 = vadd.f32 0.0, %v5649
  %5651 = vmatmul.bf16.gmra.mxu0 %v3672
  %v5652 = vpop.f32.mrf.mxu0
  %v5653 = vadd.f32 0.0, %v5652
  %v5654 = vpop.f32.mrf.mxu0
  %v5655 = vadd.f32 0.0, %v5654
  %5656 = vmatmul.bf16.gmra.mxu0 %v3674
  %v5657 = vpop.f32.mrf.mxu0
  %v5658 = vadd.f32 0.0, %v5657
  %v5659 = vpop.f32.mrf.mxu0
  %v5660 = vadd.f32 0.0, %v5659
  %5661 = vdwg.mxu0
  %5662 = vmatpush.bf16.msra.mxu0 %v5596
  %5663 = vmatpush.bf16.msra.mxu0 %v5595
  %5664 = vmatpush.bf16.msra.mxu0 %v5594
  %5665 = vmatpush.bf16.msra.mxu0 %v5593
  %5666 = vmatpush.bf16.msra.mxu0 %v5592
  %5667 = vmatpush.bf16.msra.mxu0 %v5591
  %5668 = vmatpush.bf16.msra.mxu0 %v5590
  %5669 = vmatpush.bf16.msra.mxu0 %v5589
  %5670 = vmatmul.bf16.gmra.mxu0 %v3661
  %v5671 = vpop.f32.mrf.mxu0
  %v5672 = vadd.f32 %v5623, %v5671
  %v5673 = vpop.f32.mrf.mxu0
  %v5674 = vadd.f32 %v5625, %v5673
  %5675 = vmatmul.bf16.gmra.mxu0 %v3663
  %v5676 = vpop.f32.mrf.mxu0
  %v5677 = vadd.f32 %v5628, %v5676
  %v5678 = vpop.f32.mrf.mxu0
  %v5679 = vadd.f32 %v5630, %v5678
  %5680 = vmatmul.bf16.gmra.mxu0 %v3665
  %v5681 = vpop.f32.mrf.mxu0
  %v5682 = vadd.f32 %v5633, %v5681
  %v5683 = vpop.f32.mrf.mxu0
  %v5684 = vadd.f32 %v5635, %v5683
  %5685 = vmatmul.bf16.gmra.mxu0 %v3667
  %v5686 = vpop.f32.mrf.mxu0
  %v5687 = vadd.f32 %v5638, %v5686
  %v5688 = vpop.f32.mrf.mxu0
  %v5689 = vadd.f32 %v5640, %v5688
  %5690 = vmatmul.bf16.gmra.mxu0 %v3669
  %v5691 = vpop.f32.mrf.mxu0
  %v5692 = vadd.f32 %v5643, %v5691
  %v5693 = vpop.f32.mrf.mxu0
  %v5694 = vadd.f32 %v5645, %v5693
  %5695 = vmatmul.bf16.gmra.mxu0 %v3671
  %v5696 = vpop.f32.mrf.mxu0
  %v5697 = vadd.f32 %v5648, %v5696
  %v5698 = vpop.f32.mrf.mxu0
  %v5699 = vadd.f32 %v5650, %v5698
  %5700 = vmatmul.bf16.gmra.mxu0 %v3673
  %v5701 = vpop.f32.mrf.mxu0
  %v5702 = vadd.f32 %v5653, %v5701
  %v5703 = vpop.f32.mrf.mxu0
  %v5704 = vadd.f32 %v5655, %v5703
  %5705 = vmatmul.bf16.gmra.mxu0 %v3675
  %v5706 = vpop.f32.mrf.mxu0
  %v5707 = vadd.f32 %v5658, %v5706
  %v5708 = vpop.f32.mrf.mxu0
  %v5709 = vadd.f32 %v5660, %v5708
  %5710 = vdwg.mxu0
  %v5743 = vunpack.c.l.b16 %v5452
  %v5744 = vunpack.c.l.b16 %v5453
  %v5745 = vunpack.c.l.b16 %v5454
  %v5746 = vunpack.c.l.b16 %v5455
  %v5747 = vunpack.c.l.b16 %v5456
  %v5748 = vunpack.c.l.b16 %v5457
  %v5749 = vunpack.c.l.b16 %v5458
  %v5750 = vunpack.c.l.b16 %v5459
  %v5751 = vunpack.c.l.b16 %v5460
  %v5752 = vunpack.c.l.b16 %v5461
  %v5753 = vunpack.c.l.b16 %v5462
  %v5754 = vunpack.c.l.b16 %v5463
  %v5755 = vunpack.c.l.b16 %v5464
  %v5756 = vunpack.c.l.b16 %v5465
  %v5757 = vunpack.c.l.b16 %v5466
  %v5758 = vunpack.c.l.b16 %v5467
  %v5759 = vunpack.c.l.b16 %v5468
  %v5760 = vunpack.c.l.b16 %v5469
  %v5761 = vunpack.c.l.b16 %v5470
  %v5762 = vunpack.c.l.b16 %v5471
  %v5763 = vunpack.c.l.b16 %v5472
  %v5764 = vunpack.c.l.b16 %v5473
  %v5765 = vunpack.c.l.b16 %v5474
  %v5766 = vunpack.c.l.b16 %v5475
  %v5767 = vunpack.c.l.b16 %v5476
  %v5768 = vunpack.c.l.b16 %v5477
  %v5769 = vunpack.c.l.b16 %v5478
  %v5770 = vunpack.c.l.b16 %v5479
  %v5771 = vunpack.c.l.b16 %v5480
  %v5772 = vunpack.c.l.b16 %v5481
  %v5773 = vunpack.c.l.b16 %v5482
  %v5774 = vunpack.c.l.b16 %v5483
  %v5775 = vpack.c.b16 %v5744, %v5743
  %v5776 = vpack.c.b16 %v5746, %v5745
  %v5777 = vpack.c.b16 %v5748, %v5747
  %v5778 = vpack.c.b16 %v5750, %v5749
  %v5779 = vpack.c.b16 %v5752, %v5751
  %v5780 = vpack.c.b16 %v5754, %v5753
  %v5781 = vpack.c.b16 %v5756, %v5755
  %v5782 = vpack.c.b16 %v5758, %v5757
  %v5783 = vpack.c.b16 %v5760, %v5759
  %v5784 = vpack.c.b16 %v5762, %v5761
  %v5785 = vpack.c.b16 %v5764, %v5763
  %v5786 = vpack.c.b16 %v5766, %v5765
  %v5787 = vpack.c.b16 %v5768, %v5767
  %v5788 = vpack.c.b16 %v5770, %v5769
  %v5789 = vpack.c.b16 %v5772, %v5771
  %v5790 = vpack.c.b16 %v5774, %v5773
  %5807 = vmatpush.bf16.msra.mxu0 %v5782
  %5808 = vmatpush.bf16.msra.mxu0 %v5781
  %5809 = vmatpush.bf16.msra.mxu0 %v5780
  %5810 = vmatpush.bf16.msra.mxu0 %v5779
  %5811 = vmatpush.bf16.msra.mxu0 %v5778
  %5812 = vmatpush.bf16.msra.mxu0 %v5777
  %5813 = vmatpush.bf16.msra.mxu0 %v5776
  %5814 = vmatpush.bf16.msra.mxu0 %v5775
  %5815 = vmatmul.bf16.gmra.mxu0 %v5436
  %v5816 = vpop.f32.mrf.mxu0
  %v5817 = vadd.f32 %v5672, %v5816
  %v5818 = vpop.f32.mrf.mxu0
  %v5819 = vadd.f32 %v5674, %v5818
  %5820 = vmatmul.bf16.gmra.mxu0 %v5438
  %v5821 = vpop.f32.mrf.mxu0
  %v5822 = vadd.f32 %v5677, %v5821
  %v5823 = vpop.f32.mrf.mxu0
  %v5824 = vadd.f32 %v5679, %v5823
  %5825 = vmatmul.bf16.gmra.mxu0 %v5440
  %v5826 = vpop.f32.mrf.mxu0
  %v5827 = vadd.f32 %v5682, %v5826
  %v5828 = vpop.f32.mrf.mxu0
  %v5829 = vadd.f32 %v5684, %v5828
  %5830 = vmatmul.bf16.gmra.mxu0 %v5442
  %v5831 = vpop.f32.mrf.mxu0
  %v5832 = vadd.f32 %v5687, %v5831
  %v5833 = vpop.f32.mrf.mxu0
  %v5834 = vadd.f32 %v5689, %v5833
  %5835 = vmatmul.bf16.gmra.mxu0 %v5444
  %v5836 = vpop.f32.mrf.mxu0
  %v5837 = vadd.f32 %v5692, %v5836
  %v5838 = vpop.f32.mrf.mxu0
  %v5839 = vadd.f32 %v5694, %v5838
  %5840 = vmatmul.bf16.gmra.mxu0 %v5446
  %v5841 = vpop.f32.mrf.mxu0
  %v5842 = vadd.f32 %v5697, %v5841
  %v5843 = vpop.f32.mrf.mxu0
  %v5844 = vadd.f32 %v5699, %v5843
  %5845 = vmatmul.bf16.gmra.mxu0 %v5448
  %v5846 = vpop.f32.mrf.mxu0
  %v5847 = vadd.f32 %v5702, %v5846
  %v5848 = vpop.f32.mrf.mxu0
  %v5849 = vadd.f32 %v5704, %v5848
  %5850 = vmatmul.bf16.gmra.mxu0 %v5450
  %v5851 = vpop.f32.mrf.mxu0
  %v5852 = vadd.f32 %v5707, %v5851
  %v5853 = vpop.f32.mrf.mxu0
  %v5854 = vadd.f32 %v5709, %v5853
  %5855 = vdwg.mxu0
  %5856 = vmatpush.bf16.msra.mxu0 %v5790
  %5857 = vmatpush.bf16.msra.mxu0 %v5789
  %5858 = vmatpush.bf16.msra.mxu0 %v5788
  %5859 = vmatpush.bf16.msra.mxu0 %v5787
  %5860 = vmatpush.bf16.msra.mxu0 %v5786
  %5861 = vmatpush.bf16.msra.mxu0 %v5785
  %5862 = vmatpush.bf16.msra.mxu0 %v5784
  %5863 = vmatpush.bf16.msra.mxu0 %v5783
  %5864 = vmatmul.bf16.gmra.mxu0 %v5437
  %v5865 = vpop.f32.mrf.mxu0
  %v5866 = vadd.f32 %v5817, %v5865
  %v5867 = vpop.f32.mrf.mxu0
  %v5868 = vadd.f32 %v5819, %v5867
  %5869 = vmatmul.bf16.gmra.mxu0 %v5439
  %v5870 = vpop.f32.mrf.mxu0
  %v5871 = vadd.f32 %v5822, %v5870
  %v5872 = vpop.f32.mrf.mxu0
  %v5873 = vadd.f32 %v5824, %v5872
  %5874 = vmatmul.bf16.gmra.mxu0 %v5441
  %v5875 = vpop.f32.mrf.mxu0
  %v5876 = vadd.f32 %v5827, %v5875
  %v5877 = vpop.f32.mrf.mxu0
  %v5878 = vadd.f32 %v5829, %v5877
  %5879 = vmatmul.bf16.gmra.mxu0 %v5443
  %v5880 = vpop.f32.mrf.mxu0
  %v5881 = vadd.f32 %v5832, %v5880
  %v5882 = vpop.f32.mrf.mxu0
  %v5883 = vadd.f32 %v5834, %v5882
  %5884 = vmatmul.bf16.gmra.mxu0 %v5445
  %v5885 = vpop.f32.mrf.mxu0
  %v5886 = vadd.f32 %v5837, %v5885
  %v5887 = vpop.f32.mrf.mxu0
  %v5888 = vadd.f32 %v5839, %v5887
  %5889 = vmatmul.bf16.gmra.mxu0 %v5447
  %v5890 = vpop.f32.mrf.mxu0
  %v5891 = vadd.f32 %v5842, %v5890
  %v5892 = vpop.f32.mrf.mxu0
  %v5893 = vadd.f32 %v5844, %v5892
  %5894 = vmatmul.bf16.gmra.mxu0 %v5449
  %v5895 = vpop.f32.mrf.mxu0
  %v5896 = vadd.f32 %v5847, %v5895
  %v5897 = vpop.f32.mrf.mxu0
  %v5898 = vadd.f32 %v5849, %v5897
  %5899 = vmatmul.bf16.gmra.mxu0 %v5451
  %v5900 = vpop.f32.mrf.mxu0
  %v5901 = vadd.f32 %v5852, %v5900
  %v5902 = vpop.f32.mrf.mxu0
  %v5903 = vadd.f32 %v5854, %v5902
  %5904 = vdwg.mxu0
  %v5905 = vld [vmem:[%s7] sm:$0x1]
  %v5907 = vperm.slane %v5905, 0
  %v5909 = vadd.f32 %v5866, %v5907
  %v5910 = vadd.f32 %v5868, %v5907
  %v5911 = vadd.f32 %v5871, %v5907
  %v5912 = vadd.f32 %v5873, %v5907
  %v5913 = vadd.f32 %v5876, %v5907
  %v5914 = vadd.f32 %v5878, %v5907
  %v5915 = vadd.f32 %v5881, %v5907
  %v5916 = vadd.f32 %v5883, %v5907
  %v5917 = vadd.f32 %v5886, %v5907
  %v5918 = vadd.f32 %v5888, %v5907
  %v5919 = vadd.f32 %v5891, %v5907
  %v5920 = vadd.f32 %v5893, %v5907
  %v5921 = vadd.f32 %v5896, %v5907
  %v5922 = vadd.f32 %v5898, %v5907
  %v5923 = vadd.f32 %v5901, %v5907
  %v5924 = vadd.f32 %v5903, %v5907
  %v5925 = vlaneseq
  %v5926 = vand.u32 %v5925, 127
  %vm5927 = vcmp.eq.s32.totalorder %v5926, 0
  %v5928 = vmax.f32 %v5909, -10.0
  %v5929 = vmax.f32 %v5910, -10.0
  %v5930 = vmax.f32 %v5911, -10.0
  %v5931 = vmax.f32 %v5912, -10.0
  %v5932 = vmax.f32 %v5913, -10.0
  %v5933 = vmax.f32 %v5914, -10.0
  %v5934 = vmax.f32 %v5915, -10.0
  %v5935 = vmax.f32 %v5916, -10.0
  %v5936 = vmax.f32 %v5917, -10.0
  %v5937 = vmax.f32 %v5918, -10.0
  %v5938 = vmax.f32 %v5919, -10.0
  %v5939 = vmax.f32 %v5920, -10.0
  %v5940 = vmax.f32 %v5921, -10.0
  %v5941 = vmax.f32 %v5922, -10.0
  %v5942 = vmax.f32 %v5923, -10.0
  %v5943 = vmax.f32 %v5924, -10.0
  %v5944 = vmin.f32 %v5928, 10.0
  %v5945 = vmin.f32 %v5929, 10.0
  %v5946 = vmin.f32 %v5930, 10.0
  %v5947 = vmin.f32 %v5931, 10.0
  %v5948 = vmin.f32 %v5932, 10.0
  %v5949 = vmin.f32 %v5933, 10.0
  %v5950 = vmin.f32 %v5934, 10.0
  %v5951 = vmin.f32 %v5935, 10.0
  %v5952 = vmin.f32 %v5936, 10.0
  %v5953 = vmin.f32 %v5937, 10.0
  %v5954 = vmin.f32 %v5938, 10.0
  %v5955 = vmin.f32 %v5939, 10.0
  %v5956 = vmin.f32 %v5940, 10.0
  %v5957 = vmin.f32 %v5941, 10.0
  %v5958 = vmin.f32 %v5942, 10.0
  %v5959 = vmin.f32 %v5943, 10.0
  %v5960 = vxor.u32 %v5909, 2147483648
  %v5961 = vxor.u32 %v5910, 2147483648
  %v5962 = vxor.u32 %v5911, 2147483648
  %v5963 = vxor.u32 %v5912, 2147483648
  %v5964 = vxor.u32 %v5913, 2147483648
  %v5965 = vxor.u32 %v5914, 2147483648
  %v5966 = vxor.u32 %v5915, 2147483648
  %v5967 = vxor.u32 %v5916, 2147483648
  %v5968 = vxor.u32 %v5917, 2147483648
  %v5969 = vxor.u32 %v5918, 2147483648
  %v5970 = vxor.u32 %v5919, 2147483648
  %v5971 = vxor.u32 %v5920, 2147483648
  %v5972 = vxor.u32 %v5921, 2147483648
  %v5973 = vxor.u32 %v5922, 2147483648
  %v5974 = vxor.u32 %v5923, 2147483648
  %v5975 = vxor.u32 %v5924, 2147483648
  %v5976 = vmul.f32 %v5960, 1.442695
  %v5977 = vpow.pop %v5976
  %v5978 = vmul.f32 %v5961, 1.442695
  %v5979 = vpow.pop %v5978
  %v5980 = vmul.f32 %v5962, 1.442695
  %v5981 = vpow.pop %v5980
  %v5982 = vmul.f32 %v5963, 1.442695
  %v5983 = vpow.pop %v5982
  %v5984 = vmul.f32 %v5964, 1.442695
  %v5985 = vpow.pop %v5984
  %v5986 = vmul.f32 %v5965, 1.442695
  %v5987 = vpow.pop %v5986
  %v5988 = vmul.f32 %v5966, 1.442695
  %v5989 = vpow.pop %v5988
  %v5990 = vmul.f32 %v5967, 1.442695
  %v5991 = vpow.pop %v5990
  %v5992 = vmul.f32 %v5968, 1.442695
  %v5993 = vpow.pop %v5992
  %v5994 = vmul.f32 %v5969, 1.442695
  %v5995 = vpow.pop %v5994
  %v5996 = vmul.f32 %v5970, 1.442695
  %v5997 = vpow.pop %v5996
  %v5998 = vmul.f32 %v5971, 1.442695
  %v5999 = vpow.pop %v5998
  %v6000 = vmul.f32 %v5972, 1.442695
  %v6001 = vpow.pop %v6000
  %v6002 = vmul.f32 %v5973, 1.442695
  %v6003 = vpow.pop %v6002
  %v6004 = vmul.f32 %v5974, 1.442695
  %v6005 = vpow.pop %v6004
  %v6006 = vmul.f32 %v5975, 1.442695
  %v6007 = vpow.pop %v6006
  %v6008 = vadd.f32 %v5977, 1.0
  %v6009 = vadd.f32 %v5979, 1.0
  %v6010 = vadd.f32 %v5981, 1.0
  %v6011 = vadd.f32 %v5983, 1.0
  %v6012 = vadd.f32 %v5985, 1.0
  %v6013 = vadd.f32 %v5987, 1.0
  %v6014 = vadd.f32 %v5989, 1.0
  %v6015 = vadd.f32 %v5991, 1.0
  %v6016 = vadd.f32 %v5993, 1.0
  %v6017 = vadd.f32 %v5995, 1.0
  %v6018 = vadd.f32 %v5997, 1.0
  %v6019 = vadd.f32 %v5999, 1.0
  %v6020 = vadd.f32 %v6001, 1.0
  %v6021 = vadd.f32 %v6003, 1.0
  %v6022 = vadd.f32 %v6005, 1.0
  %v6023 = vadd.f32 %v6007, 1.0
  %v6024 = vrcp.pop %v6008
  %v6025 = vmul.f32 %v6008, %v6024
  %v6026 = vsub.f32 1.0, %v6025
  %v6027 = vmul.f32 %v6024, %v6026
  %v6028 = vadd.f32 %v6024, %v6027
  %vm6029 = vweird.f32 %v6008
  %vm6030 = vweird.f32 %v6024
  %vm6031 = vmor %vm6029, %vm6030
  %v6032 = vsel %vm6031, %v6024, %v6028
  %v6033 = vand.u32 2147483647, %v6008
  %vm6034 = vcmp.eq.f32.partialorder %v6033, 8.507059e+37
  %v6035 = vand.u32 %v6008, 2147483648
  %v6036 = vor.u32 1.1754944e-38, %v6035
  %v6037 = vsel %vm6034, %v6036, %v6032
  %v6038 = vmul.f32 1.0, %v6037
  %v6039 = vrcp.pop %v6009
  %v6040 = vmul.f32 %v6009, %v6039
  %v6041 = vsub.f32 1.0, %v6040
  %v6042 = vmul.f32 %v6039, %v6041
  %v6043 = vadd.f32 %v6039, %v6042
  %vm6044 = vweird.f32 %v6009
  %vm6045 = vweird.f32 %v6039
  %vm6046 = vmor %vm6044, %vm6045
  %v6047 = vsel %vm6046, %v6039, %v6043
  %v6048 = vand.u32 2147483647, %v6009
  %vm6049 = vcmp.eq.f32.partialorder %v6048, 8.507059e+37
  %v6050 = vand.u32 %v6009, 2147483648
  %v6051 = vor.u32 1.1754944e-38, %v6050
  %v6052 = vsel %vm6049, %v6051, %v6047
  %v6053 = vmul.f32 1.0, %v6052
  %v6054 = vrcp.pop %v6010
  %v6055 = vmul.f32 %v6010, %v6054
  %v6056 = vsub.f32 1.0, %v6055
  %v6057 = vmul.f32 %v6054, %v6056
  %v6058 = vadd.f32 %v6054, %v6057
  %vm6059 = vweird.f32 %v6010
  %vm6060 = vweird.f32 %v6054
  %vm6061 = vmor %vm6059, %vm6060
  %v6062 = vsel %vm6061, %v6054, %v6058
  %v6063 = vand.u32 2147483647, %v6010
  %vm6064 = vcmp.eq.f32.partialorder %v6063, 8.507059e+37
  %v6065 = vand.u32 %v6010, 2147483648
  %v6066 = vor.u32 1.1754944e-38, %v6065
  %v6067 = vsel %vm6064, %v6066, %v6062
  %v6068 = vmul.f32 1.0, %v6067
  %v6069 = vrcp.pop %v6011
  %v6070 = vmul.f32 %v6011, %v6069
  %v6071 = vsub.f32 1.0, %v6070
  %v6072 = vmul.f32 %v6069, %v6071
  %v6073 = vadd.f32 %v6069, %v6072
  %vm6074 = vweird.f32 %v6011
  %vm6075 = vweird.f32 %v6069
  %vm6076 = vmor %vm6074, %vm6075
  %v6077 = vsel %vm6076, %v6069, %v6073
  %v6078 = vand.u32 2147483647, %v6011
  %vm6079 = vcmp.eq.f32.partialorder %v6078, 8.507059e+37
  %v6080 = vand.u32 %v6011, 2147483648
  %v6081 = vor.u32 1.1754944e-38, %v6080
  %v6082 = vsel %vm6079, %v6081, %v6077
  %v6083 = vmul.f32 1.0, %v6082
  %v6084 = vrcp.pop %v6012
  %v6085 = vmul.f32 %v6012, %v6084
  %v6086 = vsub.f32 1.0, %v6085
  %v6087 = vmul.f32 %v6084, %v6086
  %v6088 = vadd.f32 %v6084, %v6087
  %vm6089 = vweird.f32 %v6012
  %vm6090 = vweird.f32 %v6084
  %vm6091 = vmor %vm6089, %vm6090
  %v6092 = vsel %vm6091, %v6084, %v6088
  %v6093 = vand.u32 2147483647, %v6012
  %vm6094 = vcmp.eq.f32.partialorder %v6093, 8.507059e+37
  %v6095 = vand.u32 %v6012, 2147483648
  %v6096 = vor.u32 1.1754944e-38, %v6095
  %v6097 = vsel %vm6094, %v6096, %v6092
  %v6098 = vmul.f32 1.0, %v6097
  %v6099 = vrcp.pop %v6013
  %v6100 = vmul.f32 %v6013, %v6099
  %v6101 = vsub.f32 1.0, %v6100
  %v6102 = vmul.f32 %v6099, %v6101
  %v6103 = vadd.f32 %v6099, %v6102
  %vm6104 = vweird.f32 %v6013
  %vm6105 = vweird.f32 %v6099
  %vm6106 = vmor %vm6104, %vm6105
  %v6107 = vsel %vm6106, %v6099, %v6103
  %v6108 = vand.u32 2147483647, %v6013
  %vm6109 = vcmp.eq.f32.partialorder %v6108, 8.507059e+37
  %v6110 = vand.u32 %v6013, 2147483648
  %v6111 = vor.u32 1.1754944e-38, %v6110
  %v6112 = vsel %vm6109, %v6111, %v6107
  %v6113 = vmul.f32 1.0, %v6112
  %v6114 = vrcp.pop %v6014
  %v6115 = vmul.f32 %v6014, %v6114
  %v6116 = vsub.f32 1.0, %v6115
  %v6117 = vmul.f32 %v6114, %v6116
  %v6118 = vadd.f32 %v6114, %v6117
  %vm6119 = vweird.f32 %v6014
  %vm6120 = vweird.f32 %v6114
  %vm6121 = vmor %vm6119, %vm6120
  %v6122 = vsel %vm6121, %v6114, %v6118
  %v6123 = vand.u32 2147483647, %v6014
  %vm6124 = vcmp.eq.f32.partialorder %v6123, 8.507059e+37
  %v6125 = vand.u32 %v6014, 2147483648
  %v6126 = vor.u32 1.1754944e-38, %v6125
  %v6127 = vsel %vm6124, %v6126, %v6122
  %v6128 = vmul.f32 1.0, %v6127
  %v6129 = vrcp.pop %v6015
  %v6130 = vmul.f32 %v6015, %v6129
  %v6131 = vsub.f32 1.0, %v6130
  %v6132 = vmul.f32 %v6129, %v6131
  %v6133 = vadd.f32 %v6129, %v6132
  %vm6134 = vweird.f32 %v6015
  %vm6135 = vweird.f32 %v6129
  %vm6136 = vmor %vm6134, %vm6135
  %v6137 = vsel %vm6136, %v6129, %v6133
  %v6138 = vand.u32 2147483647, %v6015
  %vm6139 = vcmp.eq.f32.partialorder %v6138, 8.507059e+37
  %v6140 = vand.u32 %v6015, 2147483648
  %v6141 = vor.u32 1.1754944e-38, %v6140
  %v6142 = vsel %vm6139, %v6141, %v6137
  %v6143 = vmul.f32 1.0, %v6142
  %v6144 = vrcp.pop %v6016
  %v6145 = vmul.f32 %v6016, %v6144
  %v6146 = vsub.f32 1.0, %v6145
  %v6147 = vmul.f32 %v6144, %v6146
  %v6148 = vadd.f32 %v6144, %v6147
  %vm6149 = vweird.f32 %v6016
  %vm6150 = vweird.f32 %v6144
  %vm6151 = vmor %vm6149, %vm6150
  %v6152 = vsel %vm6151, %v6144, %v6148
  %v6153 = vand.u32 2147483647, %v6016
  %vm6154 = vcmp.eq.f32.partialorder %v6153, 8.507059e+37
  %v6155 = vand.u32 %v6016, 2147483648
  %v6156 = vor.u32 1.1754944e-38, %v6155
  %v6157 = vsel %vm6154, %v6156, %v6152
  %v6158 = vmul.f32 1.0, %v6157
  %v6159 = vrcp.pop %v6017
  %v6160 = vmul.f32 %v6017, %v6159
  %v6161 = vsub.f32 1.0, %v6160
  %v6162 = vmul.f32 %v6159, %v6161
  %v6163 = vadd.f32 %v6159, %v6162
  %vm6164 = vweird.f32 %v6017
  %vm6165 = vweird.f32 %v6159
  %vm6166 = vmor %vm6164, %vm6165
  %v6167 = vsel %vm6166, %v6159, %v6163
  %v6168 = vand.u32 2147483647, %v6017
  %vm6169 = vcmp.eq.f32.partialorder %v6168, 8.507059e+37
  %v6170 = vand.u32 %v6017, 2147483648
  %v6171 = vor.u32 1.1754944e-38, %v6170
  %v6172 = vsel %vm6169, %v6171, %v6167
  %v6173 = vmul.f32 1.0, %v6172
  %v6174 = vrcp.pop %v6018
  %v6175 = vmul.f32 %v6018, %v6174
  %v6176 = vsub.f32 1.0, %v6175
  %v6177 = vmul.f32 %v6174, %v6176
  %v6178 = vadd.f32 %v6174, %v6177
  %vm6179 = vweird.f32 %v6018
  %vm6180 = vweird.f32 %v6174
  %vm6181 = vmor %vm6179, %vm6180
  %v6182 = vsel %vm6181, %v6174, %v6178
  %v6183 = vand.u32 2147483647, %v6018
  %vm6184 = vcmp.eq.f32.partialorder %v6183, 8.507059e+37
  %v6185 = vand.u32 %v6018, 2147483648
  %v6186 = vor.u32 1.1754944e-38, %v6185
  %v6187 = vsel %vm6184, %v6186, %v6182
  %v6188 = vmul.f32 1.0, %v6187
  %v6189 = vrcp.pop %v6019
  %v6190 = vmul.f32 %v6019, %v6189
  %v6191 = vsub.f32 1.0, %v6190
  %v6192 = vmul.f32 %v6189, %v6191
  %v6193 = vadd.f32 %v6189, %v6192
  %vm6194 = vweird.f32 %v6019
  %vm6195 = vweird.f32 %v6189
  %vm6196 = vmor %vm6194, %vm6195
  %v6197 = vsel %vm6196, %v6189, %v6193
  %v6198 = vand.u32 2147483647, %v6019
  %vm6199 = vcmp.eq.f32.partialorder %v6198, 8.507059e+37
  %v6200 = vand.u32 %v6019, 2147483648
  %v6201 = vor.u32 1.1754944e-38, %v6200
  %v6202 = vsel %vm6199, %v6201, %v6197
  %v6203 = vmul.f32 1.0, %v6202
  %v6204 = vrcp.pop %v6020
  %v6205 = vmul.f32 %v6020, %v6204
  %v6206 = vsub.f32 1.0, %v6205
  %v6207 = vmul.f32 %v6204, %v6206
  %v6208 = vadd.f32 %v6204, %v6207
  %vm6209 = vweird.f32 %v6020
  %vm6210 = vweird.f32 %v6204
  %vm6211 = vmor %vm6209, %vm6210
  %v6212 = vsel %vm6211, %v6204, %v6208
  %v6213 = vand.u32 2147483647, %v6020
  %vm6214 = vcmp.eq.f32.partialorder %v6213, 8.507059e+37
  %v6215 = vand.u32 %v6020, 2147483648
  %v6216 = vor.u32 1.1754944e-38, %v6215
  %v6217 = vsel %vm6214, %v6216, %v6212
  %v6218 = vmul.f32 1.0, %v6217
  %v6219 = vrcp.pop %v6021
  %v6220 = vmul.f32 %v6021, %v6219
  %v6221 = vsub.f32 1.0, %v6220
  %v6222 = vmul.f32 %v6219, %v6221
  %v6223 = vadd.f32 %v6219, %v6222
  %vm6224 = vweird.f32 %v6021
  %vm6225 = vweird.f32 %v6219
  %vm6226 = vmor %vm6224, %vm6225
  %v6227 = vsel %vm6226, %v6219, %v6223
  %v6228 = vand.u32 2147483647, %v6021
  %vm6229 = vcmp.eq.f32.partialorder %v6228, 8.507059e+37
  %v6230 = vand.u32 %v6021, 2147483648
  %v6231 = vor.u32 1.1754944e-38, %v6230
  %v6232 = vsel %vm6229, %v6231, %v6227
  %v6233 = vmul.f32 1.0, %v6232
  %v6234 = vrcp.pop %v6022
  %v6235 = vmul.f32 %v6022, %v6234
  %v6236 = vsub.f32 1.0, %v6235
  %v6237 = vmul.f32 %v6234, %v6236
  %v6238 = vadd.f32 %v6234, %v6237
  %vm6239 = vweird.f32 %v6022
  %vm6240 = vweird.f32 %v6234
  %vm6241 = vmor %vm6239, %vm6240
  %v6242 = vsel %vm6241, %v6234, %v6238
  %v6243 = vand.u32 2147483647, %v6022
  %vm6244 = vcmp.eq.f32.partialorder %v6243, 8.507059e+37
  %v6245 = vand.u32 %v6022, 2147483648
  %v6246 = vor.u32 1.1754944e-38, %v6245
  %v6247 = vsel %vm6244, %v6246, %v6242
  %v6248 = vmul.f32 1.0, %v6247
  %v6249 = vrcp.pop %v6023
  %v6250 = vmul.f32 %v6023, %v6249
  %v6251 = vsub.f32 1.0, %v6250
  %v6252 = vmul.f32 %v6249, %v6251
  %v6253 = vadd.f32 %v6249, %v6252
  %vm6254 = vweird.f32 %v6023
  %vm6255 = vweird.f32 %v6249
  %vm6256 = vmor %vm6254, %vm6255
  %v6257 = vsel %vm6256, %v6249, %v6253
  %v6258 = vand.u32 2147483647, %v6023
  %vm6259 = vcmp.eq.f32.partialorder %v6258, 8.507059e+37
  %v6260 = vand.u32 %v6023, 2147483648
  %v6261 = vor.u32 1.1754944e-38, %v6260
  %v6262 = vsel %vm6259, %v6261, %v6257
  %v6263 = vmul.f32 1.0, %v6262
  %v6264 = vsel %vm5927, %v5944, %v6038
  %v6265 = vsel %vm5927, %v5945, %v6053
  %v6266 = vsel %vm5927, %v5946, %v6068
  %v6267 = vsel %vm5927, %v5947, %v6083
  %v6268 = vsel %vm5927, %v5948, %v6098
  %v6269 = vsel %vm5927, %v5949, %v6113
  %v6270 = vsel %vm5927, %v5950, %v6128
  %v6271 = vsel %vm5927, %v5951, %v6143
  %v6272 = vsel %vm5927, %v5952, %v6158
  %v6273 = vsel %vm5927, %v5953, %v6173
  %v6274 = vsel %vm5927, %v5954, %v6188
  %v6275 = vsel %vm5927, %v5955, %v6203
  %v6276 = vsel %vm5927, %v5956, %v6218
  %v6277 = vsel %vm5927, %v5957, %v6233
  %v6278 = vsel %vm5927, %v5958, %v6248
  %v6279 = vsel %vm5927, %v5959, %v6263
  %6280 = vst [vmem:[%s8] sm:$0xff] %v6264
  %6281 = vst [vmem:[%s8 + $0x8] sm:$0xff] %v6265
  %6282 = vst [vmem:[%s8 + $0x10] sm:$0xff] %v6266
  %6283 = vst [vmem:[%s8 + $0x18] sm:$0xff] %v6267
  %6284 = vst [vmem:[%s8 + $0x20] sm:$0xff] %v6268
  %6285 = vst [vmem:[%s8 + $0x28] sm:$0xff] %v6269
  %6286 = vst [vmem:[%s8 + $0x30] sm:$0xff] %v6270
  %6287 = vst [vmem:[%s8 + $0x38] sm:$0xff] %v6271
  %6288 = vst [vmem:[%s8 + $0x40] sm:$0xff] %v6272
  %6289 = vst [vmem:[%s8 + $0x48] sm:$0xff] %v6273
  %6290 = vst [vmem:[%s8 + $0x50] sm:$0xff] %v6274
  %6291 = vst [vmem:[%s8 + $0x58] sm:$0xff] %v6275
  %6292 = vst [vmem:[%s8 + $0x60] sm:$0xff] %v6276
  %6293 = vst [vmem:[%s8 + $0x68] sm:$0xff] %v6277
  %6294 = vst [vmem:[%s8 + $0x70] sm:$0xff] %v6278
  %6295 = vst [vmem:[%s8 + $0x78] sm:$0xff] %v6279
  // Predicated region
  $region34: #{implicit_field_forward.3} parent=0 // pred_check
    _
  $region35: #{implicit_field_forward.3} parent=0 // pred_check_branch
    %6297 = sbr.rel (0) target = $region37
  $region36: #{implicit_field_forward.3} parent=0 // pred_region
    _
  $region37: #{implicit_field_forward.3} parent=0 // pred_fallthru
    _
  // Predicated region
  $region38: #{implicit_field_forward.3} parent=0 // pred_check
    _
  $region39: #{implicit_field_forward.3} parent=0 // pred_check_branch
    %6299 = sbr.rel (0) target = $region41
  $region40: #{implicit_field_forward.3} parent=0 // pred_region
    _
  $region41: #{implicit_field_forward.3} parent=0 // pred_fallthru
    _

</llo_original>
